<compile_context>
chip_gen: v7x
topology: tpu7x:2x2x1
jax: 0.10.0
libtpu: 0.0.40
codegen_flags: <defaults>
</compile_context>

<pallas_src>
import functools

import jax
import jax.numpy as jnp
from jax import lax
from jax.experimental import pallas as pl
from jax.experimental.pallas import tpu as pltpu

LANE = 128


def _resnet_block_kernel(x_ref, w1_ref, s1_ref, b1_ref, w2_ref, s2_ref, b2_ref,
                         out_ref,
                         xtile_ref, ypad_ref, acc1_ref, acc2_ref,
                         *, H, W, tile_h, n_tiles):
    """Fused: reflect-pad -> conv3x3 -> BN -> ReLU -> reflect-pad -> conv3x3 -> BN -> +x."""
    Cp = x_ref.shape[-1]
    tH = tile_h
    t = pl.program_id(1)
    r0 = t * tH                      # first output row of this tile

    # ---------------- Stage 0: build the reflect-padded x tile in VMEM ----------------
    # xtile row i  <->  x row (r0 - 2 + i);  xtile col j (1..W) <-> x col (j - 1).
    xtile_ref[2:tH + 2, 1:W + 1, :] = x_ref[0, pl.ds(r0, tH), :, :]

    @pl.when(t > 0)
    def _():  # interior top halo
        xtile_ref[0:2, 1:W + 1, :] = x_ref[0, pl.ds(r0 - 2, 2), :, :]

    @pl.when(t == 0)
    def _():  # image top boundary: x[-1] reflects to x[1]; x[-2] row is a don't-care
        top_dc = min(2, H - 1)
        xtile_ref[1:2, 1:W + 1, :] = x_ref[0, 1:2, :, :]
        xtile_ref[0:1, 1:W + 1, :] = x_ref[0, top_dc:top_dc + 1, :, :]

    @pl.when(t < n_tiles - 1)
    def _():  # interior bottom halo
        xtile_ref[tH + 2:tH + 4, 1:W + 1, :] = x_ref[0, pl.ds(r0 + tH, 2), :, :]

    @pl.when(t == n_tiles - 1)
    def _():  # image bottom boundary: x[H] reflects to x[H-2]; x[H+1] row is a don't-care
        bot_dc = max(H - 3, 0)
        xtile_ref[tH + 2:tH + 3, 1:W + 1, :] = x_ref[0, H - 2:H - 1, :, :]
        xtile_ref[tH + 3:tH + 4, 1:W + 1, :] = x_ref[0, bot_dc:bot_dc + 1, :, :]

    # reflect-pad columns:  padded col 0 := x col 1,  padded col W+1 := x col W-2
    xtile_ref[:, 0:1, :] = xtile_ref[:, 2:3, :]
    xtile_ref[:, W + 1:W + 2, :] = xtile_ref[:, W - 1:W, :]

    # ---------------- Stage 1: conv1 (9 shifted bf16 matmuls) + BN1 + ReLU ----------------
    # Produces the intermediate y for rows [r0-1, r0+tH+1) (i.e. with the halo conv2 needs).
    M1 = (tH + 2) * W
    for idx in range(9):
        ky, kx = idx // 3, idx % 3
        patch = xtile_ref[ky:ky + tH + 2, kx:kx + W, :].reshape(M1, Cp).astype(jnp.bfloat16)
        tap = jnp.dot(patch, w1_ref[idx], preferred_element_type=jnp.float32)
        if idx == 0:
            acc1_ref[...] = tap
        else:
            acc1_ref[...] += tap
    y1 = jnp.maximum(acc1_ref[...] * s1_ref[...] + b1_ref[...], 0.0)
    ypad_ref[:, 1:W + 1, :] = y1.reshape(tH + 2, W, Cp)

    # y's own reflection padding (conv2 pads y, not x) -- must reflect *computed* y rows.
    @pl.when(t == 0)
    def _():  # y[-1] := y[1]
        ypad_ref[0:1, 1:W + 1, :] = ypad_ref[2:3, 1:W + 1, :]

    @pl.when(t == n_tiles - 1)
    def _():  # y[H] := y[H-2]
        ypad_ref[tH + 1:tH + 2, 1:W + 1, :] = ypad_ref[tH - 1:tH, 1:W + 1, :]

    ypad_ref[:, 0:1, :] = ypad_ref[:, 2:3, :]
    ypad_ref[:, W + 1:W + 2, :] = ypad_ref[:, W - 1:W, :]

    # ---------------- Stage 2: conv2 + BN2 + residual add ----------------
    M2 = tH * W
    for idx in range(9):
        ky, kx = idx // 3, idx % 3
        patch = ypad_ref[ky:ky + tH, kx:kx + W, :].reshape(M2, Cp).astype(jnp.bfloat16)
        tap = jnp.dot(patch, w2_ref[idx], preferred_element_type=jnp.float32)
        if idx == 0:
            acc2_ref[...] = tap
        else:
            acc2_ref[...] += tap
    y2 = acc2_ref[...] * s2_ref[...] + b2_ref[...]
    res = x_ref[0, pl.ds(r0, tH), :, :].astype(jnp.float32).reshape(M2, Cp)
    out_ref[...] = (y2 + res).reshape(1, tH, W, Cp).astype(out_ref.dtype)


def _fused_block_call(x, w1, s1, b1, w2, s2, b2, tile_h):
    N, H, W, Cp = x.shape
    n_tiles = H // tile_h
    kernel = functools.partial(_resnet_block_kernel, H=H, W=W, tile_h=tile_h, n_tiles=n_tiles)
    return pl.pallas_call(
        kernel,
        out_shape=jax.ShapeDtypeStruct((N, H, W, Cp), x.dtype),
        grid_spec=pltpu.PrefetchScalarGridSpec(
            num_scalar_prefetch=0,
            grid=(N, n_tiles),
            in_specs=[
                # Full image per batch element; block index depends only on n, so the
                # DMA is issued once per image and reused across H-tiles.
                pl.BlockSpec((1, H, W, Cp), lambda n, t: (n, 0, 0, 0)),
                pl.BlockSpec((9, Cp, Cp), lambda n, t: (0, 0, 0)),
                pl.BlockSpec((1, Cp), lambda n, t: (0, 0)),
                pl.BlockSpec((1, Cp), lambda n, t: (0, 0)),
                pl.BlockSpec((9, Cp, Cp), lambda n, t: (0, 0, 0)),
                pl.BlockSpec((1, Cp), lambda n, t: (0, 0)),
                pl.BlockSpec((1, Cp), lambda n, t: (0, 0)),
            ],
            out_specs=pl.BlockSpec((1, tile_h, W, Cp), lambda n, t: (n, t, 0, 0)),
            scratch_shapes=[
                pltpu.VMEM((tile_h + 4, W + 2, Cp), jnp.float32),   # reflect-padded x tile
                pltpu.VMEM((tile_h + 2, W + 2, Cp), jnp.float32),   # reflect-padded intermediate y
                pltpu.VMEM(((tile_h + 2) * W, Cp), jnp.float32),    # conv1 accumulator
                pltpu.VMEM((tile_h * W, Cp), jnp.float32),          # conv2 accumulator
            ],
        ),
        compiler_params=pltpu.CompilerParams(
            dimension_semantics=("parallel", "parallel"),
            vmem_limit_bytes=48 * 1024 * 1024,
        ),
    )(x, w1, s1, b1, w2, s2, b2)


def _choose_tile_h(H, W, Cp, budget_bytes=6 << 20):
    """Largest divisor of H whose per-step scratch + output block fits the budget."""
    def est(tH):
        f32 = 4
        return ((tH + 4) * (W + 2) * Cp * f32          # xtile scratch
                + (tH + 2) * (W + 2) * Cp * f32        # ypad scratch
                + ((tH + 2) * W + tH * W) * Cp * f32   # accumulators
                + 2 * tH * W * Cp * f32)               # double-buffered output block
    for tH in range(H, 1, -1):
        if H % tH == 0 and est(tH) <= budget_bytes:
            return tH
    return H  # TODO(synk): ragged H tiling (H prime / huge) would need masked edge tiles


def _fold_bn(gamma, beta, mean, var, eps=1e-5):
    scale = gamma / jnp.sqrt(var + eps)
    shift = beta - mean * scale
    return scale, shift


def _pad_last(v, Cp):
    c = v.shape[-1]
    if c == Cp:
        return v
    return jnp.pad(v, [(0, 0)] * (v.ndim - 1) + [(0, Cp - c)])


def _w_to_taps(w_pt, Cp):
    # (Cout, Cin, 3, 3) -> (3, 3, Cin, Cout) -> pad channels -> (9, Cp, Cp) bf16
    w = jnp.transpose(w_pt, (2, 3, 1, 0))
    cin, cout = w.shape[2], w.shape[3]
    w = jnp.pad(w, ((0, 0), (0, 0), (0, Cp - cin), (0, Cp - cout)))
    return w.reshape(9, Cp, Cp).astype(jnp.bfloat16)


def init_params(key, dim):
    """Deterministic synthetic parameters matching ResnetBlock(dim, bias=False)."""
    ks = jax.random.split(key, 10)
    w1 = jax.random.normal(ks[0], (dim, dim, 3, 3), jnp.float32) * 0.1
    w2 = jax.random.normal(ks[1], (dim, dim, 3, 3), jnp.float32) * 0.1
    bn1 = dict(gamma=1.0 + 0.1 * jax.random.normal(ks[2], (dim,), jnp.float32),
               beta=0.1 * jax.random.normal(ks[3], (dim,), jnp.float32),
               mean=0.1 * jax.random.normal(ks[4], (dim,), jnp.float32),
               var=0.5 + jax.random.uniform(ks[5], (dim,), jnp.float32))
    bn2 = dict(gamma=1.0 + 0.1 * jax.random.normal(ks[6], (dim,), jnp.float32),
               beta=0.1 * jax.random.normal(ks[7], (dim,), jnp.float32),
               mean=0.1 * jax.random.normal(ks[8], (dim,), jnp.float32),
               var=0.5 + jax.random.uniform(ks[9], (dim,), jnp.float32))
    return dict(w1=w1, w2=w2, bn1=bn1, bn2=bn2)


@functools.partial(jax.jit, static_argnames=("tile_h",))
def resnet_block_forward(x_nchw, params, tile_h=None):
    """Forward pass of ResnetBlock, NCHW in / NCHW out (single fused Pallas kernel)."""
    x = jnp.transpose(x_nchw, (0, 2, 3, 1))            # -> NHWC
    N, H, W, C = x.shape
    Cp = max(LANE, ((C + LANE - 1) // LANE) * LANE)     # lane-dense channel count
    xp = _pad_last(x, Cp)                               # zero-padded channels

    w1 = _w_to_taps(params["w1"], Cp)
    w2 = _w_to_taps(params["w2"], Cp)
    s1, b1 = _fold_bn(**params["bn1"])
    s2, b2 = _fold_bn(**params["bn2"])
    # zero scale/shift in padded channels keeps the intermediate & output pads at 0
    s1 = _pad_last(s1, Cp).reshape(1, Cp).astype(jnp.float32)
    b1 = _pad_last(b1, Cp).reshape(1, Cp).astype(jnp.float32)
    s2 = _pad_last(s2, Cp).reshape(1, Cp).astype(jnp.float32)
    b2 = _pad_last(b2, Cp).reshape(1, Cp).astype(jnp.float32)

    if tile_h is None:
        tile_h = _choose_tile_h(H, W, Cp)
    if H % tile_h != 0 or tile_h < 2:
        raise ValueError(f"tile_h={tile_h} must divide H={H} and be >= 2")

    out = _fused_block_call(xp, w1, s1, b1, w2, s2, b2, tile_h)
    out = out[..., :C]                                  # drop channel padding
    return jnp.transpose(out, (0, 3, 1, 2))             # -> NCHW


def _reference_forward(x_nchw, params):
    """Pure-JAX reference (lax.conv, f32) for a correctness check."""
    def conv(x, w):
        return lax.conv_general_dilated(
            x, w, window_strides=(1, 1), padding="VALID",
            dimension_numbers=("NCHW", "OIHW", "NCHW"))

    def bn(x, p, eps=1e-5):
        s = p["gamma"] / jnp.sqrt(p["var"] + eps)
        return (x - p["mean"][None, :, None, None]) * s[None, :, None, None] \
               + p["beta"][None, :, None, None]

    pad = lambda z: jnp.pad(z, ((0, 0), (0, 0), (1, 1), (1, 1)), mode="reflect")
    h = jnp.maximum(bn(conv(pad(x_nchw), params["w1"]), params["bn1"]), 0.0)
    h = bn(conv(pad(h), params["w2"]), params["bn2"])
    return x_nchw + h


if __name__ == "__main__":
    key = jax.random.PRNGKey(0)
    k_x, k_p = jax.random.split(key)

    N, C, H, W = 2, 4, 16, 16
    x = jax.random.normal(k_x, (N, C, H, W), jnp.float32)
    params = init_params(k_p, C)

    # tile_h=8 -> 2 H-tiles per image: exercises the in-kernel halo/reflection path.
    out = resnet_block_forward(x, params, tile_h=8)
    out = jax.block_until_ready(out)

    ref = _reference_forward(x, params)
    assert out.shape == (N, C, H, W)
    max_err = jnp.max(jnp.abs(out - ref))
    # bf16 MXU inputs with f32 accumulation -> tolerance looser than pure-f32.
    assert jnp.allclose(out, ref, atol=5e-2, rtol=5e-2), f"mismatch vs reference (max abs err {max_err})"

    print("KERNEL_OK")
</pallas_src>

<mosaic_0001>
module attributes {stable_mosaic.version = 11 : i64} {
  func.func @_resnet_block_kernel(%arg0: i32, %arg1: i32, %arg2: memref<1x16x16x128xf32, #tpu.memory_space<vmem>>, %arg3: memref<9x128x128xbf16, #tpu.memory_space<vmem>>, %arg4: memref<1x128xf32, #tpu.memory_space<vmem>>, %arg5: memref<1x128xf32, #tpu.memory_space<vmem>>, %arg6: memref<9x128x128xbf16, #tpu.memory_space<vmem>>, %arg7: memref<1x128xf32, #tpu.memory_space<vmem>>, %arg8: memref<1x128xf32, #tpu.memory_space<vmem>>, %arg9: memref<1x8x16x128xf32, #tpu.memory_space<vmem>>, %arg10: memref<12x18x128xf32, #tpu.memory_space<vmem>>, %arg11: memref<10x18x128xf32, #tpu.memory_space<vmem>>, %arg12: memref<160x128xf32, #tpu.memory_space<vmem>>, %arg13: memref<128x128xf32, #tpu.memory_space<vmem>>) attributes {dimension_semantics = [#tpu.dimension_semantics<parallel>, #tpu.dimension_semantics<parallel>], iteration_bounds = array<i64: 2, 2>, scalar_prefetch = 0 : i64, scratch_operands = 4 : i64, tpu.core_type = #tpu.core_type<tc>, window_params = [{transform_indices = @transform_0, window_bounds = array<i64: 1, 16, 16, 128>}, {pipeline_mode = #tpu.pipeline_mode<synchronous>, transform_indices = @transform_1, window_bounds = array<i64: 9, 128, 128>}, {pipeline_mode = #tpu.pipeline_mode<synchronous>, transform_indices = @transform_2, window_bounds = array<i64: 1, 128>}, {pipeline_mode = #tpu.pipeline_mode<synchronous>, transform_indices = @transform_3, window_bounds = array<i64: 1, 128>}, {pipeline_mode = #tpu.pipeline_mode<synchronous>, transform_indices = @transform_4, window_bounds = array<i64: 9, 128, 128>}, {pipeline_mode = #tpu.pipeline_mode<synchronous>, transform_indices = @transform_5, window_bounds = array<i64: 1, 128>}, {pipeline_mode = #tpu.pipeline_mode<synchronous>, transform_indices = @transform_6, window_bounds = array<i64: 1, 128>}, {transform_indices = @transform_7, window_bounds = array<i64: 1, 8, 16, 128>}]} {
    %c8_i32 = arith.constant 8 : i32
    %0 = arith.muli %arg1, %c8_i32 : i32
    %c0 = arith.constant 0 : index
    %1 = arith.index_cast %0 : i32 to index
    %c0_0 = arith.constant 0 : index
    %c0_1 = arith.constant 0 : index
    %2 = vector.load %arg2[%c0, %1, %c0_0, %c0_1] : memref<1x16x16x128xf32, #tpu.memory_space<vmem>>, vector<1x8x16x128xf32>
    %3 = vector.shape_cast %2 : vector<1x8x16x128xf32> to vector<8x16x128xf32>
    %c2 = arith.constant 2 : index
    %c1 = arith.constant 1 : index
    %c0_2 = arith.constant 0 : index
    %4 = vector.load %arg10[%c2, %c1, %c0_2] : memref<12x18x128xf32, #tpu.memory_space<vmem>>, vector<8x16x128xf32>
    tpu.vector_store %arg10[%c2, %c1, %c0_2], %3 {strides = array<i32>} : memref<12x18x128xf32, #tpu.memory_space<vmem>>, vector<8x16x128xf32>,
    %c0_i32 = arith.constant 0 : i32
    %5 = arith.cmpi sgt, %arg1, %c0_i32 : i32
    %6 = arith.extui %5 : i1 to i32
    %c0_i32_3 = arith.constant 0 : i32
    %7 = arith.cmpi ne, %6, %c0_i32_3 : i32
    scf.if %7 {
      %c2_i32 = arith.constant 2 : i32
      %214 = arith.subi %0, %c2_i32 : i32
      %c0_245 = arith.constant 0 : index
      %215 = arith.index_cast %214 : i32 to index
      %c0_246 = arith.constant 0 : index
      %c0_247 = arith.constant 0 : index
      %216 = vector.load %arg2[%c0_245, %215, %c0_246, %c0_247] : memref<1x16x16x128xf32, #tpu.memory_space<vmem>>, vector<1x2x16x128xf32>
      %217 = vector.shape_cast %216 : vector<1x2x16x128xf32> to vector<2x16x128xf32>
      %c0_248 = arith.constant 0 : index
      %c1_249 = arith.constant 1 : index
      %c0_250 = arith.constant 0 : index
      %218 = vector.load %arg10[%c0_248, %c1_249, %c0_250] : memref<12x18x128xf32, #tpu.memory_space<vmem>>, vector<2x16x128xf32>
      tpu.vector_store %arg10[%c0_248, %c1_249, %c0_250], %217 {strides = array<i32>} : memref<12x18x128xf32, #tpu.memory_space<vmem>>, vector<2x16x128xf32>,
    } else {
    }
    %c0_i32_4 = arith.constant 0 : i32
    %8 = arith.cmpi eq, %arg1, %c0_i32_4 : i32
    %9 = arith.extui %8 : i1 to i32
    %c0_i32_5 = arith.constant 0 : i32
    %10 = arith.cmpi ne, %9, %c0_i32_5 : i32
    scf.if %10 {
      %c0_245 = arith.constant 0 : index
      %c1_246 = arith.constant 1 : index
      %c0_247 = arith.constant 0 : index
      %c0_248 = arith.constant 0 : index
      %214 = vector.load %arg2[%c0_245, %c1_246, %c0_247, %c0_248] : memref<1x16x16x128xf32, #tpu.memory_space<vmem>>, vector<1x1x16x128xf32>
      %215 = vector.shape_cast %214 : vector<1x1x16x128xf32> to vector<1x16x128xf32>
      %c1_249 = arith.constant 1 : index
      %c1_250 = arith.constant 1 : index
      %c0_251 = arith.constant 0 : index
      %216 = vector.load %arg10[%c1_249, %c1_250, %c0_251] : memref<12x18x128xf32, #tpu.memory_space<vmem>>, vector<1x16x128xf32>
      tpu.vector_store %arg10[%c1_249, %c1_250, %c0_251], %215 {strides = array<i32>} : memref<12x18x128xf32, #tpu.memory_space<vmem>>, vector<1x16x128xf32>,
      %c0_252 = arith.constant 0 : index
      %c2_253 = arith.constant 2 : index
      %c0_254 = arith.constant 0 : index
      %c0_255 = arith.constant 0 : index
      %217 = vector.load %arg2[%c0_252, %c2_253, %c0_254, %c0_255] : memref<1x16x16x128xf32, #tpu.memory_space<vmem>>, vector<1x1x16x128xf32>
      %218 = vector.shape_cast %217 : vector<1x1x16x128xf32> to vector<1x16x128xf32>
      %c0_256 = arith.constant 0 : index
      %c1_257 = arith.constant 1 : index
      %c0_258 = arith.constant 0 : index
      %219 = vector.load %arg10[%c0_256, %c1_257, %c0_258] : memref<12x18x128xf32, #tpu.memory_space<vmem>>, vector<1x16x128xf32>
      tpu.vector_store %arg10[%c0_256, %c1_257, %c0_258], %218 {strides = array<i32>} : memref<12x18x128xf32, #tpu.memory_space<vmem>>, vector<1x16x128xf32>,
    } else {
    }
    %c1_i32 = arith.constant 1 : i32
    %11 = arith.cmpi slt, %arg1, %c1_i32 : i32
    %12 = arith.extui %11 : i1 to i32
    %c0_i32_6 = arith.constant 0 : i32
    %13 = arith.cmpi ne, %12, %c0_i32_6 : i32
    scf.if %13 {
      %c8_i32_245 = arith.constant 8 : i32
      %214 = arith.addi %0, %c8_i32_245 : i32
      %c0_246 = arith.constant 0 : index
      %215 = arith.index_cast %214 : i32 to index
      %c0_247 = arith.constant 0 : index
      %c0_248 = arith.constant 0 : index
      %216 = vector.load %arg2[%c0_246, %215, %c0_247, %c0_248] : memref<1x16x16x128xf32, #tpu.memory_space<vmem>>, vector<1x2x16x128xf32>
      %217 = vector.shape_cast %216 : vector<1x2x16x128xf32> to vector<2x16x128xf32>
      %c10 = arith.constant 10 : index
      %c1_249 = arith.constant 1 : index
      %c0_250 = arith.constant 0 : index
      %218 = vector.load %arg10[%c10, %c1_249, %c0_250] : memref<12x18x128xf32, #tpu.memory_space<vmem>>, vector<2x16x128xf32>
      tpu.vector_store %arg10[%c10, %c1_249, %c0_250], %217 {strides = array<i32>} : memref<12x18x128xf32, #tpu.memory_space<vmem>>, vector<2x16x128xf32>,
    } else {
    }
    %c1_i32_7 = arith.constant 1 : i32
    %14 = arith.cmpi eq, %arg1, %c1_i32_7 : i32
    %15 = arith.extui %14 : i1 to i32
    %c0_i32_8 = arith.constant 0 : i32
    %16 = arith.cmpi ne, %15, %c0_i32_8 : i32
    scf.if %16 {
      %c0_245 = arith.constant 0 : index
      %c14 = arith.constant 14 : index
      %c0_246 = arith.constant 0 : index
      %c0_247 = arith.constant 0 : index
      %214 = vector.load %arg2[%c0_245, %c14, %c0_246, %c0_247] : memref<1x16x16x128xf32, #tpu.memory_space<vmem>>, vector<1x1x16x128xf32>
      %215 = vector.shape_cast %214 : vector<1x1x16x128xf32> to vector<1x16x128xf32>
      %c10 = arith.constant 10 : index
      %c1_248 = arith.constant 1 : index
      %c0_249 = arith.constant 0 : index
      %216 = vector.load %arg10[%c10, %c1_248, %c0_249] : memref<12x18x128xf32, #tpu.memory_space<vmem>>, vector<1x16x128xf32>
      tpu.vector_store %arg10[%c10, %c1_248, %c0_249], %215 {strides = array<i32>} : memref<12x18x128xf32, #tpu.memory_space<vmem>>, vector<1x16x128xf32>,
      %c0_250 = arith.constant 0 : index
      %c13 = arith.constant 13 : index
      %c0_251 = arith.constant 0 : index
      %c0_252 = arith.constant 0 : index
      %217 = vector.load %arg2[%c0_250, %c13, %c0_251, %c0_252] : memref<1x16x16x128xf32, #tpu.memory_space<vmem>>, vector<1x1x16x128xf32>
      %218 = vector.shape_cast %217 : vector<1x1x16x128xf32> to vector<1x16x128xf32>
      %c11 = arith.constant 11 : index
      %c1_253 = arith.constant 1 : index
      %c0_254 = arith.constant 0 : index
      %219 = vector.load %arg10[%c11, %c1_253, %c0_254] : memref<12x18x128xf32, #tpu.memory_space<vmem>>, vector<1x16x128xf32>
      tpu.vector_store %arg10[%c11, %c1_253, %c0_254], %218 {strides = array<i32>} : memref<12x18x128xf32, #tpu.memory_space<vmem>>, vector<1x16x128xf32>,
    } else {
    }
    %c0_9 = arith.constant 0 : index
    %c2_10 = arith.constant 2 : index
    %c0_11 = arith.constant 0 : index
    %17 = vector.load %arg10[%c0_9, %c2_10, %c0_11] : memref<12x18x128xf32, #tpu.memory_space<vmem>>, vector<12x1x128xf32>
    %c0_12 = arith.constant 0 : index
    %c0_13 = arith.constant 0 : index
    %c0_14 = arith.constant 0 : index
    %18 = vector.load %arg10[%c0_12, %c0_13, %c0_14] : memref<12x18x128xf32, #tpu.memory_space<vmem>>, vector<12x1x128xf32>
    tpu.vector_store %arg10[%c0_12, %c0_13, %c0_14], %17 {strides = array<i32>} : memref<12x18x128xf32, #tpu.memory_space<vmem>>, vector<12x1x128xf32>,
    %c0_15 = arith.constant 0 : index
    %c15 = arith.constant 15 : index
    %c0_16 = arith.constant 0 : index
    %19 = vector.load %arg10[%c0_15, %c15, %c0_16] : memref<12x18x128xf32, #tpu.memory_space<vmem>>, vector<12x1x128xf32>
    %c0_17 = arith.constant 0 : index
    %c17 = arith.constant 17 : index
    %c0_18 = arith.constant 0 : index
    %20 = vector.load %arg10[%c0_17, %c17, %c0_18] : memref<12x18x128xf32, #tpu.memory_space<vmem>>, vector<12x1x128xf32>
    tpu.vector_store %arg10[%c0_17, %c17, %c0_18], %19 {strides = array<i32>} : memref<12x18x128xf32, #tpu.memory_space<vmem>>, vector<12x1x128xf32>,
    %c0_19 = arith.constant 0 : index
    %c0_20 = arith.constant 0 : index
    %c0_21 = arith.constant 0 : index
    %21 = vector.load %arg10[%c0_19, %c0_20, %c0_21] : memref<12x18x128xf32, #tpu.memory_space<vmem>>, vector<10x16x128xf32>
    %22 = vector.shape_cast %21 : vector<10x16x128xf32> to vector<160x128xf32>
    %23 = arith.truncf %22 : vector<160x128xf32> to vector<160x128xbf16>
    %c0_22 = arith.constant 0 : index
    %c0_23 = arith.constant 0 : index
    %c0_24 = arith.constant 0 : index
    %24 = vector.load %arg3[%c0_22, %c0_23, %c0_24] : memref<9x128x128xbf16, #tpu.memory_space<vmem>>, vector<1x128x128xbf16>
    %25 = vector.shape_cast %24 : vector<1x128x128xbf16> to vector<128x128xbf16>
    %cst = arith.constant dense<0.000000e+00> : vector<160x128xf32>
    %26 = tpu.matmul %23, %25, %cst {dimension_numbers = #tpu.dot_dimension_numbers<[1], [0], [0], [1], [0, 0, 1, 1], [], []>} : vector<160x128xbf16>, vector<128x128xbf16>, vector<160x128xf32> -> vector<160x128xf32>
    %c0_25 = arith.constant 0 : index
    %c0_26 = arith.constant 0 : index
    %27 = vector.load %arg12[%c0_25, %c0_26] : memref<160x128xf32, #tpu.memory_space<vmem>>, vector<160x128xf32>
    tpu.vector_store %arg12[%c0_25, %c0_26], %26 {strides = array<i32>} : memref<160x128xf32, #tpu.memory_space<vmem>>, vector<160x128xf32>,
    %c0_27 = arith.constant 0 : index
    %c1_28 = arith.constant 1 : index
    %c0_29 = arith.constant 0 : index
    %28 = vector.load %arg10[%c0_27, %c1_28, %c0_29] : memref<12x18x128xf32, #tpu.memory_space<vmem>>, vector<10x16x128xf32>
    %29 = vector.shape_cast %28 : vector<10x16x128xf32> to vector<160x128xf32>
    %30 = arith.truncf %29 : vector<160x128xf32> to vector<160x128xbf16>
    %c1_30 = arith.constant 1 : index
    %c0_31 = arith.constant 0 : index
    %c0_32 = arith.constant 0 : index
    %31 = vector.load %arg3[%c1_30, %c0_31, %c0_32] : memref<9x128x128xbf16, #tpu.memory_space<vmem>>, vector<1x128x128xbf16>
    %32 = vector.shape_cast %31 : vector<1x128x128xbf16> to vector<128x128xbf16>
    %cst_33 = arith.constant dense<0.000000e+00> : vector<160x128xf32>
    %33 = tpu.matmul %30, %32, %cst_33 {dimension_numbers = #tpu.dot_dimension_numbers<[1], [0], [0], [1], [0, 0, 1, 1], [], []>} : vector<160x128xbf16>, vector<128x128xbf16>, vector<160x128xf32> -> vector<160x128xf32>
    %c0_34 = arith.constant 0 : index
    %c0_35 = arith.constant 0 : index
    %34 = vector.load %arg12[%c0_34, %c0_35] : memref<160x128xf32, #tpu.memory_space<vmem>>, vector<160x128xf32>
    %35 = arith.addf %34, %33 : vector<160x128xf32>
    %c0_36 = arith.constant 0 : index
    %c0_37 = arith.constant 0 : index
    %36 = vector.load %arg12[%c0_36, %c0_37] : memref<160x128xf32, #tpu.memory_space<vmem>>, vector<160x128xf32>
    tpu.vector_store %arg12[%c0_36, %c0_37], %35 {strides = array<i32>} : memref<160x128xf32, #tpu.memory_space<vmem>>, vector<160x128xf32>,
    %c0_38 = arith.constant 0 : index
    %c2_39 = arith.constant 2 : index
    %c0_40 = arith.constant 0 : index
    %37 = vector.load %arg10[%c0_38, %c2_39, %c0_40] : memref<12x18x128xf32, #tpu.memory_space<vmem>>, vector<10x16x128xf32>
    %38 = vector.shape_cast %37 : vector<10x16x128xf32> to vector<160x128xf32>
    %39 = arith.truncf %38 : vector<160x128xf32> to vector<160x128xbf16>
    %c2_41 = arith.constant 2 : index
    %c0_42 = arith.constant 0 : index
    %c0_43 = arith.constant 0 : index
    %40 = vector.load %arg3[%c2_41, %c0_42, %c0_43] : memref<9x128x128xbf16, #tpu.memory_space<vmem>>, vector<1x128x128xbf16>
    %41 = vector.shape_cast %40 : vector<1x128x128xbf16> to vector<128x128xbf16>
    %cst_44 = arith.constant dense<0.000000e+00> : vector<160x128xf32>
    %42 = tpu.matmul %39, %41, %cst_44 {dimension_numbers = #tpu.dot_dimension_numbers<[1], [0], [0], [1], [0, 0, 1, 1], [], []>} : vector<160x128xbf16>, vector<128x128xbf16>, vector<160x128xf32> -> vector<160x128xf32>
    %c0_45 = arith.constant 0 : index
    %c0_46 = arith.constant 0 : index
    %43 = vector.load %arg12[%c0_45, %c0_46] : memref<160x128xf32, #tpu.memory_space<vmem>>, vector<160x128xf32>
    %44 = arith.addf %43, %42 : vector<160x128xf32>
    %c0_47 = arith.constant 0 : index
    %c0_48 = arith.constant 0 : index
    %45 = vector.load %arg12[%c0_47, %c0_48] : memref<160x128xf32, #tpu.memory_space<vmem>>, vector<160x128xf32>
    tpu.vector_store %arg12[%c0_47, %c0_48], %44 {strides = array<i32>} : memref<160x128xf32, #tpu.memory_space<vmem>>, vector<160x128xf32>,
    %c1_49 = arith.constant 1 : index
    %c0_50 = arith.constant 0 : index
    %c0_51 = arith.constant 0 : index
    %46 = vector.load %arg10[%c1_49, %c0_50, %c0_51] : memref<12x18x128xf32, #tpu.memory_space<vmem>>, vector<10x16x128xf32>
    %47 = vector.shape_cast %46 : vector<10x16x128xf32> to vector<160x128xf32>
    %48 = arith.truncf %47 : vector<160x128xf32> to vector<160x128xbf16>
    %c3 = arith.constant 3 : index
    %c0_52 = arith.constant 0 : index
    %c0_53 = arith.constant 0 : index
    %49 = vector.load %arg3[%c3, %c0_52, %c0_53] : memref<9x128x128xbf16, #tpu.memory_space<vmem>>, vector<1x128x128xbf16>
    %50 = vector.shape_cast %49 : vector<1x128x128xbf16> to vector<128x128xbf16>
    %cst_54 = arith.constant dense<0.000000e+00> : vector<160x128xf32>
    %51 = tpu.matmul %48, %50, %cst_54 {dimension_numbers = #tpu.dot_dimension_numbers<[1], [0], [0], [1], [0, 0, 1, 1], [], []>} : vector<160x128xbf16>, vector<128x128xbf16>, vector<160x128xf32> -> vector<160x128xf32>
    %c0_55 = arith.constant 0 : index
    %c0_56 = arith.constant 0 : index
    %52 = vector.load %arg12[%c0_55, %c0_56] : memref<160x128xf32, #tpu.memory_space<vmem>>, vector<160x128xf32>
    %53 = arith.addf %52, %51 : vector<160x128xf32>
    %c0_57 = arith.constant 0 : index
    %c0_58 = arith.constant 0 : index
    %54 = vector.load %arg12[%c0_57, %c0_58] : memref<160x128xf32, #tpu.memory_space<vmem>>, vector<160x128xf32>
    tpu.vector_store %arg12[%c0_57, %c0_58], %53 {strides = array<i32>} : memref<160x128xf32, #tpu.memory_space<vmem>>, vector<160x128xf32>,
    %c1_59 = arith.constant 1 : index
    %c1_60 = arith.constant 1 : index
    %c0_61 = arith.constant 0 : index
    %55 = vector.load %arg10[%c1_59, %c1_60, %c0_61] : memref<12x18x128xf32, #tpu.memory_space<vmem>>, vector<10x16x128xf32>
    %56 = vector.shape_cast %55 : vector<10x16x128xf32> to vector<160x128xf32>
    %57 = arith.truncf %56 : vector<160x128xf32> to vector<160x128xbf16>
    %c4 = arith.constant 4 : index
    %c0_62 = arith.constant 0 : index
    %c0_63 = arith.constant 0 : index
    %58 = vector.load %arg3[%c4, %c0_62, %c0_63] : memref<9x128x128xbf16, #tpu.memory_space<vmem>>, vector<1x128x128xbf16>
    %59 = vector.shape_cast %58 : vector<1x128x128xbf16> to vector<128x128xbf16>
    %cst_64 = arith.constant dense<0.000000e+00> : vector<160x128xf32>
    %60 = tpu.matmul %57, %59, %cst_64 {dimension_numbers = #tpu.dot_dimension_numbers<[1], [0], [0], [1], [0, 0, 1, 1], [], []>} : vector<160x128xbf16>, vector<128x128xbf16>, vector<160x128xf32> -> vector<160x128xf32>
    %c0_65 = arith.constant 0 : index
    %c0_66 = arith.constant 0 : index
    %61 = vector.load %arg12[%c0_65, %c0_66] : memref<160x128xf32, #tpu.memory_space<vmem>>, vector<160x128xf32>
    %62 = arith.addf %61, %60 : vector<160x128xf32>
    %c0_67 = arith.constant 0 : index
    %c0_68 = arith.constant 0 : index
    %63 = vector.load %arg12[%c0_67, %c0_68] : memref<160x128xf32, #tpu.memory_space<vmem>>, vector<160x128xf32>
    tpu.vector_store %arg12[%c0_67, %c0_68], %62 {strides = array<i32>} : memref<160x128xf32, #tpu.memory_space<vmem>>, vector<160x128xf32>,
    %c1_69 = arith.constant 1 : index
    %c2_70 = arith.constant 2 : index
    %c0_71 = arith.constant 0 : index
    %64 = vector.load %arg10[%c1_69, %c2_70, %c0_71] : memref<12x18x128xf32, #tpu.memory_space<vmem>>, vector<10x16x128xf32>
    %65 = vector.shape_cast %64 : vector<10x16x128xf32> to vector<160x128xf32>
    %66 = arith.truncf %65 : vector<160x128xf32> to vector<160x128xbf16>
    %c5 = arith.constant 5 : index
    %c0_72 = arith.constant 0 : index
    %c0_73 = arith.constant 0 : index
    %67 = vector.load %arg3[%c5, %c0_72, %c0_73] : memref<9x128x128xbf16, #tpu.memory_space<vmem>>, vector<1x128x128xbf16>
    %68 = vector.shape_cast %67 : vector<1x128x128xbf16> to vector<128x128xbf16>
    %cst_74 = arith.constant dense<0.000000e+00> : vector<160x128xf32>
    %69 = tpu.matmul %66, %68, %cst_74 {dimension_numbers = #tpu.dot_dimension_numbers<[1], [0], [0], [1], [0, 0, 1, 1], [], []>} : vector<160x128xbf16>, vector<128x128xbf16>, vector<160x128xf32> -> vector<160x128xf32>
    %c0_75 = arith.constant 0 : index
    %c0_76 = arith.constant 0 : index
    %70 = vector.load %arg12[%c0_75, %c0_76] : memref<160x128xf32, #tpu.memory_space<vmem>>, vector<160x128xf32>
    %71 = arith.addf %70, %69 : vector<160x128xf32>
    %c0_77 = arith.constant 0 : index
    %c0_78 = arith.constant 0 : index
    %72 = vector.load %arg12[%c0_77, %c0_78] : memref<160x128xf32, #tpu.memory_space<vmem>>, vector<160x128xf32>
    tpu.vector_store %arg12[%c0_77, %c0_78], %71 {strides = array<i32>} : memref<160x128xf32, #tpu.memory_space<vmem>>, vector<160x128xf32>,
    %c2_79 = arith.constant 2 : index
    %c0_80 = arith.constant 0 : index
    %c0_81 = arith.constant 0 : index
    %73 = vector.load %arg10[%c2_79, %c0_80, %c0_81] : memref<12x18x128xf32, #tpu.memory_space<vmem>>, vector<10x16x128xf32>
    %74 = vector.shape_cast %73 : vector<10x16x128xf32> to vector<160x128xf32>
    %75 = arith.truncf %74 : vector<160x128xf32> to vector<160x128xbf16>
    %c6 = arith.constant 6 : index
    %c0_82 = arith.constant 0 : index
    %c0_83 = arith.constant 0 : index
    %76 = vector.load %arg3[%c6, %c0_82, %c0_83] : memref<9x128x128xbf16, #tpu.memory_space<vmem>>, vector<1x128x128xbf16>
    %77 = vector.shape_cast %76 : vector<1x128x128xbf16> to vector<128x128xbf16>
    %cst_84 = arith.constant dense<0.000000e+00> : vector<160x128xf32>
    %78 = tpu.matmul %75, %77, %cst_84 {dimension_numbers = #tpu.dot_dimension_numbers<[1], [0], [0], [1], [0, 0, 1, 1], [], []>} : vector<160x128xbf16>, vector<128x128xbf16>, vector<160x128xf32> -> vector<160x128xf32>
    %c0_85 = arith.constant 0 : index
    %c0_86 = arith.constant 0 : index
    %79 = vector.load %arg12[%c0_85, %c0_86] : memref<160x128xf32, #tpu.memory_space<vmem>>, vector<160x128xf32>
    %80 = arith.addf %79, %78 : vector<160x128xf32>
    %c0_87 = arith.constant 0 : index
    %c0_88 = arith.constant 0 : index
    %81 = vector.load %arg12[%c0_87, %c0_88] : memref<160x128xf32, #tpu.memory_space<vmem>>, vector<160x128xf32>
    tpu.vector_store %arg12[%c0_87, %c0_88], %80 {strides = array<i32>} : memref<160x128xf32, #tpu.memory_space<vmem>>, vector<160x128xf32>,
    %c2_89 = arith.constant 2 : index
    %c1_90 = arith.constant 1 : index
    %c0_91 = arith.constant 0 : index
    %82 = vector.load %arg10[%c2_89, %c1_90, %c0_91] : memref<12x18x128xf32, #tpu.memory_space<vmem>>, vector<10x16x128xf32>
    %83 = vector.shape_cast %82 : vector<10x16x128xf32> to vector<160x128xf32>
    %84 = arith.truncf %83 : vector<160x128xf32> to vector<160x128xbf16>
    %c7 = arith.constant 7 : index
    %c0_92 = arith.constant 0 : index
    %c0_93 = arith.constant 0 : index
    %85 = vector.load %arg3[%c7, %c0_92, %c0_93] : memref<9x128x128xbf16, #tpu.memory_space<vmem>>, vector<1x128x128xbf16>
    %86 = vector.shape_cast %85 : vector<1x128x128xbf16> to vector<128x128xbf16>
    %cst_94 = arith.constant dense<0.000000e+00> : vector<160x128xf32>
    %87 = tpu.matmul %84, %86, %cst_94 {dimension_numbers = #tpu.dot_dimension_numbers<[1], [0], [0], [1], [0, 0, 1, 1], [], []>} : vector<160x128xbf16>, vector<128x128xbf16>, vector<160x128xf32> -> vector<160x128xf32>
    %c0_95 = arith.constant 0 : index
    %c0_96 = arith.constant 0 : index
    %88 = vector.load %arg12[%c0_95, %c0_96] : memref<160x128xf32, #tpu.memory_space<vmem>>, vector<160x128xf32>
    %89 = arith.addf %88, %87 : vector<160x128xf32>
    %c0_97 = arith.constant 0 : index
    %c0_98 = arith.constant 0 : index
    %90 = vector.load %arg12[%c0_97, %c0_98] : memref<160x128xf32, #tpu.memory_space<vmem>>, vector<160x128xf32>
    tpu.vector_store %arg12[%c0_97, %c0_98], %89 {strides = array<i32>} : memref<160x128xf32, #tpu.memory_space<vmem>>, vector<160x128xf32>,
    %c2_99 = arith.constant 2 : index
    %c2_100 = arith.constant 2 : index
    %c0_101 = arith.constant 0 : index
    %91 = vector.load %arg10[%c2_99, %c2_100, %c0_101] : memref<12x18x128xf32, #tpu.memory_space<vmem>>, vector<10x16x128xf32>
    %92 = vector.shape_cast %91 : vector<10x16x128xf32> to vector<160x128xf32>
    %93 = arith.truncf %92 : vector<160x128xf32> to vector<160x128xbf16>
    %c8 = arith.constant 8 : index
    %c0_102 = arith.constant 0 : index
    %c0_103 = arith.constant 0 : index
    %94 = vector.load %arg3[%c8, %c0_102, %c0_103] : memref<9x128x128xbf16, #tpu.memory_space<vmem>>, vector<1x128x128xbf16>
    %95 = vector.shape_cast %94 : vector<1x128x128xbf16> to vector<128x128xbf16>
    %cst_104 = arith.constant dense<0.000000e+00> : vector<160x128xf32>
    %96 = tpu.matmul %93, %95, %cst_104 {dimension_numbers = #tpu.dot_dimension_numbers<[1], [0], [0], [1], [0, 0, 1, 1], [], []>} : vector<160x128xbf16>, vector<128x128xbf16>, vector<160x128xf32> -> vector<160x128xf32>
    %c0_105 = arith.constant 0 : index
    %c0_106 = arith.constant 0 : index
    %97 = vector.load %arg12[%c0_105, %c0_106] : memref<160x128xf32, #tpu.memory_space<vmem>>, vector<160x128xf32>
    %98 = arith.addf %97, %96 : vector<160x128xf32>
    %c0_107 = arith.constant 0 : index
    %c0_108 = arith.constant 0 : index
    %99 = vector.load %arg12[%c0_107, %c0_108] : memref<160x128xf32, #tpu.memory_space<vmem>>, vector<160x128xf32>
    tpu.vector_store %arg12[%c0_107, %c0_108], %98 {strides = array<i32>} : memref<160x128xf32, #tpu.memory_space<vmem>>, vector<160x128xf32>,
    %c0_109 = arith.constant 0 : index
    %c0_110 = arith.constant 0 : index
    %100 = vector.load %arg12[%c0_109, %c0_110] : memref<160x128xf32, #tpu.memory_space<vmem>>, vector<160x128xf32>
    %c0_111 = arith.constant 0 : index
    %c0_112 = arith.constant 0 : index
    %101 = vector.load %arg4[%c0_111, %c0_112] : memref<1x128xf32, #tpu.memory_space<vmem>>, vector<1x128xf32>
    %102 = vector.broadcast %101 : vector<1x128xf32> to vector<160x128xf32>
    %103 = arith.mulf %100, %102 : vector<160x128xf32>
    %c0_113 = arith.constant 0 : index
    %c0_114 = arith.constant 0 : index
    %104 = vector.load %arg5[%c0_113, %c0_114] : memref<1x128xf32, #tpu.memory_space<vmem>>, vector<1x128xf32>
    %105 = vector.broadcast %104 : vector<1x128xf32> to vector<160x128xf32>
    %106 = arith.addf %103, %105 : vector<160x128xf32>
    %cst_115 = arith.constant 0.000000e+00 : f32
    %107 = vector.broadcast %cst_115 : f32 to vector<160x128xf32>
    %108 = arith.maximumf %106, %107 : vector<160x128xf32>
    %109 = vector.shape_cast %108 : vector<160x128xf32> to vector<10x16x128xf32>
    %c0_116 = arith.constant 0 : index
    %c1_117 = arith.constant 1 : index
    %c0_118 = arith.constant 0 : index
    %110 = vector.load %arg11[%c0_116, %c1_117, %c0_118] : memref<10x18x128xf32, #tpu.memory_space<vmem>>, vector<10x16x128xf32>
    tpu.vector_store %arg11[%c0_116, %c1_117, %c0_118], %109 {strides = array<i32>} : memref<10x18x128xf32, #tpu.memory_space<vmem>>, vector<10x16x128xf32>,
    %c0_i32_119 = arith.constant 0 : i32
    %111 = arith.cmpi eq, %arg1, %c0_i32_119 : i32
    %112 = arith.extui %111 : i1 to i32
    %c0_i32_120 = arith.constant 0 : i32
    %113 = arith.cmpi ne, %112, %c0_i32_120 : i32
    scf.if %113 {
      %c2_245 = arith.constant 2 : index
      %c1_246 = arith.constant 1 : index
      %c0_247 = arith.constant 0 : index
      %214 = vector.load %arg11[%c2_245, %c1_246, %c0_247] : memref<10x18x128xf32, #tpu.memory_space<vmem>>, vector<1x16x128xf32>
      %c0_248 = arith.constant 0 : index
      %c1_249 = arith.constant 1 : index
      %c0_250 = arith.constant 0 : index
      %215 = vector.load %arg11[%c0_248, %c1_249, %c0_250] : memref<10x18x128xf32, #tpu.memory_space<vmem>>, vector<1x16x128xf32>
      tpu.vector_store %arg11[%c0_248, %c1_249, %c0_250], %214 {strides = array<i32>} : memref<10x18x128xf32, #tpu.memory_space<vmem>>, vector<1x16x128xf32>,
    } else {
    }
    %c1_i32_121 = arith.constant 1 : i32
    %114 = arith.cmpi eq, %arg1, %c1_i32_121 : i32
    %115 = arith.extui %114 : i1 to i32
    %c0_i32_122 = arith.constant 0 : i32
    %116 = arith.cmpi ne, %115, %c0_i32_122 : i32
    scf.if %116 {
      %c7_245 = arith.constant 7 : index
      %c1_246 = arith.constant 1 : index
      %c0_247 = arith.constant 0 : index
      %214 = vector.load %arg11[%c7_245, %c1_246, %c0_247] : memref<10x18x128xf32, #tpu.memory_space<vmem>>, vector<1x16x128xf32>
      %c9 = arith.constant 9 : index
      %c1_248 = arith.constant 1 : index
      %c0_249 = arith.constant 0 : index
      %215 = vector.load %arg11[%c9, %c1_248, %c0_249] : memref<10x18x128xf32, #tpu.memory_space<vmem>>, vector<1x16x128xf32>
      tpu.vector_store %arg11[%c9, %c1_248, %c0_249], %214 {strides = array<i32>} : memref<10x18x128xf32, #tpu.memory_space<vmem>>, vector<1x16x128xf32>,
    } else {
    }
    %c0_123 = arith.constant 0 : index
    %c2_124 = arith.constant 2 : index
    %c0_125 = arith.constant 0 : index
    %117 = vector.load %arg11[%c0_123, %c2_124, %c0_125] : memref<10x18x128xf32, #tpu.memory_space<vmem>>, vector<10x1x128xf32>
    %c0_126 = arith.constant 0 : index
    %c0_127 = arith.constant 0 : index
    %c0_128 = arith.constant 0 : index
    %118 = vector.load %arg11[%c0_126, %c0_127, %c0_128] : memref<10x18x128xf32, #tpu.memory_space<vmem>>, vector<10x1x128xf32>
    tpu.vector_store %arg11[%c0_126, %c0_127, %c0_128], %117 {strides = array<i32>} : memref<10x18x128xf32, #tpu.memory_space<vmem>>, vector<10x1x128xf32>,
    %c0_129 = arith.constant 0 : index
    %c15_130 = arith.constant 15 : index
    %c0_131 = arith.constant 0 : index
    %119 = vector.load %arg11[%c0_129, %c15_130, %c0_131] : memref<10x18x128xf32, #tpu.memory_space<vmem>>, vector<10x1x128xf32>
    %c0_132 = arith.constant 0 : index
    %c17_133 = arith.constant 17 : index
    %c0_134 = arith.constant 0 : index
    %120 = vector.load %arg11[%c0_132, %c17_133, %c0_134] : memref<10x18x128xf32, #tpu.memory_space<vmem>>, vector<10x1x128xf32>
    tpu.vector_store %arg11[%c0_132, %c17_133, %c0_134], %119 {strides = array<i32>} : memref<10x18x128xf32, #tpu.memory_space<vmem>>, vector<10x1x128xf32>,
    %c0_135 = arith.constant 0 : index
    %c0_136 = arith.constant 0 : index
    %c0_137 = arith.constant 0 : index
    %121 = vector.load %arg11[%c0_135, %c0_136, %c0_137] : memref<10x18x128xf32, #tpu.memory_space<vmem>>, vector<8x16x128xf32>
    %122 = vector.shape_cast %121 : vector<8x16x128xf32> to vector<128x128xf32>
    %123 = arith.truncf %122 : vector<128x128xf32> to vector<128x128xbf16>
    %c0_138 = arith.constant 0 : index
    %c0_139 = arith.constant 0 : index
    %c0_140 = arith.constant 0 : index
    %124 = vector.load %arg6[%c0_138, %c0_139, %c0_140] : memref<9x128x128xbf16, #tpu.memory_space<vmem>>, vector<1x128x128xbf16>
    %125 = vector.shape_cast %124 : vector<1x128x128xbf16> to vector<128x128xbf16>
    %cst_141 = arith.constant dense<0.000000e+00> : vector<128x128xf32>
    %126 = tpu.matmul %123, %125, %cst_141 {dimension_numbers = #tpu.dot_dimension_numbers<[1], [0], [0], [1], [0, 0, 1, 1], [], []>} : vector<128x128xbf16>, vector<128x128xbf16>, vector<128x128xf32> -> vector<128x128xf32>
    %c0_142 = arith.constant 0 : index
    %c0_143 = arith.constant 0 : index
    %127 = vector.load %arg13[%c0_142, %c0_143] : memref<128x128xf32, #tpu.memory_space<vmem>>, vector<128x128xf32>
    tpu.vector_store %arg13[%c0_142, %c0_143], %126 {strides = array<i32>} : memref<128x128xf32, #tpu.memory_space<vmem>>, vector<128x128xf32>,
    %c0_144 = arith.constant 0 : index
    %c1_145 = arith.constant 1 : index
    %c0_146 = arith.constant 0 : index
    %128 = vector.load %arg11[%c0_144, %c1_145, %c0_146] : memref<10x18x128xf32, #tpu.memory_space<vmem>>, vector<8x16x128xf32>
    %129 = vector.shape_cast %128 : vector<8x16x128xf32> to vector<128x128xf32>
    %130 = arith.truncf %129 : vector<128x128xf32> to vector<128x128xbf16>
    %c1_147 = arith.constant 1 : index
    %c0_148 = arith.constant 0 : index
    %c0_149 = arith.constant 0 : index
    %131 = vector.load %arg6[%c1_147, %c0_148, %c0_149] : memref<9x128x128xbf16, #tpu.memory_space<vmem>>, vector<1x128x128xbf16>
    %132 = vector.shape_cast %131 : vector<1x128x128xbf16> to vector<128x128xbf16>
    %cst_150 = arith.constant dense<0.000000e+00> : vector<128x128xf32>
    %133 = tpu.matmul %130, %132, %cst_150 {dimension_numbers = #tpu.dot_dimension_numbers<[1], [0], [0], [1], [0, 0, 1, 1], [], []>} : vector<128x128xbf16>, vector<128x128xbf16>, vector<128x128xf32> -> vector<128x128xf32>
    %c0_151 = arith.constant 0 : index
    %c0_152 = arith.constant 0 : index
    %134 = vector.load %arg13[%c0_151, %c0_152] : memref<128x128xf32, #tpu.memory_space<vmem>>, vector<128x128xf32>
    %135 = arith.addf %134, %133 : vector<128x128xf32>
    %c0_153 = arith.constant 0 : index
    %c0_154 = arith.constant 0 : index
    %136 = vector.load %arg13[%c0_153, %c0_154] : memref<128x128xf32, #tpu.memory_space<vmem>>, vector<128x128xf32>
    tpu.vector_store %arg13[%c0_153, %c0_154], %135 {strides = array<i32>} : memref<128x128xf32, #tpu.memory_space<vmem>>, vector<128x128xf32>,
    %c0_155 = arith.constant 0 : index
    %c2_156 = arith.constant 2 : index
    %c0_157 = arith.constant 0 : index
    %137 = vector.load %arg11[%c0_155, %c2_156, %c0_157] : memref<10x18x128xf32, #tpu.memory_space<vmem>>, vector<8x16x128xf32>
    %138 = vector.shape_cast %137 : vector<8x16x128xf32> to vector<128x128xf32>
    %139 = arith.truncf %138 : vector<128x128xf32> to vector<128x128xbf16>
    %c2_158 = arith.constant 2 : index
    %c0_159 = arith.constant 0 : index
    %c0_160 = arith.constant 0 : index
    %140 = vector.load %arg6[%c2_158, %c0_159, %c0_160] : memref<9x128x128xbf16, #tpu.memory_space<vmem>>, vector<1x128x128xbf16>
    %141 = vector.shape_cast %140 : vector<1x128x128xbf16> to vector<128x128xbf16>
    %cst_161 = arith.constant dense<0.000000e+00> : vector<128x128xf32>
    %142 = tpu.matmul %139, %141, %cst_161 {dimension_numbers = #tpu.dot_dimension_numbers<[1], [0], [0], [1], [0, 0, 1, 1], [], []>} : vector<128x128xbf16>, vector<128x128xbf16>, vector<128x128xf32> -> vector<128x128xf32>
    %c0_162 = arith.constant 0 : index
    %c0_163 = arith.constant 0 : index
    %143 = vector.load %arg13[%c0_162, %c0_163] : memref<128x128xf32, #tpu.memory_space<vmem>>, vector<128x128xf32>
    %144 = arith.addf %143, %142 : vector<128x128xf32>
    %c0_164 = arith.constant 0 : index
    %c0_165 = arith.constant 0 : index
    %145 = vector.load %arg13[%c0_164, %c0_165] : memref<128x128xf32, #tpu.memory_space<vmem>>, vector<128x128xf32>
    tpu.vector_store %arg13[%c0_164, %c0_165], %144 {strides = array<i32>} : memref<128x128xf32, #tpu.memory_space<vmem>>, vector<128x128xf32>,
    %c1_166 = arith.constant 1 : index
    %c0_167 = arith.constant 0 : index
    %c0_168 = arith.constant 0 : index
    %146 = vector.load %arg11[%c1_166, %c0_167, %c0_168] : memref<10x18x128xf32, #tpu.memory_space<vmem>>, vector<8x16x128xf32>
    %147 = vector.shape_cast %146 : vector<8x16x128xf32> to vector<128x128xf32>
    %148 = arith.truncf %147 : vector<128x128xf32> to vector<128x128xbf16>
    %c3_169 = arith.constant 3 : index
    %c0_170 = arith.constant 0 : index
    %c0_171 = arith.constant 0 : index
    %149 = vector.load %arg6[%c3_169, %c0_170, %c0_171] : memref<9x128x128xbf16, #tpu.memory_space<vmem>>, vector<1x128x128xbf16>
    %150 = vector.shape_cast %149 : vector<1x128x128xbf16> to vector<128x128xbf16>
    %cst_172 = arith.constant dense<0.000000e+00> : vector<128x128xf32>
    %151 = tpu.matmul %148, %150, %cst_172 {dimension_numbers = #tpu.dot_dimension_numbers<[1], [0], [0], [1], [0, 0, 1, 1], [], []>} : vector<128x128xbf16>, vector<128x128xbf16>, vector<128x128xf32> -> vector<128x128xf32>
    %c0_173 = arith.constant 0 : index
    %c0_174 = arith.constant 0 : index
    %152 = vector.load %arg13[%c0_173, %c0_174] : memref<128x128xf32, #tpu.memory_space<vmem>>, vector<128x128xf32>
    %153 = arith.addf %152, %151 : vector<128x128xf32>
    %c0_175 = arith.constant 0 : index
    %c0_176 = arith.constant 0 : index
    %154 = vector.load %arg13[%c0_175, %c0_176] : memref<128x128xf32, #tpu.memory_space<vmem>>, vector<128x128xf32>
    tpu.vector_store %arg13[%c0_175, %c0_176], %153 {strides = array<i32>} : memref<128x128xf32, #tpu.memory_space<vmem>>, vector<128x128xf32>,
    %c1_177 = arith.constant 1 : index
    %c1_178 = arith.constant 1 : index
    %c0_179 = arith.constant 0 : index
    %155 = vector.load %arg11[%c1_177, %c1_178, %c0_179] : memref<10x18x128xf32, #tpu.memory_space<vmem>>, vector<8x16x128xf32>
    %156 = vector.shape_cast %155 : vector<8x16x128xf32> to vector<128x128xf32>
    %157 = arith.truncf %156 : vector<128x128xf32> to vector<128x128xbf16>
    %c4_180 = arith.constant 4 : index
    %c0_181 = arith.constant 0 : index
    %c0_182 = arith.constant 0 : index
    %158 = vector.load %arg6[%c4_180, %c0_181, %c0_182] : memref<9x128x128xbf16, #tpu.memory_space<vmem>>, vector<1x128x128xbf16>
    %159 = vector.shape_cast %158 : vector<1x128x128xbf16> to vector<128x128xbf16>
    %cst_183 = arith.constant dense<0.000000e+00> : vector<128x128xf32>
    %160 = tpu.matmul %157, %159, %cst_183 {dimension_numbers = #tpu.dot_dimension_numbers<[1], [0], [0], [1], [0, 0, 1, 1], [], []>} : vector<128x128xbf16>, vector<128x128xbf16>, vector<128x128xf32> -> vector<128x128xf32>
    %c0_184 = arith.constant 0 : index
    %c0_185 = arith.constant 0 : index
    %161 = vector.load %arg13[%c0_184, %c0_185] : memref<128x128xf32, #tpu.memory_space<vmem>>, vector<128x128xf32>
    %162 = arith.addf %161, %160 : vector<128x128xf32>
    %c0_186 = arith.constant 0 : index
    %c0_187 = arith.constant 0 : index
    %163 = vector.load %arg13[%c0_186, %c0_187] : memref<128x128xf32, #tpu.memory_space<vmem>>, vector<128x128xf32>
    tpu.vector_store %arg13[%c0_186, %c0_187], %162 {strides = array<i32>} : memref<128x128xf32, #tpu.memory_space<vmem>>, vector<128x128xf32>,
    %c1_188 = arith.constant 1 : index
    %c2_189 = arith.constant 2 : index
    %c0_190 = arith.constant 0 : index
    %164 = vector.load %arg11[%c1_188, %c2_189, %c0_190] : memref<10x18x128xf32, #tpu.memory_space<vmem>>, vector<8x16x128xf32>
    %165 = vector.shape_cast %164 : vector<8x16x128xf32> to vector<128x128xf32>
    %166 = arith.truncf %165 : vector<128x128xf32> to vector<128x128xbf16>
    %c5_191 = arith.constant 5 : index
    %c0_192 = arith.constant 0 : index
    %c0_193 = arith.constant 0 : index
    %167 = vector.load %arg6[%c5_191, %c0_192, %c0_193] : memref<9x128x128xbf16, #tpu.memory_space<vmem>>, vector<1x128x128xbf16>
    %168 = vector.shape_cast %167 : vector<1x128x128xbf16> to vector<128x128xbf16>
    %cst_194 = arith.constant dense<0.000000e+00> : vector<128x128xf32>
    %169 = tpu.matmul %166, %168, %cst_194 {dimension_numbers = #tpu.dot_dimension_numbers<[1], [0], [0], [1], [0, 0, 1, 1], [], []>} : vector<128x128xbf16>, vector<128x128xbf16>, vector<128x128xf32> -> vector<128x128xf32>
    %c0_195 = arith.constant 0 : index
    %c0_196 = arith.constant 0 : index
    %170 = vector.load %arg13[%c0_195, %c0_196] : memref<128x128xf32, #tpu.memory_space<vmem>>, vector<128x128xf32>
    %171 = arith.addf %170, %169 : vector<128x128xf32>
    %c0_197 = arith.constant 0 : index
    %c0_198 = arith.constant 0 : index
    %172 = vector.load %arg13[%c0_197, %c0_198] : memref<128x128xf32, #tpu.memory_space<vmem>>, vector<128x128xf32>
    tpu.vector_store %arg13[%c0_197, %c0_198], %171 {strides = array<i32>} : memref<128x128xf32, #tpu.memory_space<vmem>>, vector<128x128xf32>,
    %c2_199 = arith.constant 2 : index
    %c0_200 = arith.constant 0 : index
    %c0_201 = arith.constant 0 : index
    %173 = vector.load %arg11[%c2_199, %c0_200, %c0_201] : memref<10x18x128xf32, #tpu.memory_space<vmem>>, vector<8x16x128xf32>
    %174 = vector.shape_cast %173 : vector<8x16x128xf32> to vector<128x128xf32>
    %175 = arith.truncf %174 : vector<128x128xf32> to vector<128x128xbf16>
    %c6_202 = arith.constant 6 : index
    %c0_203 = arith.constant 0 : index
    %c0_204 = arith.constant 0 : index
    %176 = vector.load %arg6[%c6_202, %c0_203, %c0_204] : memref<9x128x128xbf16, #tpu.memory_space<vmem>>, vector<1x128x128xbf16>
    %177 = vector.shape_cast %176 : vector<1x128x128xbf16> to vector<128x128xbf16>
    %cst_205 = arith.constant dense<0.000000e+00> : vector<128x128xf32>
    %178 = tpu.matmul %175, %177, %cst_205 {dimension_numbers = #tpu.dot_dimension_numbers<[1], [0], [0], [1], [0, 0, 1, 1], [], []>} : vector<128x128xbf16>, vector<128x128xbf16>, vector<128x128xf32> -> vector<128x128xf32>
    %c0_206 = arith.constant 0 : index
    %c0_207 = arith.constant 0 : index
    %179 = vector.load %arg13[%c0_206, %c0_207] : memref<128x128xf32, #tpu.memory_space<vmem>>, vector<128x128xf32>
    %180 = arith.addf %179, %178 : vector<128x128xf32>
    %c0_208 = arith.constant 0 : index
    %c0_209 = arith.constant 0 : index
    %181 = vector.load %arg13[%c0_208, %c0_209] : memref<128x128xf32, #tpu.memory_space<vmem>>, vector<128x128xf32>
    tpu.vector_store %arg13[%c0_208, %c0_209], %180 {strides = array<i32>} : memref<128x128xf32, #tpu.memory_space<vmem>>, vector<128x128xf32>,
    %c2_210 = arith.constant 2 : index
    %c1_211 = arith.constant 1 : index
    %c0_212 = arith.constant 0 : index
    %182 = vector.load %arg11[%c2_210, %c1_211, %c0_212] : memref<10x18x128xf32, #tpu.memory_space<vmem>>, vector<8x16x128xf32>
    %183 = vector.shape_cast %182 : vector<8x16x128xf32> to vector<128x128xf32>
    %184 = arith.truncf %183 : vector<128x128xf32> to vector<128x128xbf16>
    %c7_213 = arith.constant 7 : index
    %c0_214 = arith.constant 0 : index
    %c0_215 = arith.constant 0 : index
    %185 = vector.load %arg6[%c7_213, %c0_214, %c0_215] : memref<9x128x128xbf16, #tpu.memory_space<vmem>>, vector<1x128x128xbf16>
    %186 = vector.shape_cast %185 : vector<1x128x128xbf16> to vector<128x128xbf16>
    %cst_216 = arith.constant dense<0.000000e+00> : vector<128x128xf32>
    %187 = tpu.matmul %184, %186, %cst_216 {dimension_numbers = #tpu.dot_dimension_numbers<[1], [0], [0], [1], [0, 0, 1, 1], [], []>} : vector<128x128xbf16>, vector<128x128xbf16>, vector<128x128xf32> -> vector<128x128xf32>
    %c0_217 = arith.constant 0 : index
    %c0_218 = arith.constant 0 : index
    %188 = vector.load %arg13[%c0_217, %c0_218] : memref<128x128xf32, #tpu.memory_space<vmem>>, vector<128x128xf32>
    %189 = arith.addf %188, %187 : vector<128x128xf32>
    %c0_219 = arith.constant 0 : index
    %c0_220 = arith.constant 0 : index
    %190 = vector.load %arg13[%c0_219, %c0_220] : memref<128x128xf32, #tpu.memory_space<vmem>>, vector<128x128xf32>
    tpu.vector_store %arg13[%c0_219, %c0_220], %189 {strides = array<i32>} : memref<128x128xf32, #tpu.memory_space<vmem>>, vector<128x128xf32>,
    %c2_221 = arith.constant 2 : index
    %c2_222 = arith.constant 2 : index
    %c0_223 = arith.constant 0 : index
    %191 = vector.load %arg11[%c2_221, %c2_222, %c0_223] : memref<10x18x128xf32, #tpu.memory_space<vmem>>, vector<8x16x128xf32>
    %192 = vector.shape_cast %191 : vector<8x16x128xf32> to vector<128x128xf32>
    %193 = arith.truncf %192 : vector<128x128xf32> to vector<128x128xbf16>
    %c8_224 = arith.constant 8 : index
    %c0_225 = arith.constant 0 : index
    %c0_226 = arith.constant 0 : index
    %194 = vector.load %arg6[%c8_224, %c0_225, %c0_226] : memref<9x128x128xbf16, #tpu.memory_space<vmem>>, vector<1x128x128xbf16>
    %195 = vector.shape_cast %194 : vector<1x128x128xbf16> to vector<128x128xbf16>
    %cst_227 = arith.constant dense<0.000000e+00> : vector<128x128xf32>
    %196 = tpu.matmul %193, %195, %cst_227 {dimension_numbers = #tpu.dot_dimension_numbers<[1], [0], [0], [1], [0, 0, 1, 1], [], []>} : vector<128x128xbf16>, vector<128x128xbf16>, vector<128x128xf32> -> vector<128x128xf32>
    %c0_228 = arith.constant 0 : index
    %c0_229 = arith.constant 0 : index
    %197 = vector.load %arg13[%c0_228, %c0_229] : memref<128x128xf32, #tpu.memory_space<vmem>>, vector<128x128xf32>
    %198 = arith.addf %197, %196 : vector<128x128xf32>
    %c0_230 = arith.constant 0 : index
    %c0_231 = arith.constant 0 : index
    %199 = vector.load %arg13[%c0_230, %c0_231] : memref<128x128xf32, #tpu.memory_space<vmem>>, vector<128x128xf32>
    tpu.vector_store %arg13[%c0_230, %c0_231], %198 {strides = array<i32>} : memref<128x128xf32, #tpu.memory_space<vmem>>, vector<128x128xf32>,
    %c0_232 = arith.constant 0 : index
    %c0_233 = arith.constant 0 : index
    %200 = vector.load %arg13[%c0_232, %c0_233] : memref<128x128xf32, #tpu.memory_space<vmem>>, vector<128x128xf32>
    %c0_234 = arith.constant 0 : index
    %c0_235 = arith.constant 0 : index
    %201 = vector.load %arg7[%c0_234, %c0_235] : memref<1x128xf32, #tpu.memory_space<vmem>>, vector<1x128xf32>
    %202 = vector.broadcast %201 : vector<1x128xf32> to vector<128x128xf32>
    %203 = arith.mulf %200, %202 : vector<128x128xf32>
    %c0_236 = arith.constant 0 : index
    %c0_237 = arith.constant 0 : index
    %204 = vector.load %arg8[%c0_236, %c0_237] : memref<1x128xf32, #tpu.memory_space<vmem>>, vector<1x128xf32>
    %205 = vector.broadcast %204 : vector<1x128xf32> to vector<128x128xf32>
    %206 = arith.addf %203, %205 : vector<128x128xf32>
    %c0_238 = arith.constant 0 : index
    %207 = arith.index_cast %0 : i32 to index
    %c0_239 = arith.constant 0 : index
    %c0_240 = arith.constant 0 : index
    %208 = vector.load %arg2[%c0_238, %207, %c0_239, %c0_240] : memref<1x16x16x128xf32, #tpu.memory_space<vmem>>, vector<1x8x16x128xf32>
    %209 = vector.shape_cast %208 : vector<1x8x16x128xf32> to vector<8x16x128xf32>
    %210 = vector.shape_cast %209 : vector<8x16x128xf32> to vector<128x128xf32>
    %211 = arith.addf %206, %210 : vector<128x128xf32>
    %212 = vector.shape_cast %211 : vector<128x128xf32> to vector<1x8x16x128xf32>
    %c0_241 = arith.constant 0 : index
    %c0_242 = arith.constant 0 : index
    %c0_243 = arith.constant 0 : index
    %c0_244 = arith.constant 0 : index
    %213 = vector.load %arg9[%c0_241, %c0_242, %c0_243, %c0_244] : memref<1x8x16x128xf32, #tpu.memory_space<vmem>>, vector<1x8x16x128xf32>
    tpu.vector_store %arg9[%c0_241, %c0_242, %c0_243, %c0_244], %212 {strides = array<i32>} : memref<1x8x16x128xf32, #tpu.memory_space<vmem>>, vector<1x8x16x128xf32>,
    return
  }
  func.func @transform_0(%arg0: i32, %arg1: i32) -> (i32, i32, i32, i32) {
    %c0_i32 = arith.constant 0 : i32
    %c0_i32_0 = arith.constant 0 : i32
    %c0_i32_1 = arith.constant 0 : i32
    %c0_i32_2 = arith.constant 0 : i32
    return %arg0, %c0_i32, %c0_i32_0, %c0_i32_1 : i32, i32, i32, i32
  }
  func.func @transform_1(%arg0: i32, %arg1: i32) -> (i32, i32, i32) {
    %c0_i32 = arith.constant 0 : i32
    %c0_i32_0 = arith.constant 0 : i32
    %c0_i32_1 = arith.constant 0 : i32
    %c0_i32_2 = arith.constant 0 : i32
    return %c0_i32, %c0_i32_0, %c0_i32_1 : i32, i32, i32
  }
  func.func @transform_2(%arg0: i32, %arg1: i32) -> (i32, i32) {
    %c0_i32 = arith.constant 0 : i32
    %c0_i32_0 = arith.constant 0 : i32
    %c0_i32_1 = arith.constant 0 : i32
    return %c0_i32, %c0_i32_0 : i32, i32
  }
  func.func @transform_3(%arg0: i32, %arg1: i32) -> (i32, i32) {
    %c0_i32 = arith.constant 0 : i32
    %c0_i32_0 = arith.constant 0 : i32
    %c0_i32_1 = arith.constant 0 : i32
    return %c0_i32, %c0_i32_0 : i32, i32
  }
  func.func @transform_4(%arg0: i32, %arg1: i32) -> (i32, i32, i32) {
    %c0_i32 = arith.constant 0 : i32
    %c0_i32_0 = arith.constant 0 : i32
    %c0_i32_1 = arith.constant 0 : i32
    %c0_i32_2 = arith.constant 0 : i32
    return %c0_i32, %c0_i32_0, %c0_i32_1 : i32, i32, i32
  }
  func.func @transform_5(%arg0: i32, %arg1: i32) -> (i32, i32) {
    %c0_i32 = arith.constant 0 : i32
    %c0_i32_0 = arith.constant 0 : i32
    %c0_i32_1 = arith.constant 0 : i32
    return %c0_i32, %c0_i32_0 : i32, i32
  }
  func.func @transform_6(%arg0: i32, %arg1: i32) -> (i32, i32) {
    %c0_i32 = arith.constant 0 : i32
    %c0_i32_0 = arith.constant 0 : i32
    %c0_i32_1 = arith.constant 0 : i32
    return %c0_i32, %c0_i32_0 : i32, i32
  }
  func.func @transform_7(%arg0: i32, %arg1: i32) -> (i32, i32, i32, i32) {
    %c0_i32 = arith.constant 0 : i32
    %c0_i32_0 = arith.constant 0 : i32
    %c0_i32_1 = arith.constant 0 : i32
    return %arg0, %arg1, %c0_i32, %c0_i32_0 : i32, i32, i32, i32
  }
}

</mosaic_0001>

<llo_original>
// kernel: resnet_block_forward.1
$region0: #{resnet_block_forward.1}
  #allocation0 [shape = 'u32[]', space=smem, size = 0x4, offset = 0x4, fixed_abs, tag = 'smem constant byte address 0x4 - core index']
  #allocation1 [shape = 'u32[144,128]{1,0:T(1,128)}', space=vmem, size = 0x12000, scoped, tag = 'internal scratch']
  #allocation2 [shape = 'f32[12,18,128]{2,1,0:T(8,128)}', space=vmem, size = 0x24000, scoped, tag = 'scratch operand']
  #allocation3 [shape = 'f32[10,18,128]{2,1,0:T(8,128)}', space=vmem, size = 0x1e000, scoped, tag = 'scratch operand']
  #allocation4 [shape = 'f32[160,128]{1,0:T(8,128)}', space=vmem, size = 0x14000, scoped, tag = 'scratch operand']
  #allocation5 [shape = 'f32[128,128]{1,0:T(8,128)}', space=vmem, size = 0x10000, scoped, tag = 'scratch operand']
  %s0 = inlined_call_operand.vmem [shape: f32[2,16,16,128], index: 0, kind: input, shape index: {}]
  %s1 = inlined_call_operand.vmem [shape: bf16[9,128,128], index: 1, kind: input, shape index: {}]
  %s2 = inlined_call_operand.vmem [shape: f32[1,128], index: 2, kind: input, shape index: {}]
  %s3 = inlined_call_operand.vmem [shape: f32[1,128], index: 3, kind: input, shape index: {}]
  %s4 = inlined_call_operand.vmem [shape: bf16[9,128,128], index: 4, kind: input, shape index: {}]
  %s5 = inlined_call_operand.vmem [shape: f32[1,128], index: 5, kind: input, shape index: {}]
  %s6 = inlined_call_operand.vmem [shape: f32[1,128], index: 6, kind: input, shape index: {}]
  %s7 = inlined_call_operand.vmem [shape: f32[2,16,16,128], index: 7, kind: output, shape index: {}]
  %s8 = sld [smem:[#allocation0]]
  $region85: #{resnet_block_forward.1} parent=0
    _
  %s10 = ssub.s32 1, %s8
  %s11 = scalar_select 0, %s10, %s8
  loop: start=0, step=1, limit=6
  $region2: #{resnet_block_forward.1} parent=0 // loop_pre_header
    _
  $region3: #{resnet_block_forward.1} parent=0 // loop_header
    %s13 = sphi 0, %s17
    %p14 = scmp.ge.s32.totalorder %s13, 6
    %s20 = sphi 0, %s32
    %s21 = sphi 0, %s28
    %s22 = sphi 0, %s20
    %s23 = sphi 0, %s21
    %s24 = sphi 0, %s22
    %s25 = sphi 0, %s23
    %s35 = sphi 0, %s37
    %s38 = sphi 0, %s35
    %s39 = sphi 0, %s38
    %s55 = sphi 0, %s39
    %s59 = sphi 0, %s59
    %s61 = sphi 0, %s59
    %s62 = sphi 0, %s61
    %s76 = sphi 0, %s62
    %s80 = sphi 0, %s80
    %s82 = sphi 0, %s80
    %s83 = sphi 0, %s82
    %s97 = sphi 0, %s83
    %s101 = sphi 0, %s101
    %s103 = sphi 0, %s101
    %s104 = sphi 0, %s103
    %s118 = sphi 0, %s104
    %s122 = sphi 0, %s122
    %s124 = sphi 0, %s122
    %s125 = sphi 0, %s124
    %s139 = sphi 0, %s125
    %s143 = sphi 0, %s143
    %s145 = sphi 0, %s143
    %s146 = sphi 0, %s145
    %s160 = sphi 0, %s146
    %s164 = sphi 0, %s164
    %s166 = sphi 0, %s164
    %s167 = sphi 0, %s166
    %s181 = sphi 0, %s167
    %s189 = sphi 0, %s191
    %s192 = sphi 0, %s189
    %s193 = sphi 0, %s192
    %s209 = sphi 0, %s193
  $region4: #{resnet_block_forward.1} parent=0 // loop_header_branch
    %16 = sbr.rel (%p14) target = $region8
  $region5: #{resnet_block_forward.1} parent=0 // loop_body
    %s18 = ssub.s32 %s13, 1
    %s19 = ssub.s32 %s13, 2
    %s26 = sadd.s32 1, %s21
    %p27 = scmp.ge.s32.totalorder %s26, 2
    %s28 = scalar_select %p27, 0, %s26
    %s29 = sadd.s32 1, %s20
    %s30 = scalar_select %p27, %s29, %s20
    %p31 = scmp.ge.s32.totalorder %s30, 2
    %s32 = scalar_select %p31, 0, %s30
    %s33 = ssub.s32 %s20, %s32
    %p34 = scmp.eq.s32.totalorder %s33, 0
    %s36 = sadd.s32 %s35, 1
    %s37 = scalar_select %p34, %s35, %s36
    %p40 = pneg %p34
    %p41 = scmp.eq.s32.totalorder %s13, 3
    %p42 = por %p40, %p41
    %p43 = scmp.ne.s32.totalorder %s35, %s38
    %p44 = scmp.eq.s32.totalorder %s13, 0
    %p45 = por %p43, %p44
    %p46 = scmp.ne.s32.totalorder %s35, %s38
    %p47 = scmp.eq.s32.totalorder %s18, 3
    %p48 = por %p46, %p47
    %p49 = scmp.ne.s32.totalorder %s38, %s39
    %p50 = scmp.eq.s32.totalorder %s18, 0
    %p51 = por %p49, %p50
    %p52 = scmp.ne.s32.totalorder %s38, %s39
    %p53 = scmp.eq.s32.totalorder %s19, 3
    %p54 = por %p52, %p53
    %p56 = scmp.ne.s32.totalorder %s39, %s55
    %p57 = scmp.eq.s32.totalorder %s19, 0
    %p58 = por %p56, %p57
    %s60 = sadd.s32 %s59, 1
    %p63 = scmp.eq.s32.totalorder %s13, 3
    %p64 = scmp.ne.s32.totalorder %s59, %s61
    %p65 = scmp.eq.s32.totalorder %s13, 0
    %p66 = por %p64, %p65
    %p67 = scmp.ne.s32.totalorder %s59, %s61
    %p68 = scmp.eq.s32.totalorder %s18, 3
    %p69 = por %p67, %p68
    %p70 = scmp.ne.s32.totalorder %s61, %s62
    %p71 = scmp.eq.s32.totalorder %s18, 0
    %p72 = por %p70, %p71
    %p73 = scmp.ne.s32.totalorder %s61, %s62
    %p74 = scmp.eq.s32.totalorder %s19, 3
    %p75 = por %p73, %p74
    %p77 = scmp.ne.s32.totalorder %s62, %s76
    %p78 = scmp.eq.s32.totalorder %s19, 0
    %p79 = por %p77, %p78
    %s81 = sadd.s32 %s80, 1
    %p84 = scmp.eq.s32.totalorder %s13, 3
    %p85 = scmp.ne.s32.totalorder %s80, %s82
    %p86 = scmp.eq.s32.totalorder %s13, 0
    %p87 = por %p85, %p86
    %p88 = scmp.ne.s32.totalorder %s80, %s82
    %p89 = scmp.eq.s32.totalorder %s18, 3
    %p90 = por %p88, %p89
    %p91 = scmp.ne.s32.totalorder %s82, %s83
    %p92 = scmp.eq.s32.totalorder %s18, 0
    %p93 = por %p91, %p92
    %p94 = scmp.ne.s32.totalorder %s82, %s83
    %p95 = scmp.eq.s32.totalorder %s19, 3
    %p96 = por %p94, %p95
    %p98 = scmp.ne.s32.totalorder %s83, %s97
    %p99 = scmp.eq.s32.totalorder %s19, 0
    %p100 = por %p98, %p99
    %s102 = sadd.s32 %s101, 1
    %p105 = scmp.eq.s32.totalorder %s13, 3
    %p106 = scmp.ne.s32.totalorder %s101, %s103
    %p107 = scmp.eq.s32.totalorder %s13, 0
    %p108 = por %p106, %p107
    %p109 = scmp.ne.s32.totalorder %s101, %s103
    %p110 = scmp.eq.s32.totalorder %s18, 3
    %p111 = por %p109, %p110
    %p112 = scmp.ne.s32.totalorder %s103, %s104
    %p113 = scmp.eq.s32.totalorder %s18, 0
    %p114 = por %p112, %p113
    %p115 = scmp.ne.s32.totalorder %s103, %s104
    %p116 = scmp.eq.s32.totalorder %s19, 3
    %p117 = por %p115, %p116
    %p119 = scmp.ne.s32.totalorder %s104, %s118
    %p120 = scmp.eq.s32.totalorder %s19, 0
    %p121 = por %p119, %p120
    %s123 = sadd.s32 %s122, 1
    %p126 = scmp.eq.s32.totalorder %s13, 3
    %p127 = scmp.ne.s32.totalorder %s122, %s124
    %p128 = scmp.eq.s32.totalorder %s13, 0
    %p129 = por %p127, %p128
    %p130 = scmp.ne.s32.totalorder %s122, %s124
    %p131 = scmp.eq.s32.totalorder %s18, 3
    %p132 = por %p130, %p131
    %p133 = scmp.ne.s32.totalorder %s124, %s125
    %p134 = scmp.eq.s32.totalorder %s18, 0
    %p135 = por %p133, %p134
    %p136 = scmp.ne.s32.totalorder %s124, %s125
    %p137 = scmp.eq.s32.totalorder %s19, 3
    %p138 = por %p136, %p137
    %p140 = scmp.ne.s32.totalorder %s125, %s139
    %p141 = scmp.eq.s32.totalorder %s19, 0
    %p142 = por %p140, %p141
    %s144 = sadd.s32 %s143, 1
    %p147 = scmp.eq.s32.totalorder %s13, 3
    %p148 = scmp.ne.s32.totalorder %s143, %s145
    %p149 = scmp.eq.s32.totalorder %s13, 0
    %p150 = por %p148, %p149
    %p151 = scmp.ne.s32.totalorder %s143, %s145
    %p152 = scmp.eq.s32.totalorder %s18, 3
    %p153 = por %p151, %p152
    %p154 = scmp.ne.s32.totalorder %s145, %s146
    %p155 = scmp.eq.s32.totalorder %s18, 0
    %p156 = por %p154, %p155
    %p157 = scmp.ne.s32.totalorder %s145, %s146
    %p158 = scmp.eq.s32.totalorder %s19, 3
    %p159 = por %p157, %p158
    %p161 = scmp.ne.s32.totalorder %s146, %s160
    %p162 = scmp.eq.s32.totalorder %s19, 0
    %p163 = por %p161, %p162
    %s165 = sadd.s32 %s164, 1
    %p168 = scmp.eq.s32.totalorder %s13, 3
    %p169 = scmp.ne.s32.totalorder %s164, %s166
    %p170 = scmp.eq.s32.totalorder %s13, 0
    %p171 = por %p169, %p170
    %p172 = scmp.ne.s32.totalorder %s164, %s166
    %p173 = scmp.eq.s32.totalorder %s18, 3
    %p174 = por %p172, %p173
    %p175 = scmp.ne.s32.totalorder %s166, %s167
    %p176 = scmp.eq.s32.totalorder %s18, 0
    %p177 = por %p175, %p176
    %p178 = scmp.ne.s32.totalorder %s166, %s167
    %p179 = scmp.eq.s32.totalorder %s19, 3
    %p180 = por %p178, %p179
    %p182 = scmp.ne.s32.totalorder %s167, %s181
    %p183 = scmp.eq.s32.totalorder %s19, 0
    %p184 = por %p182, %p183
    %s185 = ssub.s32 %s20, %s32
    %s186 = ssub.s32 %s21, %s28
    %s187 = sor.u32 %s185, %s186
    %p188 = scmp.eq.s32.totalorder %s187, 0
    %s190 = sadd.s32 %s189, 1
    %s191 = scalar_select %p188, %s189, %s190
    %p194 = pneg %p188
    %p195 = scmp.eq.s32.totalorder %s13, 3
    %p196 = por %p194, %p195
    %p197 = scmp.ne.s32.totalorder %s189, %s192
    %p198 = scmp.eq.s32.totalorder %s13, 0
    %p199 = por %p197, %p198
    %p200 = scmp.ne.s32.totalorder %s189, %s192
    %p201 = scmp.eq.s32.totalorder %s18, 3
    %p202 = por %p200, %p201
    %p203 = scmp.ne.s32.totalorder %s192, %s193
    %p204 = scmp.eq.s32.totalorder %s18, 0
    %p205 = por %p203, %p204
    %p206 = scmp.ne.s32.totalorder %s192, %s193
    %p207 = scmp.eq.s32.totalorder %s19, 3
    %p208 = por %p206, %p207
    %p210 = scmp.ne.s32.totalorder %s193, %s209
    %p211 = scmp.eq.s32.totalorder %s19, 0
    %p212 = por %p210, %p211
    %p213 = scmp.le.s32.totalorder 1, %s13
    %p214 = scmp.lt.s32.totalorder %s13, 5
    %p215 = pnand %p213, %p214
    %p216 = pneg %p215
    // Predicated region
    $region9: #{resnet_block_forward.1} parent=5 // pred_check
      _
    $region10: #{resnet_block_forward.1} parent=5 // pred_check_branch
      %218 = sbr.rel (%p215) target = $region12
    $region11: #{resnet_block_forward.1} parent=5 // pred_region
      %s219 = ssub.s32 %s13, 1
      // Predicated region
      $region13: #{resnet_block_forward.1} parent=11 // pred_check
        %p220 = pneg %p72
      $region14: #{resnet_block_forward.1} parent=11 // pred_check_branch
        %222 = sbr.rel (%p220) target = $region16
      $region15: #{resnet_block_forward.1} parent=11 // pred_region
        _
      $region16: #{resnet_block_forward.1} parent=11 // pred_fallthru
        _
      // Predicated region
      $region17: #{resnet_block_forward.1} parent=11 // pred_check
        %p223 = pneg %p93
      $region18: #{resnet_block_forward.1} parent=11 // pred_check_branch
        %225 = sbr.rel (%p223) target = $region20
      $region19: #{resnet_block_forward.1} parent=11 // pred_region
        _
      $region20: #{resnet_block_forward.1} parent=11 // pred_fallthru
        _
      // Predicated region
      $region21: #{resnet_block_forward.1} parent=11 // pred_check
        %p226 = pneg %p114
      $region22: #{resnet_block_forward.1} parent=11 // pred_check_branch
        %228 = sbr.rel (%p226) target = $region24
      $region23: #{resnet_block_forward.1} parent=11 // pred_region
        _
      $region24: #{resnet_block_forward.1} parent=11 // pred_fallthru
        _
      // Predicated region
      $region25: #{resnet_block_forward.1} parent=11 // pred_check
        %p229 = pneg %p135
      $region26: #{resnet_block_forward.1} parent=11 // pred_check_branch
        %231 = sbr.rel (%p229) target = $region28
      $region27: #{resnet_block_forward.1} parent=11 // pred_region
        _
      $region28: #{resnet_block_forward.1} parent=11 // pred_fallthru
        _
      // Predicated region
      $region29: #{resnet_block_forward.1} parent=11 // pred_check
        %p232 = pneg %p156
      $region30: #{resnet_block_forward.1} parent=11 // pred_check_branch
        %234 = sbr.rel (%p232) target = $region32
      $region31: #{resnet_block_forward.1} parent=11 // pred_region
        _
      $region32: #{resnet_block_forward.1} parent=11 // pred_fallthru
        _
      // Predicated region
      $region33: #{resnet_block_forward.1} parent=11 // pred_check
        %p235 = pneg %p177
      $region34: #{resnet_block_forward.1} parent=11 // pred_check_branch
        %237 = sbr.rel (%p235) target = $region36
      $region35: #{resnet_block_forward.1} parent=11 // pred_region
        _
      $region36: #{resnet_block_forward.1} parent=11 // pred_fallthru
        _
    $region12: #{resnet_block_forward.1} parent=5 // pred_fallthru
      _
    %p238 = scmp.lt.s32.totalorder %s13, 4
    // Predicated region
    $region37: #{resnet_block_forward.1} parent=5 // pred_check
      %p239 = pneg %p238
    $region38: #{resnet_block_forward.1} parent=5 // pred_check_branch
      %241 = sbr.rel (%p239) target = $region40
    $region39: #{resnet_block_forward.1} parent=5 // pred_region
      // Predicated region
      $region41: #{resnet_block_forward.1} parent=39 // pred_check
        %p242 = pneg %p45
      $region42: #{resnet_block_forward.1} parent=39 // pred_check_branch
        %244 = sbr.rel (%p242) target = $region44
      $region43: #{resnet_block_forward.1} parent=39 // pred_region
        %p245 = scmp.lt.s32.totalorder %s20, 1
        %s246 = scalar_select %p245, %s20, 1
        %s247 = smul.addr %s246, 32
        %s248 = smul.addr %s247, 8
        %s249 = scalar_lea.vmem %s0, %s248
      $region44: #{resnet_block_forward.1} parent=39 // pred_fallthru
        _
    $region40: #{resnet_block_forward.1} parent=5 // pred_fallthru
      _
    %p250 = scmp.le.s32.totalorder 1, %s13
    %p251 = scmp.lt.s32.totalorder %s13, 5
    %p252 = pnand %p250, %p251
    %p253 = pneg %p252
    // Predicated region
    $region45: #{resnet_block_forward.1} parent=5 // pred_check
      _
    $region46: #{resnet_block_forward.1} parent=5 // pred_check_branch
      %255 = sbr.rel (%p252) target = $region48
    $region47: #{resnet_block_forward.1} parent=5 // pred_region
      %s256 = ssub.s32 %s13, 1
      %p257 = scmp.lt.s32.totalorder %s22, 1
      %s258 = scalar_select %p257, %s22, 1
      %s259 = smul.addr %s258, 32
      %s260 = smul.addr %s259, 8
      %s261 = scalar_lea.vmem %s0, %s260
      %p262 = pneg %p51
      %p263 = pneg %p48
      %p264 = pneg %p72
      %p265 = pneg %p69
      %p266 = pneg %p93
      %p267 = pneg %p90
      %p268 = pneg %p114
      %p269 = pneg %p111
      %p270 = pneg %p135
      %p271 = pneg %p132
      %p272 = pneg %p156
      %p273 = pneg %p153
      %p274 = pneg %p177
      %p275 = pneg %p174
      %p276 = pneg %p205
      %p277 = pneg %p202
      %s278 = smul.u32 8, %s23
      %p279 = scmp.lt.s32.totalorder %s22, 1
      %s280 = scalar_select %p279, %s22, 1
      %p281 = scmp.lt.s32.totalorder %s278, 15
      %s282 = scalar_select %p281, %s278, 15
      %s283 = smul.addr %s282, 2
      %s284 = smul.addr %s280, 32
      %s285 = sadd.s32 %s283, %s284
      %s286 = smul.addr %s285, 8
      %s287 = scalar_lea.vmem %s7, %s286
      %p288 = scmp.lt.s32.totalorder %s22, 1
      %s289 = scalar_select %p288, %s22, 1
      %s290 = smul.addr %s289, 32
      %s291 = smul.addr %s290, 8
      %s292 = scalar_lea.vmem %s0, %s291
      %s293 = smul.u32 8, %s23
      %p294 = scmp.lt.s32.totalorder %s22, 1
      %s295 = scalar_select %p294, %s22, 1
      %p296 = scmp.lt.s32.totalorder %s293, 15
      %s297 = scalar_select %p296, %s293, 15
      %s298 = smul.addr %s297, 2
      %s299 = smul.addr %s295, 32
      %s300 = sadd.s32 %s298, %s299
      %s301 = smul.addr %s300, 8
      %s302 = scalar_lea.vmem %s7, %s301
      %s303 = smul.u32 8, %s23
      %s305 = smul.u32 %s23, 8
      %s306 = smul.u32 %s305, 16
      %s307 = scalar_lea.vmem %s292, %s306
      %v308 = vld [vmem:[%s307] sm:$0xff]
      %v309 = vld [vmem:[%s307 + $0x8] sm:$0xff]
      %v310 = vld [vmem:[%s307 + $0x10] sm:$0xff]
      %v311 = vld [vmem:[%s307 + $0x18] sm:$0xff]
      %v312 = vld [vmem:[%s307 + $0x20] sm:$0xff]
      %v313 = vld [vmem:[%s307 + $0x28] sm:$0xff]
      %v314 = vld [vmem:[%s307 + $0x30] sm:$0xff]
      %v315 = vld [vmem:[%s307 + $0x38] sm:$0xff]
      %v316 = vld [vmem:[%s307 + $0x40] sm:$0xff]
      %v317 = vld [vmem:[%s307 + $0x48] sm:$0xff]
      %v318 = vld [vmem:[%s307 + $0x50] sm:$0xff]
      %v319 = vld [vmem:[%s307 + $0x58] sm:$0xff]
      %v320 = vld [vmem:[%s307 + $0x60] sm:$0xff]
      %v321 = vld [vmem:[%s307 + $0x68] sm:$0xff]
      %v322 = vld [vmem:[%s307 + $0x70] sm:$0xff]
      %v323 = vld [vmem:[%s307 + $0x78] sm:$0xff]
      %s324 = scalar_lea.vmem [#allocation2], 48
      %325 = vst [vmem:[%s324 + $0x1] sm:$0xff] %v308
      %326 = vst [vmem:[%s324 + $0x9] sm:$0xff] %v309
      %327 = vst [vmem:[%s324 + $0x19] sm:$0xff] %v310
      %328 = vst [vmem:[%s324 + $0x21] sm:$0xff] %v311
      %329 = vst [vmem:[%s324 + $0x31] sm:$0xff] %v312
      %330 = vst [vmem:[%s324 + $0x39] sm:$0xff] %v313
      %331 = vst [vmem:[%s324 + $0x49] sm:$0xff] %v314
      %332 = vst [vmem:[%s324 + $0x51] sm:$0xff] %v315
      %333 = vst [vmem:[%s324 + $0x61] sm:$0xff] %v316
      %334 = vst [vmem:[%s324 + $0x69] sm:$0xff] %v317
      %335 = vst [vmem:[%s324 + $0x79] sm:$0xff] %v318
      %336 = vst [vmem:[%s324 + $0x81] sm:$0xff] %v319
      %337 = vst [vmem:[%s324 + $0x91] sm:$0xff] %v320
      %338 = vst [vmem:[%s324 + $0x99] sm:$0xff] %v321
      %339 = vst [vmem:[%s324 + $0xa9] sm:$0xff] %v322
      %340 = vst [vmem:[%s324 + $0xb1] sm:$0xff] %v323
      %p341 = scmp.gt.s32.totalorder %s23, 0
      // Predicated region
      $region49: #{resnet_block_forward.1} parent=47 // pred_check
        %p342 = pneg %p341
      $region50: #{resnet_block_forward.1} parent=47 // pred_check_branch
        %344 = sbr.rel (%p342) target = $region52
      $region51: #{resnet_block_forward.1} parent=47 // pred_region
        %s345 = ssub.s32 %s305, 2
        %s346 = smul.u32 %s345, 16
        %s347 = scalar_lea.vmem %s292, %s346
        %v348 = vld [vmem:[%s347] sm:$0xff]
        %v349 = vld [vmem:[%s347 + $0x8] sm:$0xff]
        %v350 = vld [vmem:[%s347 + $0x10] sm:$0xff]
        %v351 = vld [vmem:[%s347 + $0x18] sm:$0xff]
        %352 = vst [vmem:[#allocation2 + $0x1] sm:$0xff] %v348
        %353 = vst [vmem:[#allocation2 + $0x9] sm:$0xff] %v349
        %354 = vst [vmem:[#allocation2 + $0x19] sm:$0xff] %v350
        %355 = vst [vmem:[#allocation2 + $0x21] sm:$0xff] %v351
      $region52: #{resnet_block_forward.1} parent=47 // pred_fallthru
        _
      %p356 = scmp.eq.s32.totalorder %s23, 0
      // Predicated region
      $region53: #{resnet_block_forward.1} parent=47 // pred_check
        %p357 = pneg %p356
      $region54: #{resnet_block_forward.1} parent=47 // pred_check_branch
        %359 = sbr.rel (%p357) target = $region56
      $region55: #{resnet_block_forward.1} parent=47 // pred_region
        %s360 = scalar_lea.vmem %s292, 16
        %v361 = vld [vmem:[%s360] sm:$0xff]
        %v362 = vld [vmem:[%s360 + $0x8] sm:$0xff]
        %s363 = scalar_lea.vmem [#allocation2], 24
        %364 = vst [vmem:[%s363 + $0x1] sm:$0xff] %v361
        %365 = vst [vmem:[%s363 + $0x9] sm:$0xff] %v362
        %s366 = scalar_lea.vmem %s292, 32
        %v367 = vld [vmem:[%s366] sm:$0xff]
        %v368 = vld [vmem:[%s366 + $0x8] sm:$0xff]
        %369 = vst [vmem:[#allocation2 + $0x1] sm:$0xff] %v367
        %370 = vst [vmem:[#allocation2 + $0x9] sm:$0xff] %v368
      $region56: #{resnet_block_forward.1} parent=47 // pred_fallthru
        _
      %p371 = scmp.lt.s32.totalorder %s23, 1
      // Predicated region
      $region57: #{resnet_block_forward.1} parent=47 // pred_check
        %p372 = pneg %p371
      $region58: #{resnet_block_forward.1} parent=47 // pred_check_branch
        %374 = sbr.rel (%p372) target = $region60
      $region59: #{resnet_block_forward.1} parent=47 // pred_region
        %s375 = sadd.s32 %s305, 8
        %s376 = smul.u32 %s375, 16
        %s377 = scalar_lea.vmem %s292, %s376
        %v378 = vld [vmem:[%s377] sm:$0xff]
        %v379 = vld [vmem:[%s377 + $0x8] sm:$0xff]
        %v380 = vld [vmem:[%s377 + $0x10] sm:$0xff]
        %v381 = vld [vmem:[%s377 + $0x18] sm:$0xff]
        %s382 = scalar_lea.vmem [#allocation2], 240
        %383 = vst [vmem:[%s382 + $0x1] sm:$0xff] %v378
        %384 = vst [vmem:[%s382 + $0x9] sm:$0xff] %v379
        %385 = vst [vmem:[%s382 + $0x19] sm:$0xff] %v380
        %386 = vst [vmem:[%s382 + $0x21] sm:$0xff] %v381
      $region60: #{resnet_block_forward.1} parent=47 // pred_fallthru
        _
      %p387 = scmp.eq.s32.totalorder %s23, 1
      // Predicated region
      $region61: #{resnet_block_forward.1} parent=47 // pred_check
        %p388 = pneg %p387
      $region62: #{resnet_block_forward.1} parent=47 // pred_check_branch
        %390 = sbr.rel (%p388) target = $region64
      $region63: #{resnet_block_forward.1} parent=47 // pred_region
        %s391 = scalar_lea.vmem %s292, 224
        %v392 = vld [vmem:[%s391] sm:$0xff]
        %v393 = vld [vmem:[%s391 + $0x8] sm:$0xff]
        %s394 = scalar_lea.vmem [#allocation2], 240
        %395 = vst [vmem:[%s394 + $0x1] sm:$0xff] %v392
        %396 = vst [vmem:[%s394 + $0x9] sm:$0xff] %v393
        %s397 = scalar_lea.vmem %s292, 208
        %v398 = vld [vmem:[%s397] sm:$0xff]
        %v399 = vld [vmem:[%s397 + $0x8] sm:$0xff]
        %s400 = scalar_lea.vmem [#allocation2], 264
        %401 = vst [vmem:[%s400 + $0x1] sm:$0xff] %v398
        %402 = vst [vmem:[%s400 + $0x9] sm:$0xff] %v399
      $region64: #{resnet_block_forward.1} parent=47 // pred_fallthru
        _
      %v403 = vld [vmem:[#allocation2 + $0x2] sm:$0x1]
      %v404 = vld [vmem:[#allocation2 + $0x1a] sm:$0x1]
      %v405 = vld [vmem:[#allocation2 + $0x32] sm:$0x1]
      %v406 = vld [vmem:[#allocation2 + $0x4a] sm:$0x1]
      %v407 = vld [vmem:[#allocation2 + $0x62] sm:$0x1]
      %v408 = vld [vmem:[#allocation2 + $0x7a] sm:$0x1]
      %v409 = vld [vmem:[#allocation2 + $0x92] sm:$0x1]
      %v410 = vld [vmem:[#allocation2 + $0xaa] sm:$0x1]
      %v411 = vld [vmem:[#allocation2 + $0xc2] sm:$0x1]
      %v412 = vld [vmem:[#allocation2 + $0xda] sm:$0x1]
      %v413 = vld [vmem:[#allocation2 + $0xf2] sm:$0x1]
      %v414 = vld [vmem:[#allocation2 + $0x10a] sm:$0x1]
      %415 = vst [vmem:[#allocation2] sm:$0x1] %v403
      %416 = vst [vmem:[#allocation2 + $0x18] sm:$0x1] %v404
      %417 = vst [vmem:[#allocation2 + $0x30] sm:$0x1] %v405
      %418 = vst [vmem:[#allocation2 + $0x48] sm:$0x1] %v406
      %419 = vst [vmem:[#allocation2 + $0x60] sm:$0x1] %v407
      %420 = vst [vmem:[#allocation2 + $0x78] sm:$0x1] %v408
      %421 = vst [vmem:[#allocation2 + $0x90] sm:$0x1] %v409
      %422 = vst [vmem:[#allocation2 + $0xa8] sm:$0x1] %v410
      %423 = vst [vmem:[#allocation2 + $0xc0] sm:$0x1] %v411
      %424 = vst [vmem:[#allocation2 + $0xd8] sm:$0x1] %v412
      %425 = vst [vmem:[#allocation2 + $0xf0] sm:$0x1] %v413
      %426 = vst [vmem:[#allocation2 + $0x108] sm:$0x1] %v414
      %v427 = vld [vmem:[#allocation2 + $0xf] sm:$0x1]
      %v428 = vld [vmem:[#allocation2 + $0x27] sm:$0x1]
      %v429 = vld [vmem:[#allocation2 + $0x3f] sm:$0x1]
      %v430 = vld [vmem:[#allocation2 + $0x57] sm:$0x1]
      %v431 = vld [vmem:[#allocation2 + $0x6f] sm:$0x1]
      %v432 = vld [vmem:[#allocation2 + $0x87] sm:$0x1]
      %v433 = vld [vmem:[#allocation2 + $0x9f] sm:$0x1]
      %v434 = vld [vmem:[#allocation2 + $0xb7] sm:$0x1]
      %v435 = vld [vmem:[#allocation2 + $0xcf] sm:$0x1]
      %v436 = vld [vmem:[#allocation2 + $0xe7] sm:$0x1]
      %v437 = vld [vmem:[#allocation2 + $0xff] sm:$0x1]
      %v438 = vld [vmem:[#allocation2 + $0x117] sm:$0x1]
      %439 = vst [vmem:[#allocation2 + $0x11] sm:$0x1] %v427
      %440 = vst [vmem:[#allocation2 + $0x29] sm:$0x1] %v428
      %441 = vst [vmem:[#allocation2 + $0x41] sm:$0x1] %v429
      %442 = vst [vmem:[#allocation2 + $0x59] sm:$0x1] %v430
      %443 = vst [vmem:[#allocation2 + $0x71] sm:$0x1] %v431
      %444 = vst [vmem:[#allocation2 + $0x89] sm:$0x1] %v432
      %445 = vst [vmem:[#allocation2 + $0xa1] sm:$0x1] %v433
      %446 = vst [vmem:[#allocation2 + $0xb9] sm:$0x1] %v434
      %447 = vst [vmem:[#allocation2 + $0xd1] sm:$0x1] %v435
      %448 = vst [vmem:[#allocation2 + $0xe9] sm:$0x1] %v436
      %449 = vst [vmem:[#allocation2 + $0x101] sm:$0x1] %v437
      %450 = vst [vmem:[#allocation2 + $0x119] sm:$0x1] %v438
      %v451 = vld [vmem:[#allocation2] sm:$0xff]
      %v452 = vld [vmem:[#allocation2 + $0x8] sm:$0xff]
      %v453 = vld [vmem:[#allocation2 + $0x18] sm:$0xff]
      %v454 = vld [vmem:[#allocation2 + $0x20] sm:$0xff]
      %v455 = vld [vmem:[#allocation2 + $0x30] sm:$0xff]
      %v456 = vld [vmem:[#allocation2 + $0x38] sm:$0xff]
      %v457 = vld [vmem:[#allocation2 + $0x48] sm:$0xff]
      %v458 = vld [vmem:[#allocation2 + $0x50] sm:$0xff]
      %v459 = vld [vmem:[#allocation2 + $0x60] sm:$0xff]
      %v460 = vld [vmem:[#allocation2 + $0x68] sm:$0xff]
      %v461 = vld [vmem:[#allocation2 + $0x78] sm:$0xff]
      %v462 = vld [vmem:[#allocation2 + $0x80] sm:$0xff]
      %v463 = vld [vmem:[#allocation2 + $0x90] sm:$0xff]
      %v464 = vld [vmem:[#allocation2 + $0x98] sm:$0xff]
      %v465 = vld [vmem:[#allocation2 + $0xa8] sm:$0xff]
      %v466 = vld [vmem:[#allocation2 + $0xb0] sm:$0xff]
      %v467 = vld [vmem:[#allocation2 + $0xc0] sm:$0xff]
      %v468 = vld [vmem:[#allocation2 + $0xc8] sm:$0xff]
      %v469 = vld [vmem:[#allocation2 + $0xd8] sm:$0xff]
      %v470 = vld [vmem:[#allocation2 + $0xe0] sm:$0xff]
      %v471 = vpack.c.bf16 %v452, %v451
      %v472 = vpack.c.bf16 %v454, %v453
      %v473 = vpack.c.bf16 %v456, %v455
      %v474 = vpack.c.bf16 %v458, %v457
      %v475 = vpack.c.bf16 %v460, %v459
      %v476 = vpack.c.bf16 %v462, %v461
      %v477 = vpack.c.bf16 %v464, %v463
      %v478 = vpack.c.bf16 %v466, %v465
      %v479 = vpack.c.bf16 %v468, %v467
      %v480 = vpack.c.bf16 %v470, %v469
      %v481 = vld [vmem:[%s1] sm:$0xf]
      %v482 = vld [vmem:[%s1 + $0x4] sm:$0xf]
      %v483 = vld [vmem:[%s1 + $0x8] sm:$0xf]
      %v484 = vld [vmem:[%s1 + $0xc] sm:$0xf]
      %v485 = vld [vmem:[%s1 + $0x10] sm:$0xf]
      %v486 = vld [vmem:[%s1 + $0x14] sm:$0xf]
      %v487 = vld [vmem:[%s1 + $0x18] sm:$0xf]
      %v488 = vld [vmem:[%s1 + $0x1c] sm:$0xf]
      %v489 = vld [vmem:[%s1 + $0x20] sm:$0xf]
      %v490 = vld [vmem:[%s1 + $0x24] sm:$0xf]
      %v491 = vld [vmem:[%s1 + $0x28] sm:$0xf]
      %v492 = vld [vmem:[%s1 + $0x2c] sm:$0xf]
      %v493 = vld [vmem:[%s1 + $0x30] sm:$0xf]
      %v494 = vld [vmem:[%s1 + $0x34] sm:$0xf]
      %v495 = vld [vmem:[%s1 + $0x38] sm:$0xf]
      %v496 = vld [vmem:[%s1 + $0x3c] sm:$0xf]
      %v513 = vunpack.c.l.b16 %v481
      %v514 = vunpack.c.l.b16 %v482
      %v515 = vunpack.c.l.b16 %v483
      %v516 = vunpack.c.l.b16 %v484
      %v517 = vunpack.c.l.b16 %v485
      %v518 = vunpack.c.l.b16 %v486
      %v519 = vunpack.c.l.b16 %v487
      %v520 = vunpack.c.l.b16 %v488
      %v521 = vunpack.c.l.b16 %v489
      %v522 = vunpack.c.l.b16 %v490
      %v523 = vunpack.c.l.b16 %v491
      %v524 = vunpack.c.l.b16 %v492
      %v525 = vunpack.c.l.b16 %v493
      %v526 = vunpack.c.l.b16 %v494
      %v527 = vunpack.c.l.b16 %v495
      %v528 = vunpack.c.l.b16 %v496
      %v529 = vpack.c.b16 %v514, %v513
      %v530 = vpack.c.b16 %v516, %v515
      %v531 = vpack.c.b16 %v518, %v517
      %v532 = vpack.c.b16 %v520, %v519
      %v533 = vpack.c.b16 %v522, %v521
      %v534 = vpack.c.b16 %v524, %v523
      %v535 = vpack.c.b16 %v526, %v525
      %v536 = vpack.c.b16 %v528, %v527
      %545 = vmatprep.subr.bf16.mxu0 0
      %546 = vmatpush1.bf16.msra.mxu0 %v529
      %547 = vmatprep.subr.bf16.mxu0 0
      %548 = vmatpush1.bf16.msra.mxu0 %v530
      %549 = vmatprep.subr.bf16.mxu0 0
      %550 = vmatpush1.bf16.msra.mxu0 %v531
      %551 = vmatprep.subr.bf16.mxu0 0
      %552 = vmatpush1.bf16.msra.mxu0 %v532
      %553 = vmatprep.subr.bf16.mxu0 0
      %554 = vmatpush1.bf16.msra.mxu0 %v533
      %555 = vmatprep.subr.bf16.mxu0 0
      %556 = vmatpush1.bf16.msra.mxu0 %v534
      %557 = vmatprep.subr.bf16.mxu0 0
      %558 = vmatpush1.bf16.msra.mxu0 %v535
      %559 = vmatprep.subr.bf16.mxu0 0
      %560 = vmatpush1.bf16.msra.mxu0 %v536
      %561 = vmatprep.subr.bf16.mxu0 0
      %562 = vmatpush1.bf16.msra.mxu0 0
      %563 = vmatprep.subr.bf16.mxu0 0
      %564 = vmatpush1.bf16.msra.mxu0 0
      %565 = vmatprep.subr.bf16.mxu0 0
      %566 = vmatpush1.bf16.msra.mxu0 0
      %567 = vmatprep.subr.bf16.mxu0 0
      %568 = vmatpush1.bf16.msra.mxu0 0
      %569 = vmatprep.subr.bf16.mxu0 0
      %570 = vmatpush1.bf16.msra.mxu0 0
      %571 = vmatprep.subr.bf16.mxu0 0
      %572 = vmatpush1.bf16.msra.mxu0 0
      %573 = vmatprep.subr.bf16.mxu0 0
      %574 = vmatpush1.bf16.msra.mxu0 0
      %575 = vmatprep.subr.bf16.mxu0 0
      %576 = vmatpush1.bf16.msra.mxu0 0
      %577 = vmatprep.mubr.bf16.mxu0 0
      %578 = vmatmul.mubr.bf16.gmra.mrb[0].mxu0 %v471
      %v579 = vpop.f32.mrb[0].mxu0
      %v580 = vadd.f32 0.0, %v579
      %v581 = vpop.f32.mrb[0].mxu0
      %v582 = vpop.f32.mrb[0].mxu0
      %v583 = vadd.f32 0.0, %v582
      %v584 = vpop.f32.mrb[0].mxu0
      %585 = vmatprep.mubr.bf16.mxu0 0
      %586 = vmatmul.mubr.bf16.gmra.mrb[0].mxu0 %v472
      %v587 = vpop.f32.mrb[0].mxu0
      %v588 = vadd.f32 0.0, %v587
      %v589 = vpop.f32.mrb[0].mxu0
      %v590 = vpop.f32.mrb[0].mxu0
      %v591 = vadd.f32 0.0, %v590
      %v592 = vpop.f32.mrb[0].mxu0
      %593 = vmatprep.mubr.bf16.mxu0 0
      %594 = vmatmul.mubr.bf16.gmra.mrb[0].mxu0 %v473
      %v595 = vpop.f32.mrb[0].mxu0
      %v596 = vadd.f32 0.0, %v595
      %v597 = vpop.f32.mrb[0].mxu0
      %v598 = vpop.f32.mrb[0].mxu0
      %v599 = vadd.f32 0.0, %v598
      %v600 = vpop.f32.mrb[0].mxu0
      %601 = vmatprep.mubr.bf16.mxu0 0
      %602 = vmatmul.mubr.bf16.gmra.mrb[0].mxu0 %v474
      %v603 = vpop.f32.mrb[0].mxu0
      %v604 = vadd.f32 0.0, %v603
      %v605 = vpop.f32.mrb[0].mxu0
      %v606 = vpop.f32.mrb[0].mxu0
      %v607 = vadd.f32 0.0, %v606
      %v608 = vpop.f32.mrb[0].mxu0
      %609 = vmatprep.mubr.bf16.mxu0 0
      %610 = vmatmul.mubr.bf16.gmra.mrb[0].mxu0 %v475
      %v611 = vpop.f32.mrb[0].mxu0
      %v612 = vadd.f32 0.0, %v611
      %v613 = vpop.f32.mrb[0].mxu0
      %v614 = vpop.f32.mrb[0].mxu0
      %v615 = vadd.f32 0.0, %v614
      %v616 = vpop.f32.mrb[0].mxu0
      %617 = vmatprep.mubr.bf16.mxu0 0
      %618 = vmatmul.mubr.bf16.gmra.mrb[0].mxu0 %v476
      %v619 = vpop.f32.mrb[0].mxu0
      %v620 = vadd.f32 0.0, %v619
      %v621 = vpop.f32.mrb[0].mxu0
      %v622 = vpop.f32.mrb[0].mxu0
      %v623 = vadd.f32 0.0, %v622
      %v624 = vpop.f32.mrb[0].mxu0
      %625 = vmatprep.mubr.bf16.mxu0 0
      %626 = vmatmul.mubr.bf16.gmra.mrb[0].mxu0 %v477
      %v627 = vpop.f32.mrb[0].mxu0
      %v628 = vadd.f32 0.0, %v627
      %v629 = vpop.f32.mrb[0].mxu0
      %v630 = vpop.f32.mrb[0].mxu0
      %v631 = vadd.f32 0.0, %v630
      %v632 = vpop.f32.mrb[0].mxu0
      %633 = vmatprep.mubr.bf16.mxu0 0
      %634 = vmatmul.mubr.bf16.gmra.mrb[0].mxu0 %v478
      %v635 = vpop.f32.mrb[0].mxu0
      %v636 = vadd.f32 0.0, %v635
      %v637 = vpop.f32.mrb[0].mxu0
      %v638 = vpop.f32.mrb[0].mxu0
      %v639 = vadd.f32 0.0, %v638
      %v640 = vpop.f32.mrb[0].mxu0
      %641 = vmatprep.mubr.bf16.mxu0 0
      %642 = vmatmul.mubr.bf16.gmra.mrb[0].mxu0 %v479
      %v643 = vpop.f32.mrb[0].mxu0
      %v644 = vadd.f32 0.0, %v643
      %v645 = vpop.f32.mrb[0].mxu0
      %v646 = vpop.f32.mrb[0].mxu0
      %v647 = vadd.f32 0.0, %v646
      %v648 = vpop.f32.mrb[0].mxu0
      %649 = vmatprep.mubr.bf16.mxu0 0
      %650 = vmatmul.mubr.bf16.gmra.mrb[0].mxu0 %v480
      %v651 = vpop.f32.mrb[0].mxu0
      %v652 = vadd.f32 0.0, %v651
      %v653 = vpop.f32.mrb[0].mxu0
      %v654 = vpop.f32.mrb[0].mxu0
      %v655 = vadd.f32 0.0, %v654
      %v656 = vpop.f32.mrb[0].mxu0
      %657 = vdwg.mxu0
      %658 = vst [vmem:[#allocation4] sm:$0xff] %v580
      %659 = vst [vmem:[#allocation4 + $0x8] sm:$0xff] %v583
      %660 = vst [vmem:[#allocation4 + $0x10] sm:$0xff] %v588
      %661 = vst [vmem:[#allocation4 + $0x18] sm:$0xff] %v591
      %662 = vst [vmem:[#allocation4 + $0x20] sm:$0xff] %v596
      %663 = vst [vmem:[#allocation4 + $0x28] sm:$0xff] %v599
      %664 = vst [vmem:[#allocation4 + $0x30] sm:$0xff] %v604
      %665 = vst [vmem:[#allocation4 + $0x38] sm:$0xff] %v607
      %666 = vst [vmem:[#allocation4 + $0x40] sm:$0xff] %v612
      %667 = vst [vmem:[#allocation4 + $0x48] sm:$0xff] %v615
      %668 = vst [vmem:[#allocation4 + $0x50] sm:$0xff] %v620
      %669 = vst [vmem:[#allocation4 + $0x58] sm:$0xff] %v623
      %670 = vst [vmem:[#allocation4 + $0x60] sm:$0xff] %v628
      %671 = vst [vmem:[#allocation4 + $0x68] sm:$0xff] %v631
      %672 = vst [vmem:[#allocation4 + $0x70] sm:$0xff] %v636
      %673 = vst [vmem:[#allocation4 + $0x78] sm:$0xff] %v639
      %674 = vst [vmem:[#allocation4 + $0x80] sm:$0xff] %v644
      %675 = vst [vmem:[#allocation4 + $0x88] sm:$0xff] %v647
      %676 = vst [vmem:[#allocation4 + $0x90] sm:$0xff] %v652
      %677 = vst [vmem:[#allocation4 + $0x98] sm:$0xff] %v655
      %v678 = vld [vmem:[#allocation2 + $0x1] sm:$0xff]
      %v679 = vld [vmem:[#allocation2 + $0x9] sm:$0xff]
      %v680 = vld [vmem:[#allocation2 + $0x19] sm:$0xff]
      %v681 = vld [vmem:[#allocation2 + $0x21] sm:$0xff]
      %v682 = vld [vmem:[#allocation2 + $0x31] sm:$0xff]
      %v683 = vld [vmem:[#allocation2 + $0x39] sm:$0xff]
      %v684 = vld [vmem:[#allocation2 + $0x49] sm:$0xff]
      %v685 = vld [vmem:[#allocation2 + $0x51] sm:$0xff]
      %v686 = vld [vmem:[#allocation2 + $0x61] sm:$0xff]
      %v687 = vld [vmem:[#allocation2 + $0x69] sm:$0xff]
      %v688 = vld [vmem:[#allocation2 + $0x79] sm:$0xff]
      %v689 = vld [vmem:[#allocation2 + $0x81] sm:$0xff]
      %v690 = vld [vmem:[#allocation2 + $0x91] sm:$0xff]
      %v691 = vld [vmem:[#allocation2 + $0x99] sm:$0xff]
      %v692 = vld [vmem:[#allocation2 + $0xa9] sm:$0xff]
      %v693 = vld [vmem:[#allocation2 + $0xb1] sm:$0xff]
      %v694 = vld [vmem:[#allocation2 + $0xc1] sm:$0xff]
      %v695 = vld [vmem:[#allocation2 + $0xc9] sm:$0xff]
      %v696 = vld [vmem:[#allocation2 + $0xd9] sm:$0xff]
      %v697 = vld [vmem:[#allocation2 + $0xe1] sm:$0xff]
      %v698 = vpack.c.bf16 %v679, %v678
      %v699 = vpack.c.bf16 %v681, %v680
      %v700 = vpack.c.bf16 %v683, %v682
      %v701 = vpack.c.bf16 %v685, %v684
      %v702 = vpack.c.bf16 %v687, %v686
      %v703 = vpack.c.bf16 %v689, %v688
      %v704 = vpack.c.bf16 %v691, %v690
      %v705 = vpack.c.bf16 %v693, %v692
      %v706 = vpack.c.bf16 %v695, %v694
      %v707 = vpack.c.bf16 %v697, %v696
      %s708 = scalar_lea.vmem %s1, 64
      %v709 = vld [vmem:[%s708] sm:$0xf]
      %v710 = vld [vmem:[%s708 + $0x4] sm:$0xf]
      %v711 = vld [vmem:[%s708 + $0x8] sm:$0xf]
      %v712 = vld [vmem:[%s708 + $0xc] sm:$0xf]
      %v713 = vld [vmem:[%s708 + $0x10] sm:$0xf]
      %v714 = vld [vmem:[%s708 + $0x14] sm:$0xf]
      %v715 = vld [vmem:[%s708 + $0x18] sm:$0xf]
      %v716 = vld [vmem:[%s708 + $0x1c] sm:$0xf]
      %v717 = vld [vmem:[%s708 + $0x20] sm:$0xf]
      %v718 = vld [vmem:[%s708 + $0x24] sm:$0xf]
      %v719 = vld [vmem:[%s708 + $0x28] sm:$0xf]
      %v720 = vld [vmem:[%s708 + $0x2c] sm:$0xf]
      %v721 = vld [vmem:[%s708 + $0x30] sm:$0xf]
      %v722 = vld [vmem:[%s708 + $0x34] sm:$0xf]
      %v723 = vld [vmem:[%s708 + $0x38] sm:$0xf]
      %v724 = vld [vmem:[%s708 + $0x3c] sm:$0xf]
      %v741 = vunpack.c.l.b16 %v709
      %v742 = vunpack.c.l.b16 %v710
      %v743 = vunpack.c.l.b16 %v711
      %v744 = vunpack.c.l.b16 %v712
      %v745 = vunpack.c.l.b16 %v713
      %v746 = vunpack.c.l.b16 %v714
      %v747 = vunpack.c.l.b16 %v715
      %v748 = vunpack.c.l.b16 %v716
      %v749 = vunpack.c.l.b16 %v717
      %v750 = vunpack.c.l.b16 %v718
      %v751 = vunpack.c.l.b16 %v719
      %v752 = vunpack.c.l.b16 %v720
      %v753 = vunpack.c.l.b16 %v721
      %v754 = vunpack.c.l.b16 %v722
      %v755 = vunpack.c.l.b16 %v723
      %v756 = vunpack.c.l.b16 %v724
      %v757 = vpack.c.b16 %v742, %v741
      %v758 = vpack.c.b16 %v744, %v743
      %v759 = vpack.c.b16 %v746, %v745
      %v760 = vpack.c.b16 %v748, %v747
      %v761 = vpack.c.b16 %v750, %v749
      %v762 = vpack.c.b16 %v752, %v751
      %v763 = vpack.c.b16 %v754, %v753
      %v764 = vpack.c.b16 %v756, %v755
      %773 = vmatprep.subr.bf16.mxu0 0
      %774 = vmatpush1.bf16.msra.mxu0 %v757
      %775 = vmatprep.subr.bf16.mxu0 0
      %776 = vmatpush1.bf16.msra.mxu0 %v758
      %777 = vmatprep.subr.bf16.mxu0 0
      %778 = vmatpush1.bf16.msra.mxu0 %v759
      %779 = vmatprep.subr.bf16.mxu0 0
      %780 = vmatpush1.bf16.msra.mxu0 %v760
      %781 = vmatprep.subr.bf16.mxu0 0
      %782 = vmatpush1.bf16.msra.mxu0 %v761
      %783 = vmatprep.subr.bf16.mxu0 0
      %784 = vmatpush1.bf16.msra.mxu0 %v762
      %785 = vmatprep.subr.bf16.mxu0 0
      %786 = vmatpush1.bf16.msra.mxu0 %v763
      %787 = vmatprep.subr.bf16.mxu0 0
      %788 = vmatpush1.bf16.msra.mxu0 %v764
      %789 = vmatprep.subr.bf16.mxu0 0
      %790 = vmatpush1.bf16.msra.mxu0 0
      %791 = vmatprep.subr.bf16.mxu0 0
      %792 = vmatpush1.bf16.msra.mxu0 0
      %793 = vmatprep.subr.bf16.mxu0 0
      %794 = vmatpush1.bf16.msra.mxu0 0
      %795 = vmatprep.subr.bf16.mxu0 0
      %796 = vmatpush1.bf16.msra.mxu0 0
      %797 = vmatprep.subr.bf16.mxu0 0
      %798 = vmatpush1.bf16.msra.mxu0 0
      %799 = vmatprep.subr.bf16.mxu0 0
      %800 = vmatpush1.bf16.msra.mxu0 0
      %801 = vmatprep.subr.bf16.mxu0 0
      %802 = vmatpush1.bf16.msra.mxu0 0
      %803 = vmatprep.subr.bf16.mxu0 0
      %804 = vmatpush1.bf16.msra.mxu0 0
      %805 = vmatprep.mubr.bf16.mxu0 0
      %806 = vmatmul.mubr.bf16.gmra.mrb[0].mxu0 %v698
      %v807 = vpop.f32.mrb[0].mxu0
      %v808 = vadd.f32 0.0, %v807
      %v809 = vpop.f32.mrb[0].mxu0
      %v810 = vpop.f32.mrb[0].mxu0
      %v811 = vadd.f32 0.0, %v810
      %v812 = vpop.f32.mrb[0].mxu0
      %813 = vmatprep.mubr.bf16.mxu0 0
      %814 = vmatmul.mubr.bf16.gmra.mrb[0].mxu0 %v699
      %v815 = vpop.f32.mrb[0].mxu0
      %v816 = vadd.f32 0.0, %v815
      %v817 = vpop.f32.mrb[0].mxu0
      %v818 = vpop.f32.mrb[0].mxu0
      %v819 = vadd.f32 0.0, %v818
      %v820 = vpop.f32.mrb[0].mxu0
      %821 = vmatprep.mubr.bf16.mxu0 0
      %822 = vmatmul.mubr.bf16.gmra.mrb[0].mxu0 %v700
      %v823 = vpop.f32.mrb[0].mxu0
      %v824 = vadd.f32 0.0, %v823
      %v825 = vpop.f32.mrb[0].mxu0
      %v826 = vpop.f32.mrb[0].mxu0
      %v827 = vadd.f32 0.0, %v826
      %v828 = vpop.f32.mrb[0].mxu0
      %829 = vmatprep.mubr.bf16.mxu0 0
      %830 = vmatmul.mubr.bf16.gmra.mrb[0].mxu0 %v701
      %v831 = vpop.f32.mrb[0].mxu0
      %v832 = vadd.f32 0.0, %v831
      %v833 = vpop.f32.mrb[0].mxu0
      %v834 = vpop.f32.mrb[0].mxu0
      %v835 = vadd.f32 0.0, %v834
      %v836 = vpop.f32.mrb[0].mxu0
      %837 = vmatprep.mubr.bf16.mxu0 0
      %838 = vmatmul.mubr.bf16.gmra.mrb[0].mxu0 %v702
      %v839 = vpop.f32.mrb[0].mxu0
      %v840 = vadd.f32 0.0, %v839
      %v841 = vpop.f32.mrb[0].mxu0
      %v842 = vpop.f32.mrb[0].mxu0
      %v843 = vadd.f32 0.0, %v842
      %v844 = vpop.f32.mrb[0].mxu0
      %845 = vmatprep.mubr.bf16.mxu0 0
      %846 = vmatmul.mubr.bf16.gmra.mrb[0].mxu0 %v703
      %v847 = vpop.f32.mrb[0].mxu0
      %v848 = vadd.f32 0.0, %v847
      %v849 = vpop.f32.mrb[0].mxu0
      %v850 = vpop.f32.mrb[0].mxu0
      %v851 = vadd.f32 0.0, %v850
      %v852 = vpop.f32.mrb[0].mxu0
      %853 = vmatprep.mubr.bf16.mxu0 0
      %854 = vmatmul.mubr.bf16.gmra.mrb[0].mxu0 %v704
      %v855 = vpop.f32.mrb[0].mxu0
      %v856 = vadd.f32 0.0, %v855
      %v857 = vpop.f32.mrb[0].mxu0
      %v858 = vpop.f32.mrb[0].mxu0
      %v859 = vadd.f32 0.0, %v858
      %v860 = vpop.f32.mrb[0].mxu0
      %861 = vmatprep.mubr.bf16.mxu0 0
      %862 = vmatmul.mubr.bf16.gmra.mrb[0].mxu0 %v705
      %v863 = vpop.f32.mrb[0].mxu0
      %v864 = vadd.f32 0.0, %v863
      %v865 = vpop.f32.mrb[0].mxu0
      %v866 = vpop.f32.mrb[0].mxu0
      %v867 = vadd.f32 0.0, %v866
      %v868 = vpop.f32.mrb[0].mxu0
      %869 = vmatprep.mubr.bf16.mxu0 0
      %870 = vmatmul.mubr.bf16.gmra.mrb[0].mxu0 %v706
      %v871 = vpop.f32.mrb[0].mxu0
      %v872 = vadd.f32 0.0, %v871
      %v873 = vpop.f32.mrb[0].mxu0
      %v874 = vpop.f32.mrb[0].mxu0
      %v875 = vadd.f32 0.0, %v874
      %v876 = vpop.f32.mrb[0].mxu0
      %877 = vmatprep.mubr.bf16.mxu0 0
      %878 = vmatmul.mubr.bf16.gmra.mrb[0].mxu0 %v707
      %v879 = vpop.f32.mrb[0].mxu0
      %v880 = vadd.f32 0.0, %v879
      %v881 = vpop.f32.mrb[0].mxu0
      %v882 = vpop.f32.mrb[0].mxu0
      %v883 = vadd.f32 0.0, %v882
      %v884 = vpop.f32.mrb[0].mxu0
      %885 = vdwg.mxu0
      %v886 = vld [vmem:[#allocation4] sm:$0xff]
      %v887 = vld [vmem:[#allocation4 + $0x8] sm:$0xff]
      %v888 = vld [vmem:[#allocation4 + $0x10] sm:$0xff]
      %v889 = vld [vmem:[#allocation4 + $0x18] sm:$0xff]
      %v890 = vld [vmem:[#allocation4 + $0x20] sm:$0xff]
      %v891 = vld [vmem:[#allocation4 + $0x28] sm:$0xff]
      %v892 = vld [vmem:[#allocation4 + $0x30] sm:$0xff]
      %v893 = vld [vmem:[#allocation4 + $0x38] sm:$0xff]
      %v894 = vld [vmem:[#allocation4 + $0x40] sm:$0xff]
      %v895 = vld [vmem:[#allocation4 + $0x48] sm:$0xff]
      %v896 = vld [vmem:[#allocation4 + $0x50] sm:$0xff]
      %v897 = vld [vmem:[#allocation4 + $0x58] sm:$0xff]
      %v898 = vld [vmem:[#allocation4 + $0x60] sm:$0xff]
      %v899 = vld [vmem:[#allocation4 + $0x68] sm:$0xff]
      %v900 = vld [vmem:[#allocation4 + $0x70] sm:$0xff]
      %v901 = vld [vmem:[#allocation4 + $0x78] sm:$0xff]
      %v902 = vld [vmem:[#allocation4 + $0x80] sm:$0xff]
      %v903 = vld [vmem:[#allocation4 + $0x88] sm:$0xff]
      %v904 = vld [vmem:[#allocation4 + $0x90] sm:$0xff]
      %v905 = vld [vmem:[#allocation4 + $0x98] sm:$0xff]
      %v906 = vadd.f32 %v886, %v808
      %v907 = vadd.f32 %v887, %v811
      %v908 = vadd.f32 %v888, %v816
      %v909 = vadd.f32 %v889, %v819
      %v910 = vadd.f32 %v890, %v824
      %v911 = vadd.f32 %v891, %v827
      %v912 = vadd.f32 %v892, %v832
      %v913 = vadd.f32 %v893, %v835
      %v914 = vadd.f32 %v894, %v840
      %v915 = vadd.f32 %v895, %v843
      %v916 = vadd.f32 %v896, %v848
      %v917 = vadd.f32 %v897, %v851
      %v918 = vadd.f32 %v898, %v856
      %v919 = vadd.f32 %v899, %v859
      %v920 = vadd.f32 %v900, %v864
      %v921 = vadd.f32 %v901, %v867
      %v922 = vadd.f32 %v902, %v872
      %v923 = vadd.f32 %v903, %v875
      %v924 = vadd.f32 %v904, %v880
      %v925 = vadd.f32 %v905, %v883
      %926 = vst [vmem:[#allocation4] sm:$0xff] %v906
      %927 = vst [vmem:[#allocation4 + $0x8] sm:$0xff] %v907
      %928 = vst [vmem:[#allocation4 + $0x10] sm:$0xff] %v908
      %929 = vst [vmem:[#allocation4 + $0x18] sm:$0xff] %v909
      %930 = vst [vmem:[#allocation4 + $0x20] sm:$0xff] %v910
      %931 = vst [vmem:[#allocation4 + $0x28] sm:$0xff] %v911
      %932 = vst [vmem:[#allocation4 + $0x30] sm:$0xff] %v912
      %933 = vst [vmem:[#allocation4 + $0x38] sm:$0xff] %v913
      %934 = vst [vmem:[#allocation4 + $0x40] sm:$0xff] %v914
      %935 = vst [vmem:[#allocation4 + $0x48] sm:$0xff] %v915
      %936 = vst [vmem:[#allocation4 + $0x50] sm:$0xff] %v916
      %937 = vst [vmem:[#allocation4 + $0x58] sm:$0xff] %v917
      %938 = vst [vmem:[#allocation4 + $0x60] sm:$0xff] %v918
      %939 = vst [vmem:[#allocation4 + $0x68] sm:$0xff] %v919
      %940 = vst [vmem:[#allocation4 + $0x70] sm:$0xff] %v920
      %941 = vst [vmem:[#allocation4 + $0x78] sm:$0xff] %v921
      %942 = vst [vmem:[#allocation4 + $0x80] sm:$0xff] %v922
      %943 = vst [vmem:[#allocation4 + $0x88] sm:$0xff] %v923
      %944 = vst [vmem:[#allocation4 + $0x90] sm:$0xff] %v924
      %945 = vst [vmem:[#allocation4 + $0x98] sm:$0xff] %v925
      %v946 = vld [vmem:[#allocation2 + $0x2] sm:$0xff]
      %v947 = vld [vmem:[#allocation2 + $0xa] sm:$0xff]
      %v948 = vld [vmem:[#allocation2 + $0x1a] sm:$0xff]
      %v949 = vld [vmem:[#allocation2 + $0x22] sm:$0xff]
      %v950 = vld [vmem:[#allocation2 + $0x32] sm:$0xff]
      %v951 = vld [vmem:[#allocation2 + $0x3a] sm:$0xff]
      %v952 = vld [vmem:[#allocation2 + $0x4a] sm:$0xff]
      %v953 = vld [vmem:[#allocation2 + $0x52] sm:$0xff]
      %v954 = vld [vmem:[#allocation2 + $0x62] sm:$0xff]
      %v955 = vld [vmem:[#allocation2 + $0x6a] sm:$0xff]
      %v956 = vld [vmem:[#allocation2 + $0x7a] sm:$0xff]
      %v957 = vld [vmem:[#allocation2 + $0x82] sm:$0xff]
      %v958 = vld [vmem:[#allocation2 + $0x92] sm:$0xff]
      %v959 = vld [vmem:[#allocation2 + $0x9a] sm:$0xff]
      %v960 = vld [vmem:[#allocation2 + $0xaa] sm:$0xff]
      %v961 = vld [vmem:[#allocation2 + $0xb2] sm:$0xff]
      %v962 = vld [vmem:[#allocation2 + $0xc2] sm:$0xff]
      %v963 = vld [vmem:[#allocation2 + $0xca] sm:$0xff]
      %v964 = vld [vmem:[#allocation2 + $0xda] sm:$0xff]
      %v965 = vld [vmem:[#allocation2 + $0xe2] sm:$0xff]
      %v966 = vpack.c.bf16 %v947, %v946
      %v967 = vpack.c.bf16 %v949, %v948
      %v968 = vpack.c.bf16 %v951, %v950
      %v969 = vpack.c.bf16 %v953, %v952
      %v970 = vpack.c.bf16 %v955, %v954
      %v971 = vpack.c.bf16 %v957, %v956
      %v972 = vpack.c.bf16 %v959, %v958
      %v973 = vpack.c.bf16 %v961, %v960
      %v974 = vpack.c.bf16 %v963, %v962
      %v975 = vpack.c.bf16 %v965, %v964
      %s976 = scalar_lea.vmem %s1, 128
      %v977 = vld [vmem:[%s976] sm:$0xf]
      %v978 = vld [vmem:[%s976 + $0x4] sm:$0xf]
      %v979 = vld [vmem:[%s976 + $0x8] sm:$0xf]
      %v980 = vld [vmem:[%s976 + $0xc] sm:$0xf]
      %v981 = vld [vmem:[%s976 + $0x10] sm:$0xf]
      %v982 = vld [vmem:[%s976 + $0x14] sm:$0xf]
      %v983 = vld [vmem:[%s976 + $0x18] sm:$0xf]
      %v984 = vld [vmem:[%s976 + $0x1c] sm:$0xf]
      %v985 = vld [vmem:[%s976 + $0x20] sm:$0xf]
      %v986 = vld [vmem:[%s976 + $0x24] sm:$0xf]
      %v987 = vld [vmem:[%s976 + $0x28] sm:$0xf]
      %v988 = vld [vmem:[%s976 + $0x2c] sm:$0xf]
      %v989 = vld [vmem:[%s976 + $0x30] sm:$0xf]
      %v990 = vld [vmem:[%s976 + $0x34] sm:$0xf]
      %v991 = vld [vmem:[%s976 + $0x38] sm:$0xf]
      %v992 = vld [vmem:[%s976 + $0x3c] sm:$0xf]
      %v1009 = vunpack.c.l.b16 %v977
      %v1010 = vunpack.c.l.b16 %v978
      %v1011 = vunpack.c.l.b16 %v979
      %v1012 = vunpack.c.l.b16 %v980
      %v1013 = vunpack.c.l.b16 %v981
      %v1014 = vunpack.c.l.b16 %v982
      %v1015 = vunpack.c.l.b16 %v983
      %v1016 = vunpack.c.l.b16 %v984
      %v1017 = vunpack.c.l.b16 %v985
      %v1018 = vunpack.c.l.b16 %v986
      %v1019 = vunpack.c.l.b16 %v987
      %v1020 = vunpack.c.l.b16 %v988
      %v1021 = vunpack.c.l.b16 %v989
      %v1022 = vunpack.c.l.b16 %v990
      %v1023 = vunpack.c.l.b16 %v991
      %v1024 = vunpack.c.l.b16 %v992
      %v1025 = vpack.c.b16 %v1010, %v1009
      %v1026 = vpack.c.b16 %v1012, %v1011
      %v1027 = vpack.c.b16 %v1014, %v1013
      %v1028 = vpack.c.b16 %v1016, %v1015
      %v1029 = vpack.c.b16 %v1018, %v1017
      %v1030 = vpack.c.b16 %v1020, %v1019
      %v1031 = vpack.c.b16 %v1022, %v1021
      %v1032 = vpack.c.b16 %v1024, %v1023
      %1041 = vmatprep.subr.bf16.mxu0 0
      %1042 = vmatpush1.bf16.msra.mxu0 %v1025
      %1043 = vmatprep.subr.bf16.mxu0 0
      %1044 = vmatpush1.bf16.msra.mxu0 %v1026
      %1045 = vmatprep.subr.bf16.mxu0 0
      %1046 = vmatpush1.bf16.msra.mxu0 %v1027
      %1047 = vmatprep.subr.bf16.mxu0 0
      %1048 = vmatpush1.bf16.msra.mxu0 %v1028
      %1049 = vmatprep.subr.bf16.mxu0 0
      %1050 = vmatpush1.bf16.msra.mxu0 %v1029
      %1051 = vmatprep.subr.bf16.mxu0 0
      %1052 = vmatpush1.bf16.msra.mxu0 %v1030
      %1053 = vmatprep.subr.bf16.mxu0 0
      %1054 = vmatpush1.bf16.msra.mxu0 %v1031
      %1055 = vmatprep.subr.bf16.mxu0 0
      %1056 = vmatpush1.bf16.msra.mxu0 %v1032
      %1057 = vmatprep.subr.bf16.mxu0 0
      %1058 = vmatpush1.bf16.msra.mxu0 0
      %1059 = vmatprep.subr.bf16.mxu0 0
      %1060 = vmatpush1.bf16.msra.mxu0 0
      %1061 = vmatprep.subr.bf16.mxu0 0
      %1062 = vmatpush1.bf16.msra.mxu0 0
      %1063 = vmatprep.subr.bf16.mxu0 0
      %1064 = vmatpush1.bf16.msra.mxu0 0
      %1065 = vmatprep.subr.bf16.mxu0 0
      %1066 = vmatpush1.bf16.msra.mxu0 0
      %1067 = vmatprep.subr.bf16.mxu0 0
      %1068 = vmatpush1.bf16.msra.mxu0 0
      %1069 = vmatprep.subr.bf16.mxu0 0
      %1070 = vmatpush1.bf16.msra.mxu0 0
      %1071 = vmatprep.subr.bf16.mxu0 0
      %1072 = vmatpush1.bf16.msra.mxu0 0
      %1073 = vmatprep.mubr.bf16.mxu0 0
      %1074 = vmatmul.mubr.bf16.gmra.mrb[0].mxu0 %v966
      %v1075 = vpop.f32.mrb[0].mxu0
      %v1076 = vadd.f32 0.0, %v1075
      %v1077 = vpop.f32.mrb[0].mxu0
      %v1078 = vpop.f32.mrb[0].mxu0
      %v1079 = vadd.f32 0.0, %v1078
      %v1080 = vpop.f32.mrb[0].mxu0
      %1081 = vmatprep.mubr.bf16.mxu0 0
      %1082 = vmatmul.mubr.bf16.gmra.mrb[0].mxu0 %v967
      %v1083 = vpop.f32.mrb[0].mxu0
      %v1084 = vadd.f32 0.0, %v1083
      %v1085 = vpop.f32.mrb[0].mxu0
      %v1086 = vpop.f32.mrb[0].mxu0
      %v1087 = vadd.f32 0.0, %v1086
      %v1088 = vpop.f32.mrb[0].mxu0
      %1089 = vmatprep.mubr.bf16.mxu0 0
      %1090 = vmatmul.mubr.bf16.gmra.mrb[0].mxu0 %v968
      %v1091 = vpop.f32.mrb[0].mxu0
      %v1092 = vadd.f32 0.0, %v1091
      %v1093 = vpop.f32.mrb[0].mxu0
      %v1094 = vpop.f32.mrb[0].mxu0
      %v1095 = vadd.f32 0.0, %v1094
      %v1096 = vpop.f32.mrb[0].mxu0
      %1097 = vmatprep.mubr.bf16.mxu0 0
      %1098 = vmatmul.mubr.bf16.gmra.mrb[0].mxu0 %v969
      %v1099 = vpop.f32.mrb[0].mxu0
      %v1100 = vadd.f32 0.0, %v1099
      %v1101 = vpop.f32.mrb[0].mxu0
      %v1102 = vpop.f32.mrb[0].mxu0
      %v1103 = vadd.f32 0.0, %v1102
      %v1104 = vpop.f32.mrb[0].mxu0
      %1105 = vmatprep.mubr.bf16.mxu0 0
      %1106 = vmatmul.mubr.bf16.gmra.mrb[0].mxu0 %v970
      %v1107 = vpop.f32.mrb[0].mxu0
      %v1108 = vadd.f32 0.0, %v1107
      %v1109 = vpop.f32.mrb[0].mxu0
      %v1110 = vpop.f32.mrb[0].mxu0
      %v1111 = vadd.f32 0.0, %v1110
      %v1112 = vpop.f32.mrb[0].mxu0
      %1113 = vmatprep.mubr.bf16.mxu0 0
      %1114 = vmatmul.mubr.bf16.gmra.mrb[0].mxu0 %v971
      %v1115 = vpop.f32.mrb[0].mxu0
      %v1116 = vadd.f32 0.0, %v1115
      %v1117 = vpop.f32.mrb[0].mxu0
      %v1118 = vpop.f32.mrb[0].mxu0
      %v1119 = vadd.f32 0.0, %v1118
      %v1120 = vpop.f32.mrb[0].mxu0
      %1121 = vmatprep.mubr.bf16.mxu0 0
      %1122 = vmatmul.mubr.bf16.gmra.mrb[0].mxu0 %v972
      %v1123 = vpop.f32.mrb[0].mxu0
      %v1124 = vadd.f32 0.0, %v1123
      %v1125 = vpop.f32.mrb[0].mxu0
      %v1126 = vpop.f32.mrb[0].mxu0
      %v1127 = vadd.f32 0.0, %v1126
      %v1128 = vpop.f32.mrb[0].mxu0
      %1129 = vmatprep.mubr.bf16.mxu0 0
      %1130 = vmatmul.mubr.bf16.gmra.mrb[0].mxu0 %v973
      %v1131 = vpop.f32.mrb[0].mxu0
      %v1132 = vadd.f32 0.0, %v1131
      %v1133 = vpop.f32.mrb[0].mxu0
      %v1134 = vpop.f32.mrb[0].mxu0
      %v1135 = vadd.f32 0.0, %v1134
      %v1136 = vpop.f32.mrb[0].mxu0
      %1137 = vmatprep.mubr.bf16.mxu0 0
      %1138 = vmatmul.mubr.bf16.gmra.mrb[0].mxu0 %v974
      %v1139 = vpop.f32.mrb[0].mxu0
      %v1140 = vadd.f32 0.0, %v1139
      %v1141 = vpop.f32.mrb[0].mxu0
      %v1142 = vpop.f32.mrb[0].mxu0
      %v1143 = vadd.f32 0.0, %v1142
      %v1144 = vpop.f32.mrb[0].mxu0
      %1145 = vmatprep.mubr.bf16.mxu0 0
      %1146 = vmatmul.mubr.bf16.gmra.mrb[0].mxu0 %v975
      %v1147 = vpop.f32.mrb[0].mxu0
      %v1148 = vadd.f32 0.0, %v1147
      %v1149 = vpop.f32.mrb[0].mxu0
      %v1150 = vpop.f32.mrb[0].mxu0
      %v1151 = vadd.f32 0.0, %v1150
      %v1152 = vpop.f32.mrb[0].mxu0
      %1153 = vdwg.mxu0
      %v1154 = vld [vmem:[#allocation4] sm:$0xff]
      %v1155 = vld [vmem:[#allocation4 + $0x8] sm:$0xff]
      %v1156 = vld [vmem:[#allocation4 + $0x10] sm:$0xff]
      %v1157 = vld [vmem:[#allocation4 + $0x18] sm:$0xff]
      %v1158 = vld [vmem:[#allocation4 + $0x20] sm:$0xff]
      %v1159 = vld [vmem:[#allocation4 + $0x28] sm:$0xff]
      %v1160 = vld [vmem:[#allocation4 + $0x30] sm:$0xff]
      %v1161 = vld [vmem:[#allocation4 + $0x38] sm:$0xff]
      %v1162 = vld [vmem:[#allocation4 + $0x40] sm:$0xff]
      %v1163 = vld [vmem:[#allocation4 + $0x48] sm:$0xff]
      %v1164 = vld [vmem:[#allocation4 + $0x50] sm:$0xff]
      %v1165 = vld [vmem:[#allocation4 + $0x58] sm:$0xff]
      %v1166 = vld [vmem:[#allocation4 + $0x60] sm:$0xff]
      %v1167 = vld [vmem:[#allocation4 + $0x68] sm:$0xff]
      %v1168 = vld [vmem:[#allocation4 + $0x70] sm:$0xff]
      %v1169 = vld [vmem:[#allocation4 + $0x78] sm:$0xff]
      %v1170 = vld [vmem:[#allocation4 + $0x80] sm:$0xff]
      %v1171 = vld [vmem:[#allocation4 + $0x88] sm:$0xff]
      %v1172 = vld [vmem:[#allocation4 + $0x90] sm:$0xff]
      %v1173 = vld [vmem:[#allocation4 + $0x98] sm:$0xff]
      %v1174 = vadd.f32 %v1154, %v1076
      %v1175 = vadd.f32 %v1155, %v1079
      %v1176 = vadd.f32 %v1156, %v1084
      %v1177 = vadd.f32 %v1157, %v1087
      %v1178 = vadd.f32 %v1158, %v1092
      %v1179 = vadd.f32 %v1159, %v1095
      %v1180 = vadd.f32 %v1160, %v1100
      %v1181 = vadd.f32 %v1161, %v1103
      %v1182 = vadd.f32 %v1162, %v1108
      %v1183 = vadd.f32 %v1163, %v1111
      %v1184 = vadd.f32 %v1164, %v1116
      %v1185 = vadd.f32 %v1165, %v1119
      %v1186 = vadd.f32 %v1166, %v1124
      %v1187 = vadd.f32 %v1167, %v1127
      %v1188 = vadd.f32 %v1168, %v1132
      %v1189 = vadd.f32 %v1169, %v1135
      %v1190 = vadd.f32 %v1170, %v1140
      %v1191 = vadd.f32 %v1171, %v1143
      %v1192 = vadd.f32 %v1172, %v1148
      %v1193 = vadd.f32 %v1173, %v1151
      %1194 = vst [vmem:[#allocation4] sm:$0xff] %v1174
      %1195 = vst [vmem:[#allocation4 + $0x8] sm:$0xff] %v1175
      %1196 = vst [vmem:[#allocation4 + $0x10] sm:$0xff] %v1176
      %1197 = vst [vmem:[#allocation4 + $0x18] sm:$0xff] %v1177
      %1198 = vst [vmem:[#allocation4 + $0x20] sm:$0xff] %v1178
      %1199 = vst [vmem:[#allocation4 + $0x28] sm:$0xff] %v1179
      %1200 = vst [vmem:[#allocation4 + $0x30] sm:$0xff] %v1180
      %1201 = vst [vmem:[#allocation4 + $0x38] sm:$0xff] %v1181
      %1202 = vst [vmem:[#allocation4 + $0x40] sm:$0xff] %v1182
      %1203 = vst [vmem:[#allocation4 + $0x48] sm:$0xff] %v1183
      %1204 = vst [vmem:[#allocation4 + $0x50] sm:$0xff] %v1184
      %1205 = vst [vmem:[#allocation4 + $0x58] sm:$0xff] %v1185
      %1206 = vst [vmem:[#allocation4 + $0x60] sm:$0xff] %v1186
      %1207 = vst [vmem:[#allocation4 + $0x68] sm:$0xff] %v1187
      %1208 = vst [vmem:[#allocation4 + $0x70] sm:$0xff] %v1188
      %1209 = vst [vmem:[#allocation4 + $0x78] sm:$0xff] %v1189
      %1210 = vst [vmem:[#allocation4 + $0x80] sm:$0xff] %v1190
      %1211 = vst [vmem:[#allocation4 + $0x88] sm:$0xff] %v1191
      %1212 = vst [vmem:[#allocation4 + $0x90] sm:$0xff] %v1192
      %1213 = vst [vmem:[#allocation4 + $0x98] sm:$0xff] %v1193
      %s1214 = scalar_lea.vmem [#allocation2], 24
      %v1215 = vld [vmem:[%s1214] sm:$0xff]
      %v1216 = vld [vmem:[%s1214 + $0x8] sm:$0xff]
      %v1217 = vld [vmem:[%s1214 + $0x18] sm:$0xff]
      %v1218 = vld [vmem:[%s1214 + $0x20] sm:$0xff]
      %v1219 = vld [vmem:[%s1214 + $0x30] sm:$0xff]
      %v1220 = vld [vmem:[%s1214 + $0x38] sm:$0xff]
      %v1221 = vld [vmem:[%s1214 + $0x48] sm:$0xff]
      %v1222 = vld [vmem:[%s1214 + $0x50] sm:$0xff]
      %v1223 = vld [vmem:[%s1214 + $0x60] sm:$0xff]
      %v1224 = vld [vmem:[%s1214 + $0x68] sm:$0xff]
      %v1225 = vld [vmem:[%s1214 + $0x78] sm:$0xff]
      %v1226 = vld [vmem:[%s1214 + $0x80] sm:$0xff]
      %v1227 = vld [vmem:[%s1214 + $0x90] sm:$0xff]
      %v1228 = vld [vmem:[%s1214 + $0x98] sm:$0xff]
      %v1229 = vld [vmem:[%s1214 + $0xa8] sm:$0xff]
      %v1230 = vld [vmem:[%s1214 + $0xb0] sm:$0xff]
      %v1231 = vld [vmem:[%s1214 + $0xc0] sm:$0xff]
      %v1232 = vld [vmem:[%s1214 + $0xc8] sm:$0xff]
      %v1233 = vld [vmem:[%s1214 + $0xd8] sm:$0xff]
      %v1234 = vld [vmem:[%s1214 + $0xe0] sm:$0xff]
      %v1235 = vpack.c.bf16 %v1216, %v1215
      %v1236 = vpack.c.bf16 %v1218, %v1217
      %v1237 = vpack.c.bf16 %v1220, %v1219
      %v1238 = vpack.c.bf16 %v1222, %v1221
      %v1239 = vpack.c.bf16 %v1224, %v1223
      %v1240 = vpack.c.bf16 %v1226, %v1225
      %v1241 = vpack.c.bf16 %v1228, %v1227
      %v1242 = vpack.c.bf16 %v1230, %v1229
      %v1243 = vpack.c.bf16 %v1232, %v1231
      %v1244 = vpack.c.bf16 %v1234, %v1233
      %s1245 = scalar_lea.vmem %s1, 192
      %v1246 = vld [vmem:[%s1245] sm:$0xf]
      %v1247 = vld [vmem:[%s1245 + $0x4] sm:$0xf]
      %v1248 = vld [vmem:[%s1245 + $0x8] sm:$0xf]
      %v1249 = vld [vmem:[%s1245 + $0xc] sm:$0xf]
      %v1250 = vld [vmem:[%s1245 + $0x10] sm:$0xf]
      %v1251 = vld [vmem:[%s1245 + $0x14] sm:$0xf]
      %v1252 = vld [vmem:[%s1245 + $0x18] sm:$0xf]
      %v1253 = vld [vmem:[%s1245 + $0x1c] sm:$0xf]
      %v1254 = vld [vmem:[%s1245 + $0x20] sm:$0xf]
      %v1255 = vld [vmem:[%s1245 + $0x24] sm:$0xf]
      %v1256 = vld [vmem:[%s1245 + $0x28] sm:$0xf]
      %v1257 = vld [vmem:[%s1245 + $0x2c] sm:$0xf]
      %v1258 = vld [vmem:[%s1245 + $0x30] sm:$0xf]
      %v1259 = vld [vmem:[%s1245 + $0x34] sm:$0xf]
      %v1260 = vld [vmem:[%s1245 + $0x38] sm:$0xf]
      %v1261 = vld [vmem:[%s1245 + $0x3c] sm:$0xf]
      %v1278 = vunpack.c.l.b16 %v1246
      %v1279 = vunpack.c.l.b16 %v1247
      %v1280 = vunpack.c.l.b16 %v1248
      %v1281 = vunpack.c.l.b16 %v1249
      %v1282 = vunpack.c.l.b16 %v1250
      %v1283 = vunpack.c.l.b16 %v1251
      %v1284 = vunpack.c.l.b16 %v1252
      %v1285 = vunpack.c.l.b16 %v1253
      %v1286 = vunpack.c.l.b16 %v1254
      %v1287 = vunpack.c.l.b16 %v1255
      %v1288 = vunpack.c.l.b16 %v1256
      %v1289 = vunpack.c.l.b16 %v1257
      %v1290 = vunpack.c.l.b16 %v1258
      %v1291 = vunpack.c.l.b16 %v1259
      %v1292 = vunpack.c.l.b16 %v1260
      %v1293 = vunpack.c.l.b16 %v1261
      %v1294 = vpack.c.b16 %v1279, %v1278
      %v1295 = vpack.c.b16 %v1281, %v1280
      %v1296 = vpack.c.b16 %v1283, %v1282
      %v1297 = vpack.c.b16 %v1285, %v1284
      %v1298 = vpack.c.b16 %v1287, %v1286
      %v1299 = vpack.c.b16 %v1289, %v1288
      %v1300 = vpack.c.b16 %v1291, %v1290
      %v1301 = vpack.c.b16 %v1293, %v1292
      %1310 = vmatprep.subr.bf16.mxu0 0
      %1311 = vmatpush1.bf16.msra.mxu0 %v1294
      %1312 = vmatprep.subr.bf16.mxu0 0
      %1313 = vmatpush1.bf16.msra.mxu0 %v1295
      %1314 = vmatprep.subr.bf16.mxu0 0
      %1315 = vmatpush1.bf16.msra.mxu0 %v1296
      %1316 = vmatprep.subr.bf16.mxu0 0
      %1317 = vmatpush1.bf16.msra.mxu0 %v1297
      %1318 = vmatprep.subr.bf16.mxu0 0
      %1319 = vmatpush1.bf16.msra.mxu0 %v1298
      %1320 = vmatprep.subr.bf16.mxu0 0
      %1321 = vmatpush1.bf16.msra.mxu0 %v1299
      %1322 = vmatprep.subr.bf16.mxu0 0
      %1323 = vmatpush1.bf16.msra.mxu0 %v1300
      %1324 = vmatprep.subr.bf16.mxu0 0
      %1325 = vmatpush1.bf16.msra.mxu0 %v1301
      %1326 = vmatprep.subr.bf16.mxu0 0
      %1327 = vmatpush1.bf16.msra.mxu0 0
      %1328 = vmatprep.subr.bf16.mxu0 0
      %1329 = vmatpush1.bf16.msra.mxu0 0
      %1330 = vmatprep.subr.bf16.mxu0 0
      %1331 = vmatpush1.bf16.msra.mxu0 0
      %1332 = vmatprep.subr.bf16.mxu0 0
      %1333 = vmatpush1.bf16.msra.mxu0 0
      %1334 = vmatprep.subr.bf16.mxu0 0
      %1335 = vmatpush1.bf16.msra.mxu0 0
      %1336 = vmatprep.subr.bf16.mxu0 0
      %1337 = vmatpush1.bf16.msra.mxu0 0
      %1338 = vmatprep.subr.bf16.mxu0 0
      %1339 = vmatpush1.bf16.msra.mxu0 0
      %1340 = vmatprep.subr.bf16.mxu0 0
      %1341 = vmatpush1.bf16.msra.mxu0 0
      %1342 = vmatprep.mubr.bf16.mxu0 0
      %1343 = vmatmul.mubr.bf16.gmra.mrb[0].mxu0 %v1235
      %v1344 = vpop.f32.mrb[0].mxu0
      %v1345 = vadd.f32 0.0, %v1344
      %v1346 = vpop.f32.mrb[0].mxu0
      %v1347 = vpop.f32.mrb[0].mxu0
      %v1348 = vadd.f32 0.0, %v1347
      %v1349 = vpop.f32.mrb[0].mxu0
      %1350 = vmatprep.mubr.bf16.mxu0 0
      %1351 = vmatmul.mubr.bf16.gmra.mrb[0].mxu0 %v1236
      %v1352 = vpop.f32.mrb[0].mxu0
      %v1353 = vadd.f32 0.0, %v1352
      %v1354 = vpop.f32.mrb[0].mxu0
      %v1355 = vpop.f32.mrb[0].mxu0
      %v1356 = vadd.f32 0.0, %v1355
      %v1357 = vpop.f32.mrb[0].mxu0
      %1358 = vmatprep.mubr.bf16.mxu0 0
      %1359 = vmatmul.mubr.bf16.gmra.mrb[0].mxu0 %v1237
      %v1360 = vpop.f32.mrb[0].mxu0
      %v1361 = vadd.f32 0.0, %v1360
      %v1362 = vpop.f32.mrb[0].mxu0
      %v1363 = vpop.f32.mrb[0].mxu0
      %v1364 = vadd.f32 0.0, %v1363
      %v1365 = vpop.f32.mrb[0].mxu0
      %1366 = vmatprep.mubr.bf16.mxu0 0
      %1367 = vmatmul.mubr.bf16.gmra.mrb[0].mxu0 %v1238
      %v1368 = vpop.f32.mrb[0].mxu0
      %v1369 = vadd.f32 0.0, %v1368
      %v1370 = vpop.f32.mrb[0].mxu0
      %v1371 = vpop.f32.mrb[0].mxu0
      %v1372 = vadd.f32 0.0, %v1371
      %v1373 = vpop.f32.mrb[0].mxu0
      %1374 = vmatprep.mubr.bf16.mxu0 0
      %1375 = vmatmul.mubr.bf16.gmra.mrb[0].mxu0 %v1239
      %v1376 = vpop.f32.mrb[0].mxu0
      %v1377 = vadd.f32 0.0, %v1376
      %v1378 = vpop.f32.mrb[0].mxu0
      %v1379 = vpop.f32.mrb[0].mxu0
      %v1380 = vadd.f32 0.0, %v1379
      %v1381 = vpop.f32.mrb[0].mxu0
      %1382 = vmatprep.mubr.bf16.mxu0 0
      %1383 = vmatmul.mubr.bf16.gmra.mrb[0].mxu0 %v1240
      %v1384 = vpop.f32.mrb[0].mxu0
      %v1385 = vadd.f32 0.0, %v1384
      %v1386 = vpop.f32.mrb[0].mxu0
      %v1387 = vpop.f32.mrb[0].mxu0
      %v1388 = vadd.f32 0.0, %v1387
      %v1389 = vpop.f32.mrb[0].mxu0
      %1390 = vmatprep.mubr.bf16.mxu0 0
      %1391 = vmatmul.mubr.bf16.gmra.mrb[0].mxu0 %v1241
      %v1392 = vpop.f32.mrb[0].mxu0
      %v1393 = vadd.f32 0.0, %v1392
      %v1394 = vpop.f32.mrb[0].mxu0
      %v1395 = vpop.f32.mrb[0].mxu0
      %v1396 = vadd.f32 0.0, %v1395
      %v1397 = vpop.f32.mrb[0].mxu0
      %1398 = vmatprep.mubr.bf16.mxu0 0
      %1399 = vmatmul.mubr.bf16.gmra.mrb[0].mxu0 %v1242
      %v1400 = vpop.f32.mrb[0].mxu0
      %v1401 = vadd.f32 0.0, %v1400
      %v1402 = vpop.f32.mrb[0].mxu0
      %v1403 = vpop.f32.mrb[0].mxu0
      %v1404 = vadd.f32 0.0, %v1403
      %v1405 = vpop.f32.mrb[0].mxu0
      %1406 = vmatprep.mubr.bf16.mxu0 0
      %1407 = vmatmul.mubr.bf16.gmra.mrb[0].mxu0 %v1243
      %v1408 = vpop.f32.mrb[0].mxu0
      %v1409 = vadd.f32 0.0, %v1408
      %v1410 = vpop.f32.mrb[0].mxu0
      %v1411 = vpop.f32.mrb[0].mxu0
      %v1412 = vadd.f32 0.0, %v1411
      %v1413 = vpop.f32.mrb[0].mxu0
      %1414 = vmatprep.mubr.bf16.mxu0 0
      %1415 = vmatmul.mubr.bf16.gmra.mrb[0].mxu0 %v1244
      %v1416 = vpop.f32.mrb[0].mxu0
      %v1417 = vadd.f32 0.0, %v1416
      %v1418 = vpop.f32.mrb[0].mxu0
      %v1419 = vpop.f32.mrb[0].mxu0
      %v1420 = vadd.f32 0.0, %v1419
      %v1421 = vpop.f32.mrb[0].mxu0
      %1422 = vdwg.mxu0
      %v1423 = vld [vmem:[#allocation4] sm:$0xff]
      %v1424 = vld [vmem:[#allocation4 + $0x8] sm:$0xff]
      %v1425 = vld [vmem:[#allocation4 + $0x10] sm:$0xff]
      %v1426 = vld [vmem:[#allocation4 + $0x18] sm:$0xff]
      %v1427 = vld [vmem:[#allocation4 + $0x20] sm:$0xff]
      %v1428 = vld [vmem:[#allocation4 + $0x28] sm:$0xff]
      %v1429 = vld [vmem:[#allocation4 + $0x30] sm:$0xff]
      %v1430 = vld [vmem:[#allocation4 + $0x38] sm:$0xff]
      %v1431 = vld [vmem:[#allocation4 + $0x40] sm:$0xff]
      %v1432 = vld [vmem:[#allocation4 + $0x48] sm:$0xff]
      %v1433 = vld [vmem:[#allocation4 + $0x50] sm:$0xff]
      %v1434 = vld [vmem:[#allocation4 + $0x58] sm:$0xff]
      %v1435 = vld [vmem:[#allocation4 + $0x60] sm:$0xff]
      %v1436 = vld [vmem:[#allocation4 + $0x68] sm:$0xff]
      %v1437 = vld [vmem:[#allocation4 + $0x70] sm:$0xff]
      %v1438 = vld [vmem:[#allocation4 + $0x78] sm:$0xff]
      %v1439 = vld [vmem:[#allocation4 + $0x80] sm:$0xff]
      %v1440 = vld [vmem:[#allocation4 + $0x88] sm:$0xff]
      %v1441 = vld [vmem:[#allocation4 + $0x90] sm:$0xff]
      %v1442 = vld [vmem:[#allocation4 + $0x98] sm:$0xff]
      %v1443 = vadd.f32 %v1423, %v1345
      %v1444 = vadd.f32 %v1424, %v1348
      %v1445 = vadd.f32 %v1425, %v1353
      %v1446 = vadd.f32 %v1426, %v1356
      %v1447 = vadd.f32 %v1427, %v1361
      %v1448 = vadd.f32 %v1428, %v1364
      %v1449 = vadd.f32 %v1429, %v1369
      %v1450 = vadd.f32 %v1430, %v1372
      %v1451 = vadd.f32 %v1431, %v1377
      %v1452 = vadd.f32 %v1432, %v1380
      %v1453 = vadd.f32 %v1433, %v1385
      %v1454 = vadd.f32 %v1434, %v1388
      %v1455 = vadd.f32 %v1435, %v1393
      %v1456 = vadd.f32 %v1436, %v1396
      %v1457 = vadd.f32 %v1437, %v1401
      %v1458 = vadd.f32 %v1438, %v1404
      %v1459 = vadd.f32 %v1439, %v1409
      %v1460 = vadd.f32 %v1440, %v1412
      %v1461 = vadd.f32 %v1441, %v1417
      %v1462 = vadd.f32 %v1442, %v1420
      %1463 = vst [vmem:[#allocation4] sm:$0xff] %v1443
      %1464 = vst [vmem:[#allocation4 + $0x8] sm:$0xff] %v1444
      %1465 = vst [vmem:[#allocation4 + $0x10] sm:$0xff] %v1445
      %1466 = vst [vmem:[#allocation4 + $0x18] sm:$0xff] %v1446
      %1467 = vst [vmem:[#allocation4 + $0x20] sm:$0xff] %v1447
      %1468 = vst [vmem:[#allocation4 + $0x28] sm:$0xff] %v1448
      %1469 = vst [vmem:[#allocation4 + $0x30] sm:$0xff] %v1449
      %1470 = vst [vmem:[#allocation4 + $0x38] sm:$0xff] %v1450
      %1471 = vst [vmem:[#allocation4 + $0x40] sm:$0xff] %v1451
      %1472 = vst [vmem:[#allocation4 + $0x48] sm:$0xff] %v1452
      %1473 = vst [vmem:[#allocation4 + $0x50] sm:$0xff] %v1453
      %1474 = vst [vmem:[#allocation4 + $0x58] sm:$0xff] %v1454
      %1475 = vst [vmem:[#allocation4 + $0x60] sm:$0xff] %v1455
      %1476 = vst [vmem:[#allocation4 + $0x68] sm:$0xff] %v1456
      %1477 = vst [vmem:[#allocation4 + $0x70] sm:$0xff] %v1457
      %1478 = vst [vmem:[#allocation4 + $0x78] sm:$0xff] %v1458
      %1479 = vst [vmem:[#allocation4 + $0x80] sm:$0xff] %v1459
      %1480 = vst [vmem:[#allocation4 + $0x88] sm:$0xff] %v1460
      %1481 = vst [vmem:[#allocation4 + $0x90] sm:$0xff] %v1461
      %1482 = vst [vmem:[#allocation4 + $0x98] sm:$0xff] %v1462
      %v1483 = vld [vmem:[%s1214 + $0x1] sm:$0xff]
      %v1484 = vld [vmem:[%s1214 + $0x9] sm:$0xff]
      %v1485 = vld [vmem:[%s1214 + $0x19] sm:$0xff]
      %v1486 = vld [vmem:[%s1214 + $0x21] sm:$0xff]
      %v1487 = vld [vmem:[%s1214 + $0x31] sm:$0xff]
      %v1488 = vld [vmem:[%s1214 + $0x39] sm:$0xff]
      %v1489 = vld [vmem:[%s1214 + $0x49] sm:$0xff]
      %v1490 = vld [vmem:[%s1214 + $0x51] sm:$0xff]
      %v1491 = vld [vmem:[%s1214 + $0x61] sm:$0xff]
      %v1492 = vld [vmem:[%s1214 + $0x69] sm:$0xff]
      %v1493 = vld [vmem:[%s1214 + $0x79] sm:$0xff]
      %v1494 = vld [vmem:[%s1214 + $0x81] sm:$0xff]
      %v1495 = vld [vmem:[%s1214 + $0x91] sm:$0xff]
      %v1496 = vld [vmem:[%s1214 + $0x99] sm:$0xff]
      %v1497 = vld [vmem:[%s1214 + $0xa9] sm:$0xff]
      %v1498 = vld [vmem:[%s1214 + $0xb1] sm:$0xff]
      %v1499 = vld [vmem:[%s1214 + $0xc1] sm:$0xff]
      %v1500 = vld [vmem:[%s1214 + $0xc9] sm:$0xff]
      %v1501 = vld [vmem:[%s1214 + $0xd9] sm:$0xff]
      %v1502 = vld [vmem:[%s1214 + $0xe1] sm:$0xff]
      %v1503 = vpack.c.bf16 %v1484, %v1483
      %v1504 = vpack.c.bf16 %v1486, %v1485
      %v1505 = vpack.c.bf16 %v1488, %v1487
      %v1506 = vpack.c.bf16 %v1490, %v1489
      %v1507 = vpack.c.bf16 %v1492, %v1491
      %v1508 = vpack.c.bf16 %v1494, %v1493
      %v1509 = vpack.c.bf16 %v1496, %v1495
      %v1510 = vpack.c.bf16 %v1498, %v1497
      %v1511 = vpack.c.bf16 %v1500, %v1499
      %v1512 = vpack.c.bf16 %v1502, %v1501
      %s1513 = scalar_lea.vmem %s1, 256
      %v1514 = vld [vmem:[%s1513] sm:$0xf]
      %v1515 = vld [vmem:[%s1513 + $0x4] sm:$0xf]
      %v1516 = vld [vmem:[%s1513 + $0x8] sm:$0xf]
      %v1517 = vld [vmem:[%s1513 + $0xc] sm:$0xf]
      %v1518 = vld [vmem:[%s1513 + $0x10] sm:$0xf]
      %v1519 = vld [vmem:[%s1513 + $0x14] sm:$0xf]
      %v1520 = vld [vmem:[%s1513 + $0x18] sm:$0xf]
      %v1521 = vld [vmem:[%s1513 + $0x1c] sm:$0xf]
      %v1522 = vld [vmem:[%s1513 + $0x20] sm:$0xf]
      %v1523 = vld [vmem:[%s1513 + $0x24] sm:$0xf]
      %v1524 = vld [vmem:[%s1513 + $0x28] sm:$0xf]
      %v1525 = vld [vmem:[%s1513 + $0x2c] sm:$0xf]
      %v1526 = vld [vmem:[%s1513 + $0x30] sm:$0xf]
      %v1527 = vld [vmem:[%s1513 + $0x34] sm:$0xf]
      %v1528 = vld [vmem:[%s1513 + $0x38] sm:$0xf]
      %v1529 = vld [vmem:[%s1513 + $0x3c] sm:$0xf]
      %v1546 = vunpack.c.l.b16 %v1514
      %v1547 = vunpack.c.l.b16 %v1515
      %v1548 = vunpack.c.l.b16 %v1516
      %v1549 = vunpack.c.l.b16 %v1517
      %v1550 = vunpack.c.l.b16 %v1518
      %v1551 = vunpack.c.l.b16 %v1519
      %v1552 = vunpack.c.l.b16 %v1520
      %v1553 = vunpack.c.l.b16 %v1521
      %v1554 = vunpack.c.l.b16 %v1522
      %v1555 = vunpack.c.l.b16 %v1523
      %v1556 = vunpack.c.l.b16 %v1524
      %v1557 = vunpack.c.l.b16 %v1525
      %v1558 = vunpack.c.l.b16 %v1526
      %v1559 = vunpack.c.l.b16 %v1527
      %v1560 = vunpack.c.l.b16 %v1528
      %v1561 = vunpack.c.l.b16 %v1529
      %v1562 = vpack.c.b16 %v1547, %v1546
      %v1563 = vpack.c.b16 %v1549, %v1548
      %v1564 = vpack.c.b16 %v1551, %v1550
      %v1565 = vpack.c.b16 %v1553, %v1552
      %v1566 = vpack.c.b16 %v1555, %v1554
      %v1567 = vpack.c.b16 %v1557, %v1556
      %v1568 = vpack.c.b16 %v1559, %v1558
      %v1569 = vpack.c.b16 %v1561, %v1560
      %1578 = vmatprep.subr.bf16.mxu0 0
      %1579 = vmatpush1.bf16.msra.mxu0 %v1562
      %1580 = vmatprep.subr.bf16.mxu0 0
      %1581 = vmatpush1.bf16.msra.mxu0 %v1563
      %1582 = vmatprep.subr.bf16.mxu0 0
      %1583 = vmatpush1.bf16.msra.mxu0 %v1564
      %1584 = vmatprep.subr.bf16.mxu0 0
      %1585 = vmatpush1.bf16.msra.mxu0 %v1565
      %1586 = vmatprep.subr.bf16.mxu0 0
      %1587 = vmatpush1.bf16.msra.mxu0 %v1566
      %1588 = vmatprep.subr.bf16.mxu0 0
      %1589 = vmatpush1.bf16.msra.mxu0 %v1567
      %1590 = vmatprep.subr.bf16.mxu0 0
      %1591 = vmatpush1.bf16.msra.mxu0 %v1568
      %1592 = vmatprep.subr.bf16.mxu0 0
      %1593 = vmatpush1.bf16.msra.mxu0 %v1569
      %1594 = vmatprep.subr.bf16.mxu0 0
      %1595 = vmatpush1.bf16.msra.mxu0 0
      %1596 = vmatprep.subr.bf16.mxu0 0
      %1597 = vmatpush1.bf16.msra.mxu0 0
      %1598 = vmatprep.subr.bf16.mxu0 0
      %1599 = vmatpush1.bf16.msra.mxu0 0
      %1600 = vmatprep.subr.bf16.mxu0 0
      %1601 = vmatpush1.bf16.msra.mxu0 0
      %1602 = vmatprep.subr.bf16.mxu0 0
      %1603 = vmatpush1.bf16.msra.mxu0 0
      %1604 = vmatprep.subr.bf16.mxu0 0
      %1605 = vmatpush1.bf16.msra.mxu0 0
      %1606 = vmatprep.subr.bf16.mxu0 0
      %1607 = vmatpush1.bf16.msra.mxu0 0
      %1608 = vmatprep.subr.bf16.mxu0 0
      %1609 = vmatpush1.bf16.msra.mxu0 0
      %1610 = vmatprep.mubr.bf16.mxu0 0
      %1611 = vmatmul.mubr.bf16.gmra.mrb[0].mxu0 %v1503
      %v1612 = vpop.f32.mrb[0].mxu0
      %v1613 = vadd.f32 0.0, %v1612
      %v1614 = vpop.f32.mrb[0].mxu0
      %v1615 = vpop.f32.mrb[0].mxu0
      %v1616 = vadd.f32 0.0, %v1615
      %v1617 = vpop.f32.mrb[0].mxu0
      %1618 = vmatprep.mubr.bf16.mxu0 0
      %1619 = vmatmul.mubr.bf16.gmra.mrb[0].mxu0 %v1504
      %v1620 = vpop.f32.mrb[0].mxu0
      %v1621 = vadd.f32 0.0, %v1620
      %v1622 = vpop.f32.mrb[0].mxu0
      %v1623 = vpop.f32.mrb[0].mxu0
      %v1624 = vadd.f32 0.0, %v1623
      %v1625 = vpop.f32.mrb[0].mxu0
      %1626 = vmatprep.mubr.bf16.mxu0 0
      %1627 = vmatmul.mubr.bf16.gmra.mrb[0].mxu0 %v1505
      %v1628 = vpop.f32.mrb[0].mxu0
      %v1629 = vadd.f32 0.0, %v1628
      %v1630 = vpop.f32.mrb[0].mxu0
      %v1631 = vpop.f32.mrb[0].mxu0
      %v1632 = vadd.f32 0.0, %v1631
      %v1633 = vpop.f32.mrb[0].mxu0
      %1634 = vmatprep.mubr.bf16.mxu0 0
      %1635 = vmatmul.mubr.bf16.gmra.mrb[0].mxu0 %v1506
      %v1636 = vpop.f32.mrb[0].mxu0
      %v1637 = vadd.f32 0.0, %v1636
      %v1638 = vpop.f32.mrb[0].mxu0
      %v1639 = vpop.f32.mrb[0].mxu0
      %v1640 = vadd.f32 0.0, %v1639
      %v1641 = vpop.f32.mrb[0].mxu0
      %1642 = vmatprep.mubr.bf16.mxu0 0
      %1643 = vmatmul.mubr.bf16.gmra.mrb[0].mxu0 %v1507
      %v1644 = vpop.f32.mrb[0].mxu0
      %v1645 = vadd.f32 0.0, %v1644
      %v1646 = vpop.f32.mrb[0].mxu0
      %v1647 = vpop.f32.mrb[0].mxu0
      %v1648 = vadd.f32 0.0, %v1647
      %v1649 = vpop.f32.mrb[0].mxu0
      %1650 = vmatprep.mubr.bf16.mxu0 0
      %1651 = vmatmul.mubr.bf16.gmra.mrb[0].mxu0 %v1508
      %v1652 = vpop.f32.mrb[0].mxu0
      %v1653 = vadd.f32 0.0, %v1652
      %v1654 = vpop.f32.mrb[0].mxu0
      %v1655 = vpop.f32.mrb[0].mxu0
      %v1656 = vadd.f32 0.0, %v1655
      %v1657 = vpop.f32.mrb[0].mxu0
      %1658 = vmatprep.mubr.bf16.mxu0 0
      %1659 = vmatmul.mubr.bf16.gmra.mrb[0].mxu0 %v1509
      %v1660 = vpop.f32.mrb[0].mxu0
      %v1661 = vadd.f32 0.0, %v1660
      %v1662 = vpop.f32.mrb[0].mxu0
      %v1663 = vpop.f32.mrb[0].mxu0
      %v1664 = vadd.f32 0.0, %v1663
      %v1665 = vpop.f32.mrb[0].mxu0
      %1666 = vmatprep.mubr.bf16.mxu0 0
      %1667 = vmatmul.mubr.bf16.gmra.mrb[0].mxu0 %v1510
      %v1668 = vpop.f32.mrb[0].mxu0
      %v1669 = vadd.f32 0.0, %v1668
      %v1670 = vpop.f32.mrb[0].mxu0
      %v1671 = vpop.f32.mrb[0].mxu0
      %v1672 = vadd.f32 0.0, %v1671
      %v1673 = vpop.f32.mrb[0].mxu0
      %1674 = vmatprep.mubr.bf16.mxu0 0
      %1675 = vmatmul.mubr.bf16.gmra.mrb[0].mxu0 %v1511
      %v1676 = vpop.f32.mrb[0].mxu0
      %v1677 = vadd.f32 0.0, %v1676
      %v1678 = vpop.f32.mrb[0].mxu0
      %v1679 = vpop.f32.mrb[0].mxu0
      %v1680 = vadd.f32 0.0, %v1679
      %v1681 = vpop.f32.mrb[0].mxu0
      %1682 = vmatprep.mubr.bf16.mxu0 0
      %1683 = vmatmul.mubr.bf16.gmra.mrb[0].mxu0 %v1512
      %v1684 = vpop.f32.mrb[0].mxu0
      %v1685 = vadd.f32 0.0, %v1684
      %v1686 = vpop.f32.mrb[0].mxu0
      %v1687 = vpop.f32.mrb[0].mxu0
      %v1688 = vadd.f32 0.0, %v1687
      %v1689 = vpop.f32.mrb[0].mxu0
      %1690 = vdwg.mxu0
      %v1691 = vld [vmem:[#allocation4] sm:$0xff]
      %v1692 = vld [vmem:[#allocation4 + $0x8] sm:$0xff]
      %v1693 = vld [vmem:[#allocation4 + $0x10] sm:$0xff]
      %v1694 = vld [vmem:[#allocation4 + $0x18] sm:$0xff]
      %v1695 = vld [vmem:[#allocation4 + $0x20] sm:$0xff]
      %v1696 = vld [vmem:[#allocation4 + $0x28] sm:$0xff]
      %v1697 = vld [vmem:[#allocation4 + $0x30] sm:$0xff]
      %v1698 = vld [vmem:[#allocation4 + $0x38] sm:$0xff]
      %v1699 = vld [vmem:[#allocation4 + $0x40] sm:$0xff]
      %v1700 = vld [vmem:[#allocation4 + $0x48] sm:$0xff]
      %v1701 = vld [vmem:[#allocation4 + $0x50] sm:$0xff]
      %v1702 = vld [vmem:[#allocation4 + $0x58] sm:$0xff]
      %v1703 = vld [vmem:[#allocation4 + $0x60] sm:$0xff]
      %v1704 = vld [vmem:[#allocation4 + $0x68] sm:$0xff]
      %v1705 = vld [vmem:[#allocation4 + $0x70] sm:$0xff]
      %v1706 = vld [vmem:[#allocation4 + $0x78] sm:$0xff]
      %v1707 = vld [vmem:[#allocation4 + $0x80] sm:$0xff]
      %v1708 = vld [vmem:[#allocation4 + $0x88] sm:$0xff]
      %v1709 = vld [vmem:[#allocation4 + $0x90] sm:$0xff]
      %v1710 = vld [vmem:[#allocation4 + $0x98] sm:$0xff]
      %v1711 = vadd.f32 %v1691, %v1613
      %v1712 = vadd.f32 %v1692, %v1616
      %v1713 = vadd.f32 %v1693, %v1621
      %v1714 = vadd.f32 %v1694, %v1624
      %v1715 = vadd.f32 %v1695, %v1629
      %v1716 = vadd.f32 %v1696, %v1632
      %v1717 = vadd.f32 %v1697, %v1637
      %v1718 = vadd.f32 %v1698, %v1640
      %v1719 = vadd.f32 %v1699, %v1645
      %v1720 = vadd.f32 %v1700, %v1648
      %v1721 = vadd.f32 %v1701, %v1653
      %v1722 = vadd.f32 %v1702, %v1656
      %v1723 = vadd.f32 %v1703, %v1661
      %v1724 = vadd.f32 %v1704, %v1664
      %v1725 = vadd.f32 %v1705, %v1669
      %v1726 = vadd.f32 %v1706, %v1672
      %v1727 = vadd.f32 %v1707, %v1677
      %v1728 = vadd.f32 %v1708, %v1680
      %v1729 = vadd.f32 %v1709, %v1685
      %v1730 = vadd.f32 %v1710, %v1688
      %1731 = vst [vmem:[#allocation4] sm:$0xff] %v1711
      %1732 = vst [vmem:[#allocation4 + $0x8] sm:$0xff] %v1712
      %1733 = vst [vmem:[#allocation4 + $0x10] sm:$0xff] %v1713
      %1734 = vst [vmem:[#allocation4 + $0x18] sm:$0xff] %v1714
      %1735 = vst [vmem:[#allocation4 + $0x20] sm:$0xff] %v1715
      %1736 = vst [vmem:[#allocation4 + $0x28] sm:$0xff] %v1716
      %1737 = vst [vmem:[#allocation4 + $0x30] sm:$0xff] %v1717
      %1738 = vst [vmem:[#allocation4 + $0x38] sm:$0xff] %v1718
      %1739 = vst [vmem:[#allocation4 + $0x40] sm:$0xff] %v1719
      %1740 = vst [vmem:[#allocation4 + $0x48] sm:$0xff] %v1720
      %1741 = vst [vmem:[#allocation4 + $0x50] sm:$0xff] %v1721
      %1742 = vst [vmem:[#allocation4 + $0x58] sm:$0xff] %v1722
      %1743 = vst [vmem:[#allocation4 + $0x60] sm:$0xff] %v1723
      %1744 = vst [vmem:[#allocation4 + $0x68] sm:$0xff] %v1724
      %1745 = vst [vmem:[#allocation4 + $0x70] sm:$0xff] %v1725
      %1746 = vst [vmem:[#allocation4 + $0x78] sm:$0xff] %v1726
      %1747 = vst [vmem:[#allocation4 + $0x80] sm:$0xff] %v1727
      %1748 = vst [vmem:[#allocation4 + $0x88] sm:$0xff] %v1728
      %1749 = vst [vmem:[#allocation4 + $0x90] sm:$0xff] %v1729
      %1750 = vst [vmem:[#allocation4 + $0x98] sm:$0xff] %v1730
      %v1751 = vld [vmem:[%s1214 + $0x2] sm:$0xff]
      %v1752 = vld [vmem:[%s1214 + $0xa] sm:$0xff]
      %v1753 = vld [vmem:[%s1214 + $0x1a] sm:$0xff]
      %v1754 = vld [vmem:[%s1214 + $0x22] sm:$0xff]
      %v1755 = vld [vmem:[%s1214 + $0x32] sm:$0xff]
      %v1756 = vld [vmem:[%s1214 + $0x3a] sm:$0xff]
      %v1757 = vld [vmem:[%s1214 + $0x4a] sm:$0xff]
      %v1758 = vld [vmem:[%s1214 + $0x52] sm:$0xff]
      %v1759 = vld [vmem:[%s1214 + $0x62] sm:$0xff]
      %v1760 = vld [vmem:[%s1214 + $0x6a] sm:$0xff]
      %v1761 = vld [vmem:[%s1214 + $0x7a] sm:$0xff]
      %v1762 = vld [vmem:[%s1214 + $0x82] sm:$0xff]
      %v1763 = vld [vmem:[%s1214 + $0x92] sm:$0xff]
      %v1764 = vld [vmem:[%s1214 + $0x9a] sm:$0xff]
      %v1765 = vld [vmem:[%s1214 + $0xaa] sm:$0xff]
      %v1766 = vld [vmem:[%s1214 + $0xb2] sm:$0xff]
      %v1767 = vld [vmem:[%s1214 + $0xc2] sm:$0xff]
      %v1768 = vld [vmem:[%s1214 + $0xca] sm:$0xff]
      %v1769 = vld [vmem:[%s1214 + $0xda] sm:$0xff]
      %v1770 = vld [vmem:[%s1214 + $0xe2] sm:$0xff]
      %v1771 = vpack.c.bf16 %v1752, %v1751
      %v1772 = vpack.c.bf16 %v1754, %v1753
      %v1773 = vpack.c.bf16 %v1756, %v1755
      %v1774 = vpack.c.bf16 %v1758, %v1757
      %v1775 = vpack.c.bf16 %v1760, %v1759
      %v1776 = vpack.c.bf16 %v1762, %v1761
      %v1777 = vpack.c.bf16 %v1764, %v1763
      %v1778 = vpack.c.bf16 %v1766, %v1765
      %v1779 = vpack.c.bf16 %v1768, %v1767
      %v1780 = vpack.c.bf16 %v1770, %v1769
      %s1781 = scalar_lea.vmem %s1, 320
      %v1782 = vld [vmem:[%s1781] sm:$0xf]
      %v1783 = vld [vmem:[%s1781 + $0x4] sm:$0xf]
      %v1784 = vld [vmem:[%s1781 + $0x8] sm:$0xf]
      %v1785 = vld [vmem:[%s1781 + $0xc] sm:$0xf]
      %v1786 = vld [vmem:[%s1781 + $0x10] sm:$0xf]
      %v1787 = vld [vmem:[%s1781 + $0x14] sm:$0xf]
      %v1788 = vld [vmem:[%s1781 + $0x18] sm:$0xf]
      %v1789 = vld [vmem:[%s1781 + $0x1c] sm:$0xf]
      %v1790 = vld [vmem:[%s1781 + $0x20] sm:$0xf]
      %v1791 = vld [vmem:[%s1781 + $0x24] sm:$0xf]
      %v1792 = vld [vmem:[%s1781 + $0x28] sm:$0xf]
      %v1793 = vld [vmem:[%s1781 + $0x2c] sm:$0xf]
      %v1794 = vld [vmem:[%s1781 + $0x30] sm:$0xf]
      %v1795 = vld [vmem:[%s1781 + $0x34] sm:$0xf]
      %v1796 = vld [vmem:[%s1781 + $0x38] sm:$0xf]
      %v1797 = vld [vmem:[%s1781 + $0x3c] sm:$0xf]
      %v1814 = vunpack.c.l.b16 %v1782
      %v1815 = vunpack.c.l.b16 %v1783
      %v1816 = vunpack.c.l.b16 %v1784
      %v1817 = vunpack.c.l.b16 %v1785
      %v1818 = vunpack.c.l.b16 %v1786
      %v1819 = vunpack.c.l.b16 %v1787
      %v1820 = vunpack.c.l.b16 %v1788
      %v1821 = vunpack.c.l.b16 %v1789
      %v1822 = vunpack.c.l.b16 %v1790
      %v1823 = vunpack.c.l.b16 %v1791
      %v1824 = vunpack.c.l.b16 %v1792
      %v1825 = vunpack.c.l.b16 %v1793
      %v1826 = vunpack.c.l.b16 %v1794
      %v1827 = vunpack.c.l.b16 %v1795
      %v1828 = vunpack.c.l.b16 %v1796
      %v1829 = vunpack.c.l.b16 %v1797
      %v1830 = vpack.c.b16 %v1815, %v1814
      %v1831 = vpack.c.b16 %v1817, %v1816
      %v1832 = vpack.c.b16 %v1819, %v1818
      %v1833 = vpack.c.b16 %v1821, %v1820
      %v1834 = vpack.c.b16 %v1823, %v1822
      %v1835 = vpack.c.b16 %v1825, %v1824
      %v1836 = vpack.c.b16 %v1827, %v1826
      %v1837 = vpack.c.b16 %v1829, %v1828
      %1846 = vmatprep.subr.bf16.mxu0 0
      %1847 = vmatpush1.bf16.msra.mxu0 %v1830
      %1848 = vmatprep.subr.bf16.mxu0 0
      %1849 = vmatpush1.bf16.msra.mxu0 %v1831
      %1850 = vmatprep.subr.bf16.mxu0 0
      %1851 = vmatpush1.bf16.msra.mxu0 %v1832
      %1852 = vmatprep.subr.bf16.mxu0 0
      %1853 = vmatpush1.bf16.msra.mxu0 %v1833
      %1854 = vmatprep.subr.bf16.mxu0 0
      %1855 = vmatpush1.bf16.msra.mxu0 %v1834
      %1856 = vmatprep.subr.bf16.mxu0 0
      %1857 = vmatpush1.bf16.msra.mxu0 %v1835
      %1858 = vmatprep.subr.bf16.mxu0 0
      %1859 = vmatpush1.bf16.msra.mxu0 %v1836
      %1860 = vmatprep.subr.bf16.mxu0 0
      %1861 = vmatpush1.bf16.msra.mxu0 %v1837
      %1862 = vmatprep.subr.bf16.mxu0 0
      %1863 = vmatpush1.bf16.msra.mxu0 0
      %1864 = vmatprep.subr.bf16.mxu0 0
      %1865 = vmatpush1.bf16.msra.mxu0 0
      %1866 = vmatprep.subr.bf16.mxu0 0
      %1867 = vmatpush1.bf16.msra.mxu0 0
      %1868 = vmatprep.subr.bf16.mxu0 0
      %1869 = vmatpush1.bf16.msra.mxu0 0
      %1870 = vmatprep.subr.bf16.mxu0 0
      %1871 = vmatpush1.bf16.msra.mxu0 0
      %1872 = vmatprep.subr.bf16.mxu0 0
      %1873 = vmatpush1.bf16.msra.mxu0 0
      %1874 = vmatprep.subr.bf16.mxu0 0
      %1875 = vmatpush1.bf16.msra.mxu0 0
      %1876 = vmatprep.subr.bf16.mxu0 0
      %1877 = vmatpush1.bf16.msra.mxu0 0
      %1878 = vmatprep.mubr.bf16.mxu0 0
      %1879 = vmatmul.mubr.bf16.gmra.mrb[0].mxu0 %v1771
      %v1880 = vpop.f32.mrb[0].mxu0
      %v1881 = vadd.f32 0.0, %v1880
      %v1882 = vpop.f32.mrb[0].mxu0
      %v1883 = vpop.f32.mrb[0].mxu0
      %v1884 = vadd.f32 0.0, %v1883
      %v1885 = vpop.f32.mrb[0].mxu0
      %1886 = vmatprep.mubr.bf16.mxu0 0
      %1887 = vmatmul.mubr.bf16.gmra.mrb[0].mxu0 %v1772
      %v1888 = vpop.f32.mrb[0].mxu0
      %v1889 = vadd.f32 0.0, %v1888
      %v1890 = vpop.f32.mrb[0].mxu0
      %v1891 = vpop.f32.mrb[0].mxu0
      %v1892 = vadd.f32 0.0, %v1891
      %v1893 = vpop.f32.mrb[0].mxu0
      %1894 = vmatprep.mubr.bf16.mxu0 0
      %1895 = vmatmul.mubr.bf16.gmra.mrb[0].mxu0 %v1773
      %v1896 = vpop.f32.mrb[0].mxu0
      %v1897 = vadd.f32 0.0, %v1896
      %v1898 = vpop.f32.mrb[0].mxu0
      %v1899 = vpop.f32.mrb[0].mxu0
      %v1900 = vadd.f32 0.0, %v1899
      %v1901 = vpop.f32.mrb[0].mxu0
      %1902 = vmatprep.mubr.bf16.mxu0 0
      %1903 = vmatmul.mubr.bf16.gmra.mrb[0].mxu0 %v1774
      %v1904 = vpop.f32.mrb[0].mxu0
      %v1905 = vadd.f32 0.0, %v1904
      %v1906 = vpop.f32.mrb[0].mxu0
      %v1907 = vpop.f32.mrb[0].mxu0
      %v1908 = vadd.f32 0.0, %v1907
      %v1909 = vpop.f32.mrb[0].mxu0
      %1910 = vmatprep.mubr.bf16.mxu0 0
      %1911 = vmatmul.mubr.bf16.gmra.mrb[0].mxu0 %v1775
      %v1912 = vpop.f32.mrb[0].mxu0
      %v1913 = vadd.f32 0.0, %v1912
      %v1914 = vpop.f32.mrb[0].mxu0
      %v1915 = vpop.f32.mrb[0].mxu0
      %v1916 = vadd.f32 0.0, %v1915
      %v1917 = vpop.f32.mrb[0].mxu0
      %1918 = vmatprep.mubr.bf16.mxu0 0
      %1919 = vmatmul.mubr.bf16.gmra.mrb[0].mxu0 %v1776
      %v1920 = vpop.f32.mrb[0].mxu0
      %v1921 = vadd.f32 0.0, %v1920
      %v1922 = vpop.f32.mrb[0].mxu0
      %v1923 = vpop.f32.mrb[0].mxu0
      %v1924 = vadd.f32 0.0, %v1923
      %v1925 = vpop.f32.mrb[0].mxu0
      %1926 = vmatprep.mubr.bf16.mxu0 0
      %1927 = vmatmul.mubr.bf16.gmra.mrb[0].mxu0 %v1777
      %v1928 = vpop.f32.mrb[0].mxu0
      %v1929 = vadd.f32 0.0, %v1928
      %v1930 = vpop.f32.mrb[0].mxu0
      %v1931 = vpop.f32.mrb[0].mxu0
      %v1932 = vadd.f32 0.0, %v1931
      %v1933 = vpop.f32.mrb[0].mxu0
      %1934 = vmatprep.mubr.bf16.mxu0 0
      %1935 = vmatmul.mubr.bf16.gmra.mrb[0].mxu0 %v1778
      %v1936 = vpop.f32.mrb[0].mxu0
      %v1937 = vadd.f32 0.0, %v1936
      %v1938 = vpop.f32.mrb[0].mxu0
      %v1939 = vpop.f32.mrb[0].mxu0
      %v1940 = vadd.f32 0.0, %v1939
      %v1941 = vpop.f32.mrb[0].mxu0
      %1942 = vmatprep.mubr.bf16.mxu0 0
      %1943 = vmatmul.mubr.bf16.gmra.mrb[0].mxu0 %v1779
      %v1944 = vpop.f32.mrb[0].mxu0
      %v1945 = vadd.f32 0.0, %v1944
      %v1946 = vpop.f32.mrb[0].mxu0
      %v1947 = vpop.f32.mrb[0].mxu0
      %v1948 = vadd.f32 0.0, %v1947
      %v1949 = vpop.f32.mrb[0].mxu0
      %1950 = vmatprep.mubr.bf16.mxu0 0
      %1951 = vmatmul.mubr.bf16.gmra.mrb[0].mxu0 %v1780
      %v1952 = vpop.f32.mrb[0].mxu0
      %v1953 = vadd.f32 0.0, %v1952
      %v1954 = vpop.f32.mrb[0].mxu0
      %v1955 = vpop.f32.mrb[0].mxu0
      %v1956 = vadd.f32 0.0, %v1955
      %v1957 = vpop.f32.mrb[0].mxu0
      %1958 = vdwg.mxu0
      %v1959 = vld [vmem:[#allocation4] sm:$0xff]
      %v1960 = vld [vmem:[#allocation4 + $0x8] sm:$0xff]
      %v1961 = vld [vmem:[#allocation4 + $0x10] sm:$0xff]
      %v1962 = vld [vmem:[#allocation4 + $0x18] sm:$0xff]
      %v1963 = vld [vmem:[#allocation4 + $0x20] sm:$0xff]
      %v1964 = vld [vmem:[#allocation4 + $0x28] sm:$0xff]
      %v1965 = vld [vmem:[#allocation4 + $0x30] sm:$0xff]
      %v1966 = vld [vmem:[#allocation4 + $0x38] sm:$0xff]
      %v1967 = vld [vmem:[#allocation4 + $0x40] sm:$0xff]
      %v1968 = vld [vmem:[#allocation4 + $0x48] sm:$0xff]
      %v1969 = vld [vmem:[#allocation4 + $0x50] sm:$0xff]
      %v1970 = vld [vmem:[#allocation4 + $0x58] sm:$0xff]
      %v1971 = vld [vmem:[#allocation4 + $0x60] sm:$0xff]
      %v1972 = vld [vmem:[#allocation4 + $0x68] sm:$0xff]
      %v1973 = vld [vmem:[#allocation4 + $0x70] sm:$0xff]
      %v1974 = vld [vmem:[#allocation4 + $0x78] sm:$0xff]
      %v1975 = vld [vmem:[#allocation4 + $0x80] sm:$0xff]
      %v1976 = vld [vmem:[#allocation4 + $0x88] sm:$0xff]
      %v1977 = vld [vmem:[#allocation4 + $0x90] sm:$0xff]
      %v1978 = vld [vmem:[#allocation4 + $0x98] sm:$0xff]
      %v1979 = vadd.f32 %v1959, %v1881
      %v1980 = vadd.f32 %v1960, %v1884
      %v1981 = vadd.f32 %v1961, %v1889
      %v1982 = vadd.f32 %v1962, %v1892
      %v1983 = vadd.f32 %v1963, %v1897
      %v1984 = vadd.f32 %v1964, %v1900
      %v1985 = vadd.f32 %v1965, %v1905
      %v1986 = vadd.f32 %v1966, %v1908
      %v1987 = vadd.f32 %v1967, %v1913
      %v1988 = vadd.f32 %v1968, %v1916
      %v1989 = vadd.f32 %v1969, %v1921
      %v1990 = vadd.f32 %v1970, %v1924
      %v1991 = vadd.f32 %v1971, %v1929
      %v1992 = vadd.f32 %v1972, %v1932
      %v1993 = vadd.f32 %v1973, %v1937
      %v1994 = vadd.f32 %v1974, %v1940
      %v1995 = vadd.f32 %v1975, %v1945
      %v1996 = vadd.f32 %v1976, %v1948
      %v1997 = vadd.f32 %v1977, %v1953
      %v1998 = vadd.f32 %v1978, %v1956
      %1999 = vst [vmem:[#allocation4] sm:$0xff] %v1979
      %2000 = vst [vmem:[#allocation4 + $0x8] sm:$0xff] %v1980
      %2001 = vst [vmem:[#allocation4 + $0x10] sm:$0xff] %v1981
      %2002 = vst [vmem:[#allocation4 + $0x18] sm:$0xff] %v1982
      %2003 = vst [vmem:[#allocation4 + $0x20] sm:$0xff] %v1983
      %2004 = vst [vmem:[#allocation4 + $0x28] sm:$0xff] %v1984
      %2005 = vst [vmem:[#allocation4 + $0x30] sm:$0xff] %v1985
      %2006 = vst [vmem:[#allocation4 + $0x38] sm:$0xff] %v1986
      %2007 = vst [vmem:[#allocation4 + $0x40] sm:$0xff] %v1987
      %2008 = vst [vmem:[#allocation4 + $0x48] sm:$0xff] %v1988
      %2009 = vst [vmem:[#allocation4 + $0x50] sm:$0xff] %v1989
      %2010 = vst [vmem:[#allocation4 + $0x58] sm:$0xff] %v1990
      %2011 = vst [vmem:[#allocation4 + $0x60] sm:$0xff] %v1991
      %2012 = vst [vmem:[#allocation4 + $0x68] sm:$0xff] %v1992
      %2013 = vst [vmem:[#allocation4 + $0x70] sm:$0xff] %v1993
      %2014 = vst [vmem:[#allocation4 + $0x78] sm:$0xff] %v1994
      %2015 = vst [vmem:[#allocation4 + $0x80] sm:$0xff] %v1995
      %2016 = vst [vmem:[#allocation4 + $0x88] sm:$0xff] %v1996
      %2017 = vst [vmem:[#allocation4 + $0x90] sm:$0xff] %v1997
      %2018 = vst [vmem:[#allocation4 + $0x98] sm:$0xff] %v1998
      %v2019 = vld [vmem:[%s324] sm:$0xff]
      %v2020 = vld [vmem:[%s324 + $0x8] sm:$0xff]
      %v2021 = vld [vmem:[%s324 + $0x18] sm:$0xff]
      %v2022 = vld [vmem:[%s324 + $0x20] sm:$0xff]
      %v2023 = vld [vmem:[%s324 + $0x30] sm:$0xff]
      %v2024 = vld [vmem:[%s324 + $0x38] sm:$0xff]
      %v2025 = vld [vmem:[%s324 + $0x48] sm:$0xff]
      %v2026 = vld [vmem:[%s324 + $0x50] sm:$0xff]
      %v2027 = vld [vmem:[%s324 + $0x60] sm:$0xff]
      %v2028 = vld [vmem:[%s324 + $0x68] sm:$0xff]
      %v2029 = vld [vmem:[%s324 + $0x78] sm:$0xff]
      %v2030 = vld [vmem:[%s324 + $0x80] sm:$0xff]
      %v2031 = vld [vmem:[%s324 + $0x90] sm:$0xff]
      %v2032 = vld [vmem:[%s324 + $0x98] sm:$0xff]
      %v2033 = vld [vmem:[%s324 + $0xa8] sm:$0xff]
      %v2034 = vld [vmem:[%s324 + $0xb0] sm:$0xff]
      %v2035 = vld [vmem:[%s324 + $0xc0] sm:$0xff]
      %v2036 = vld [vmem:[%s324 + $0xc8] sm:$0xff]
      %v2037 = vld [vmem:[%s324 + $0xd8] sm:$0xff]
      %v2038 = vld [vmem:[%s324 + $0xe0] sm:$0xff]
      %v2039 = vpack.c.bf16 %v2020, %v2019
      %v2040 = vpack.c.bf16 %v2022, %v2021
      %v2041 = vpack.c.bf16 %v2024, %v2023
      %v2042 = vpack.c.bf16 %v2026, %v2025
      %v2043 = vpack.c.bf16 %v2028, %v2027
      %v2044 = vpack.c.bf16 %v2030, %v2029
      %v2045 = vpack.c.bf16 %v2032, %v2031
      %v2046 = vpack.c.bf16 %v2034, %v2033
      %v2047 = vpack.c.bf16 %v2036, %v2035
      %v2048 = vpack.c.bf16 %v2038, %v2037
      %s2049 = scalar_lea.vmem %s1, 384
      %v2050 = vld [vmem:[%s2049] sm:$0xf]
      %v2051 = vld [vmem:[%s2049 + $0x4] sm:$0xf]
      %v2052 = vld [vmem:[%s2049 + $0x8] sm:$0xf]
      %v2053 = vld [vmem:[%s2049 + $0xc] sm:$0xf]
      %v2054 = vld [vmem:[%s2049 + $0x10] sm:$0xf]
      %v2055 = vld [vmem:[%s2049 + $0x14] sm:$0xf]
      %v2056 = vld [vmem:[%s2049 + $0x18] sm:$0xf]
      %v2057 = vld [vmem:[%s2049 + $0x1c] sm:$0xf]
      %v2058 = vld [vmem:[%s2049 + $0x20] sm:$0xf]
      %v2059 = vld [vmem:[%s2049 + $0x24] sm:$0xf]
      %v2060 = vld [vmem:[%s2049 + $0x28] sm:$0xf]
      %v2061 = vld [vmem:[%s2049 + $0x2c] sm:$0xf]
      %v2062 = vld [vmem:[%s2049 + $0x30] sm:$0xf]
      %v2063 = vld [vmem:[%s2049 + $0x34] sm:$0xf]
      %v2064 = vld [vmem:[%s2049 + $0x38] sm:$0xf]
      %v2065 = vld [vmem:[%s2049 + $0x3c] sm:$0xf]
      %v2082 = vunpack.c.l.b16 %v2050
      %v2083 = vunpack.c.l.b16 %v2051
      %v2084 = vunpack.c.l.b16 %v2052
      %v2085 = vunpack.c.l.b16 %v2053
      %v2086 = vunpack.c.l.b16 %v2054
      %v2087 = vunpack.c.l.b16 %v2055
      %v2088 = vunpack.c.l.b16 %v2056
      %v2089 = vunpack.c.l.b16 %v2057
      %v2090 = vunpack.c.l.b16 %v2058
      %v2091 = vunpack.c.l.b16 %v2059
      %v2092 = vunpack.c.l.b16 %v2060
      %v2093 = vunpack.c.l.b16 %v2061
      %v2094 = vunpack.c.l.b16 %v2062
      %v2095 = vunpack.c.l.b16 %v2063
      %v2096 = vunpack.c.l.b16 %v2064
      %v2097 = vunpack.c.l.b16 %v2065
      %v2098 = vpack.c.b16 %v2083, %v2082
      %v2099 = vpack.c.b16 %v2085, %v2084
      %v2100 = vpack.c.b16 %v2087, %v2086
      %v2101 = vpack.c.b16 %v2089, %v2088
      %v2102 = vpack.c.b16 %v2091, %v2090
      %v2103 = vpack.c.b16 %v2093, %v2092
      %v2104 = vpack.c.b16 %v2095, %v2094
      %v2105 = vpack.c.b16 %v2097, %v2096
      %2114 = vmatprep.subr.bf16.mxu0 0
      %2115 = vmatpush1.bf16.msra.mxu0 %v2098
      %2116 = vmatprep.subr.bf16.mxu0 0
      %2117 = vmatpush1.bf16.msra.mxu0 %v2099
      %2118 = vmatprep.subr.bf16.mxu0 0
      %2119 = vmatpush1.bf16.msra.mxu0 %v2100
      %2120 = vmatprep.subr.bf16.mxu0 0
      %2121 = vmatpush1.bf16.msra.mxu0 %v2101
      %2122 = vmatprep.subr.bf16.mxu0 0
      %2123 = vmatpush1.bf16.msra.mxu0 %v2102
      %2124 = vmatprep.subr.bf16.mxu0 0
      %2125 = vmatpush1.bf16.msra.mxu0 %v2103
      %2126 = vmatprep.subr.bf16.mxu0 0
      %2127 = vmatpush1.bf16.msra.mxu0 %v2104
      %2128 = vmatprep.subr.bf16.mxu0 0
      %2129 = vmatpush1.bf16.msra.mxu0 %v2105
      %2130 = vmatprep.subr.bf16.mxu0 0
      %2131 = vmatpush1.bf16.msra.mxu0 0
      %2132 = vmatprep.subr.bf16.mxu0 0
      %2133 = vmatpush1.bf16.msra.mxu0 0
      %2134 = vmatprep.subr.bf16.mxu0 0
      %2135 = vmatpush1.bf16.msra.mxu0 0
      %2136 = vmatprep.subr.bf16.mxu0 0
      %2137 = vmatpush1.bf16.msra.mxu0 0
      %2138 = vmatprep.subr.bf16.mxu0 0
      %2139 = vmatpush1.bf16.msra.mxu0 0
      %2140 = vmatprep.subr.bf16.mxu0 0
      %2141 = vmatpush1.bf16.msra.mxu0 0
      %2142 = vmatprep.subr.bf16.mxu0 0
      %2143 = vmatpush1.bf16.msra.mxu0 0
      %2144 = vmatprep.subr.bf16.mxu0 0
      %2145 = vmatpush1.bf16.msra.mxu0 0
      %2146 = vmatprep.mubr.bf16.mxu0 0
      %2147 = vmatmul.mubr.bf16.gmra.mrb[0].mxu0 %v2039
      %v2148 = vpop.f32.mrb[0].mxu0
      %v2149 = vadd.f32 0.0, %v2148
      %v2150 = vpop.f32.mrb[0].mxu0
      %v2151 = vpop.f32.mrb[0].mxu0
      %v2152 = vadd.f32 0.0, %v2151
      %v2153 = vpop.f32.mrb[0].mxu0
      %2154 = vmatprep.mubr.bf16.mxu0 0
      %2155 = vmatmul.mubr.bf16.gmra.mrb[0].mxu0 %v2040
      %v2156 = vpop.f32.mrb[0].mxu0
      %v2157 = vadd.f32 0.0, %v2156
      %v2158 = vpop.f32.mrb[0].mxu0
      %v2159 = vpop.f32.mrb[0].mxu0
      %v2160 = vadd.f32 0.0, %v2159
      %v2161 = vpop.f32.mrb[0].mxu0
      %2162 = vmatprep.mubr.bf16.mxu0 0
      %2163 = vmatmul.mubr.bf16.gmra.mrb[0].mxu0 %v2041
      %v2164 = vpop.f32.mrb[0].mxu0
      %v2165 = vadd.f32 0.0, %v2164
      %v2166 = vpop.f32.mrb[0].mxu0
      %v2167 = vpop.f32.mrb[0].mxu0
      %v2168 = vadd.f32 0.0, %v2167
      %v2169 = vpop.f32.mrb[0].mxu0
      %2170 = vmatprep.mubr.bf16.mxu0 0
      %2171 = vmatmul.mubr.bf16.gmra.mrb[0].mxu0 %v2042
      %v2172 = vpop.f32.mrb[0].mxu0
      %v2173 = vadd.f32 0.0, %v2172
      %v2174 = vpop.f32.mrb[0].mxu0
      %v2175 = vpop.f32.mrb[0].mxu0
      %v2176 = vadd.f32 0.0, %v2175
      %v2177 = vpop.f32.mrb[0].mxu0
      %2178 = vmatprep.mubr.bf16.mxu0 0
      %2179 = vmatmul.mubr.bf16.gmra.mrb[0].mxu0 %v2043
      %v2180 = vpop.f32.mrb[0].mxu0
      %v2181 = vadd.f32 0.0, %v2180
      %v2182 = vpop.f32.mrb[0].mxu0
      %v2183 = vpop.f32.mrb[0].mxu0
      %v2184 = vadd.f32 0.0, %v2183
      %v2185 = vpop.f32.mrb[0].mxu0
      %2186 = vmatprep.mubr.bf16.mxu0 0
      %2187 = vmatmul.mubr.bf16.gmra.mrb[0].mxu0 %v2044
      %v2188 = vpop.f32.mrb[0].mxu0
      %v2189 = vadd.f32 0.0, %v2188
      %v2190 = vpop.f32.mrb[0].mxu0
      %v2191 = vpop.f32.mrb[0].mxu0
      %v2192 = vadd.f32 0.0, %v2191
      %v2193 = vpop.f32.mrb[0].mxu0
      %2194 = vmatprep.mubr.bf16.mxu0 0
      %2195 = vmatmul.mubr.bf16.gmra.mrb[0].mxu0 %v2045
      %v2196 = vpop.f32.mrb[0].mxu0
      %v2197 = vadd.f32 0.0, %v2196
      %v2198 = vpop.f32.mrb[0].mxu0
      %v2199 = vpop.f32.mrb[0].mxu0
      %v2200 = vadd.f32 0.0, %v2199
      %v2201 = vpop.f32.mrb[0].mxu0
      %2202 = vmatprep.mubr.bf16.mxu0 0
      %2203 = vmatmul.mubr.bf16.gmra.mrb[0].mxu0 %v2046
      %v2204 = vpop.f32.mrb[0].mxu0
      %v2205 = vadd.f32 0.0, %v2204
      %v2206 = vpop.f32.mrb[0].mxu0
      %v2207 = vpop.f32.mrb[0].mxu0
      %v2208 = vadd.f32 0.0, %v2207
      %v2209 = vpop.f32.mrb[0].mxu0
      %2210 = vmatprep.mubr.bf16.mxu0 0
      %2211 = vmatmul.mubr.bf16.gmra.mrb[0].mxu0 %v2047
      %v2212 = vpop.f32.mrb[0].mxu0
      %v2213 = vadd.f32 0.0, %v2212
      %v2214 = vpop.f32.mrb[0].mxu0
      %v2215 = vpop.f32.mrb[0].mxu0
      %v2216 = vadd.f32 0.0, %v2215
      %v2217 = vpop.f32.mrb[0].mxu0
      %2218 = vmatprep.mubr.bf16.mxu0 0
      %2219 = vmatmul.mubr.bf16.gmra.mrb[0].mxu0 %v2048
      %v2220 = vpop.f32.mrb[0].mxu0
      %v2221 = vadd.f32 0.0, %v2220
      %v2222 = vpop.f32.mrb[0].mxu0
      %v2223 = vpop.f32.mrb[0].mxu0
      %v2224 = vadd.f32 0.0, %v2223
      %v2225 = vpop.f32.mrb[0].mxu0
      %2226 = vdwg.mxu0
      %v2227 = vld [vmem:[#allocation4] sm:$0xff]
      %v2228 = vld [vmem:[#allocation4 + $0x8] sm:$0xff]
      %v2229 = vld [vmem:[#allocation4 + $0x10] sm:$0xff]
      %v2230 = vld [vmem:[#allocation4 + $0x18] sm:$0xff]
      %v2231 = vld [vmem:[#allocation4 + $0x20] sm:$0xff]
      %v2232 = vld [vmem:[#allocation4 + $0x28] sm:$0xff]
      %v2233 = vld [vmem:[#allocation4 + $0x30] sm:$0xff]
      %v2234 = vld [vmem:[#allocation4 + $0x38] sm:$0xff]
      %v2235 = vld [vmem:[#allocation4 + $0x40] sm:$0xff]
      %v2236 = vld [vmem:[#allocation4 + $0x48] sm:$0xff]
      %v2237 = vld [vmem:[#allocation4 + $0x50] sm:$0xff]
      %v2238 = vld [vmem:[#allocation4 + $0x58] sm:$0xff]
      %v2239 = vld [vmem:[#allocation4 + $0x60] sm:$0xff]
      %v2240 = vld [vmem:[#allocation4 + $0x68] sm:$0xff]
      %v2241 = vld [vmem:[#allocation4 + $0x70] sm:$0xff]
      %v2242 = vld [vmem:[#allocation4 + $0x78] sm:$0xff]
      %v2243 = vld [vmem:[#allocation4 + $0x80] sm:$0xff]
      %v2244 = vld [vmem:[#allocation4 + $0x88] sm:$0xff]
      %v2245 = vld [vmem:[#allocation4 + $0x90] sm:$0xff]
      %v2246 = vld [vmem:[#allocation4 + $0x98] sm:$0xff]
      %v2247 = vadd.f32 %v2227, %v2149
      %v2248 = vadd.f32 %v2228, %v2152
      %v2249 = vadd.f32 %v2229, %v2157
      %v2250 = vadd.f32 %v2230, %v2160
      %v2251 = vadd.f32 %v2231, %v2165
      %v2252 = vadd.f32 %v2232, %v2168
      %v2253 = vadd.f32 %v2233, %v2173
      %v2254 = vadd.f32 %v2234, %v2176
      %v2255 = vadd.f32 %v2235, %v2181
      %v2256 = vadd.f32 %v2236, %v2184
      %v2257 = vadd.f32 %v2237, %v2189
      %v2258 = vadd.f32 %v2238, %v2192
      %v2259 = vadd.f32 %v2239, %v2197
      %v2260 = vadd.f32 %v2240, %v2200
      %v2261 = vadd.f32 %v2241, %v2205
      %v2262 = vadd.f32 %v2242, %v2208
      %v2263 = vadd.f32 %v2243, %v2213
      %v2264 = vadd.f32 %v2244, %v2216
      %v2265 = vadd.f32 %v2245, %v2221
      %v2266 = vadd.f32 %v2246, %v2224
      %2267 = vst [vmem:[#allocation4] sm:$0xff] %v2247
      %2268 = vst [vmem:[#allocation4 + $0x8] sm:$0xff] %v2248
      %2269 = vst [vmem:[#allocation4 + $0x10] sm:$0xff] %v2249
      %2270 = vst [vmem:[#allocation4 + $0x18] sm:$0xff] %v2250
      %2271 = vst [vmem:[#allocation4 + $0x20] sm:$0xff] %v2251
      %2272 = vst [vmem:[#allocation4 + $0x28] sm:$0xff] %v2252
      %2273 = vst [vmem:[#allocation4 + $0x30] sm:$0xff] %v2253
      %2274 = vst [vmem:[#allocation4 + $0x38] sm:$0xff] %v2254
      %2275 = vst [vmem:[#allocation4 + $0x40] sm:$0xff] %v2255
      %2276 = vst [vmem:[#allocation4 + $0x48] sm:$0xff] %v2256
      %2277 = vst [vmem:[#allocation4 + $0x50] sm:$0xff] %v2257
      %2278 = vst [vmem:[#allocation4 + $0x58] sm:$0xff] %v2258
      %2279 = vst [vmem:[#allocation4 + $0x60] sm:$0xff] %v2259
      %2280 = vst [vmem:[#allocation4 + $0x68] sm:$0xff] %v2260
      %2281 = vst [vmem:[#allocation4 + $0x70] sm:$0xff] %v2261
      %2282 = vst [vmem:[#allocation4 + $0x78] sm:$0xff] %v2262
      %2283 = vst [vmem:[#allocation4 + $0x80] sm:$0xff] %v2263
      %2284 = vst [vmem:[#allocation4 + $0x88] sm:$0xff] %v2264
      %2285 = vst [vmem:[#allocation4 + $0x90] sm:$0xff] %v2265
      %2286 = vst [vmem:[#allocation4 + $0x98] sm:$0xff] %v2266
      %v2287 = vld [vmem:[%s324 + $0x1] sm:$0xff]
      %v2288 = vld [vmem:[%s324 + $0x9] sm:$0xff]
      %v2289 = vld [vmem:[%s324 + $0x19] sm:$0xff]
      %v2290 = vld [vmem:[%s324 + $0x21] sm:$0xff]
      %v2291 = vld [vmem:[%s324 + $0x31] sm:$0xff]
      %v2292 = vld [vmem:[%s324 + $0x39] sm:$0xff]
      %v2293 = vld [vmem:[%s324 + $0x49] sm:$0xff]
      %v2294 = vld [vmem:[%s324 + $0x51] sm:$0xff]
      %v2295 = vld [vmem:[%s324 + $0x61] sm:$0xff]
      %v2296 = vld [vmem:[%s324 + $0x69] sm:$0xff]
      %v2297 = vld [vmem:[%s324 + $0x79] sm:$0xff]
      %v2298 = vld [vmem:[%s324 + $0x81] sm:$0xff]
      %v2299 = vld [vmem:[%s324 + $0x91] sm:$0xff]
      %v2300 = vld [vmem:[%s324 + $0x99] sm:$0xff]
      %v2301 = vld [vmem:[%s324 + $0xa9] sm:$0xff]
      %v2302 = vld [vmem:[%s324 + $0xb1] sm:$0xff]
      %v2303 = vld [vmem:[%s324 + $0xc1] sm:$0xff]
      %v2304 = vld [vmem:[%s324 + $0xc9] sm:$0xff]
      %v2305 = vld [vmem:[%s324 + $0xd9] sm:$0xff]
      %v2306 = vld [vmem:[%s324 + $0xe1] sm:$0xff]
      %v2307 = vpack.c.bf16 %v2288, %v2287
      %v2308 = vpack.c.bf16 %v2290, %v2289
      %v2309 = vpack.c.bf16 %v2292, %v2291
      %v2310 = vpack.c.bf16 %v2294, %v2293
      %v2311 = vpack.c.bf16 %v2296, %v2295
      %v2312 = vpack.c.bf16 %v2298, %v2297
      %v2313 = vpack.c.bf16 %v2300, %v2299
      %v2314 = vpack.c.bf16 %v2302, %v2301
      %v2315 = vpack.c.bf16 %v2304, %v2303
      %v2316 = vpack.c.bf16 %v2306, %v2305
      %s2317 = scalar_lea.vmem %s1, 448
      %v2318 = vld [vmem:[%s2317] sm:$0xf]
      %v2319 = vld [vmem:[%s2317 + $0x4] sm:$0xf]
      %v2320 = vld [vmem:[%s2317 + $0x8] sm:$0xf]
      %v2321 = vld [vmem:[%s2317 + $0xc] sm:$0xf]
      %v2322 = vld [vmem:[%s2317 + $0x10] sm:$0xf]
      %v2323 = vld [vmem:[%s2317 + $0x14] sm:$0xf]
      %v2324 = vld [vmem:[%s2317 + $0x18] sm:$0xf]
      %v2325 = vld [vmem:[%s2317 + $0x1c] sm:$0xf]
      %v2326 = vld [vmem:[%s2317 + $0x20] sm:$0xf]
      %v2327 = vld [vmem:[%s2317 + $0x24] sm:$0xf]
      %v2328 = vld [vmem:[%s2317 + $0x28] sm:$0xf]
      %v2329 = vld [vmem:[%s2317 + $0x2c] sm:$0xf]
      %v2330 = vld [vmem:[%s2317 + $0x30] sm:$0xf]
      %v2331 = vld [vmem:[%s2317 + $0x34] sm:$0xf]
      %v2332 = vld [vmem:[%s2317 + $0x38] sm:$0xf]
      %v2333 = vld [vmem:[%s2317 + $0x3c] sm:$0xf]
      %v2350 = vunpack.c.l.b16 %v2318
      %v2351 = vunpack.c.l.b16 %v2319
      %v2352 = vunpack.c.l.b16 %v2320
      %v2353 = vunpack.c.l.b16 %v2321
      %v2354 = vunpack.c.l.b16 %v2322
      %v2355 = vunpack.c.l.b16 %v2323
      %v2356 = vunpack.c.l.b16 %v2324
      %v2357 = vunpack.c.l.b16 %v2325
      %v2358 = vunpack.c.l.b16 %v2326
      %v2359 = vunpack.c.l.b16 %v2327
      %v2360 = vunpack.c.l.b16 %v2328
      %v2361 = vunpack.c.l.b16 %v2329
      %v2362 = vunpack.c.l.b16 %v2330
      %v2363 = vunpack.c.l.b16 %v2331
      %v2364 = vunpack.c.l.b16 %v2332
      %v2365 = vunpack.c.l.b16 %v2333
      %v2366 = vpack.c.b16 %v2351, %v2350
      %v2367 = vpack.c.b16 %v2353, %v2352
      %v2368 = vpack.c.b16 %v2355, %v2354
      %v2369 = vpack.c.b16 %v2357, %v2356
      %v2370 = vpack.c.b16 %v2359, %v2358
      %v2371 = vpack.c.b16 %v2361, %v2360
      %v2372 = vpack.c.b16 %v2363, %v2362
      %v2373 = vpack.c.b16 %v2365, %v2364
      %2382 = vmatprep.subr.bf16.mxu0 0
      %2383 = vmatpush1.bf16.msra.mxu0 %v2366
      %2384 = vmatprep.subr.bf16.mxu0 0
      %2385 = vmatpush1.bf16.msra.mxu0 %v2367
      %2386 = vmatprep.subr.bf16.mxu0 0
      %2387 = vmatpush1.bf16.msra.mxu0 %v2368
      %2388 = vmatprep.subr.bf16.mxu0 0
      %2389 = vmatpush1.bf16.msra.mxu0 %v2369
      %2390 = vmatprep.subr.bf16.mxu0 0
      %2391 = vmatpush1.bf16.msra.mxu0 %v2370
      %2392 = vmatprep.subr.bf16.mxu0 0
      %2393 = vmatpush1.bf16.msra.mxu0 %v2371
      %2394 = vmatprep.subr.bf16.mxu0 0
      %2395 = vmatpush1.bf16.msra.mxu0 %v2372
      %2396 = vmatprep.subr.bf16.mxu0 0
      %2397 = vmatpush1.bf16.msra.mxu0 %v2373
      %2398 = vmatprep.subr.bf16.mxu0 0
      %2399 = vmatpush1.bf16.msra.mxu0 0
      %2400 = vmatprep.subr.bf16.mxu0 0
      %2401 = vmatpush1.bf16.msra.mxu0 0
      %2402 = vmatprep.subr.bf16.mxu0 0
      %2403 = vmatpush1.bf16.msra.mxu0 0
      %2404 = vmatprep.subr.bf16.mxu0 0
      %2405 = vmatpush1.bf16.msra.mxu0 0
      %2406 = vmatprep.subr.bf16.mxu0 0
      %2407 = vmatpush1.bf16.msra.mxu0 0
      %2408 = vmatprep.subr.bf16.mxu0 0
      %2409 = vmatpush1.bf16.msra.mxu0 0
      %2410 = vmatprep.subr.bf16.mxu0 0
      %2411 = vmatpush1.bf16.msra.mxu0 0
      %2412 = vmatprep.subr.bf16.mxu0 0
      %2413 = vmatpush1.bf16.msra.mxu0 0
      %2414 = vmatprep.mubr.bf16.mxu0 0
      %2415 = vmatmul.mubr.bf16.gmra.mrb[0].mxu0 %v2307
      %v2416 = vpop.f32.mrb[0].mxu0
      %v2417 = vadd.f32 0.0, %v2416
      %v2418 = vpop.f32.mrb[0].mxu0
      %v2419 = vpop.f32.mrb[0].mxu0
      %v2420 = vadd.f32 0.0, %v2419
      %v2421 = vpop.f32.mrb[0].mxu0
      %2422 = vmatprep.mubr.bf16.mxu0 0
      %2423 = vmatmul.mubr.bf16.gmra.mrb[0].mxu0 %v2308
      %v2424 = vpop.f32.mrb[0].mxu0
      %v2425 = vadd.f32 0.0, %v2424
      %v2426 = vpop.f32.mrb[0].mxu0
      %v2427 = vpop.f32.mrb[0].mxu0
      %v2428 = vadd.f32 0.0, %v2427
      %v2429 = vpop.f32.mrb[0].mxu0
      %2430 = vmatprep.mubr.bf16.mxu0 0
      %2431 = vmatmul.mubr.bf16.gmra.mrb[0].mxu0 %v2309
      %v2432 = vpop.f32.mrb[0].mxu0
      %v2433 = vadd.f32 0.0, %v2432
      %v2434 = vpop.f32.mrb[0].mxu0
      %v2435 = vpop.f32.mrb[0].mxu0
      %v2436 = vadd.f32 0.0, %v2435
      %v2437 = vpop.f32.mrb[0].mxu0
      %2438 = vmatprep.mubr.bf16.mxu0 0
      %2439 = vmatmul.mubr.bf16.gmra.mrb[0].mxu0 %v2310
      %v2440 = vpop.f32.mrb[0].mxu0
      %v2441 = vadd.f32 0.0, %v2440
      %v2442 = vpop.f32.mrb[0].mxu0
      %v2443 = vpop.f32.mrb[0].mxu0
      %v2444 = vadd.f32 0.0, %v2443
      %v2445 = vpop.f32.mrb[0].mxu0
      %2446 = vmatprep.mubr.bf16.mxu0 0
      %2447 = vmatmul.mubr.bf16.gmra.mrb[0].mxu0 %v2311
      %v2448 = vpop.f32.mrb[0].mxu0
      %v2449 = vadd.f32 0.0, %v2448
      %v2450 = vpop.f32.mrb[0].mxu0
      %v2451 = vpop.f32.mrb[0].mxu0
      %v2452 = vadd.f32 0.0, %v2451
      %v2453 = vpop.f32.mrb[0].mxu0
      %2454 = vmatprep.mubr.bf16.mxu0 0
      %2455 = vmatmul.mubr.bf16.gmra.mrb[0].mxu0 %v2312
      %v2456 = vpop.f32.mrb[0].mxu0
      %v2457 = vadd.f32 0.0, %v2456
      %v2458 = vpop.f32.mrb[0].mxu0
      %v2459 = vpop.f32.mrb[0].mxu0
      %v2460 = vadd.f32 0.0, %v2459
      %v2461 = vpop.f32.mrb[0].mxu0
      %2462 = vmatprep.mubr.bf16.mxu0 0
      %2463 = vmatmul.mubr.bf16.gmra.mrb[0].mxu0 %v2313
      %v2464 = vpop.f32.mrb[0].mxu0
      %v2465 = vadd.f32 0.0, %v2464
      %v2466 = vpop.f32.mrb[0].mxu0
      %v2467 = vpop.f32.mrb[0].mxu0
      %v2468 = vadd.f32 0.0, %v2467
      %v2469 = vpop.f32.mrb[0].mxu0
      %2470 = vmatprep.mubr.bf16.mxu0 0
      %2471 = vmatmul.mubr.bf16.gmra.mrb[0].mxu0 %v2314
      %v2472 = vpop.f32.mrb[0].mxu0
      %v2473 = vadd.f32 0.0, %v2472
      %v2474 = vpop.f32.mrb[0].mxu0
      %v2475 = vpop.f32.mrb[0].mxu0
      %v2476 = vadd.f32 0.0, %v2475
      %v2477 = vpop.f32.mrb[0].mxu0
      %2478 = vmatprep.mubr.bf16.mxu0 0
      %2479 = vmatmul.mubr.bf16.gmra.mrb[0].mxu0 %v2315
      %v2480 = vpop.f32.mrb[0].mxu0
      %v2481 = vadd.f32 0.0, %v2480
      %v2482 = vpop.f32.mrb[0].mxu0
      %v2483 = vpop.f32.mrb[0].mxu0
      %v2484 = vadd.f32 0.0, %v2483
      %v2485 = vpop.f32.mrb[0].mxu0
      %2486 = vmatprep.mubr.bf16.mxu0 0
      %2487 = vmatmul.mubr.bf16.gmra.mrb[0].mxu0 %v2316
      %v2488 = vpop.f32.mrb[0].mxu0
      %v2489 = vadd.f32 0.0, %v2488
      %v2490 = vpop.f32.mrb[0].mxu0
      %v2491 = vpop.f32.mrb[0].mxu0
      %v2492 = vadd.f32 0.0, %v2491
      %v2493 = vpop.f32.mrb[0].mxu0
      %2494 = vdwg.mxu0
      %v2495 = vld [vmem:[#allocation4] sm:$0xff]
      %v2496 = vld [vmem:[#allocation4 + $0x8] sm:$0xff]
      %v2497 = vld [vmem:[#allocation4 + $0x10] sm:$0xff]
      %v2498 = vld [vmem:[#allocation4 + $0x18] sm:$0xff]
      %v2499 = vld [vmem:[#allocation4 + $0x20] sm:$0xff]
      %v2500 = vld [vmem:[#allocation4 + $0x28] sm:$0xff]
      %v2501 = vld [vmem:[#allocation4 + $0x30] sm:$0xff]
      %v2502 = vld [vmem:[#allocation4 + $0x38] sm:$0xff]
      %v2503 = vld [vmem:[#allocation4 + $0x40] sm:$0xff]
      %v2504 = vld [vmem:[#allocation4 + $0x48] sm:$0xff]
      %v2505 = vld [vmem:[#allocation4 + $0x50] sm:$0xff]
      %v2506 = vld [vmem:[#allocation4 + $0x58] sm:$0xff]
      %v2507 = vld [vmem:[#allocation4 + $0x60] sm:$0xff]
      %v2508 = vld [vmem:[#allocation4 + $0x68] sm:$0xff]
      %v2509 = vld [vmem:[#allocation4 + $0x70] sm:$0xff]
      %v2510 = vld [vmem:[#allocation4 + $0x78] sm:$0xff]
      %v2511 = vld [vmem:[#allocation4 + $0x80] sm:$0xff]
      %v2512 = vld [vmem:[#allocation4 + $0x88] sm:$0xff]
      %v2513 = vld [vmem:[#allocation4 + $0x90] sm:$0xff]
      %v2514 = vld [vmem:[#allocation4 + $0x98] sm:$0xff]
      %v2515 = vadd.f32 %v2495, %v2417
      %v2516 = vadd.f32 %v2496, %v2420
      %v2517 = vadd.f32 %v2497, %v2425
      %v2518 = vadd.f32 %v2498, %v2428
      %v2519 = vadd.f32 %v2499, %v2433
      %v2520 = vadd.f32 %v2500, %v2436
      %v2521 = vadd.f32 %v2501, %v2441
      %v2522 = vadd.f32 %v2502, %v2444
      %v2523 = vadd.f32 %v2503, %v2449
      %v2524 = vadd.f32 %v2504, %v2452
      %v2525 = vadd.f32 %v2505, %v2457
      %v2526 = vadd.f32 %v2506, %v2460
      %v2527 = vadd.f32 %v2507, %v2465
      %v2528 = vadd.f32 %v2508, %v2468
      %v2529 = vadd.f32 %v2509, %v2473
      %v2530 = vadd.f32 %v2510, %v2476
      %v2531 = vadd.f32 %v2511, %v2481
      %v2532 = vadd.f32 %v2512, %v2484
      %v2533 = vadd.f32 %v2513, %v2489
      %v2534 = vadd.f32 %v2514, %v2492
      %2535 = vst [vmem:[#allocation4] sm:$0xff] %v2515
      %2536 = vst [vmem:[#allocation4 + $0x8] sm:$0xff] %v2516
      %2537 = vst [vmem:[#allocation4 + $0x10] sm:$0xff] %v2517
      %2538 = vst [vmem:[#allocation4 + $0x18] sm:$0xff] %v2518
      %2539 = vst [vmem:[#allocation4 + $0x20] sm:$0xff] %v2519
      %2540 = vst [vmem:[#allocation4 + $0x28] sm:$0xff] %v2520
      %2541 = vst [vmem:[#allocation4 + $0x30] sm:$0xff] %v2521
      %2542 = vst [vmem:[#allocation4 + $0x38] sm:$0xff] %v2522
      %2543 = vst [vmem:[#allocation4 + $0x40] sm:$0xff] %v2523
      %2544 = vst [vmem:[#allocation4 + $0x48] sm:$0xff] %v2524
      %2545 = vst [vmem:[#allocation4 + $0x50] sm:$0xff] %v2525
      %2546 = vst [vmem:[#allocation4 + $0x58] sm:$0xff] %v2526
      %2547 = vst [vmem:[#allocation4 + $0x60] sm:$0xff] %v2527
      %2548 = vst [vmem:[#allocation4 + $0x68] sm:$0xff] %v2528
      %2549 = vst [vmem:[#allocation4 + $0x70] sm:$0xff] %v2529
      %2550 = vst [vmem:[#allocation4 + $0x78] sm:$0xff] %v2530
      %2551 = vst [vmem:[#allocation4 + $0x80] sm:$0xff] %v2531
      %2552 = vst [vmem:[#allocation4 + $0x88] sm:$0xff] %v2532
      %2553 = vst [vmem:[#allocation4 + $0x90] sm:$0xff] %v2533
      %2554 = vst [vmem:[#allocation4 + $0x98] sm:$0xff] %v2534
      %v2555 = vld [vmem:[%s324 + $0x2] sm:$0xff]
      %v2556 = vld [vmem:[%s324 + $0xa] sm:$0xff]
      %v2557 = vld [vmem:[%s324 + $0x1a] sm:$0xff]
      %v2558 = vld [vmem:[%s324 + $0x22] sm:$0xff]
      %v2559 = vld [vmem:[%s324 + $0x32] sm:$0xff]
      %v2560 = vld [vmem:[%s324 + $0x3a] sm:$0xff]
      %v2561 = vld [vmem:[%s324 + $0x4a] sm:$0xff]
      %v2562 = vld [vmem:[%s324 + $0x52] sm:$0xff]
      %v2563 = vld [vmem:[%s324 + $0x62] sm:$0xff]
      %v2564 = vld [vmem:[%s324 + $0x6a] sm:$0xff]
      %v2565 = vld [vmem:[%s324 + $0x7a] sm:$0xff]
      %v2566 = vld [vmem:[%s324 + $0x82] sm:$0xff]
      %v2567 = vld [vmem:[%s324 + $0x92] sm:$0xff]
      %v2568 = vld [vmem:[%s324 + $0x9a] sm:$0xff]
      %v2569 = vld [vmem:[%s324 + $0xaa] sm:$0xff]
      %v2570 = vld [vmem:[%s324 + $0xb2] sm:$0xff]
      %v2571 = vld [vmem:[%s324 + $0xc2] sm:$0xff]
      %v2572 = vld [vmem:[%s324 + $0xca] sm:$0xff]
      %v2573 = vld [vmem:[%s324 + $0xda] sm:$0xff]
      %v2574 = vld [vmem:[%s324 + $0xe2] sm:$0xff]
      %v2575 = vpack.c.bf16 %v2556, %v2555
      %v2576 = vpack.c.bf16 %v2558, %v2557
      %v2577 = vpack.c.bf16 %v2560, %v2559
      %v2578 = vpack.c.bf16 %v2562, %v2561
      %v2579 = vpack.c.bf16 %v2564, %v2563
      %v2580 = vpack.c.bf16 %v2566, %v2565
      %v2581 = vpack.c.bf16 %v2568, %v2567
      %v2582 = vpack.c.bf16 %v2570, %v2569
      %v2583 = vpack.c.bf16 %v2572, %v2571
      %v2584 = vpack.c.bf16 %v2574, %v2573
      %s2585 = scalar_lea.vmem %s1, 512
      %v2586 = vld [vmem:[%s2585] sm:$0xf]
      %v2587 = vld [vmem:[%s2585 + $0x4] sm:$0xf]
      %v2588 = vld [vmem:[%s2585 + $0x8] sm:$0xf]
      %v2589 = vld [vmem:[%s2585 + $0xc] sm:$0xf]
      %v2590 = vld [vmem:[%s2585 + $0x10] sm:$0xf]
      %v2591 = vld [vmem:[%s2585 + $0x14] sm:$0xf]
      %v2592 = vld [vmem:[%s2585 + $0x18] sm:$0xf]
      %v2593 = vld [vmem:[%s2585 + $0x1c] sm:$0xf]
      %v2594 = vld [vmem:[%s2585 + $0x20] sm:$0xf]
      %v2595 = vld [vmem:[%s2585 + $0x24] sm:$0xf]
      %v2596 = vld [vmem:[%s2585 + $0x28] sm:$0xf]
      %v2597 = vld [vmem:[%s2585 + $0x2c] sm:$0xf]
      %v2598 = vld [vmem:[%s2585 + $0x30] sm:$0xf]
      %v2599 = vld [vmem:[%s2585 + $0x34] sm:$0xf]
      %v2600 = vld [vmem:[%s2585 + $0x38] sm:$0xf]
      %v2601 = vld [vmem:[%s2585 + $0x3c] sm:$0xf]
      %v2618 = vunpack.c.l.b16 %v2586
      %v2619 = vunpack.c.l.b16 %v2587
      %v2620 = vunpack.c.l.b16 %v2588
      %v2621 = vunpack.c.l.b16 %v2589
      %v2622 = vunpack.c.l.b16 %v2590
      %v2623 = vunpack.c.l.b16 %v2591
      %v2624 = vunpack.c.l.b16 %v2592
      %v2625 = vunpack.c.l.b16 %v2593
      %v2626 = vunpack.c.l.b16 %v2594
      %v2627 = vunpack.c.l.b16 %v2595
      %v2628 = vunpack.c.l.b16 %v2596
      %v2629 = vunpack.c.l.b16 %v2597
      %v2630 = vunpack.c.l.b16 %v2598
      %v2631 = vunpack.c.l.b16 %v2599
      %v2632 = vunpack.c.l.b16 %v2600
      %v2633 = vunpack.c.l.b16 %v2601
      %v2634 = vpack.c.b16 %v2619, %v2618
      %v2635 = vpack.c.b16 %v2621, %v2620
      %v2636 = vpack.c.b16 %v2623, %v2622
      %v2637 = vpack.c.b16 %v2625, %v2624
      %v2638 = vpack.c.b16 %v2627, %v2626
      %v2639 = vpack.c.b16 %v2629, %v2628
      %v2640 = vpack.c.b16 %v2631, %v2630
      %v2641 = vpack.c.b16 %v2633, %v2632
      %2650 = vmatprep.subr.bf16.mxu0 0
      %2651 = vmatpush1.bf16.msra.mxu0 %v2634
      %2652 = vmatprep.subr.bf16.mxu0 0
      %2653 = vmatpush1.bf16.msra.mxu0 %v2635
      %2654 = vmatprep.subr.bf16.mxu0 0
      %2655 = vmatpush1.bf16.msra.mxu0 %v2636
      %2656 = vmatprep.subr.bf16.mxu0 0
      %2657 = vmatpush1.bf16.msra.mxu0 %v2637
      %2658 = vmatprep.subr.bf16.mxu0 0
      %2659 = vmatpush1.bf16.msra.mxu0 %v2638
      %2660 = vmatprep.subr.bf16.mxu0 0
      %2661 = vmatpush1.bf16.msra.mxu0 %v2639
      %2662 = vmatprep.subr.bf16.mxu0 0
      %2663 = vmatpush1.bf16.msra.mxu0 %v2640
      %2664 = vmatprep.subr.bf16.mxu0 0
      %2665 = vmatpush1.bf16.msra.mxu0 %v2641
      %2666 = vmatprep.subr.bf16.mxu0 0
      %2667 = vmatpush1.bf16.msra.mxu0 0
      %2668 = vmatprep.subr.bf16.mxu0 0
      %2669 = vmatpush1.bf16.msra.mxu0 0
      %2670 = vmatprep.subr.bf16.mxu0 0
      %2671 = vmatpush1.bf16.msra.mxu0 0
      %2672 = vmatprep.subr.bf16.mxu0 0
      %2673 = vmatpush1.bf16.msra.mxu0 0
      %2674 = vmatprep.subr.bf16.mxu0 0
      %2675 = vmatpush1.bf16.msra.mxu0 0
      %2676 = vmatprep.subr.bf16.mxu0 0
      %2677 = vmatpush1.bf16.msra.mxu0 0
      %2678 = vmatprep.subr.bf16.mxu0 0
      %2679 = vmatpush1.bf16.msra.mxu0 0
      %2680 = vmatprep.subr.bf16.mxu0 0
      %2681 = vmatpush1.bf16.msra.mxu0 0
      %2682 = vmatprep.mubr.bf16.mxu0 0
      %2683 = vmatmul.mubr.bf16.gmra.mrb[0].mxu0 %v2575
      %v2684 = vpop.f32.mrb[0].mxu0
      %v2685 = vadd.f32 0.0, %v2684
      %v2686 = vpop.f32.mrb[0].mxu0
      %v2687 = vpop.f32.mrb[0].mxu0
      %v2688 = vadd.f32 0.0, %v2687
      %v2689 = vpop.f32.mrb[0].mxu0
      %2690 = vmatprep.mubr.bf16.mxu0 0
      %2691 = vmatmul.mubr.bf16.gmra.mrb[0].mxu0 %v2576
      %v2692 = vpop.f32.mrb[0].mxu0
      %v2693 = vadd.f32 0.0, %v2692
      %v2694 = vpop.f32.mrb[0].mxu0
      %v2695 = vpop.f32.mrb[0].mxu0
      %v2696 = vadd.f32 0.0, %v2695
      %v2697 = vpop.f32.mrb[0].mxu0
      %2698 = vmatprep.mubr.bf16.mxu0 0
      %2699 = vmatmul.mubr.bf16.gmra.mrb[0].mxu0 %v2577
      %v2700 = vpop.f32.mrb[0].mxu0
      %v2701 = vadd.f32 0.0, %v2700
      %v2702 = vpop.f32.mrb[0].mxu0
      %v2703 = vpop.f32.mrb[0].mxu0
      %v2704 = vadd.f32 0.0, %v2703
      %v2705 = vpop.f32.mrb[0].mxu0
      %2706 = vmatprep.mubr.bf16.mxu0 0
      %2707 = vmatmul.mubr.bf16.gmra.mrb[0].mxu0 %v2578
      %v2708 = vpop.f32.mrb[0].mxu0
      %v2709 = vadd.f32 0.0, %v2708
      %v2710 = vpop.f32.mrb[0].mxu0
      %v2711 = vpop.f32.mrb[0].mxu0
      %v2712 = vadd.f32 0.0, %v2711
      %v2713 = vpop.f32.mrb[0].mxu0
      %2714 = vmatprep.mubr.bf16.mxu0 0
      %2715 = vmatmul.mubr.bf16.gmra.mrb[0].mxu0 %v2579
      %v2716 = vpop.f32.mrb[0].mxu0
      %v2717 = vadd.f32 0.0, %v2716
      %v2718 = vpop.f32.mrb[0].mxu0
      %v2719 = vpop.f32.mrb[0].mxu0
      %v2720 = vadd.f32 0.0, %v2719
      %v2721 = vpop.f32.mrb[0].mxu0
      %2722 = vmatprep.mubr.bf16.mxu0 0
      %2723 = vmatmul.mubr.bf16.gmra.mrb[0].mxu0 %v2580
      %v2724 = vpop.f32.mrb[0].mxu0
      %v2725 = vadd.f32 0.0, %v2724
      %v2726 = vpop.f32.mrb[0].mxu0
      %v2727 = vpop.f32.mrb[0].mxu0
      %v2728 = vadd.f32 0.0, %v2727
      %v2729 = vpop.f32.mrb[0].mxu0
      %2730 = vmatprep.mubr.bf16.mxu0 0
      %2731 = vmatmul.mubr.bf16.gmra.mrb[0].mxu0 %v2581
      %v2732 = vpop.f32.mrb[0].mxu0
      %v2733 = vadd.f32 0.0, %v2732
      %v2734 = vpop.f32.mrb[0].mxu0
      %v2735 = vpop.f32.mrb[0].mxu0
      %v2736 = vadd.f32 0.0, %v2735
      %v2737 = vpop.f32.mrb[0].mxu0
      %2738 = vmatprep.mubr.bf16.mxu0 0
      %2739 = vmatmul.mubr.bf16.gmra.mrb[0].mxu0 %v2582
      %v2740 = vpop.f32.mrb[0].mxu0
      %v2741 = vadd.f32 0.0, %v2740
      %v2742 = vpop.f32.mrb[0].mxu0
      %v2743 = vpop.f32.mrb[0].mxu0
      %v2744 = vadd.f32 0.0, %v2743
      %v2745 = vpop.f32.mrb[0].mxu0
      %2746 = vmatprep.mubr.bf16.mxu0 0
      %2747 = vmatmul.mubr.bf16.gmra.mrb[0].mxu0 %v2583
      %v2748 = vpop.f32.mrb[0].mxu0
      %v2749 = vadd.f32 0.0, %v2748
      %v2750 = vpop.f32.mrb[0].mxu0
      %v2751 = vpop.f32.mrb[0].mxu0
      %v2752 = vadd.f32 0.0, %v2751
      %v2753 = vpop.f32.mrb[0].mxu0
      %2754 = vmatprep.mubr.bf16.mxu0 0
      %2755 = vmatmul.mubr.bf16.gmra.mrb[0].mxu0 %v2584
      %v2756 = vpop.f32.mrb[0].mxu0
      %v2757 = vadd.f32 0.0, %v2756
      %v2758 = vpop.f32.mrb[0].mxu0
      %v2759 = vpop.f32.mrb[0].mxu0
      %v2760 = vadd.f32 0.0, %v2759
      %v2761 = vpop.f32.mrb[0].mxu0
      %2762 = vdwg.mxu0
      %v2763 = vld [vmem:[#allocation4] sm:$0xff]
      %v2764 = vld [vmem:[#allocation4 + $0x8] sm:$0xff]
      %v2765 = vld [vmem:[#allocation4 + $0x10] sm:$0xff]
      %v2766 = vld [vmem:[#allocation4 + $0x18] sm:$0xff]
      %v2767 = vld [vmem:[#allocation4 + $0x20] sm:$0xff]
      %v2768 = vld [vmem:[#allocation4 + $0x28] sm:$0xff]
      %v2769 = vld [vmem:[#allocation4 + $0x30] sm:$0xff]
      %v2770 = vld [vmem:[#allocation4 + $0x38] sm:$0xff]
      %v2771 = vld [vmem:[#allocation4 + $0x40] sm:$0xff]
      %v2772 = vld [vmem:[#allocation4 + $0x48] sm:$0xff]
      %v2773 = vld [vmem:[#allocation4 + $0x50] sm:$0xff]
      %v2774 = vld [vmem:[#allocation4 + $0x58] sm:$0xff]
      %v2775 = vld [vmem:[#allocation4 + $0x60] sm:$0xff]
      %v2776 = vld [vmem:[#allocation4 + $0x68] sm:$0xff]
      %v2777 = vld [vmem:[#allocation4 + $0x70] sm:$0xff]
      %v2778 = vld [vmem:[#allocation4 + $0x78] sm:$0xff]
      %v2779 = vld [vmem:[#allocation4 + $0x80] sm:$0xff]
      %v2780 = vld [vmem:[#allocation4 + $0x88] sm:$0xff]
      %v2781 = vld [vmem:[#allocation4 + $0x90] sm:$0xff]
      %v2782 = vld [vmem:[#allocation4 + $0x98] sm:$0xff]
      %v2783 = vadd.f32 %v2763, %v2685
      %v2784 = vadd.f32 %v2764, %v2688
      %v2785 = vadd.f32 %v2765, %v2693
      %v2786 = vadd.f32 %v2766, %v2696
      %v2787 = vadd.f32 %v2767, %v2701
      %v2788 = vadd.f32 %v2768, %v2704
      %v2789 = vadd.f32 %v2769, %v2709
      %v2790 = vadd.f32 %v2770, %v2712
      %v2791 = vadd.f32 %v2771, %v2717
      %v2792 = vadd.f32 %v2772, %v2720
      %v2793 = vadd.f32 %v2773, %v2725
      %v2794 = vadd.f32 %v2774, %v2728
      %v2795 = vadd.f32 %v2775, %v2733
      %v2796 = vadd.f32 %v2776, %v2736
      %v2797 = vadd.f32 %v2777, %v2741
      %v2798 = vadd.f32 %v2778, %v2744
      %v2799 = vadd.f32 %v2779, %v2749
      %v2800 = vadd.f32 %v2780, %v2752
      %v2801 = vadd.f32 %v2781, %v2757
      %v2802 = vadd.f32 %v2782, %v2760
      %2803 = vst [vmem:[#allocation4] sm:$0xff] %v2783
      %2804 = vst [vmem:[#allocation4 + $0x8] sm:$0xff] %v2784
      %2805 = vst [vmem:[#allocation4 + $0x10] sm:$0xff] %v2785
      %2806 = vst [vmem:[#allocation4 + $0x18] sm:$0xff] %v2786
      %2807 = vst [vmem:[#allocation4 + $0x20] sm:$0xff] %v2787
      %2808 = vst [vmem:[#allocation4 + $0x28] sm:$0xff] %v2788
      %2809 = vst [vmem:[#allocation4 + $0x30] sm:$0xff] %v2789
      %2810 = vst [vmem:[#allocation4 + $0x38] sm:$0xff] %v2790
      %2811 = vst [vmem:[#allocation4 + $0x40] sm:$0xff] %v2791
      %2812 = vst [vmem:[#allocation4 + $0x48] sm:$0xff] %v2792
      %2813 = vst [vmem:[#allocation4 + $0x50] sm:$0xff] %v2793
      %2814 = vst [vmem:[#allocation4 + $0x58] sm:$0xff] %v2794
      %2815 = vst [vmem:[#allocation4 + $0x60] sm:$0xff] %v2795
      %2816 = vst [vmem:[#allocation4 + $0x68] sm:$0xff] %v2796
      %2817 = vst [vmem:[#allocation4 + $0x70] sm:$0xff] %v2797
      %2818 = vst [vmem:[#allocation4 + $0x78] sm:$0xff] %v2798
      %2819 = vst [vmem:[#allocation4 + $0x80] sm:$0xff] %v2799
      %2820 = vst [vmem:[#allocation4 + $0x88] sm:$0xff] %v2800
      %2821 = vst [vmem:[#allocation4 + $0x90] sm:$0xff] %v2801
      %2822 = vst [vmem:[#allocation4 + $0x98] sm:$0xff] %v2802
      %v2823 = vld [vmem:[#allocation4] sm:$0xff]
      %v2824 = vld [vmem:[#allocation4 + $0x8] sm:$0xff]
      %v2825 = vld [vmem:[#allocation4 + $0x10] sm:$0xff]
      %v2826 = vld [vmem:[#allocation4 + $0x18] sm:$0xff]
      %v2827 = vld [vmem:[#allocation4 + $0x20] sm:$0xff]
      %v2828 = vld [vmem:[#allocation4 + $0x28] sm:$0xff]
      %v2829 = vld [vmem:[#allocation4 + $0x30] sm:$0xff]
      %v2830 = vld [vmem:[#allocation4 + $0x38] sm:$0xff]
      %v2831 = vld [vmem:[#allocation4 + $0x40] sm:$0xff]
      %v2832 = vld [vmem:[#allocation4 + $0x48] sm:$0xff]
      %v2833 = vld [vmem:[#allocation4 + $0x50] sm:$0xff]
      %v2834 = vld [vmem:[#allocation4 + $0x58] sm:$0xff]
      %v2835 = vld [vmem:[#allocation4 + $0x60] sm:$0xff]
      %v2836 = vld [vmem:[#allocation4 + $0x68] sm:$0xff]
      %v2837 = vld [vmem:[#allocation4 + $0x70] sm:$0xff]
      %v2838 = vld [vmem:[#allocation4 + $0x78] sm:$0xff]
      %v2839 = vld [vmem:[#allocation4 + $0x80] sm:$0xff]
      %v2840 = vld [vmem:[#allocation4 + $0x88] sm:$0xff]
      %v2841 = vld [vmem:[#allocation4 + $0x90] sm:$0xff]
      %v2842 = vld [vmem:[#allocation4 + $0x98] sm:$0xff]
      %v2843 = vld [vmem:[%s2] sm:$0x1]
      %v2845 = vlaneseq
      %v2846 = vshrl.u32 %v2845, 7
      %v2847 = vsub.s32 0, %v2846
      %v2848 = vrot.slane %v2843, %v2847
      %v2850 = vmul.f32 %v2823, %v2848
      %v2851 = vmul.f32 %v2824, %v2848
      %v2852 = vmul.f32 %v2825, %v2848
      %v2853 = vmul.f32 %v2826, %v2848
      %v2854 = vmul.f32 %v2827, %v2848
      %v2855 = vmul.f32 %v2828, %v2848
      %v2856 = vmul.f32 %v2829, %v2848
      %v2857 = vmul.f32 %v2830, %v2848
      %v2858 = vmul.f32 %v2831, %v2848
      %v2859 = vmul.f32 %v2832, %v2848
      %v2860 = vmul.f32 %v2833, %v2848
      %v2861 = vmul.f32 %v2834, %v2848
      %v2862 = vmul.f32 %v2835, %v2848
      %v2863 = vmul.f32 %v2836, %v2848
      %v2864 = vmul.f32 %v2837, %v2848
      %v2865 = vmul.f32 %v2838, %v2848
      %v2866 = vmul.f32 %v2839, %v2848
      %v2867 = vmul.f32 %v2840, %v2848
      %v2868 = vmul.f32 %v2841, %v2848
      %v2869 = vmul.f32 %v2842, %v2848
      %v2870 = vld [vmem:[%s3] sm:$0x1]
      %v2872 = vlaneseq
      %v2873 = vshrl.u32 %v2872, 7
      %v2874 = vsub.s32 0, %v2873
      %v2875 = vrot.slane %v2870, %v2874
      %v2877 = vadd.f32 %v2850, %v2875
      %v2878 = vadd.f32 %v2851, %v2875
      %v2879 = vadd.f32 %v2852, %v2875
      %v2880 = vadd.f32 %v2853, %v2875
      %v2881 = vadd.f32 %v2854, %v2875
      %v2882 = vadd.f32 %v2855, %v2875
      %v2883 = vadd.f32 %v2856, %v2875
      %v2884 = vadd.f32 %v2857, %v2875
      %v2885 = vadd.f32 %v2858, %v2875
      %v2886 = vadd.f32 %v2859, %v2875
      %v2887 = vadd.f32 %v2860, %v2875
      %v2888 = vadd.f32 %v2861, %v2875
      %v2889 = vadd.f32 %v2862, %v2875
      %v2890 = vadd.f32 %v2863, %v2875
      %v2891 = vadd.f32 %v2864, %v2875
      %v2892 = vadd.f32 %v2865, %v2875
      %v2893 = vadd.f32 %v2866, %v2875
      %v2894 = vadd.f32 %v2867, %v2875
      %v2895 = vadd.f32 %v2868, %v2875
      %v2896 = vadd.f32 %v2869, %v2875
      %v2897 = vmax.f32 %v2877, 0.0
      %v2898 = vmax.f32 %v2878, 0.0
      %v2899 = vmax.f32 %v2879, 0.0
      %v2900 = vmax.f32 %v2880, 0.0
      %v2901 = vmax.f32 %v2881, 0.0
      %v2902 = vmax.f32 %v2882, 0.0
      %v2903 = vmax.f32 %v2883, 0.0
      %v2904 = vmax.f32 %v2884, 0.0
      %v2905 = vmax.f32 %v2885, 0.0
      %v2906 = vmax.f32 %v2886, 0.0
      %v2907 = vmax.f32 %v2887, 0.0
      %v2908 = vmax.f32 %v2888, 0.0
      %v2909 = vmax.f32 %v2889, 0.0
      %v2910 = vmax.f32 %v2890, 0.0
      %v2911 = vmax.f32 %v2891, 0.0
      %v2912 = vmax.f32 %v2892, 0.0
      %v2913 = vmax.f32 %v2893, 0.0
      %v2914 = vmax.f32 %v2894, 0.0
      %v2915 = vmax.f32 %v2895, 0.0
      %v2916 = vmax.f32 %v2896, 0.0
      %2917 = vst [vmem:[#allocation3 + $0x1] sm:$0xff] %v2897
      %2918 = vst [vmem:[#allocation3 + $0x9] sm:$0xff] %v2898
      %2919 = vst [vmem:[#allocation3 + $0x19] sm:$0xff] %v2899
      %2920 = vst [vmem:[#allocation3 + $0x21] sm:$0xff] %v2900
      %2921 = vst [vmem:[#allocation3 + $0x31] sm:$0xff] %v2901
      %2922 = vst [vmem:[#allocation3 + $0x39] sm:$0xff] %v2902
      %2923 = vst [vmem:[#allocation3 + $0x49] sm:$0xff] %v2903
      %2924 = vst [vmem:[#allocation3 + $0x51] sm:$0xff] %v2904
      %2925 = vst [vmem:[#allocation3 + $0x61] sm:$0xff] %v2905
      %2926 = vst [vmem:[#allocation3 + $0x69] sm:$0xff] %v2906
      %2927 = vst [vmem:[#allocation3 + $0x79] sm:$0xff] %v2907
      %2928 = vst [vmem:[#allocation3 + $0x81] sm:$0xff] %v2908
      %2929 = vst [vmem:[#allocation3 + $0x91] sm:$0xff] %v2909
      %2930 = vst [vmem:[#allocation3 + $0x99] sm:$0xff] %v2910
      %2931 = vst [vmem:[#allocation3 + $0xa9] sm:$0xff] %v2911
      %2932 = vst [vmem:[#allocation3 + $0xb1] sm:$0xff] %v2912
      %2933 = vst [vmem:[#allocation3 + $0xc1] sm:$0xff] %v2913
      %2934 = vst [vmem:[#allocation3 + $0xc9] sm:$0xff] %v2914
      %2935 = vst [vmem:[#allocation3 + $0xd9] sm:$0xff] %v2915
      %2936 = vst [vmem:[#allocation3 + $0xe1] sm:$0xff] %v2916
      // Predicated region
      $region65: #{resnet_block_forward.1} parent=47 // pred_check
        %p2937 = pneg %p356
      $region66: #{resnet_block_forward.1} parent=47 // pred_check_branch
        %2939 = sbr.rel (%p2937) target = $region68
      $region67: #{resnet_block_forward.1} parent=47 // pred_region
        %s2940 = scalar_lea.vmem [#allocation3], 48
        %v2941 = vld [vmem:[%s2940 + $0x1] sm:$0xff]
        %v2942 = vld [vmem:[%s2940 + $0x9] sm:$0xff]
        %2943 = vst [vmem:[#allocation3 + $0x1] sm:$0xff] %v2941
        %2944 = vst [vmem:[#allocation3 + $0x9] sm:$0xff] %v2942
      $region68: #{resnet_block_forward.1} parent=47 // pred_fallthru
        _
      // Predicated region
      $region69: #{resnet_block_forward.1} parent=47 // pred_check
        %p2945 = pneg %p387
      $region70: #{resnet_block_forward.1} parent=47 // pred_check_branch
        %2947 = sbr.rel (%p2945) target = $region72
      $region71: #{resnet_block_forward.1} parent=47 // pred_region
        %s2948 = scalar_lea.vmem [#allocation3], 168
        %v2949 = vld [vmem:[%s2948 + $0x1] sm:$0xff]
        %v2950 = vld [vmem:[%s2948 + $0x9] sm:$0xff]
        %s2951 = scalar_lea.vmem [#allocation3], 216
        %2952 = vst [vmem:[%s2951 + $0x1] sm:$0xff] %v2949
        %2953 = vst [vmem:[%s2951 + $0x9] sm:$0xff] %v2950
      $region72: #{resnet_block_forward.1} parent=47 // pred_fallthru
        _
      %v2954 = vld [vmem:[#allocation3 + $0x2] sm:$0x1]
      %v2955 = vld [vmem:[#allocation3 + $0x1a] sm:$0x1]
      %v2956 = vld [vmem:[#allocation3 + $0x32] sm:$0x1]
      %v2957 = vld [vmem:[#allocation3 + $0x4a] sm:$0x1]
      %v2958 = vld [vmem:[#allocation3 + $0x62] sm:$0x1]
      %v2959 = vld [vmem:[#allocation3 + $0x7a] sm:$0x1]
      %v2960 = vld [vmem:[#allocation3 + $0x92] sm:$0x1]
      %v2961 = vld [vmem:[#allocation3 + $0xaa] sm:$0x1]
      %v2962 = vld [vmem:[#allocation3 + $0xc2] sm:$0x1]
      %v2963 = vld [vmem:[#allocation3 + $0xda] sm:$0x1]
      %2964 = vst [vmem:[#allocation3] sm:$0x1] %v2954
      %2965 = vst [vmem:[#allocation3 + $0x18] sm:$0x1] %v2955
      %2966 = vst [vmem:[#allocation3 + $0x30] sm:$0x1] %v2956
      %2967 = vst [vmem:[#allocation3 + $0x48] sm:$0x1] %v2957
      %2968 = vst [vmem:[#allocation3 + $0x60] sm:$0x1] %v2958
      %2969 = vst [vmem:[#allocation3 + $0x78] sm:$0x1] %v2959
      %2970 = vst [vmem:[#allocation3 + $0x90] sm:$0x1] %v2960
      %2971 = vst [vmem:[#allocation3 + $0xa8] sm:$0x1] %v2961
      %2972 = vst [vmem:[#allocation3 + $0xc0] sm:$0x1] %v2962
      %2973 = vst [vmem:[#allocation3 + $0xd8] sm:$0x1] %v2963
      %v2974 = vld [vmem:[#allocation3 + $0xf] sm:$0x1]
      %v2975 = vld [vmem:[#allocation3 + $0x27] sm:$0x1]
      %v2976 = vld [vmem:[#allocation3 + $0x3f] sm:$0x1]
      %v2977 = vld [vmem:[#allocation3 + $0x57] sm:$0x1]
      %v2978 = vld [vmem:[#allocation3 + $0x6f] sm:$0x1]
      %v2979 = vld [vmem:[#allocation3 + $0x87] sm:$0x1]
      %v2980 = vld [vmem:[#allocation3 + $0x9f] sm:$0x1]
      %v2981 = vld [vmem:[#allocation3 + $0xb7] sm:$0x1]
      %v2982 = vld [vmem:[#allocation3 + $0xcf] sm:$0x1]
      %v2983 = vld [vmem:[#allocation3 + $0xe7] sm:$0x1]
      %2984 = vst [vmem:[#allocation3 + $0x11] sm:$0x1] %v2974
      %2985 = vst [vmem:[#allocation3 + $0x29] sm:$0x1] %v2975
      %2986 = vst [vmem:[#allocation3 + $0x41] sm:$0x1] %v2976
      %2987 = vst [vmem:[#allocation3 + $0x59] sm:$0x1] %v2977
      %2988 = vst [vmem:[#allocation3 + $0x71] sm:$0x1] %v2978
      %2989 = vst [vmem:[#allocation3 + $0x89] sm:$0x1] %v2979
      %2990 = vst [vmem:[#allocation3 + $0xa1] sm:$0x1] %v2980
      %2991 = vst [vmem:[#allocation3 + $0xb9] sm:$0x1] %v2981
      %2992 = vst [vmem:[#allocation3 + $0xd1] sm:$0x1] %v2982
      %2993 = vst [vmem:[#allocation3 + $0xe9] sm:$0x1] %v2983
      %v2994 = vld [vmem:[#allocation3] sm:$0xff]
      %v2995 = vld [vmem:[#allocation3 + $0x8] sm:$0xff]
      %v2996 = vld [vmem:[#allocation3 + $0x18] sm:$0xff]
      %v2997 = vld [vmem:[#allocation3 + $0x20] sm:$0xff]
      %v2998 = vld [vmem:[#allocation3 + $0x30] sm:$0xff]
      %v2999 = vld [vmem:[#allocation3 + $0x38] sm:$0xff]
      %v3000 = vld [vmem:[#allocation3 + $0x48] sm:$0xff]
      %v3001 = vld [vmem:[#allocation3 + $0x50] sm:$0xff]
      %v3002 = vld [vmem:[#allocation3 + $0x60] sm:$0xff]
      %v3003 = vld [vmem:[#allocation3 + $0x68] sm:$0xff]
      %v3004 = vld [vmem:[#allocation3 + $0x78] sm:$0xff]
      %v3005 = vld [vmem:[#allocation3 + $0x80] sm:$0xff]
      %v3006 = vld [vmem:[#allocation3 + $0x90] sm:$0xff]
      %v3007 = vld [vmem:[#allocation3 + $0x98] sm:$0xff]
      %v3008 = vld [vmem:[#allocation3 + $0xa8] sm:$0xff]
      %v3009 = vld [vmem:[#allocation3 + $0xb0] sm:$0xff]
      %v3010 = vpack.c.bf16 %v2995, %v2994
      %v3011 = vpack.c.bf16 %v2997, %v2996
      %v3012 = vpack.c.bf16 %v2999, %v2998
      %v3013 = vpack.c.bf16 %v3001, %v3000
      %v3014 = vpack.c.bf16 %v3003, %v3002
      %v3015 = vpack.c.bf16 %v3005, %v3004
      %v3016 = vpack.c.bf16 %v3007, %v3006
      %v3017 = vpack.c.bf16 %v3009, %v3008
      %v3018 = vld [vmem:[%s4] sm:$0xf]
      %v3019 = vld [vmem:[%s4 + $0x4] sm:$0xf]
      %v3020 = vld [vmem:[%s4 + $0x8] sm:$0xf]
      %v3021 = vld [vmem:[%s4 + $0xc] sm:$0xf]
      %v3022 = vld [vmem:[%s4 + $0x10] sm:$0xf]
      %v3023 = vld [vmem:[%s4 + $0x14] sm:$0xf]
      %v3024 = vld [vmem:[%s4 + $0x18] sm:$0xf]
      %v3025 = vld [vmem:[%s4 + $0x1c] sm:$0xf]
      %v3026 = vld [vmem:[%s4 + $0x20] sm:$0xf]
      %v3027 = vld [vmem:[%s4 + $0x24] sm:$0xf]
      %v3028 = vld [vmem:[%s4 + $0x28] sm:$0xf]
      %v3029 = vld [vmem:[%s4 + $0x2c] sm:$0xf]
      %v3030 = vld [vmem:[%s4 + $0x30] sm:$0xf]
      %v3031 = vld [vmem:[%s4 + $0x34] sm:$0xf]
      %v3032 = vld [vmem:[%s4 + $0x38] sm:$0xf]
      %v3033 = vld [vmem:[%s4 + $0x3c] sm:$0xf]
      %v3050 = vunpack.c.l.b16 %v3018
      %v3051 = vunpack.c.l.b16 %v3019
      %v3052 = vunpack.c.l.b16 %v3020
      %v3053 = vunpack.c.l.b16 %v3021
      %v3054 = vunpack.c.l.b16 %v3022
      %v3055 = vunpack.c.l.b16 %v3023
      %v3056 = vunpack.c.l.b16 %v3024
      %v3057 = vunpack.c.l.b16 %v3025
      %v3058 = vunpack.c.l.b16 %v3026
      %v3059 = vunpack.c.l.b16 %v3027
      %v3060 = vunpack.c.l.b16 %v3028
      %v3061 = vunpack.c.l.b16 %v3029
      %v3062 = vunpack.c.l.b16 %v3030
      %v3063 = vunpack.c.l.b16 %v3031
      %v3064 = vunpack.c.l.b16 %v3032
      %v3065 = vunpack.c.l.b16 %v3033
      %v3066 = vpack.c.b16 %v3051, %v3050
      %v3067 = vpack.c.b16 %v3053, %v3052
      %v3068 = vpack.c.b16 %v3055, %v3054
      %v3069 = vpack.c.b16 %v3057, %v3056
      %v3070 = vpack.c.b16 %v3059, %v3058
      %v3071 = vpack.c.b16 %v3061, %v3060
      %v3072 = vpack.c.b16 %v3063, %v3062
      %v3073 = vpack.c.b16 %v3065, %v3064
      %3082 = vmatprep.subr.bf16.mxu0 0
      %3083 = vmatpush1.bf16.msra.mxu0 %v3066
      %3084 = vmatprep.subr.bf16.mxu0 0
      %3085 = vmatpush1.bf16.msra.mxu0 %v3067
      %3086 = vmatprep.subr.bf16.mxu0 0
      %3087 = vmatpush1.bf16.msra.mxu0 %v3068
      %3088 = vmatprep.subr.bf16.mxu0 0
      %3089 = vmatpush1.bf16.msra.mxu0 %v3069
      %3090 = vmatprep.subr.bf16.mxu0 0
      %3091 = vmatpush1.bf16.msra.mxu0 %v3070
      %3092 = vmatprep.subr.bf16.mxu0 0
      %3093 = vmatpush1.bf16.msra.mxu0 %v3071
      %3094 = vmatprep.subr.bf16.mxu0 0
      %3095 = vmatpush1.bf16.msra.mxu0 %v3072
      %3096 = vmatprep.subr.bf16.mxu0 0
      %3097 = vmatpush1.bf16.msra.mxu0 %v3073
      %3098 = vmatprep.subr.bf16.mxu0 0
      %3099 = vmatpush1.bf16.msra.mxu0 0
      %3100 = vmatprep.subr.bf16.mxu0 0
      %3101 = vmatpush1.bf16.msra.mxu0 0
      %3102 = vmatprep.subr.bf16.mxu0 0
      %3103 = vmatpush1.bf16.msra.mxu0 0
      %3104 = vmatprep.subr.bf16.mxu0 0
      %3105 = vmatpush1.bf16.msra.mxu0 0
      %3106 = vmatprep.subr.bf16.mxu0 0
      %3107 = vmatpush1.bf16.msra.mxu0 0
      %3108 = vmatprep.subr.bf16.mxu0 0
      %3109 = vmatpush1.bf16.msra.mxu0 0
      %3110 = vmatprep.subr.bf16.mxu0 0
      %3111 = vmatpush1.bf16.msra.mxu0 0
      %3112 = vmatprep.subr.bf16.mxu0 0
      %3113 = vmatpush1.bf16.msra.mxu0 0
      %3114 = vmatprep.mubr.bf16.mxu0 0
      %3115 = vmatmul.mubr.bf16.gmra.mrb[0].mxu0 %v3010
      %v3116 = vpop.f32.mrb[0].mxu0
      %v3117 = vadd.f32 0.0, %v3116
      %v3118 = vpop.f32.mrb[0].mxu0
      %v3119 = vpop.f32.mrb[0].mxu0
      %v3120 = vadd.f32 0.0, %v3119
      %v3121 = vpop.f32.mrb[0].mxu0
      %3122 = vmatprep.mubr.bf16.mxu0 0
      %3123 = vmatmul.mubr.bf16.gmra.mrb[0].mxu0 %v3011
      %v3124 = vpop.f32.mrb[0].mxu0
      %v3125 = vadd.f32 0.0, %v3124
      %v3126 = vpop.f32.mrb[0].mxu0
      %v3127 = vpop.f32.mrb[0].mxu0
      %v3128 = vadd.f32 0.0, %v3127
      %v3129 = vpop.f32.mrb[0].mxu0
      %3130 = vmatprep.mubr.bf16.mxu0 0
      %3131 = vmatmul.mubr.bf16.gmra.mrb[0].mxu0 %v3012
      %v3132 = vpop.f32.mrb[0].mxu0
      %v3133 = vadd.f32 0.0, %v3132
      %v3134 = vpop.f32.mrb[0].mxu0
      %v3135 = vpop.f32.mrb[0].mxu0
      %v3136 = vadd.f32 0.0, %v3135
      %v3137 = vpop.f32.mrb[0].mxu0
      %3138 = vmatprep.mubr.bf16.mxu0 0
      %3139 = vmatmul.mubr.bf16.gmra.mrb[0].mxu0 %v3013
      %v3140 = vpop.f32.mrb[0].mxu0
      %v3141 = vadd.f32 0.0, %v3140
      %v3142 = vpop.f32.mrb[0].mxu0
      %v3143 = vpop.f32.mrb[0].mxu0
      %v3144 = vadd.f32 0.0, %v3143
      %v3145 = vpop.f32.mrb[0].mxu0
      %3146 = vmatprep.mubr.bf16.mxu0 0
      %3147 = vmatmul.mubr.bf16.gmra.mrb[0].mxu0 %v3014
      %v3148 = vpop.f32.mrb[0].mxu0
      %v3149 = vadd.f32 0.0, %v3148
      %v3150 = vpop.f32.mrb[0].mxu0
      %v3151 = vpop.f32.mrb[0].mxu0
      %v3152 = vadd.f32 0.0, %v3151
      %v3153 = vpop.f32.mrb[0].mxu0
      %3154 = vmatprep.mubr.bf16.mxu0 0
      %3155 = vmatmul.mubr.bf16.gmra.mrb[0].mxu0 %v3015
      %v3156 = vpop.f32.mrb[0].mxu0
      %v3157 = vadd.f32 0.0, %v3156
      %v3158 = vpop.f32.mrb[0].mxu0
      %v3159 = vpop.f32.mrb[0].mxu0
      %v3160 = vadd.f32 0.0, %v3159
      %v3161 = vpop.f32.mrb[0].mxu0
      %3162 = vmatprep.mubr.bf16.mxu0 0
      %3163 = vmatmul.mubr.bf16.gmra.mrb[0].mxu0 %v3016
      %v3164 = vpop.f32.mrb[0].mxu0
      %v3165 = vadd.f32 0.0, %v3164
      %v3166 = vpop.f32.mrb[0].mxu0
      %v3167 = vpop.f32.mrb[0].mxu0
      %v3168 = vadd.f32 0.0, %v3167
      %v3169 = vpop.f32.mrb[0].mxu0
      %3170 = vmatprep.mubr.bf16.mxu0 0
      %3171 = vmatmul.mubr.bf16.gmra.mrb[0].mxu0 %v3017
      %v3172 = vpop.f32.mrb[0].mxu0
      %v3173 = vadd.f32 0.0, %v3172
      %v3174 = vpop.f32.mrb[0].mxu0
      %v3175 = vpop.f32.mrb[0].mxu0
      %v3176 = vadd.f32 0.0, %v3175
      %v3177 = vpop.f32.mrb[0].mxu0
      %3178 = vdwg.mxu0
      %3179 = vst [vmem:[#allocation5] sm:$0xff] %v3117
      %3180 = vst [vmem:[#allocation5 + $0x8] sm:$0xff] %v3120
      %3181 = vst [vmem:[#allocation5 + $0x10] sm:$0xff] %v3125
      %3182 = vst [vmem:[#allocation5 + $0x18] sm:$0xff] %v3128
      %3183 = vst [vmem:[#allocation5 + $0x20] sm:$0xff] %v3133
      %3184 = vst [vmem:[#allocation5 + $0x28] sm:$0xff] %v3136
      %3185 = vst [vmem:[#allocation5 + $0x30] sm:$0xff] %v3141
      %3186 = vst [vmem:[#allocation5 + $0x38] sm:$0xff] %v3144
      %3187 = vst [vmem:[#allocation5 + $0x40] sm:$0xff] %v3149
      %3188 = vst [vmem:[#allocation5 + $0x48] sm:$0xff] %v3152
      %3189 = vst [vmem:[#allocation5 + $0x50] sm:$0xff] %v3157
      %3190 = vst [vmem:[#allocation5 + $0x58] sm:$0xff] %v3160
      %3191 = vst [vmem:[#allocation5 + $0x60] sm:$0xff] %v3165
      %3192 = vst [vmem:[#allocation5 + $0x68] sm:$0xff] %v3168
      %3193 = vst [vmem:[#allocation5 + $0x70] sm:$0xff] %v3173
      %3194 = vst [vmem:[#allocation5 + $0x78] sm:$0xff] %v3176
      %v3195 = vld [vmem:[#allocation3 + $0x1] sm:$0xff]
      %v3196 = vld [vmem:[#allocation3 + $0x9] sm:$0xff]
      %v3197 = vld [vmem:[#allocation3 + $0x19] sm:$0xff]
      %v3198 = vld [vmem:[#allocation3 + $0x21] sm:$0xff]
      %v3199 = vld [vmem:[#allocation3 + $0x31] sm:$0xff]
      %v3200 = vld [vmem:[#allocation3 + $0x39] sm:$0xff]
      %v3201 = vld [vmem:[#allocation3 + $0x49] sm:$0xff]
      %v3202 = vld [vmem:[#allocation3 + $0x51] sm:$0xff]
      %v3203 = vld [vmem:[#allocation3 + $0x61] sm:$0xff]
      %v3204 = vld [vmem:[#allocation3 + $0x69] sm:$0xff]
      %v3205 = vld [vmem:[#allocation3 + $0x79] sm:$0xff]
      %v3206 = vld [vmem:[#allocation3 + $0x81] sm:$0xff]
      %v3207 = vld [vmem:[#allocation3 + $0x91] sm:$0xff]
      %v3208 = vld [vmem:[#allocation3 + $0x99] sm:$0xff]
      %v3209 = vld [vmem:[#allocation3 + $0xa9] sm:$0xff]
      %v3210 = vld [vmem:[#allocation3 + $0xb1] sm:$0xff]
      %v3211 = vpack.c.bf16 %v3196, %v3195
      %v3212 = vpack.c.bf16 %v3198, %v3197
      %v3213 = vpack.c.bf16 %v3200, %v3199
      %v3214 = vpack.c.bf16 %v3202, %v3201
      %v3215 = vpack.c.bf16 %v3204, %v3203
      %v3216 = vpack.c.bf16 %v3206, %v3205
      %v3217 = vpack.c.bf16 %v3208, %v3207
      %v3218 = vpack.c.bf16 %v3210, %v3209
      %s3219 = scalar_lea.vmem %s4, 64
      %v3220 = vld [vmem:[%s3219] sm:$0xf]
      %v3221 = vld [vmem:[%s3219 + $0x4] sm:$0xf]
      %v3222 = vld [vmem:[%s3219 + $0x8] sm:$0xf]
      %v3223 = vld [vmem:[%s3219 + $0xc] sm:$0xf]
      %v3224 = vld [vmem:[%s3219 + $0x10] sm:$0xf]
      %v3225 = vld [vmem:[%s3219 + $0x14] sm:$0xf]
      %v3226 = vld [vmem:[%s3219 + $0x18] sm:$0xf]
      %v3227 = vld [vmem:[%s3219 + $0x1c] sm:$0xf]
      %v3228 = vld [vmem:[%s3219 + $0x20] sm:$0xf]
      %v3229 = vld [vmem:[%s3219 + $0x24] sm:$0xf]
      %v3230 = vld [vmem:[%s3219 + $0x28] sm:$0xf]
      %v3231 = vld [vmem:[%s3219 + $0x2c] sm:$0xf]
      %v3232 = vld [vmem:[%s3219 + $0x30] sm:$0xf]
      %v3233 = vld [vmem:[%s3219 + $0x34] sm:$0xf]
      %v3234 = vld [vmem:[%s3219 + $0x38] sm:$0xf]
      %v3235 = vld [vmem:[%s3219 + $0x3c] sm:$0xf]
      %v3252 = vunpack.c.l.b16 %v3220
      %v3253 = vunpack.c.l.b16 %v3221
      %v3254 = vunpack.c.l.b16 %v3222
      %v3255 = vunpack.c.l.b16 %v3223
      %v3256 = vunpack.c.l.b16 %v3224
      %v3257 = vunpack.c.l.b16 %v3225
      %v3258 = vunpack.c.l.b16 %v3226
      %v3259 = vunpack.c.l.b16 %v3227
      %v3260 = vunpack.c.l.b16 %v3228
      %v3261 = vunpack.c.l.b16 %v3229
      %v3262 = vunpack.c.l.b16 %v3230
      %v3263 = vunpack.c.l.b16 %v3231
      %v3264 = vunpack.c.l.b16 %v3232
      %v3265 = vunpack.c.l.b16 %v3233
      %v3266 = vunpack.c.l.b16 %v3234
      %v3267 = vunpack.c.l.b16 %v3235
      %v3268 = vpack.c.b16 %v3253, %v3252
      %v3269 = vpack.c.b16 %v3255, %v3254
      %v3270 = vpack.c.b16 %v3257, %v3256
      %v3271 = vpack.c.b16 %v3259, %v3258
      %v3272 = vpack.c.b16 %v3261, %v3260
      %v3273 = vpack.c.b16 %v3263, %v3262
      %v3274 = vpack.c.b16 %v3265, %v3264
      %v3275 = vpack.c.b16 %v3267, %v3266
      %3284 = vmatprep.subr.bf16.mxu0 0
      %3285 = vmatpush1.bf16.msra.mxu0 %v3268
      %3286 = vmatprep.subr.bf16.mxu0 0
      %3287 = vmatpush1.bf16.msra.mxu0 %v3269
      %3288 = vmatprep.subr.bf16.mxu0 0
      %3289 = vmatpush1.bf16.msra.mxu0 %v3270
      %3290 = vmatprep.subr.bf16.mxu0 0
      %3291 = vmatpush1.bf16.msra.mxu0 %v3271
      %3292 = vmatprep.subr.bf16.mxu0 0
      %3293 = vmatpush1.bf16.msra.mxu0 %v3272
      %3294 = vmatprep.subr.bf16.mxu0 0
      %3295 = vmatpush1.bf16.msra.mxu0 %v3273
      %3296 = vmatprep.subr.bf16.mxu0 0
      %3297 = vmatpush1.bf16.msra.mxu0 %v3274
      %3298 = vmatprep.subr.bf16.mxu0 0
      %3299 = vmatpush1.bf16.msra.mxu0 %v3275
      %3300 = vmatprep.subr.bf16.mxu0 0
      %3301 = vmatpush1.bf16.msra.mxu0 0
      %3302 = vmatprep.subr.bf16.mxu0 0
      %3303 = vmatpush1.bf16.msra.mxu0 0
      %3304 = vmatprep.subr.bf16.mxu0 0
      %3305 = vmatpush1.bf16.msra.mxu0 0
      %3306 = vmatprep.subr.bf16.mxu0 0
      %3307 = vmatpush1.bf16.msra.mxu0 0
      %3308 = vmatprep.subr.bf16.mxu0 0
      %3309 = vmatpush1.bf16.msra.mxu0 0
      %3310 = vmatprep.subr.bf16.mxu0 0
      %3311 = vmatpush1.bf16.msra.mxu0 0
      %3312 = vmatprep.subr.bf16.mxu0 0
      %3313 = vmatpush1.bf16.msra.mxu0 0
      %3314 = vmatprep.subr.bf16.mxu0 0
      %3315 = vmatpush1.bf16.msra.mxu0 0
      %3316 = vmatprep.mubr.bf16.mxu0 0
      %3317 = vmatmul.mubr.bf16.gmra.mrb[0].mxu0 %v3211
      %v3318 = vpop.f32.mrb[0].mxu0
      %v3319 = vadd.f32 0.0, %v3318
      %v3320 = vpop.f32.mrb[0].mxu0
      %v3321 = vpop.f32.mrb[0].mxu0
      %v3322 = vadd.f32 0.0, %v3321
      %v3323 = vpop.f32.mrb[0].mxu0
      %3324 = vmatprep.mubr.bf16.mxu0 0
      %3325 = vmatmul.mubr.bf16.gmra.mrb[0].mxu0 %v3212
      %v3326 = vpop.f32.mrb[0].mxu0
      %v3327 = vadd.f32 0.0, %v3326
      %v3328 = vpop.f32.mrb[0].mxu0
      %v3329 = vpop.f32.mrb[0].mxu0
      %v3330 = vadd.f32 0.0, %v3329
      %v3331 = vpop.f32.mrb[0].mxu0
      %3332 = vmatprep.mubr.bf16.mxu0 0
      %3333 = vmatmul.mubr.bf16.gmra.mrb[0].mxu0 %v3213
      %v3334 = vpop.f32.mrb[0].mxu0
      %v3335 = vadd.f32 0.0, %v3334
      %v3336 = vpop.f32.mrb[0].mxu0
      %v3337 = vpop.f32.mrb[0].mxu0
      %v3338 = vadd.f32 0.0, %v3337
      %v3339 = vpop.f32.mrb[0].mxu0
      %3340 = vmatprep.mubr.bf16.mxu0 0
      %3341 = vmatmul.mubr.bf16.gmra.mrb[0].mxu0 %v3214
      %v3342 = vpop.f32.mrb[0].mxu0
      %v3343 = vadd.f32 0.0, %v3342
      %v3344 = vpop.f32.mrb[0].mxu0
      %v3345 = vpop.f32.mrb[0].mxu0
      %v3346 = vadd.f32 0.0, %v3345
      %v3347 = vpop.f32.mrb[0].mxu0
      %3348 = vmatprep.mubr.bf16.mxu0 0
      %3349 = vmatmul.mubr.bf16.gmra.mrb[0].mxu0 %v3215
      %v3350 = vpop.f32.mrb[0].mxu0
      %v3351 = vadd.f32 0.0, %v3350
      %v3352 = vpop.f32.mrb[0].mxu0
      %v3353 = vpop.f32.mrb[0].mxu0
      %v3354 = vadd.f32 0.0, %v3353
      %v3355 = vpop.f32.mrb[0].mxu0
      %3356 = vmatprep.mubr.bf16.mxu0 0
      %3357 = vmatmul.mubr.bf16.gmra.mrb[0].mxu0 %v3216
      %v3358 = vpop.f32.mrb[0].mxu0
      %v3359 = vadd.f32 0.0, %v3358
      %v3360 = vpop.f32.mrb[0].mxu0
      %v3361 = vpop.f32.mrb[0].mxu0
      %v3362 = vadd.f32 0.0, %v3361
      %v3363 = vpop.f32.mrb[0].mxu0
      %3364 = vmatprep.mubr.bf16.mxu0 0
      %3365 = vmatmul.mubr.bf16.gmra.mrb[0].mxu0 %v3217
      %v3366 = vpop.f32.mrb[0].mxu0
      %v3367 = vadd.f32 0.0, %v3366
      %v3368 = vpop.f32.mrb[0].mxu0
      %v3369 = vpop.f32.mrb[0].mxu0
      %v3370 = vadd.f32 0.0, %v3369
      %v3371 = vpop.f32.mrb[0].mxu0
      %3372 = vmatprep.mubr.bf16.mxu0 0
      %3373 = vmatmul.mubr.bf16.gmra.mrb[0].mxu0 %v3218
      %v3374 = vpop.f32.mrb[0].mxu0
      %v3375 = vadd.f32 0.0, %v3374
      %v3376 = vpop.f32.mrb[0].mxu0
      %v3377 = vpop.f32.mrb[0].mxu0
      %v3378 = vadd.f32 0.0, %v3377
      %v3379 = vpop.f32.mrb[0].mxu0
      %3380 = vdwg.mxu0
      %v3381 = vld [vmem:[#allocation5] sm:$0xff]
      %v3382 = vld [vmem:[#allocation5 + $0x8] sm:$0xff]
      %v3383 = vld [vmem:[#allocation5 + $0x10] sm:$0xff]
      %v3384 = vld [vmem:[#allocation5 + $0x18] sm:$0xff]
      %v3385 = vld [vmem:[#allocation5 + $0x20] sm:$0xff]
      %v3386 = vld [vmem:[#allocation5 + $0x28] sm:$0xff]
      %v3387 = vld [vmem:[#allocation5 + $0x30] sm:$0xff]
      %v3388 = vld [vmem:[#allocation5 + $0x38] sm:$0xff]
      %v3389 = vld [vmem:[#allocation5 + $0x40] sm:$0xff]
      %v3390 = vld [vmem:[#allocation5 + $0x48] sm:$0xff]
      %v3391 = vld [vmem:[#allocation5 + $0x50] sm:$0xff]
      %v3392 = vld [vmem:[#allocation5 + $0x58] sm:$0xff]
      %v3393 = vld [vmem:[#allocation5 + $0x60] sm:$0xff]
      %v3394 = vld [vmem:[#allocation5 + $0x68] sm:$0xff]
      %v3395 = vld [vmem:[#allocation5 + $0x70] sm:$0xff]
      %v3396 = vld [vmem:[#allocation5 + $0x78] sm:$0xff]
      %v3397 = vadd.f32 %v3381, %v3319
      %v3398 = vadd.f32 %v3382, %v3322
      %v3399 = vadd.f32 %v3383, %v3327
      %v3400 = vadd.f32 %v3384, %v3330
      %v3401 = vadd.f32 %v3385, %v3335
      %v3402 = vadd.f32 %v3386, %v3338
      %v3403 = vadd.f32 %v3387, %v3343
      %v3404 = vadd.f32 %v3388, %v3346
      %v3405 = vadd.f32 %v3389, %v3351
      %v3406 = vadd.f32 %v3390, %v3354
      %v3407 = vadd.f32 %v3391, %v3359
      %v3408 = vadd.f32 %v3392, %v3362
      %v3409 = vadd.f32 %v3393, %v3367
      %v3410 = vadd.f32 %v3394, %v3370
      %v3411 = vadd.f32 %v3395, %v3375
      %v3412 = vadd.f32 %v3396, %v3378
      %3413 = vst [vmem:[#allocation5] sm:$0xff] %v3397
      %3414 = vst [vmem:[#allocation5 + $0x8] sm:$0xff] %v3398
      %3415 = vst [vmem:[#allocation5 + $0x10] sm:$0xff] %v3399
      %3416 = vst [vmem:[#allocation5 + $0x18] sm:$0xff] %v3400
      %3417 = vst [vmem:[#allocation5 + $0x20] sm:$0xff] %v3401
      %3418 = vst [vmem:[#allocation5 + $0x28] sm:$0xff] %v3402
      %3419 = vst [vmem:[#allocation5 + $0x30] sm:$0xff] %v3403
      %3420 = vst [vmem:[#allocation5 + $0x38] sm:$0xff] %v3404
      %3421 = vst [vmem:[#allocation5 + $0x40] sm:$0xff] %v3405
      %3422 = vst [vmem:[#allocation5 + $0x48] sm:$0xff] %v3406
      %3423 = vst [vmem:[#allocation5 + $0x50] sm:$0xff] %v3407
      %3424 = vst [vmem:[#allocation5 + $0x58] sm:$0xff] %v3408
      %3425 = vst [vmem:[#allocation5 + $0x60] sm:$0xff] %v3409
      %3426 = vst [vmem:[#allocation5 + $0x68] sm:$0xff] %v3410
      %3427 = vst [vmem:[#allocation5 + $0x70] sm:$0xff] %v3411
      %3428 = vst [vmem:[#allocation5 + $0x78] sm:$0xff] %v3412
      %v3429 = vld [vmem:[#allocation3 + $0x2] sm:$0xff]
      %v3430 = vld [vmem:[#allocation3 + $0xa] sm:$0xff]
      %v3431 = vld [vmem:[#allocation3 + $0x1a] sm:$0xff]
      %v3432 = vld [vmem:[#allocation3 + $0x22] sm:$0xff]
      %v3433 = vld [vmem:[#allocation3 + $0x32] sm:$0xff]
      %v3434 = vld [vmem:[#allocation3 + $0x3a] sm:$0xff]
      %v3435 = vld [vmem:[#allocation3 + $0x4a] sm:$0xff]
      %v3436 = vld [vmem:[#allocation3 + $0x52] sm:$0xff]
      %v3437 = vld [vmem:[#allocation3 + $0x62] sm:$0xff]
      %v3438 = vld [vmem:[#allocation3 + $0x6a] sm:$0xff]
      %v3439 = vld [vmem:[#allocation3 + $0x7a] sm:$0xff]
      %v3440 = vld [vmem:[#allocation3 + $0x82] sm:$0xff]
      %v3441 = vld [vmem:[#allocation3 + $0x92] sm:$0xff]
      %v3442 = vld [vmem:[#allocation3 + $0x9a] sm:$0xff]
      %v3443 = vld [vmem:[#allocation3 + $0xaa] sm:$0xff]
      %v3444 = vld [vmem:[#allocation3 + $0xb2] sm:$0xff]
      %v3445 = vpack.c.bf16 %v3430, %v3429
      %v3446 = vpack.c.bf16 %v3432, %v3431
      %v3447 = vpack.c.bf16 %v3434, %v3433
      %v3448 = vpack.c.bf16 %v3436, %v3435
      %v3449 = vpack.c.bf16 %v3438, %v3437
      %v3450 = vpack.c.bf16 %v3440, %v3439
      %v3451 = vpack.c.bf16 %v3442, %v3441
      %v3452 = vpack.c.bf16 %v3444, %v3443
      %s3453 = scalar_lea.vmem %s4, 128
      %v3454 = vld [vmem:[%s3453] sm:$0xf]
      %v3455 = vld [vmem:[%s3453 + $0x4] sm:$0xf]
      %v3456 = vld [vmem:[%s3453 + $0x8] sm:$0xf]
      %v3457 = vld [vmem:[%s3453 + $0xc] sm:$0xf]
      %v3458 = vld [vmem:[%s3453 + $0x10] sm:$0xf]
      %v3459 = vld [vmem:[%s3453 + $0x14] sm:$0xf]
      %v3460 = vld [vmem:[%s3453 + $0x18] sm:$0xf]
      %v3461 = vld [vmem:[%s3453 + $0x1c] sm:$0xf]
      %v3462 = vld [vmem:[%s3453 + $0x20] sm:$0xf]
      %v3463 = vld [vmem:[%s3453 + $0x24] sm:$0xf]
      %v3464 = vld [vmem:[%s3453 + $0x28] sm:$0xf]
      %v3465 = vld [vmem:[%s3453 + $0x2c] sm:$0xf]
      %v3466 = vld [vmem:[%s3453 + $0x30] sm:$0xf]
      %v3467 = vld [vmem:[%s3453 + $0x34] sm:$0xf]
      %v3468 = vld [vmem:[%s3453 + $0x38] sm:$0xf]
      %v3469 = vld [vmem:[%s3453 + $0x3c] sm:$0xf]
      %v3486 = vunpack.c.l.b16 %v3454
      %v3487 = vunpack.c.l.b16 %v3455
      %v3488 = vunpack.c.l.b16 %v3456
      %v3489 = vunpack.c.l.b16 %v3457
      %v3490 = vunpack.c.l.b16 %v3458
      %v3491 = vunpack.c.l.b16 %v3459
      %v3492 = vunpack.c.l.b16 %v3460
      %v3493 = vunpack.c.l.b16 %v3461
      %v3494 = vunpack.c.l.b16 %v3462
      %v3495 = vunpack.c.l.b16 %v3463
      %v3496 = vunpack.c.l.b16 %v3464
      %v3497 = vunpack.c.l.b16 %v3465
      %v3498 = vunpack.c.l.b16 %v3466
      %v3499 = vunpack.c.l.b16 %v3467
      %v3500 = vunpack.c.l.b16 %v3468
      %v3501 = vunpack.c.l.b16 %v3469
      %v3502 = vpack.c.b16 %v3487, %v3486
      %v3503 = vpack.c.b16 %v3489, %v3488
      %v3504 = vpack.c.b16 %v3491, %v3490
      %v3505 = vpack.c.b16 %v3493, %v3492
      %v3506 = vpack.c.b16 %v3495, %v3494
      %v3507 = vpack.c.b16 %v3497, %v3496
      %v3508 = vpack.c.b16 %v3499, %v3498
      %v3509 = vpack.c.b16 %v3501, %v3500
      %3518 = vmatprep.subr.bf16.mxu0 0
      %3519 = vmatpush1.bf16.msra.mxu0 %v3502
      %3520 = vmatprep.subr.bf16.mxu0 0
      %3521 = vmatpush1.bf16.msra.mxu0 %v3503
      %3522 = vmatprep.subr.bf16.mxu0 0
      %3523 = vmatpush1.bf16.msra.mxu0 %v3504
      %3524 = vmatprep.subr.bf16.mxu0 0
      %3525 = vmatpush1.bf16.msra.mxu0 %v3505
      %3526 = vmatprep.subr.bf16.mxu0 0
      %3527 = vmatpush1.bf16.msra.mxu0 %v3506
      %3528 = vmatprep.subr.bf16.mxu0 0
      %3529 = vmatpush1.bf16.msra.mxu0 %v3507
      %3530 = vmatprep.subr.bf16.mxu0 0
      %3531 = vmatpush1.bf16.msra.mxu0 %v3508
      %3532 = vmatprep.subr.bf16.mxu0 0
      %3533 = vmatpush1.bf16.msra.mxu0 %v3509
      %3534 = vmatprep.subr.bf16.mxu0 0
      %3535 = vmatpush1.bf16.msra.mxu0 0
      %3536 = vmatprep.subr.bf16.mxu0 0
      %3537 = vmatpush1.bf16.msra.mxu0 0
      %3538 = vmatprep.subr.bf16.mxu0 0
      %3539 = vmatpush1.bf16.msra.mxu0 0
      %3540 = vmatprep.subr.bf16.mxu0 0
      %3541 = vmatpush1.bf16.msra.mxu0 0
      %3542 = vmatprep.subr.bf16.mxu0 0
      %3543 = vmatpush1.bf16.msra.mxu0 0
      %3544 = vmatprep.subr.bf16.mxu0 0
      %3545 = vmatpush1.bf16.msra.mxu0 0
      %3546 = vmatprep.subr.bf16.mxu0 0
      %3547 = vmatpush1.bf16.msra.mxu0 0
      %3548 = vmatprep.subr.bf16.mxu0 0
      %3549 = vmatpush1.bf16.msra.mxu0 0
      %3550 = vmatprep.mubr.bf16.mxu0 0
      %3551 = vmatmul.mubr.bf16.gmra.mrb[0].mxu0 %v3445
      %v3552 = vpop.f32.mrb[0].mxu0
      %v3553 = vadd.f32 0.0, %v3552
      %v3554 = vpop.f32.mrb[0].mxu0
      %v3555 = vpop.f32.mrb[0].mxu0
      %v3556 = vadd.f32 0.0, %v3555
      %v3557 = vpop.f32.mrb[0].mxu0
      %3558 = vmatprep.mubr.bf16.mxu0 0
      %3559 = vmatmul.mubr.bf16.gmra.mrb[0].mxu0 %v3446
      %v3560 = vpop.f32.mrb[0].mxu0
      %v3561 = vadd.f32 0.0, %v3560
      %v3562 = vpop.f32.mrb[0].mxu0
      %v3563 = vpop.f32.mrb[0].mxu0
      %v3564 = vadd.f32 0.0, %v3563
      %v3565 = vpop.f32.mrb[0].mxu0
      %3566 = vmatprep.mubr.bf16.mxu0 0
      %3567 = vmatmul.mubr.bf16.gmra.mrb[0].mxu0 %v3447
      %v3568 = vpop.f32.mrb[0].mxu0
      %v3569 = vadd.f32 0.0, %v3568
      %v3570 = vpop.f32.mrb[0].mxu0
      %v3571 = vpop.f32.mrb[0].mxu0
      %v3572 = vadd.f32 0.0, %v3571
      %v3573 = vpop.f32.mrb[0].mxu0
      %3574 = vmatprep.mubr.bf16.mxu0 0
      %3575 = vmatmul.mubr.bf16.gmra.mrb[0].mxu0 %v3448
      %v3576 = vpop.f32.mrb[0].mxu0
      %v3577 = vadd.f32 0.0, %v3576
      %v3578 = vpop.f32.mrb[0].mxu0
      %v3579 = vpop.f32.mrb[0].mxu0
      %v3580 = vadd.f32 0.0, %v3579
      %v3581 = vpop.f32.mrb[0].mxu0
      %3582 = vmatprep.mubr.bf16.mxu0 0
      %3583 = vmatmul.mubr.bf16.gmra.mrb[0].mxu0 %v3449
      %v3584 = vpop.f32.mrb[0].mxu0
      %v3585 = vadd.f32 0.0, %v3584
      %v3586 = vpop.f32.mrb[0].mxu0
      %v3587 = vpop.f32.mrb[0].mxu0
      %v3588 = vadd.f32 0.0, %v3587
      %v3589 = vpop.f32.mrb[0].mxu0
      %3590 = vmatprep.mubr.bf16.mxu0 0
      %3591 = vmatmul.mubr.bf16.gmra.mrb[0].mxu0 %v3450
      %v3592 = vpop.f32.mrb[0].mxu0
      %v3593 = vadd.f32 0.0, %v3592
      %v3594 = vpop.f32.mrb[0].mxu0
      %v3595 = vpop.f32.mrb[0].mxu0
      %v3596 = vadd.f32 0.0, %v3595
      %v3597 = vpop.f32.mrb[0].mxu0
      %3598 = vmatprep.mubr.bf16.mxu0 0
      %3599 = vmatmul.mubr.bf16.gmra.mrb[0].mxu0 %v3451
      %v3600 = vpop.f32.mrb[0].mxu0
      %v3601 = vadd.f32 0.0, %v3600
      %v3602 = vpop.f32.mrb[0].mxu0
      %v3603 = vpop.f32.mrb[0].mxu0
      %v3604 = vadd.f32 0.0, %v3603
      %v3605 = vpop.f32.mrb[0].mxu0
      %3606 = vmatprep.mubr.bf16.mxu0 0
      %3607 = vmatmul.mubr.bf16.gmra.mrb[0].mxu0 %v3452
      %v3608 = vpop.f32.mrb[0].mxu0
      %v3609 = vadd.f32 0.0, %v3608
      %v3610 = vpop.f32.mrb[0].mxu0
      %v3611 = vpop.f32.mrb[0].mxu0
      %v3612 = vadd.f32 0.0, %v3611
      %v3613 = vpop.f32.mrb[0].mxu0
      %3614 = vdwg.mxu0
      %v3615 = vld [vmem:[#allocation5] sm:$0xff]
      %v3616 = vld [vmem:[#allocation5 + $0x8] sm:$0xff]
      %v3617 = vld [vmem:[#allocation5 + $0x10] sm:$0xff]
      %v3618 = vld [vmem:[#allocation5 + $0x18] sm:$0xff]
      %v3619 = vld [vmem:[#allocation5 + $0x20] sm:$0xff]
      %v3620 = vld [vmem:[#allocation5 + $0x28] sm:$0xff]
      %v3621 = vld [vmem:[#allocation5 + $0x30] sm:$0xff]
      %v3622 = vld [vmem:[#allocation5 + $0x38] sm:$0xff]
      %v3623 = vld [vmem:[#allocation5 + $0x40] sm:$0xff]
      %v3624 = vld [vmem:[#allocation5 + $0x48] sm:$0xff]
      %v3625 = vld [vmem:[#allocation5 + $0x50] sm:$0xff]
      %v3626 = vld [vmem:[#allocation5 + $0x58] sm:$0xff]
      %v3627 = vld [vmem:[#allocation5 + $0x60] sm:$0xff]
      %v3628 = vld [vmem:[#allocation5 + $0x68] sm:$0xff]
      %v3629 = vld [vmem:[#allocation5 + $0x70] sm:$0xff]
      %v3630 = vld [vmem:[#allocation5 + $0x78] sm:$0xff]
      %v3631 = vadd.f32 %v3615, %v3553
      %v3632 = vadd.f32 %v3616, %v3556
      %v3633 = vadd.f32 %v3617, %v3561
      %v3634 = vadd.f32 %v3618, %v3564
      %v3635 = vadd.f32 %v3619, %v3569
      %v3636 = vadd.f32 %v3620, %v3572
      %v3637 = vadd.f32 %v3621, %v3577
      %v3638 = vadd.f32 %v3622, %v3580
      %v3639 = vadd.f32 %v3623, %v3585
      %v3640 = vadd.f32 %v3624, %v3588
      %v3641 = vadd.f32 %v3625, %v3593
      %v3642 = vadd.f32 %v3626, %v3596
      %v3643 = vadd.f32 %v3627, %v3601
      %v3644 = vadd.f32 %v3628, %v3604
      %v3645 = vadd.f32 %v3629, %v3609
      %v3646 = vadd.f32 %v3630, %v3612
      %3647 = vst [vmem:[#allocation5] sm:$0xff] %v3631
      %3648 = vst [vmem:[#allocation5 + $0x8] sm:$0xff] %v3632
      %3649 = vst [vmem:[#allocation5 + $0x10] sm:$0xff] %v3633
      %3650 = vst [vmem:[#allocation5 + $0x18] sm:$0xff] %v3634
      %3651 = vst [vmem:[#allocation5 + $0x20] sm:$0xff] %v3635
      %3652 = vst [vmem:[#allocation5 + $0x28] sm:$0xff] %v3636
      %3653 = vst [vmem:[#allocation5 + $0x30] sm:$0xff] %v3637
      %3654 = vst [vmem:[#allocation5 + $0x38] sm:$0xff] %v3638
      %3655 = vst [vmem:[#allocation5 + $0x40] sm:$0xff] %v3639
      %3656 = vst [vmem:[#allocation5 + $0x48] sm:$0xff] %v3640
      %3657 = vst [vmem:[#allocation5 + $0x50] sm:$0xff] %v3641
      %3658 = vst [vmem:[#allocation5 + $0x58] sm:$0xff] %v3642
      %3659 = vst [vmem:[#allocation5 + $0x60] sm:$0xff] %v3643
      %3660 = vst [vmem:[#allocation5 + $0x68] sm:$0xff] %v3644
      %3661 = vst [vmem:[#allocation5 + $0x70] sm:$0xff] %v3645
      %3662 = vst [vmem:[#allocation5 + $0x78] sm:$0xff] %v3646
      %s3663 = scalar_lea.vmem [#allocation3], 24
      %v3664 = vld [vmem:[%s3663] sm:$0xff]
      %v3665 = vld [vmem:[%s3663 + $0x8] sm:$0xff]
      %v3666 = vld [vmem:[%s3663 + $0x18] sm:$0xff]
      %v3667 = vld [vmem:[%s3663 + $0x20] sm:$0xff]
      %v3668 = vld [vmem:[%s3663 + $0x30] sm:$0xff]
      %v3669 = vld [vmem:[%s3663 + $0x38] sm:$0xff]
      %v3670 = vld [vmem:[%s3663 + $0x48] sm:$0xff]
      %v3671 = vld [vmem:[%s3663 + $0x50] sm:$0xff]
      %v3672 = vld [vmem:[%s3663 + $0x60] sm:$0xff]
      %v3673 = vld [vmem:[%s3663 + $0x68] sm:$0xff]
      %v3674 = vld [vmem:[%s3663 + $0x78] sm:$0xff]
      %v3675 = vld [vmem:[%s3663 + $0x80] sm:$0xff]
      %v3676 = vld [vmem:[%s3663 + $0x90] sm:$0xff]
      %v3677 = vld [vmem:[%s3663 + $0x98] sm:$0xff]
      %v3678 = vld [vmem:[%s3663 + $0xa8] sm:$0xff]
      %v3679 = vld [vmem:[%s3663 + $0xb0] sm:$0xff]
      %v3680 = vpack.c.bf16 %v3665, %v3664
      %v3681 = vpack.c.bf16 %v3667, %v3666
      %v3682 = vpack.c.bf16 %v3669, %v3668
      %v3683 = vpack.c.bf16 %v3671, %v3670
      %v3684 = vpack.c.bf16 %v3673, %v3672
      %v3685 = vpack.c.bf16 %v3675, %v3674
      %v3686 = vpack.c.bf16 %v3677, %v3676
      %v3687 = vpack.c.bf16 %v3679, %v3678
      %s3688 = scalar_lea.vmem %s4, 192
      %v3689 = vld [vmem:[%s3688] sm:$0xf]
      %v3690 = vld [vmem:[%s3688 + $0x4] sm:$0xf]
      %v3691 = vld [vmem:[%s3688 + $0x8] sm:$0xf]
      %v3692 = vld [vmem:[%s3688 + $0xc] sm:$0xf]
      %v3693 = vld [vmem:[%s3688 + $0x10] sm:$0xf]
      %v3694 = vld [vmem:[%s3688 + $0x14] sm:$0xf]
      %v3695 = vld [vmem:[%s3688 + $0x18] sm:$0xf]
      %v3696 = vld [vmem:[%s3688 + $0x1c] sm:$0xf]
      %v3697 = vld [vmem:[%s3688 + $0x20] sm:$0xf]
      %v3698 = vld [vmem:[%s3688 + $0x24] sm:$0xf]
      %v3699 = vld [vmem:[%s3688 + $0x28] sm:$0xf]
      %v3700 = vld [vmem:[%s3688 + $0x2c] sm:$0xf]
      %v3701 = vld [vmem:[%s3688 + $0x30] sm:$0xf]
      %v3702 = vld [vmem:[%s3688 + $0x34] sm:$0xf]
      %v3703 = vld [vmem:[%s3688 + $0x38] sm:$0xf]
      %v3704 = vld [vmem:[%s3688 + $0x3c] sm:$0xf]
      %v3721 = vunpack.c.l.b16 %v3689
      %v3722 = vunpack.c.l.b16 %v3690
      %v3723 = vunpack.c.l.b16 %v3691
      %v3724 = vunpack.c.l.b16 %v3692
      %v3725 = vunpack.c.l.b16 %v3693
      %v3726 = vunpack.c.l.b16 %v3694
      %v3727 = vunpack.c.l.b16 %v3695
      %v3728 = vunpack.c.l.b16 %v3696
      %v3729 = vunpack.c.l.b16 %v3697
      %v3730 = vunpack.c.l.b16 %v3698
      %v3731 = vunpack.c.l.b16 %v3699
      %v3732 = vunpack.c.l.b16 %v3700
      %v3733 = vunpack.c.l.b16 %v3701
      %v3734 = vunpack.c.l.b16 %v3702
      %v3735 = vunpack.c.l.b16 %v3703
      %v3736 = vunpack.c.l.b16 %v3704
      %v3737 = vpack.c.b16 %v3722, %v3721
      %v3738 = vpack.c.b16 %v3724, %v3723
      %v3739 = vpack.c.b16 %v3726, %v3725
      %v3740 = vpack.c.b16 %v3728, %v3727
      %v3741 = vpack.c.b16 %v3730, %v3729
      %v3742 = vpack.c.b16 %v3732, %v3731
      %v3743 = vpack.c.b16 %v3734, %v3733
      %v3744 = vpack.c.b16 %v3736, %v3735
      %3753 = vmatprep.subr.bf16.mxu0 0
      %3754 = vmatpush1.bf16.msra.mxu0 %v3737
      %3755 = vmatprep.subr.bf16.mxu0 0
      %3756 = vmatpush1.bf16.msra.mxu0 %v3738
      %3757 = vmatprep.subr.bf16.mxu0 0
      %3758 = vmatpush1.bf16.msra.mxu0 %v3739
      %3759 = vmatprep.subr.bf16.mxu0 0
      %3760 = vmatpush1.bf16.msra.mxu0 %v3740
      %3761 = vmatprep.subr.bf16.mxu0 0
      %3762 = vmatpush1.bf16.msra.mxu0 %v3741
      %3763 = vmatprep.subr.bf16.mxu0 0
      %3764 = vmatpush1.bf16.msra.mxu0 %v3742
      %3765 = vmatprep.subr.bf16.mxu0 0
      %3766 = vmatpush1.bf16.msra.mxu0 %v3743
      %3767 = vmatprep.subr.bf16.mxu0 0
      %3768 = vmatpush1.bf16.msra.mxu0 %v3744
      %3769 = vmatprep.subr.bf16.mxu0 0
      %3770 = vmatpush1.bf16.msra.mxu0 0
      %3771 = vmatprep.subr.bf16.mxu0 0
      %3772 = vmatpush1.bf16.msra.mxu0 0
      %3773 = vmatprep.subr.bf16.mxu0 0
      %3774 = vmatpush1.bf16.msra.mxu0 0
      %3775 = vmatprep.subr.bf16.mxu0 0
      %3776 = vmatpush1.bf16.msra.mxu0 0
      %3777 = vmatprep.subr.bf16.mxu0 0
      %3778 = vmatpush1.bf16.msra.mxu0 0
      %3779 = vmatprep.subr.bf16.mxu0 0
      %3780 = vmatpush1.bf16.msra.mxu0 0
      %3781 = vmatprep.subr.bf16.mxu0 0
      %3782 = vmatpush1.bf16.msra.mxu0 0
      %3783 = vmatprep.subr.bf16.mxu0 0
      %3784 = vmatpush1.bf16.msra.mxu0 0
      %3785 = vmatprep.mubr.bf16.mxu0 0
      %3786 = vmatmul.mubr.bf16.gmra.mrb[0].mxu0 %v3680
      %v3787 = vpop.f32.mrb[0].mxu0
      %v3788 = vadd.f32 0.0, %v3787
      %v3789 = vpop.f32.mrb[0].mxu0
      %v3790 = vpop.f32.mrb[0].mxu0
      %v3791 = vadd.f32 0.0, %v3790
      %v3792 = vpop.f32.mrb[0].mxu0
      %3793 = vmatprep.mubr.bf16.mxu0 0
      %3794 = vmatmul.mubr.bf16.gmra.mrb[0].mxu0 %v3681
      %v3795 = vpop.f32.mrb[0].mxu0
      %v3796 = vadd.f32 0.0, %v3795
      %v3797 = vpop.f32.mrb[0].mxu0
      %v3798 = vpop.f32.mrb[0].mxu0
      %v3799 = vadd.f32 0.0, %v3798
      %v3800 = vpop.f32.mrb[0].mxu0
      %3801 = vmatprep.mubr.bf16.mxu0 0
      %3802 = vmatmul.mubr.bf16.gmra.mrb[0].mxu0 %v3682
      %v3803 = vpop.f32.mrb[0].mxu0
      %v3804 = vadd.f32 0.0, %v3803
      %v3805 = vpop.f32.mrb[0].mxu0
      %v3806 = vpop.f32.mrb[0].mxu0
      %v3807 = vadd.f32 0.0, %v3806
      %v3808 = vpop.f32.mrb[0].mxu0
      %3809 = vmatprep.mubr.bf16.mxu0 0
      %3810 = vmatmul.mubr.bf16.gmra.mrb[0].mxu0 %v3683
      %v3811 = vpop.f32.mrb[0].mxu0
      %v3812 = vadd.f32 0.0, %v3811
      %v3813 = vpop.f32.mrb[0].mxu0
      %v3814 = vpop.f32.mrb[0].mxu0
      %v3815 = vadd.f32 0.0, %v3814
      %v3816 = vpop.f32.mrb[0].mxu0
      %3817 = vmatprep.mubr.bf16.mxu0 0
      %3818 = vmatmul.mubr.bf16.gmra.mrb[0].mxu0 %v3684
      %v3819 = vpop.f32.mrb[0].mxu0
      %v3820 = vadd.f32 0.0, %v3819
      %v3821 = vpop.f32.mrb[0].mxu0
      %v3822 = vpop.f32.mrb[0].mxu0
      %v3823 = vadd.f32 0.0, %v3822
      %v3824 = vpop.f32.mrb[0].mxu0
      %3825 = vmatprep.mubr.bf16.mxu0 0
      %3826 = vmatmul.mubr.bf16.gmra.mrb[0].mxu0 %v3685
      %v3827 = vpop.f32.mrb[0].mxu0
      %v3828 = vadd.f32 0.0, %v3827
      %v3829 = vpop.f32.mrb[0].mxu0
      %v3830 = vpop.f32.mrb[0].mxu0
      %v3831 = vadd.f32 0.0, %v3830
      %v3832 = vpop.f32.mrb[0].mxu0
      %3833 = vmatprep.mubr.bf16.mxu0 0
      %3834 = vmatmul.mubr.bf16.gmra.mrb[0].mxu0 %v3686
      %v3835 = vpop.f32.mrb[0].mxu0
      %v3836 = vadd.f32 0.0, %v3835
      %v3837 = vpop.f32.mrb[0].mxu0
      %v3838 = vpop.f32.mrb[0].mxu0
      %v3839 = vadd.f32 0.0, %v3838
      %v3840 = vpop.f32.mrb[0].mxu0
      %3841 = vmatprep.mubr.bf16.mxu0 0
      %3842 = vmatmul.mubr.bf16.gmra.mrb[0].mxu0 %v3687
      %v3843 = vpop.f32.mrb[0].mxu0
      %v3844 = vadd.f32 0.0, %v3843
      %v3845 = vpop.f32.mrb[0].mxu0
      %v3846 = vpop.f32.mrb[0].mxu0
      %v3847 = vadd.f32 0.0, %v3846
      %v3848 = vpop.f32.mrb[0].mxu0
      %3849 = vdwg.mxu0
      %v3850 = vld [vmem:[#allocation5] sm:$0xff]
      %v3851 = vld [vmem:[#allocation5 + $0x8] sm:$0xff]
      %v3852 = vld [vmem:[#allocation5 + $0x10] sm:$0xff]
      %v3853 = vld [vmem:[#allocation5 + $0x18] sm:$0xff]
      %v3854 = vld [vmem:[#allocation5 + $0x20] sm:$0xff]
      %v3855 = vld [vmem:[#allocation5 + $0x28] sm:$0xff]
      %v3856 = vld [vmem:[#allocation5 + $0x30] sm:$0xff]
      %v3857 = vld [vmem:[#allocation5 + $0x38] sm:$0xff]
      %v3858 = vld [vmem:[#allocation5 + $0x40] sm:$0xff]
      %v3859 = vld [vmem:[#allocation5 + $0x48] sm:$0xff]
      %v3860 = vld [vmem:[#allocation5 + $0x50] sm:$0xff]
      %v3861 = vld [vmem:[#allocation5 + $0x58] sm:$0xff]
      %v3862 = vld [vmem:[#allocation5 + $0x60] sm:$0xff]
      %v3863 = vld [vmem:[#allocation5 + $0x68] sm:$0xff]
      %v3864 = vld [vmem:[#allocation5 + $0x70] sm:$0xff]
      %v3865 = vld [vmem:[#allocation5 + $0x78] sm:$0xff]
      %v3866 = vadd.f32 %v3850, %v3788
      %v3867 = vadd.f32 %v3851, %v3791
      %v3868 = vadd.f32 %v3852, %v3796
      %v3869 = vadd.f32 %v3853, %v3799
      %v3870 = vadd.f32 %v3854, %v3804
      %v3871 = vadd.f32 %v3855, %v3807
      %v3872 = vadd.f32 %v3856, %v3812
      %v3873 = vadd.f32 %v3857, %v3815
      %v3874 = vadd.f32 %v3858, %v3820
      %v3875 = vadd.f32 %v3859, %v3823
      %v3876 = vadd.f32 %v3860, %v3828
      %v3877 = vadd.f32 %v3861, %v3831
      %v3878 = vadd.f32 %v3862, %v3836
      %v3879 = vadd.f32 %v3863, %v3839
      %v3880 = vadd.f32 %v3864, %v3844
      %v3881 = vadd.f32 %v3865, %v3847
      %3882 = vst [vmem:[#allocation5] sm:$0xff] %v3866
      %3883 = vst [vmem:[#allocation5 + $0x8] sm:$0xff] %v3867
      %3884 = vst [vmem:[#allocation5 + $0x10] sm:$0xff] %v3868
      %3885 = vst [vmem:[#allocation5 + $0x18] sm:$0xff] %v3869
      %3886 = vst [vmem:[#allocation5 + $0x20] sm:$0xff] %v3870
      %3887 = vst [vmem:[#allocation5 + $0x28] sm:$0xff] %v3871
      %3888 = vst [vmem:[#allocation5 + $0x30] sm:$0xff] %v3872
      %3889 = vst [vmem:[#allocation5 + $0x38] sm:$0xff] %v3873
      %3890 = vst [vmem:[#allocation5 + $0x40] sm:$0xff] %v3874
      %3891 = vst [vmem:[#allocation5 + $0x48] sm:$0xff] %v3875
      %3892 = vst [vmem:[#allocation5 + $0x50] sm:$0xff] %v3876
      %3893 = vst [vmem:[#allocation5 + $0x58] sm:$0xff] %v3877
      %3894 = vst [vmem:[#allocation5 + $0x60] sm:$0xff] %v3878
      %3895 = vst [vmem:[#allocation5 + $0x68] sm:$0xff] %v3879
      %3896 = vst [vmem:[#allocation5 + $0x70] sm:$0xff] %v3880
      %3897 = vst [vmem:[#allocation5 + $0x78] sm:$0xff] %v3881
      %v3898 = vld [vmem:[%s3663 + $0x1] sm:$0xff]
      %v3899 = vld [vmem:[%s3663 + $0x9] sm:$0xff]
      %v3900 = vld [vmem:[%s3663 + $0x19] sm:$0xff]
      %v3901 = vld [vmem:[%s3663 + $0x21] sm:$0xff]
      %v3902 = vld [vmem:[%s3663 + $0x31] sm:$0xff]
      %v3903 = vld [vmem:[%s3663 + $0x39] sm:$0xff]
      %v3904 = vld [vmem:[%s3663 + $0x49] sm:$0xff]
      %v3905 = vld [vmem:[%s3663 + $0x51] sm:$0xff]
      %v3906 = vld [vmem:[%s3663 + $0x61] sm:$0xff]
      %v3907 = vld [vmem:[%s3663 + $0x69] sm:$0xff]
      %v3908 = vld [vmem:[%s3663 + $0x79] sm:$0xff]
      %v3909 = vld [vmem:[%s3663 + $0x81] sm:$0xff]
      %v3910 = vld [vmem:[%s3663 + $0x91] sm:$0xff]
      %v3911 = vld [vmem:[%s3663 + $0x99] sm:$0xff]
      %v3912 = vld [vmem:[%s3663 + $0xa9] sm:$0xff]
      %v3913 = vld [vmem:[%s3663 + $0xb1] sm:$0xff]
      %v3914 = vpack.c.bf16 %v3899, %v3898
      %v3915 = vpack.c.bf16 %v3901, %v3900
      %v3916 = vpack.c.bf16 %v3903, %v3902
      %v3917 = vpack.c.bf16 %v3905, %v3904
      %v3918 = vpack.c.bf16 %v3907, %v3906
      %v3919 = vpack.c.bf16 %v3909, %v3908
      %v3920 = vpack.c.bf16 %v3911, %v3910
      %v3921 = vpack.c.bf16 %v3913, %v3912
      %s3922 = scalar_lea.vmem %s4, 256
      %v3923 = vld [vmem:[%s3922] sm:$0xf]
      %v3924 = vld [vmem:[%s3922 + $0x4] sm:$0xf]
      %v3925 = vld [vmem:[%s3922 + $0x8] sm:$0xf]
      %v3926 = vld [vmem:[%s3922 + $0xc] sm:$0xf]
      %v3927 = vld [vmem:[%s3922 + $0x10] sm:$0xf]
      %v3928 = vld [vmem:[%s3922 + $0x14] sm:$0xf]
      %v3929 = vld [vmem:[%s3922 + $0x18] sm:$0xf]
      %v3930 = vld [vmem:[%s3922 + $0x1c] sm:$0xf]
      %v3931 = vld [vmem:[%s3922 + $0x20] sm:$0xf]
      %v3932 = vld [vmem:[%s3922 + $0x24] sm:$0xf]
      %v3933 = vld [vmem:[%s3922 + $0x28] sm:$0xf]
      %v3934 = vld [vmem:[%s3922 + $0x2c] sm:$0xf]
      %v3935 = vld [vmem:[%s3922 + $0x30] sm:$0xf]
      %v3936 = vld [vmem:[%s3922 + $0x34] sm:$0xf]
      %v3937 = vld [vmem:[%s3922 + $0x38] sm:$0xf]
      %v3938 = vld [vmem:[%s3922 + $0x3c] sm:$0xf]
      %v3955 = vunpack.c.l.b16 %v3923
      %v3956 = vunpack.c.l.b16 %v3924
      %v3957 = vunpack.c.l.b16 %v3925
      %v3958 = vunpack.c.l.b16 %v3926
      %v3959 = vunpack.c.l.b16 %v3927
      %v3960 = vunpack.c.l.b16 %v3928
      %v3961 = vunpack.c.l.b16 %v3929
      %v3962 = vunpack.c.l.b16 %v3930
      %v3963 = vunpack.c.l.b16 %v3931
      %v3964 = vunpack.c.l.b16 %v3932
      %v3965 = vunpack.c.l.b16 %v3933
      %v3966 = vunpack.c.l.b16 %v3934
      %v3967 = vunpack.c.l.b16 %v3935
      %v3968 = vunpack.c.l.b16 %v3936
      %v3969 = vunpack.c.l.b16 %v3937
      %v3970 = vunpack.c.l.b16 %v3938
      %v3971 = vpack.c.b16 %v3956, %v3955
      %v3972 = vpack.c.b16 %v3958, %v3957
      %v3973 = vpack.c.b16 %v3960, %v3959
      %v3974 = vpack.c.b16 %v3962, %v3961
      %v3975 = vpack.c.b16 %v3964, %v3963
      %v3976 = vpack.c.b16 %v3966, %v3965
      %v3977 = vpack.c.b16 %v3968, %v3967
      %v3978 = vpack.c.b16 %v3970, %v3969
      %3987 = vmatprep.subr.bf16.mxu0 0
      %3988 = vmatpush1.bf16.msra.mxu0 %v3971
      %3989 = vmatprep.subr.bf16.mxu0 0
      %3990 = vmatpush1.bf16.msra.mxu0 %v3972
      %3991 = vmatprep.subr.bf16.mxu0 0
      %3992 = vmatpush1.bf16.msra.mxu0 %v3973
      %3993 = vmatprep.subr.bf16.mxu0 0
      %3994 = vmatpush1.bf16.msra.mxu0 %v3974
      %3995 = vmatprep.subr.bf16.mxu0 0
      %3996 = vmatpush1.bf16.msra.mxu0 %v3975
      %3997 = vmatprep.subr.bf16.mxu0 0
      %3998 = vmatpush1.bf16.msra.mxu0 %v3976
      %3999 = vmatprep.subr.bf16.mxu0 0
      %4000 = vmatpush1.bf16.msra.mxu0 %v3977
      %4001 = vmatprep.subr.bf16.mxu0 0
      %4002 = vmatpush1.bf16.msra.mxu0 %v3978
      %4003 = vmatprep.subr.bf16.mxu0 0
      %4004 = vmatpush1.bf16.msra.mxu0 0
      %4005 = vmatprep.subr.bf16.mxu0 0
      %4006 = vmatpush1.bf16.msra.mxu0 0
      %4007 = vmatprep.subr.bf16.mxu0 0
      %4008 = vmatpush1.bf16.msra.mxu0 0
      %4009 = vmatprep.subr.bf16.mxu0 0
      %4010 = vmatpush1.bf16.msra.mxu0 0
      %4011 = vmatprep.subr.bf16.mxu0 0
      %4012 = vmatpush1.bf16.msra.mxu0 0
      %4013 = vmatprep.subr.bf16.mxu0 0
      %4014 = vmatpush1.bf16.msra.mxu0 0
      %4015 = vmatprep.subr.bf16.mxu0 0
      %4016 = vmatpush1.bf16.msra.mxu0 0
      %4017 = vmatprep.subr.bf16.mxu0 0
      %4018 = vmatpush1.bf16.msra.mxu0 0
      %4019 = vmatprep.mubr.bf16.mxu0 0
      %4020 = vmatmul.mubr.bf16.gmra.mrb[0].mxu0 %v3914
      %v4021 = vpop.f32.mrb[0].mxu0
      %v4022 = vadd.f32 0.0, %v4021
      %v4023 = vpop.f32.mrb[0].mxu0
      %v4024 = vpop.f32.mrb[0].mxu0
      %v4025 = vadd.f32 0.0, %v4024
      %v4026 = vpop.f32.mrb[0].mxu0
      %4027 = vmatprep.mubr.bf16.mxu0 0
      %4028 = vmatmul.mubr.bf16.gmra.mrb[0].mxu0 %v3915
      %v4029 = vpop.f32.mrb[0].mxu0
      %v4030 = vadd.f32 0.0, %v4029
      %v4031 = vpop.f32.mrb[0].mxu0
      %v4032 = vpop.f32.mrb[0].mxu0
      %v4033 = vadd.f32 0.0, %v4032
      %v4034 = vpop.f32.mrb[0].mxu0
      %4035 = vmatprep.mubr.bf16.mxu0 0
      %4036 = vmatmul.mubr.bf16.gmra.mrb[0].mxu0 %v3916
      %v4037 = vpop.f32.mrb[0].mxu0
      %v4038 = vadd.f32 0.0, %v4037
      %v4039 = vpop.f32.mrb[0].mxu0
      %v4040 = vpop.f32.mrb[0].mxu0
      %v4041 = vadd.f32 0.0, %v4040
      %v4042 = vpop.f32.mrb[0].mxu0
      %4043 = vmatprep.mubr.bf16.mxu0 0
      %4044 = vmatmul.mubr.bf16.gmra.mrb[0].mxu0 %v3917
      %v4045 = vpop.f32.mrb[0].mxu0
      %v4046 = vadd.f32 0.0, %v4045
      %v4047 = vpop.f32.mrb[0].mxu0
      %v4048 = vpop.f32.mrb[0].mxu0
      %v4049 = vadd.f32 0.0, %v4048
      %v4050 = vpop.f32.mrb[0].mxu0
      %4051 = vmatprep.mubr.bf16.mxu0 0
      %4052 = vmatmul.mubr.bf16.gmra.mrb[0].mxu0 %v3918
      %v4053 = vpop.f32.mrb[0].mxu0
      %v4054 = vadd.f32 0.0, %v4053
      %v4055 = vpop.f32.mrb[0].mxu0
      %v4056 = vpop.f32.mrb[0].mxu0
      %v4057 = vadd.f32 0.0, %v4056
      %v4058 = vpop.f32.mrb[0].mxu0
      %4059 = vmatprep.mubr.bf16.mxu0 0
      %4060 = vmatmul.mubr.bf16.gmra.mrb[0].mxu0 %v3919
      %v4061 = vpop.f32.mrb[0].mxu0
      %v4062 = vadd.f32 0.0, %v4061
      %v4063 = vpop.f32.mrb[0].mxu0
      %v4064 = vpop.f32.mrb[0].mxu0
      %v4065 = vadd.f32 0.0, %v4064
      %v4066 = vpop.f32.mrb[0].mxu0
      %4067 = vmatprep.mubr.bf16.mxu0 0
      %4068 = vmatmul.mubr.bf16.gmra.mrb[0].mxu0 %v3920
      %v4069 = vpop.f32.mrb[0].mxu0
      %v4070 = vadd.f32 0.0, %v4069
      %v4071 = vpop.f32.mrb[0].mxu0
      %v4072 = vpop.f32.mrb[0].mxu0
      %v4073 = vadd.f32 0.0, %v4072
      %v4074 = vpop.f32.mrb[0].mxu0
      %4075 = vmatprep.mubr.bf16.mxu0 0
      %4076 = vmatmul.mubr.bf16.gmra.mrb[0].mxu0 %v3921
      %v4077 = vpop.f32.mrb[0].mxu0
      %v4078 = vadd.f32 0.0, %v4077
      %v4079 = vpop.f32.mrb[0].mxu0
      %v4080 = vpop.f32.mrb[0].mxu0
      %v4081 = vadd.f32 0.0, %v4080
      %v4082 = vpop.f32.mrb[0].mxu0
      %4083 = vdwg.mxu0
      %v4084 = vld [vmem:[#allocation5] sm:$0xff]
      %v4085 = vld [vmem:[#allocation5 + $0x8] sm:$0xff]
      %v4086 = vld [vmem:[#allocation5 + $0x10] sm:$0xff]
      %v4087 = vld [vmem:[#allocation5 + $0x18] sm:$0xff]
      %v4088 = vld [vmem:[#allocation5 + $0x20] sm:$0xff]
      %v4089 = vld [vmem:[#allocation5 + $0x28] sm:$0xff]
      %v4090 = vld [vmem:[#allocation5 + $0x30] sm:$0xff]
      %v4091 = vld [vmem:[#allocation5 + $0x38] sm:$0xff]
      %v4092 = vld [vmem:[#allocation5 + $0x40] sm:$0xff]
      %v4093 = vld [vmem:[#allocation5 + $0x48] sm:$0xff]
      %v4094 = vld [vmem:[#allocation5 + $0x50] sm:$0xff]
      %v4095 = vld [vmem:[#allocation5 + $0x58] sm:$0xff]
      %v4096 = vld [vmem:[#allocation5 + $0x60] sm:$0xff]
      %v4097 = vld [vmem:[#allocation5 + $0x68] sm:$0xff]
      %v4098 = vld [vmem:[#allocation5 + $0x70] sm:$0xff]
      %v4099 = vld [vmem:[#allocation5 + $0x78] sm:$0xff]
      %v4100 = vadd.f32 %v4084, %v4022
      %v4101 = vadd.f32 %v4085, %v4025
      %v4102 = vadd.f32 %v4086, %v4030
      %v4103 = vadd.f32 %v4087, %v4033
      %v4104 = vadd.f32 %v4088, %v4038
      %v4105 = vadd.f32 %v4089, %v4041
      %v4106 = vadd.f32 %v4090, %v4046
      %v4107 = vadd.f32 %v4091, %v4049
      %v4108 = vadd.f32 %v4092, %v4054
      %v4109 = vadd.f32 %v4093, %v4057
      %v4110 = vadd.f32 %v4094, %v4062
      %v4111 = vadd.f32 %v4095, %v4065
      %v4112 = vadd.f32 %v4096, %v4070
      %v4113 = vadd.f32 %v4097, %v4073
      %v4114 = vadd.f32 %v4098, %v4078
      %v4115 = vadd.f32 %v4099, %v4081
      %4116 = vst [vmem:[#allocation5] sm:$0xff] %v4100
      %4117 = vst [vmem:[#allocation5 + $0x8] sm:$0xff] %v4101
      %4118 = vst [vmem:[#allocation5 + $0x10] sm:$0xff] %v4102
      %4119 = vst [vmem:[#allocation5 + $0x18] sm:$0xff] %v4103
      %4120 = vst [vmem:[#allocation5 + $0x20] sm:$0xff] %v4104
      %4121 = vst [vmem:[#allocation5 + $0x28] sm:$0xff] %v4105
      %4122 = vst [vmem:[#allocation5 + $0x30] sm:$0xff] %v4106
      %4123 = vst [vmem:[#allocation5 + $0x38] sm:$0xff] %v4107
      %4124 = vst [vmem:[#allocation5 + $0x40] sm:$0xff] %v4108
      %4125 = vst [vmem:[#allocation5 + $0x48] sm:$0xff] %v4109
      %4126 = vst [vmem:[#allocation5 + $0x50] sm:$0xff] %v4110
      %4127 = vst [vmem:[#allocation5 + $0x58] sm:$0xff] %v4111
      %4128 = vst [vmem:[#allocation5 + $0x60] sm:$0xff] %v4112
      %4129 = vst [vmem:[#allocation5 + $0x68] sm:$0xff] %v4113
      %4130 = vst [vmem:[#allocation5 + $0x70] sm:$0xff] %v4114
      %4131 = vst [vmem:[#allocation5 + $0x78] sm:$0xff] %v4115
      %v4132 = vld [vmem:[%s3663 + $0x2] sm:$0xff]
      %v4133 = vld [vmem:[%s3663 + $0xa] sm:$0xff]
      %v4134 = vld [vmem:[%s3663 + $0x1a] sm:$0xff]
      %v4135 = vld [vmem:[%s3663 + $0x22] sm:$0xff]
      %v4136 = vld [vmem:[%s3663 + $0x32] sm:$0xff]
      %v4137 = vld [vmem:[%s3663 + $0x3a] sm:$0xff]
      %v4138 = vld [vmem:[%s3663 + $0x4a] sm:$0xff]
      %v4139 = vld [vmem:[%s3663 + $0x52] sm:$0xff]
      %v4140 = vld [vmem:[%s3663 + $0x62] sm:$0xff]
      %v4141 = vld [vmem:[%s3663 + $0x6a] sm:$0xff]
      %v4142 = vld [vmem:[%s3663 + $0x7a] sm:$0xff]
      %v4143 = vld [vmem:[%s3663 + $0x82] sm:$0xff]
      %v4144 = vld [vmem:[%s3663 + $0x92] sm:$0xff]
      %v4145 = vld [vmem:[%s3663 + $0x9a] sm:$0xff]
      %v4146 = vld [vmem:[%s3663 + $0xaa] sm:$0xff]
      %v4147 = vld [vmem:[%s3663 + $0xb2] sm:$0xff]
      %v4148 = vpack.c.bf16 %v4133, %v4132
      %v4149 = vpack.c.bf16 %v4135, %v4134
      %v4150 = vpack.c.bf16 %v4137, %v4136
      %v4151 = vpack.c.bf16 %v4139, %v4138
      %v4152 = vpack.c.bf16 %v4141, %v4140
      %v4153 = vpack.c.bf16 %v4143, %v4142
      %v4154 = vpack.c.bf16 %v4145, %v4144
      %v4155 = vpack.c.bf16 %v4147, %v4146
      %s4156 = scalar_lea.vmem %s4, 320
      %v4157 = vld [vmem:[%s4156] sm:$0xf]
      %v4158 = vld [vmem:[%s4156 + $0x4] sm:$0xf]
      %v4159 = vld [vmem:[%s4156 + $0x8] sm:$0xf]
      %v4160 = vld [vmem:[%s4156 + $0xc] sm:$0xf]
      %v4161 = vld [vmem:[%s4156 + $0x10] sm:$0xf]
      %v4162 = vld [vmem:[%s4156 + $0x14] sm:$0xf]
      %v4163 = vld [vmem:[%s4156 + $0x18] sm:$0xf]
      %v4164 = vld [vmem:[%s4156 + $0x1c] sm:$0xf]
      %v4165 = vld [vmem:[%s4156 + $0x20] sm:$0xf]
      %v4166 = vld [vmem:[%s4156 + $0x24] sm:$0xf]
      %v4167 = vld [vmem:[%s4156 + $0x28] sm:$0xf]
      %v4168 = vld [vmem:[%s4156 + $0x2c] sm:$0xf]
      %v4169 = vld [vmem:[%s4156 + $0x30] sm:$0xf]
      %v4170 = vld [vmem:[%s4156 + $0x34] sm:$0xf]
      %v4171 = vld [vmem:[%s4156 + $0x38] sm:$0xf]
      %v4172 = vld [vmem:[%s4156 + $0x3c] sm:$0xf]
      %v4189 = vunpack.c.l.b16 %v4157
      %v4190 = vunpack.c.l.b16 %v4158
      %v4191 = vunpack.c.l.b16 %v4159
      %v4192 = vunpack.c.l.b16 %v4160
      %v4193 = vunpack.c.l.b16 %v4161
      %v4194 = vunpack.c.l.b16 %v4162
      %v4195 = vunpack.c.l.b16 %v4163
      %v4196 = vunpack.c.l.b16 %v4164
      %v4197 = vunpack.c.l.b16 %v4165
      %v4198 = vunpack.c.l.b16 %v4166
      %v4199 = vunpack.c.l.b16 %v4167
      %v4200 = vunpack.c.l.b16 %v4168
      %v4201 = vunpack.c.l.b16 %v4169
      %v4202 = vunpack.c.l.b16 %v4170
      %v4203 = vunpack.c.l.b16 %v4171
      %v4204 = vunpack.c.l.b16 %v4172
      %v4205 = vpack.c.b16 %v4190, %v4189
      %v4206 = vpack.c.b16 %v4192, %v4191
      %v4207 = vpack.c.b16 %v4194, %v4193
      %v4208 = vpack.c.b16 %v4196, %v4195
      %v4209 = vpack.c.b16 %v4198, %v4197
      %v4210 = vpack.c.b16 %v4200, %v4199
      %v4211 = vpack.c.b16 %v4202, %v4201
      %v4212 = vpack.c.b16 %v4204, %v4203
      %4221 = vmatprep.subr.bf16.mxu0 0
      %4222 = vmatpush1.bf16.msra.mxu0 %v4205
      %4223 = vmatprep.subr.bf16.mxu0 0
      %4224 = vmatpush1.bf16.msra.mxu0 %v4206
      %4225 = vmatprep.subr.bf16.mxu0 0
      %4226 = vmatpush1.bf16.msra.mxu0 %v4207
      %4227 = vmatprep.subr.bf16.mxu0 0
      %4228 = vmatpush1.bf16.msra.mxu0 %v4208
      %4229 = vmatprep.subr.bf16.mxu0 0
      %4230 = vmatpush1.bf16.msra.mxu0 %v4209
      %4231 = vmatprep.subr.bf16.mxu0 0
      %4232 = vmatpush1.bf16.msra.mxu0 %v4210
      %4233 = vmatprep.subr.bf16.mxu0 0
      %4234 = vmatpush1.bf16.msra.mxu0 %v4211
      %4235 = vmatprep.subr.bf16.mxu0 0
      %4236 = vmatpush1.bf16.msra.mxu0 %v4212
      %4237 = vmatprep.subr.bf16.mxu0 0
      %4238 = vmatpush1.bf16.msra.mxu0 0
      %4239 = vmatprep.subr.bf16.mxu0 0
      %4240 = vmatpush1.bf16.msra.mxu0 0
      %4241 = vmatprep.subr.bf16.mxu0 0
      %4242 = vmatpush1.bf16.msra.mxu0 0
      %4243 = vmatprep.subr.bf16.mxu0 0
      %4244 = vmatpush1.bf16.msra.mxu0 0
      %4245 = vmatprep.subr.bf16.mxu0 0
      %4246 = vmatpush1.bf16.msra.mxu0 0
      %4247 = vmatprep.subr.bf16.mxu0 0
      %4248 = vmatpush1.bf16.msra.mxu0 0
      %4249 = vmatprep.subr.bf16.mxu0 0
      %4250 = vmatpush1.bf16.msra.mxu0 0
      %4251 = vmatprep.subr.bf16.mxu0 0
      %4252 = vmatpush1.bf16.msra.mxu0 0
      %4253 = vmatprep.mubr.bf16.mxu0 0
      %4254 = vmatmul.mubr.bf16.gmra.mrb[0].mxu0 %v4148
      %v4255 = vpop.f32.mrb[0].mxu0
      %v4256 = vadd.f32 0.0, %v4255
      %v4257 = vpop.f32.mrb[0].mxu0
      %v4258 = vpop.f32.mrb[0].mxu0
      %v4259 = vadd.f32 0.0, %v4258
      %v4260 = vpop.f32.mrb[0].mxu0
      %4261 = vmatprep.mubr.bf16.mxu0 0
      %4262 = vmatmul.mubr.bf16.gmra.mrb[0].mxu0 %v4149
      %v4263 = vpop.f32.mrb[0].mxu0
      %v4264 = vadd.f32 0.0, %v4263
      %v4265 = vpop.f32.mrb[0].mxu0
      %v4266 = vpop.f32.mrb[0].mxu0
      %v4267 = vadd.f32 0.0, %v4266
      %v4268 = vpop.f32.mrb[0].mxu0
      %4269 = vmatprep.mubr.bf16.mxu0 0
      %4270 = vmatmul.mubr.bf16.gmra.mrb[0].mxu0 %v4150
      %v4271 = vpop.f32.mrb[0].mxu0
      %v4272 = vadd.f32 0.0, %v4271
      %v4273 = vpop.f32.mrb[0].mxu0
      %v4274 = vpop.f32.mrb[0].mxu0
      %v4275 = vadd.f32 0.0, %v4274
      %v4276 = vpop.f32.mrb[0].mxu0
      %4277 = vmatprep.mubr.bf16.mxu0 0
      %4278 = vmatmul.mubr.bf16.gmra.mrb[0].mxu0 %v4151
      %v4279 = vpop.f32.mrb[0].mxu0
      %v4280 = vadd.f32 0.0, %v4279
      %v4281 = vpop.f32.mrb[0].mxu0
      %v4282 = vpop.f32.mrb[0].mxu0
      %v4283 = vadd.f32 0.0, %v4282
      %v4284 = vpop.f32.mrb[0].mxu0
      %4285 = vmatprep.mubr.bf16.mxu0 0
      %4286 = vmatmul.mubr.bf16.gmra.mrb[0].mxu0 %v4152
      %v4287 = vpop.f32.mrb[0].mxu0
      %v4288 = vadd.f32 0.0, %v4287
      %v4289 = vpop.f32.mrb[0].mxu0
      %v4290 = vpop.f32.mrb[0].mxu0
      %v4291 = vadd.f32 0.0, %v4290
      %v4292 = vpop.f32.mrb[0].mxu0
      %4293 = vmatprep.mubr.bf16.mxu0 0
      %4294 = vmatmul.mubr.bf16.gmra.mrb[0].mxu0 %v4153
      %v4295 = vpop.f32.mrb[0].mxu0
      %v4296 = vadd.f32 0.0, %v4295
      %v4297 = vpop.f32.mrb[0].mxu0
      %v4298 = vpop.f32.mrb[0].mxu0
      %v4299 = vadd.f32 0.0, %v4298
      %v4300 = vpop.f32.mrb[0].mxu0
      %4301 = vmatprep.mubr.bf16.mxu0 0
      %4302 = vmatmul.mubr.bf16.gmra.mrb[0].mxu0 %v4154
      %v4303 = vpop.f32.mrb[0].mxu0
      %v4304 = vadd.f32 0.0, %v4303
      %v4305 = vpop.f32.mrb[0].mxu0
      %v4306 = vpop.f32.mrb[0].mxu0
      %v4307 = vadd.f32 0.0, %v4306
      %v4308 = vpop.f32.mrb[0].mxu0
      %4309 = vmatprep.mubr.bf16.mxu0 0
      %4310 = vmatmul.mubr.bf16.gmra.mrb[0].mxu0 %v4155
      %v4311 = vpop.f32.mrb[0].mxu0
      %v4312 = vadd.f32 0.0, %v4311
      %v4313 = vpop.f32.mrb[0].mxu0
      %v4314 = vpop.f32.mrb[0].mxu0
      %v4315 = vadd.f32 0.0, %v4314
      %v4316 = vpop.f32.mrb[0].mxu0
      %4317 = vdwg.mxu0
      %v4318 = vld [vmem:[#allocation5] sm:$0xff]
      %v4319 = vld [vmem:[#allocation5 + $0x8] sm:$0xff]
      %v4320 = vld [vmem:[#allocation5 + $0x10] sm:$0xff]
      %v4321 = vld [vmem:[#allocation5 + $0x18] sm:$0xff]
      %v4322 = vld [vmem:[#allocation5 + $0x20] sm:$0xff]
      %v4323 = vld [vmem:[#allocation5 + $0x28] sm:$0xff]
      %v4324 = vld [vmem:[#allocation5 + $0x30] sm:$0xff]
      %v4325 = vld [vmem:[#allocation5 + $0x38] sm:$0xff]
      %v4326 = vld [vmem:[#allocation5 + $0x40] sm:$0xff]
      %v4327 = vld [vmem:[#allocation5 + $0x48] sm:$0xff]
      %v4328 = vld [vmem:[#allocation5 + $0x50] sm:$0xff]
      %v4329 = vld [vmem:[#allocation5 + $0x58] sm:$0xff]
      %v4330 = vld [vmem:[#allocation5 + $0x60] sm:$0xff]
      %v4331 = vld [vmem:[#allocation5 + $0x68] sm:$0xff]
      %v4332 = vld [vmem:[#allocation5 + $0x70] sm:$0xff]
      %v4333 = vld [vmem:[#allocation5 + $0x78] sm:$0xff]
      %v4334 = vadd.f32 %v4318, %v4256
      %v4335 = vadd.f32 %v4319, %v4259
      %v4336 = vadd.f32 %v4320, %v4264
      %v4337 = vadd.f32 %v4321, %v4267
      %v4338 = vadd.f32 %v4322, %v4272
      %v4339 = vadd.f32 %v4323, %v4275
      %v4340 = vadd.f32 %v4324, %v4280
      %v4341 = vadd.f32 %v4325, %v4283
      %v4342 = vadd.f32 %v4326, %v4288
      %v4343 = vadd.f32 %v4327, %v4291
      %v4344 = vadd.f32 %v4328, %v4296
      %v4345 = vadd.f32 %v4329, %v4299
      %v4346 = vadd.f32 %v4330, %v4304
      %v4347 = vadd.f32 %v4331, %v4307
      %v4348 = vadd.f32 %v4332, %v4312
      %v4349 = vadd.f32 %v4333, %v4315
      %4350 = vst [vmem:[#allocation5] sm:$0xff] %v4334
      %4351 = vst [vmem:[#allocation5 + $0x8] sm:$0xff] %v4335
      %4352 = vst [vmem:[#allocation5 + $0x10] sm:$0xff] %v4336
      %4353 = vst [vmem:[#allocation5 + $0x18] sm:$0xff] %v4337
      %4354 = vst [vmem:[#allocation5 + $0x20] sm:$0xff] %v4338
      %4355 = vst [vmem:[#allocation5 + $0x28] sm:$0xff] %v4339
      %4356 = vst [vmem:[#allocation5 + $0x30] sm:$0xff] %v4340
      %4357 = vst [vmem:[#allocation5 + $0x38] sm:$0xff] %v4341
      %4358 = vst [vmem:[#allocation5 + $0x40] sm:$0xff] %v4342
      %4359 = vst [vmem:[#allocation5 + $0x48] sm:$0xff] %v4343
      %4360 = vst [vmem:[#allocation5 + $0x50] sm:$0xff] %v4344
      %4361 = vst [vmem:[#allocation5 + $0x58] sm:$0xff] %v4345
      %4362 = vst [vmem:[#allocation5 + $0x60] sm:$0xff] %v4346
      %4363 = vst [vmem:[#allocation5 + $0x68] sm:$0xff] %v4347
      %4364 = vst [vmem:[#allocation5 + $0x70] sm:$0xff] %v4348
      %4365 = vst [vmem:[#allocation5 + $0x78] sm:$0xff] %v4349
      %s4366 = scalar_lea.vmem [#allocation3], 48
      %v4367 = vld [vmem:[%s4366] sm:$0xff]
      %v4368 = vld [vmem:[%s4366 + $0x8] sm:$0xff]
      %v4369 = vld [vmem:[%s4366 + $0x18] sm:$0xff]
      %v4370 = vld [vmem:[%s4366 + $0x20] sm:$0xff]
      %v4371 = vld [vmem:[%s4366 + $0x30] sm:$0xff]
      %v4372 = vld [vmem:[%s4366 + $0x38] sm:$0xff]
      %v4373 = vld [vmem:[%s4366 + $0x48] sm:$0xff]
      %v4374 = vld [vmem:[%s4366 + $0x50] sm:$0xff]
      %v4375 = vld [vmem:[%s4366 + $0x60] sm:$0xff]
      %v4376 = vld [vmem:[%s4366 + $0x68] sm:$0xff]
      %v4377 = vld [vmem:[%s4366 + $0x78] sm:$0xff]
      %v4378 = vld [vmem:[%s4366 + $0x80] sm:$0xff]
      %v4379 = vld [vmem:[%s4366 + $0x90] sm:$0xff]
      %v4380 = vld [vmem:[%s4366 + $0x98] sm:$0xff]
      %v4381 = vld [vmem:[%s4366 + $0xa8] sm:$0xff]
      %v4382 = vld [vmem:[%s4366 + $0xb0] sm:$0xff]
      %v4383 = vpack.c.bf16 %v4368, %v4367
      %v4384 = vpack.c.bf16 %v4370, %v4369
      %v4385 = vpack.c.bf16 %v4372, %v4371
      %v4386 = vpack.c.bf16 %v4374, %v4373
      %v4387 = vpack.c.bf16 %v4376, %v4375
      %v4388 = vpack.c.bf16 %v4378, %v4377
      %v4389 = vpack.c.bf16 %v4380, %v4379
      %v4390 = vpack.c.bf16 %v4382, %v4381
      %s4391 = scalar_lea.vmem %s4, 384
      %v4392 = vld [vmem:[%s4391] sm:$0xf]
      %v4393 = vld [vmem:[%s4391 + $0x4] sm:$0xf]
      %v4394 = vld [vmem:[%s4391 + $0x8] sm:$0xf]
      %v4395 = vld [vmem:[%s4391 + $0xc] sm:$0xf]
      %v4396 = vld [vmem:[%s4391 + $0x10] sm:$0xf]
      %v4397 = vld [vmem:[%s4391 + $0x14] sm:$0xf]
      %v4398 = vld [vmem:[%s4391 + $0x18] sm:$0xf]
      %v4399 = vld [vmem:[%s4391 + $0x1c] sm:$0xf]
      %v4400 = vld [vmem:[%s4391 + $0x20] sm:$0xf]
      %v4401 = vld [vmem:[%s4391 + $0x24] sm:$0xf]
      %v4402 = vld [vmem:[%s4391 + $0x28] sm:$0xf]
      %v4403 = vld [vmem:[%s4391 + $0x2c] sm:$0xf]
      %v4404 = vld [vmem:[%s4391 + $0x30] sm:$0xf]
      %v4405 = vld [vmem:[%s4391 + $0x34] sm:$0xf]
      %v4406 = vld [vmem:[%s4391 + $0x38] sm:$0xf]
      %v4407 = vld [vmem:[%s4391 + $0x3c] sm:$0xf]
      %v4424 = vunpack.c.l.b16 %v4392
      %v4425 = vunpack.c.l.b16 %v4393
      %v4426 = vunpack.c.l.b16 %v4394
      %v4427 = vunpack.c.l.b16 %v4395
      %v4428 = vunpack.c.l.b16 %v4396
      %v4429 = vunpack.c.l.b16 %v4397
      %v4430 = vunpack.c.l.b16 %v4398
      %v4431 = vunpack.c.l.b16 %v4399
      %v4432 = vunpack.c.l.b16 %v4400
      %v4433 = vunpack.c.l.b16 %v4401
      %v4434 = vunpack.c.l.b16 %v4402
      %v4435 = vunpack.c.l.b16 %v4403
      %v4436 = vunpack.c.l.b16 %v4404
      %v4437 = vunpack.c.l.b16 %v4405
      %v4438 = vunpack.c.l.b16 %v4406
      %v4439 = vunpack.c.l.b16 %v4407
      %v4440 = vpack.c.b16 %v4425, %v4424
      %v4441 = vpack.c.b16 %v4427, %v4426
      %v4442 = vpack.c.b16 %v4429, %v4428
      %v4443 = vpack.c.b16 %v4431, %v4430
      %v4444 = vpack.c.b16 %v4433, %v4432
      %v4445 = vpack.c.b16 %v4435, %v4434
      %v4446 = vpack.c.b16 %v4437, %v4436
      %v4447 = vpack.c.b16 %v4439, %v4438
      %4456 = vmatprep.subr.bf16.mxu0 0
      %4457 = vmatpush1.bf16.msra.mxu0 %v4440
      %4458 = vmatprep.subr.bf16.mxu0 0
      %4459 = vmatpush1.bf16.msra.mxu0 %v4441
      %4460 = vmatprep.subr.bf16.mxu0 0
      %4461 = vmatpush1.bf16.msra.mxu0 %v4442
      %4462 = vmatprep.subr.bf16.mxu0 0
      %4463 = vmatpush1.bf16.msra.mxu0 %v4443
      %4464 = vmatprep.subr.bf16.mxu0 0
      %4465 = vmatpush1.bf16.msra.mxu0 %v4444
      %4466 = vmatprep.subr.bf16.mxu0 0
      %4467 = vmatpush1.bf16.msra.mxu0 %v4445
      %4468 = vmatprep.subr.bf16.mxu0 0
      %4469 = vmatpush1.bf16.msra.mxu0 %v4446
      %4470 = vmatprep.subr.bf16.mxu0 0
      %4471 = vmatpush1.bf16.msra.mxu0 %v4447
      %4472 = vmatprep.subr.bf16.mxu0 0
      %4473 = vmatpush1.bf16.msra.mxu0 0
      %4474 = vmatprep.subr.bf16.mxu0 0
      %4475 = vmatpush1.bf16.msra.mxu0 0
      %4476 = vmatprep.subr.bf16.mxu0 0
      %4477 = vmatpush1.bf16.msra.mxu0 0
      %4478 = vmatprep.subr.bf16.mxu0 0
      %4479 = vmatpush1.bf16.msra.mxu0 0
      %4480 = vmatprep.subr.bf16.mxu0 0
      %4481 = vmatpush1.bf16.msra.mxu0 0
      %4482 = vmatprep.subr.bf16.mxu0 0
      %4483 = vmatpush1.bf16.msra.mxu0 0
      %4484 = vmatprep.subr.bf16.mxu0 0
      %4485 = vmatpush1.bf16.msra.mxu0 0
      %4486 = vmatprep.subr.bf16.mxu0 0
      %4487 = vmatpush1.bf16.msra.mxu0 0
      %4488 = vmatprep.mubr.bf16.mxu0 0
      %4489 = vmatmul.mubr.bf16.gmra.mrb[0].mxu0 %v4383
      %v4490 = vpop.f32.mrb[0].mxu0
      %v4491 = vadd.f32 0.0, %v4490
      %v4492 = vpop.f32.mrb[0].mxu0
      %v4493 = vpop.f32.mrb[0].mxu0
      %v4494 = vadd.f32 0.0, %v4493
      %v4495 = vpop.f32.mrb[0].mxu0
      %4496 = vmatprep.mubr.bf16.mxu0 0
      %4497 = vmatmul.mubr.bf16.gmra.mrb[0].mxu0 %v4384
      %v4498 = vpop.f32.mrb[0].mxu0
      %v4499 = vadd.f32 0.0, %v4498
      %v4500 = vpop.f32.mrb[0].mxu0
      %v4501 = vpop.f32.mrb[0].mxu0
      %v4502 = vadd.f32 0.0, %v4501
      %v4503 = vpop.f32.mrb[0].mxu0
      %4504 = vmatprep.mubr.bf16.mxu0 0
      %4505 = vmatmul.mubr.bf16.gmra.mrb[0].mxu0 %v4385
      %v4506 = vpop.f32.mrb[0].mxu0
      %v4507 = vadd.f32 0.0, %v4506
      %v4508 = vpop.f32.mrb[0].mxu0
      %v4509 = vpop.f32.mrb[0].mxu0
      %v4510 = vadd.f32 0.0, %v4509
      %v4511 = vpop.f32.mrb[0].mxu0
      %4512 = vmatprep.mubr.bf16.mxu0 0
      %4513 = vmatmul.mubr.bf16.gmra.mrb[0].mxu0 %v4386
      %v4514 = vpop.f32.mrb[0].mxu0
      %v4515 = vadd.f32 0.0, %v4514
      %v4516 = vpop.f32.mrb[0].mxu0
      %v4517 = vpop.f32.mrb[0].mxu0
      %v4518 = vadd.f32 0.0, %v4517
      %v4519 = vpop.f32.mrb[0].mxu0
      %4520 = vmatprep.mubr.bf16.mxu0 0
      %4521 = vmatmul.mubr.bf16.gmra.mrb[0].mxu0 %v4387
      %v4522 = vpop.f32.mrb[0].mxu0
      %v4523 = vadd.f32 0.0, %v4522
      %v4524 = vpop.f32.mrb[0].mxu0
      %v4525 = vpop.f32.mrb[0].mxu0
      %v4526 = vadd.f32 0.0, %v4525
      %v4527 = vpop.f32.mrb[0].mxu0
      %4528 = vmatprep.mubr.bf16.mxu0 0
      %4529 = vmatmul.mubr.bf16.gmra.mrb[0].mxu0 %v4388
      %v4530 = vpop.f32.mrb[0].mxu0
      %v4531 = vadd.f32 0.0, %v4530
      %v4532 = vpop.f32.mrb[0].mxu0
      %v4533 = vpop.f32.mrb[0].mxu0
      %v4534 = vadd.f32 0.0, %v4533
      %v4535 = vpop.f32.mrb[0].mxu0
      %4536 = vmatprep.mubr.bf16.mxu0 0
      %4537 = vmatmul.mubr.bf16.gmra.mrb[0].mxu0 %v4389
      %v4538 = vpop.f32.mrb[0].mxu0
      %v4539 = vadd.f32 0.0, %v4538
      %v4540 = vpop.f32.mrb[0].mxu0
      %v4541 = vpop.f32.mrb[0].mxu0
      %v4542 = vadd.f32 0.0, %v4541
      %v4543 = vpop.f32.mrb[0].mxu0
      %4544 = vmatprep.mubr.bf16.mxu0 0
      %4545 = vmatmul.mubr.bf16.gmra.mrb[0].mxu0 %v4390
      %v4546 = vpop.f32.mrb[0].mxu0
      %v4547 = vadd.f32 0.0, %v4546
      %v4548 = vpop.f32.mrb[0].mxu0
      %v4549 = vpop.f32.mrb[0].mxu0
      %v4550 = vadd.f32 0.0, %v4549
      %v4551 = vpop.f32.mrb[0].mxu0
      %4552 = vdwg.mxu0
      %v4553 = vld [vmem:[#allocation5] sm:$0xff]
      %v4554 = vld [vmem:[#allocation5 + $0x8] sm:$0xff]
      %v4555 = vld [vmem:[#allocation5 + $0x10] sm:$0xff]
      %v4556 = vld [vmem:[#allocation5 + $0x18] sm:$0xff]
      %v4557 = vld [vmem:[#allocation5 + $0x20] sm:$0xff]
      %v4558 = vld [vmem:[#allocation5 + $0x28] sm:$0xff]
      %v4559 = vld [vmem:[#allocation5 + $0x30] sm:$0xff]
      %v4560 = vld [vmem:[#allocation5 + $0x38] sm:$0xff]
      %v4561 = vld [vmem:[#allocation5 + $0x40] sm:$0xff]
      %v4562 = vld [vmem:[#allocation5 + $0x48] sm:$0xff]
      %v4563 = vld [vmem:[#allocation5 + $0x50] sm:$0xff]
      %v4564 = vld [vmem:[#allocation5 + $0x58] sm:$0xff]
      %v4565 = vld [vmem:[#allocation5 + $0x60] sm:$0xff]
      %v4566 = vld [vmem:[#allocation5 + $0x68] sm:$0xff]
      %v4567 = vld [vmem:[#allocation5 + $0x70] sm:$0xff]
      %v4568 = vld [vmem:[#allocation5 + $0x78] sm:$0xff]
      %v4569 = vadd.f32 %v4553, %v4491
      %v4570 = vadd.f32 %v4554, %v4494
      %v4571 = vadd.f32 %v4555, %v4499
      %v4572 = vadd.f32 %v4556, %v4502
      %v4573 = vadd.f32 %v4557, %v4507
      %v4574 = vadd.f32 %v4558, %v4510
      %v4575 = vadd.f32 %v4559, %v4515
      %v4576 = vadd.f32 %v4560, %v4518
      %v4577 = vadd.f32 %v4561, %v4523
      %v4578 = vadd.f32 %v4562, %v4526
      %v4579 = vadd.f32 %v4563, %v4531
      %v4580 = vadd.f32 %v4564, %v4534
      %v4581 = vadd.f32 %v4565, %v4539
      %v4582 = vadd.f32 %v4566, %v4542
      %v4583 = vadd.f32 %v4567, %v4547
      %v4584 = vadd.f32 %v4568, %v4550
      %4585 = vst [vmem:[#allocation5] sm:$0xff] %v4569
      %4586 = vst [vmem:[#allocation5 + $0x8] sm:$0xff] %v4570
      %4587 = vst [vmem:[#allocation5 + $0x10] sm:$0xff] %v4571
      %4588 = vst [vmem:[#allocation5 + $0x18] sm:$0xff] %v4572
      %4589 = vst [vmem:[#allocation5 + $0x20] sm:$0xff] %v4573
      %4590 = vst [vmem:[#allocation5 + $0x28] sm:$0xff] %v4574
      %4591 = vst [vmem:[#allocation5 + $0x30] sm:$0xff] %v4575
      %4592 = vst [vmem:[#allocation5 + $0x38] sm:$0xff] %v4576
      %4593 = vst [vmem:[#allocation5 + $0x40] sm:$0xff] %v4577
      %4594 = vst [vmem:[#allocation5 + $0x48] sm:$0xff] %v4578
      %4595 = vst [vmem:[#allocation5 + $0x50] sm:$0xff] %v4579
      %4596 = vst [vmem:[#allocation5 + $0x58] sm:$0xff] %v4580
      %4597 = vst [vmem:[#allocation5 + $0x60] sm:$0xff] %v4581
      %4598 = vst [vmem:[#allocation5 + $0x68] sm:$0xff] %v4582
      %4599 = vst [vmem:[#allocation5 + $0x70] sm:$0xff] %v4583
      %4600 = vst [vmem:[#allocation5 + $0x78] sm:$0xff] %v4584
      %v4601 = vld [vmem:[%s4366 + $0x1] sm:$0xff]
      %v4602 = vld [vmem:[%s4366 + $0x9] sm:$0xff]
      %v4603 = vld [vmem:[%s4366 + $0x19] sm:$0xff]
      %v4604 = vld [vmem:[%s4366 + $0x21] sm:$0xff]
      %v4605 = vld [vmem:[%s4366 + $0x31] sm:$0xff]
      %v4606 = vld [vmem:[%s4366 + $0x39] sm:$0xff]
      %v4607 = vld [vmem:[%s4366 + $0x49] sm:$0xff]
      %v4608 = vld [vmem:[%s4366 + $0x51] sm:$0xff]
      %v4609 = vld [vmem:[%s4366 + $0x61] sm:$0xff]
      %v4610 = vld [vmem:[%s4366 + $0x69] sm:$0xff]
      %v4611 = vld [vmem:[%s4366 + $0x79] sm:$0xff]
      %v4612 = vld [vmem:[%s4366 + $0x81] sm:$0xff]
      %v4613 = vld [vmem:[%s4366 + $0x91] sm:$0xff]
      %v4614 = vld [vmem:[%s4366 + $0x99] sm:$0xff]
      %v4615 = vld [vmem:[%s4366 + $0xa9] sm:$0xff]
      %v4616 = vld [vmem:[%s4366 + $0xb1] sm:$0xff]
      %v4617 = vpack.c.bf16 %v4602, %v4601
      %v4618 = vpack.c.bf16 %v4604, %v4603
      %v4619 = vpack.c.bf16 %v4606, %v4605
      %v4620 = vpack.c.bf16 %v4608, %v4607
      %v4621 = vpack.c.bf16 %v4610, %v4609
      %v4622 = vpack.c.bf16 %v4612, %v4611
      %v4623 = vpack.c.bf16 %v4614, %v4613
      %v4624 = vpack.c.bf16 %v4616, %v4615
      %s4625 = scalar_lea.vmem %s4, 448
      %v4626 = vld [vmem:[%s4625] sm:$0xf]
      %v4627 = vld [vmem:[%s4625 + $0x4] sm:$0xf]
      %v4628 = vld [vmem:[%s4625 + $0x8] sm:$0xf]
      %v4629 = vld [vmem:[%s4625 + $0xc] sm:$0xf]
      %v4630 = vld [vmem:[%s4625 + $0x10] sm:$0xf]
      %v4631 = vld [vmem:[%s4625 + $0x14] sm:$0xf]
      %v4632 = vld [vmem:[%s4625 + $0x18] sm:$0xf]
      %v4633 = vld [vmem:[%s4625 + $0x1c] sm:$0xf]
      %v4634 = vld [vmem:[%s4625 + $0x20] sm:$0xf]
      %v4635 = vld [vmem:[%s4625 + $0x24] sm:$0xf]
      %v4636 = vld [vmem:[%s4625 + $0x28] sm:$0xf]
      %v4637 = vld [vmem:[%s4625 + $0x2c] sm:$0xf]
      %v4638 = vld [vmem:[%s4625 + $0x30] sm:$0xf]
      %v4639 = vld [vmem:[%s4625 + $0x34] sm:$0xf]
      %v4640 = vld [vmem:[%s4625 + $0x38] sm:$0xf]
      %v4641 = vld [vmem:[%s4625 + $0x3c] sm:$0xf]
      %v4658 = vunpack.c.l.b16 %v4626
      %v4659 = vunpack.c.l.b16 %v4627
      %v4660 = vunpack.c.l.b16 %v4628
      %v4661 = vunpack.c.l.b16 %v4629
      %v4662 = vunpack.c.l.b16 %v4630
      %v4663 = vunpack.c.l.b16 %v4631
      %v4664 = vunpack.c.l.b16 %v4632
      %v4665 = vunpack.c.l.b16 %v4633
      %v4666 = vunpack.c.l.b16 %v4634
      %v4667 = vunpack.c.l.b16 %v4635
      %v4668 = vunpack.c.l.b16 %v4636
      %v4669 = vunpack.c.l.b16 %v4637
      %v4670 = vunpack.c.l.b16 %v4638
      %v4671 = vunpack.c.l.b16 %v4639
      %v4672 = vunpack.c.l.b16 %v4640
      %v4673 = vunpack.c.l.b16 %v4641
      %v4674 = vpack.c.b16 %v4659, %v4658
      %v4675 = vpack.c.b16 %v4661, %v4660
      %v4676 = vpack.c.b16 %v4663, %v4662
      %v4677 = vpack.c.b16 %v4665, %v4664
      %v4678 = vpack.c.b16 %v4667, %v4666
      %v4679 = vpack.c.b16 %v4669, %v4668
      %v4680 = vpack.c.b16 %v4671, %v4670
      %v4681 = vpack.c.b16 %v4673, %v4672
      %4690 = vmatprep.subr.bf16.mxu0 0
      %4691 = vmatpush1.bf16.msra.mxu0 %v4674
      %4692 = vmatprep.subr.bf16.mxu0 0
      %4693 = vmatpush1.bf16.msra.mxu0 %v4675
      %4694 = vmatprep.subr.bf16.mxu0 0
      %4695 = vmatpush1.bf16.msra.mxu0 %v4676
      %4696 = vmatprep.subr.bf16.mxu0 0
      %4697 = vmatpush1.bf16.msra.mxu0 %v4677
      %4698 = vmatprep.subr.bf16.mxu0 0
      %4699 = vmatpush1.bf16.msra.mxu0 %v4678
      %4700 = vmatprep.subr.bf16.mxu0 0
      %4701 = vmatpush1.bf16.msra.mxu0 %v4679
      %4702 = vmatprep.subr.bf16.mxu0 0
      %4703 = vmatpush1.bf16.msra.mxu0 %v4680
      %4704 = vmatprep.subr.bf16.mxu0 0
      %4705 = vmatpush1.bf16.msra.mxu0 %v4681
      %4706 = vmatprep.subr.bf16.mxu0 0
      %4707 = vmatpush1.bf16.msra.mxu0 0
      %4708 = vmatprep.subr.bf16.mxu0 0
      %4709 = vmatpush1.bf16.msra.mxu0 0
      %4710 = vmatprep.subr.bf16.mxu0 0
      %4711 = vmatpush1.bf16.msra.mxu0 0
      %4712 = vmatprep.subr.bf16.mxu0 0
      %4713 = vmatpush1.bf16.msra.mxu0 0
      %4714 = vmatprep.subr.bf16.mxu0 0
      %4715 = vmatpush1.bf16.msra.mxu0 0
      %4716 = vmatprep.subr.bf16.mxu0 0
      %4717 = vmatpush1.bf16.msra.mxu0 0
      %4718 = vmatprep.subr.bf16.mxu0 0
      %4719 = vmatpush1.bf16.msra.mxu0 0
      %4720 = vmatprep.subr.bf16.mxu0 0
      %4721 = vmatpush1.bf16.msra.mxu0 0
      %4722 = vmatprep.mubr.bf16.mxu0 0
      %4723 = vmatmul.mubr.bf16.gmra.mrb[0].mxu0 %v4617
      %v4724 = vpop.f32.mrb[0].mxu0
      %v4725 = vadd.f32 0.0, %v4724
      %v4726 = vpop.f32.mrb[0].mxu0
      %v4727 = vpop.f32.mrb[0].mxu0
      %v4728 = vadd.f32 0.0, %v4727
      %v4729 = vpop.f32.mrb[0].mxu0
      %4730 = vmatprep.mubr.bf16.mxu0 0
      %4731 = vmatmul.mubr.bf16.gmra.mrb[0].mxu0 %v4618
      %v4732 = vpop.f32.mrb[0].mxu0
      %v4733 = vadd.f32 0.0, %v4732
      %v4734 = vpop.f32.mrb[0].mxu0
      %v4735 = vpop.f32.mrb[0].mxu0
      %v4736 = vadd.f32 0.0, %v4735
      %v4737 = vpop.f32.mrb[0].mxu0
      %4738 = vmatprep.mubr.bf16.mxu0 0
      %4739 = vmatmul.mubr.bf16.gmra.mrb[0].mxu0 %v4619
      %v4740 = vpop.f32.mrb[0].mxu0
      %v4741 = vadd.f32 0.0, %v4740
      %v4742 = vpop.f32.mrb[0].mxu0
      %v4743 = vpop.f32.mrb[0].mxu0
      %v4744 = vadd.f32 0.0, %v4743
      %v4745 = vpop.f32.mrb[0].mxu0
      %4746 = vmatprep.mubr.bf16.mxu0 0
      %4747 = vmatmul.mubr.bf16.gmra.mrb[0].mxu0 %v4620
      %v4748 = vpop.f32.mrb[0].mxu0
      %v4749 = vadd.f32 0.0, %v4748
      %v4750 = vpop.f32.mrb[0].mxu0
      %v4751 = vpop.f32.mrb[0].mxu0
      %v4752 = vadd.f32 0.0, %v4751
      %v4753 = vpop.f32.mrb[0].mxu0
      %4754 = vmatprep.mubr.bf16.mxu0 0
      %4755 = vmatmul.mubr.bf16.gmra.mrb[0].mxu0 %v4621
      %v4756 = vpop.f32.mrb[0].mxu0
      %v4757 = vadd.f32 0.0, %v4756
      %v4758 = vpop.f32.mrb[0].mxu0
      %v4759 = vpop.f32.mrb[0].mxu0
      %v4760 = vadd.f32 0.0, %v4759
      %v4761 = vpop.f32.mrb[0].mxu0
      %4762 = vmatprep.mubr.bf16.mxu0 0
      %4763 = vmatmul.mubr.bf16.gmra.mrb[0].mxu0 %v4622
      %v4764 = vpop.f32.mrb[0].mxu0
      %v4765 = vadd.f32 0.0, %v4764
      %v4766 = vpop.f32.mrb[0].mxu0
      %v4767 = vpop.f32.mrb[0].mxu0
      %v4768 = vadd.f32 0.0, %v4767
      %v4769 = vpop.f32.mrb[0].mxu0
      %4770 = vmatprep.mubr.bf16.mxu0 0
      %4771 = vmatmul.mubr.bf16.gmra.mrb[0].mxu0 %v4623
      %v4772 = vpop.f32.mrb[0].mxu0
      %v4773 = vadd.f32 0.0, %v4772
      %v4774 = vpop.f32.mrb[0].mxu0
      %v4775 = vpop.f32.mrb[0].mxu0
      %v4776 = vadd.f32 0.0, %v4775
      %v4777 = vpop.f32.mrb[0].mxu0
      %4778 = vmatprep.mubr.bf16.mxu0 0
      %4779 = vmatmul.mubr.bf16.gmra.mrb[0].mxu0 %v4624
      %v4780 = vpop.f32.mrb[0].mxu0
      %v4781 = vadd.f32 0.0, %v4780
      %v4782 = vpop.f32.mrb[0].mxu0
      %v4783 = vpop.f32.mrb[0].mxu0
      %v4784 = vadd.f32 0.0, %v4783
      %v4785 = vpop.f32.mrb[0].mxu0
      %4786 = vdwg.mxu0
      %v4787 = vld [vmem:[#allocation5] sm:$0xff]
      %v4788 = vld [vmem:[#allocation5 + $0x8] sm:$0xff]
      %v4789 = vld [vmem:[#allocation5 + $0x10] sm:$0xff]
      %v4790 = vld [vmem:[#allocation5 + $0x18] sm:$0xff]
      %v4791 = vld [vmem:[#allocation5 + $0x20] sm:$0xff]
      %v4792 = vld [vmem:[#allocation5 + $0x28] sm:$0xff]
      %v4793 = vld [vmem:[#allocation5 + $0x30] sm:$0xff]
      %v4794 = vld [vmem:[#allocation5 + $0x38] sm:$0xff]
      %v4795 = vld [vmem:[#allocation5 + $0x40] sm:$0xff]
      %v4796 = vld [vmem:[#allocation5 + $0x48] sm:$0xff]
      %v4797 = vld [vmem:[#allocation5 + $0x50] sm:$0xff]
      %v4798 = vld [vmem:[#allocation5 + $0x58] sm:$0xff]
      %v4799 = vld [vmem:[#allocation5 + $0x60] sm:$0xff]
      %v4800 = vld [vmem:[#allocation5 + $0x68] sm:$0xff]
      %v4801 = vld [vmem:[#allocation5 + $0x70] sm:$0xff]
      %v4802 = vld [vmem:[#allocation5 + $0x78] sm:$0xff]
      %v4803 = vadd.f32 %v4787, %v4725
      %v4804 = vadd.f32 %v4788, %v4728
      %v4805 = vadd.f32 %v4789, %v4733
      %v4806 = vadd.f32 %v4790, %v4736
      %v4807 = vadd.f32 %v4791, %v4741
      %v4808 = vadd.f32 %v4792, %v4744
      %v4809 = vadd.f32 %v4793, %v4749
      %v4810 = vadd.f32 %v4794, %v4752
      %v4811 = vadd.f32 %v4795, %v4757
      %v4812 = vadd.f32 %v4796, %v4760
      %v4813 = vadd.f32 %v4797, %v4765
      %v4814 = vadd.f32 %v4798, %v4768
      %v4815 = vadd.f32 %v4799, %v4773
      %v4816 = vadd.f32 %v4800, %v4776
      %v4817 = vadd.f32 %v4801, %v4781
      %v4818 = vadd.f32 %v4802, %v4784
      %4819 = vst [vmem:[#allocation5] sm:$0xff] %v4803
      %4820 = vst [vmem:[#allocation5 + $0x8] sm:$0xff] %v4804
      %4821 = vst [vmem:[#allocation5 + $0x10] sm:$0xff] %v4805
      %4822 = vst [vmem:[#allocation5 + $0x18] sm:$0xff] %v4806
      %4823 = vst [vmem:[#allocation5 + $0x20] sm:$0xff] %v4807
      %4824 = vst [vmem:[#allocation5 + $0x28] sm:$0xff] %v4808
      %4825 = vst [vmem:[#allocation5 + $0x30] sm:$0xff] %v4809
      %4826 = vst [vmem:[#allocation5 + $0x38] sm:$0xff] %v4810
      %4827 = vst [vmem:[#allocation5 + $0x40] sm:$0xff] %v4811
      %4828 = vst [vmem:[#allocation5 + $0x48] sm:$0xff] %v4812
      %4829 = vst [vmem:[#allocation5 + $0x50] sm:$0xff] %v4813
      %4830 = vst [vmem:[#allocation5 + $0x58] sm:$0xff] %v4814
      %4831 = vst [vmem:[#allocation5 + $0x60] sm:$0xff] %v4815
      %4832 = vst [vmem:[#allocation5 + $0x68] sm:$0xff] %v4816
      %4833 = vst [vmem:[#allocation5 + $0x70] sm:$0xff] %v4817
      %4834 = vst [vmem:[#allocation5 + $0x78] sm:$0xff] %v4818
      %v4835 = vld [vmem:[%s4366 + $0x2] sm:$0xff]
      %v4836 = vld [vmem:[%s4366 + $0xa] sm:$0xff]
      %v4837 = vld [vmem:[%s4366 + $0x1a] sm:$0xff]
      %v4838 = vld [vmem:[%s4366 + $0x22] sm:$0xff]
      %v4839 = vld [vmem:[%s4366 + $0x32] sm:$0xff]
      %v4840 = vld [vmem:[%s4366 + $0x3a] sm:$0xff]
      %v4841 = vld [vmem:[%s4366 + $0x4a] sm:$0xff]
      %v4842 = vld [vmem:[%s4366 + $0x52] sm:$0xff]
      %v4843 = vld [vmem:[%s4366 + $0x62] sm:$0xff]
      %v4844 = vld [vmem:[%s4366 + $0x6a] sm:$0xff]
      %v4845 = vld [vmem:[%s4366 + $0x7a] sm:$0xff]
      %v4846 = vld [vmem:[%s4366 + $0x82] sm:$0xff]
      %v4847 = vld [vmem:[%s4366 + $0x92] sm:$0xff]
      %v4848 = vld [vmem:[%s4366 + $0x9a] sm:$0xff]
      %v4849 = vld [vmem:[%s4366 + $0xaa] sm:$0xff]
      %v4850 = vld [vmem:[%s4366 + $0xb2] sm:$0xff]
      %v4851 = vpack.c.bf16 %v4836, %v4835
      %v4852 = vpack.c.bf16 %v4838, %v4837
      %v4853 = vpack.c.bf16 %v4840, %v4839
      %v4854 = vpack.c.bf16 %v4842, %v4841
      %v4855 = vpack.c.bf16 %v4844, %v4843
      %v4856 = vpack.c.bf16 %v4846, %v4845
      %v4857 = vpack.c.bf16 %v4848, %v4847
      %v4858 = vpack.c.bf16 %v4850, %v4849
      %s4859 = scalar_lea.vmem %s4, 512
      %v4860 = vld [vmem:[%s4859] sm:$0xf]
      %v4861 = vld [vmem:[%s4859 + $0x4] sm:$0xf]
      %v4862 = vld [vmem:[%s4859 + $0x8] sm:$0xf]
      %v4863 = vld [vmem:[%s4859 + $0xc] sm:$0xf]
      %v4864 = vld [vmem:[%s4859 + $0x10] sm:$0xf]
      %v4865 = vld [vmem:[%s4859 + $0x14] sm:$0xf]
      %v4866 = vld [vmem:[%s4859 + $0x18] sm:$0xf]
      %v4867 = vld [vmem:[%s4859 + $0x1c] sm:$0xf]
      %v4868 = vld [vmem:[%s4859 + $0x20] sm:$0xf]
      %v4869 = vld [vmem:[%s4859 + $0x24] sm:$0xf]
      %v4870 = vld [vmem:[%s4859 + $0x28] sm:$0xf]
      %v4871 = vld [vmem:[%s4859 + $0x2c] sm:$0xf]
      %v4872 = vld [vmem:[%s4859 + $0x30] sm:$0xf]
      %v4873 = vld [vmem:[%s4859 + $0x34] sm:$0xf]
      %v4874 = vld [vmem:[%s4859 + $0x38] sm:$0xf]
      %v4875 = vld [vmem:[%s4859 + $0x3c] sm:$0xf]
      %v4892 = vunpack.c.l.b16 %v4860
      %v4893 = vunpack.c.l.b16 %v4861
      %v4894 = vunpack.c.l.b16 %v4862
      %v4895 = vunpack.c.l.b16 %v4863
      %v4896 = vunpack.c.l.b16 %v4864
      %v4897 = vunpack.c.l.b16 %v4865
      %v4898 = vunpack.c.l.b16 %v4866
      %v4899 = vunpack.c.l.b16 %v4867
      %v4900 = vunpack.c.l.b16 %v4868
      %v4901 = vunpack.c.l.b16 %v4869
      %v4902 = vunpack.c.l.b16 %v4870
      %v4903 = vunpack.c.l.b16 %v4871
      %v4904 = vunpack.c.l.b16 %v4872
      %v4905 = vunpack.c.l.b16 %v4873
      %v4906 = vunpack.c.l.b16 %v4874
      %v4907 = vunpack.c.l.b16 %v4875
      %v4908 = vpack.c.b16 %v4893, %v4892
      %v4909 = vpack.c.b16 %v4895, %v4894
      %v4910 = vpack.c.b16 %v4897, %v4896
      %v4911 = vpack.c.b16 %v4899, %v4898
      %v4912 = vpack.c.b16 %v4901, %v4900
      %v4913 = vpack.c.b16 %v4903, %v4902
      %v4914 = vpack.c.b16 %v4905, %v4904
      %v4915 = vpack.c.b16 %v4907, %v4906
      %4924 = vmatprep.subr.bf16.mxu0 0
      %4925 = vmatpush1.bf16.msra.mxu0 %v4908
      %4926 = vmatprep.subr.bf16.mxu0 0
      %4927 = vmatpush1.bf16.msra.mxu0 %v4909
      %4928 = vmatprep.subr.bf16.mxu0 0
      %4929 = vmatpush1.bf16.msra.mxu0 %v4910
      %4930 = vmatprep.subr.bf16.mxu0 0
      %4931 = vmatpush1.bf16.msra.mxu0 %v4911
      %4932 = vmatprep.subr.bf16.mxu0 0
      %4933 = vmatpush1.bf16.msra.mxu0 %v4912
      %4934 = vmatprep.subr.bf16.mxu0 0
      %4935 = vmatpush1.bf16.msra.mxu0 %v4913
      %4936 = vmatprep.subr.bf16.mxu0 0
      %4937 = vmatpush1.bf16.msra.mxu0 %v4914
      %4938 = vmatprep.subr.bf16.mxu0 0
      %4939 = vmatpush1.bf16.msra.mxu0 %v4915
      %4940 = vmatprep.subr.bf16.mxu0 0
      %4941 = vmatpush1.bf16.msra.mxu0 0
      %4942 = vmatprep.subr.bf16.mxu0 0
      %4943 = vmatpush1.bf16.msra.mxu0 0
      %4944 = vmatprep.subr.bf16.mxu0 0
      %4945 = vmatpush1.bf16.msra.mxu0 0
      %4946 = vmatprep.subr.bf16.mxu0 0
      %4947 = vmatpush1.bf16.msra.mxu0 0
      %4948 = vmatprep.subr.bf16.mxu0 0
      %4949 = vmatpush1.bf16.msra.mxu0 0
      %4950 = vmatprep.subr.bf16.mxu0 0
      %4951 = vmatpush1.bf16.msra.mxu0 0
      %4952 = vmatprep.subr.bf16.mxu0 0
      %4953 = vmatpush1.bf16.msra.mxu0 0
      %4954 = vmatprep.subr.bf16.mxu0 0
      %4955 = vmatpush1.bf16.msra.mxu0 0
      %4956 = vmatprep.mubr.bf16.mxu0 0
      %4957 = vmatmul.mubr.bf16.gmra.mrb[0].mxu0 %v4851
      %v4958 = vpop.f32.mrb[0].mxu0
      %v4959 = vadd.f32 0.0, %v4958
      %v4960 = vpop.f32.mrb[0].mxu0
      %v4961 = vpop.f32.mrb[0].mxu0
      %v4962 = vadd.f32 0.0, %v4961
      %v4963 = vpop.f32.mrb[0].mxu0
      %4964 = vmatprep.mubr.bf16.mxu0 0
      %4965 = vmatmul.mubr.bf16.gmra.mrb[0].mxu0 %v4852
      %v4966 = vpop.f32.mrb[0].mxu0
      %v4967 = vadd.f32 0.0, %v4966
      %v4968 = vpop.f32.mrb[0].mxu0
      %v4969 = vpop.f32.mrb[0].mxu0
      %v4970 = vadd.f32 0.0, %v4969
      %v4971 = vpop.f32.mrb[0].mxu0
      %4972 = vmatprep.mubr.bf16.mxu0 0
      %4973 = vmatmul.mubr.bf16.gmra.mrb[0].mxu0 %v4853
      %v4974 = vpop.f32.mrb[0].mxu0
      %v4975 = vadd.f32 0.0, %v4974
      %v4976 = vpop.f32.mrb[0].mxu0
      %v4977 = vpop.f32.mrb[0].mxu0
      %v4978 = vadd.f32 0.0, %v4977
      %v4979 = vpop.f32.mrb[0].mxu0
      %4980 = vmatprep.mubr.bf16.mxu0 0
      %4981 = vmatmul.mubr.bf16.gmra.mrb[0].mxu0 %v4854
      %v4982 = vpop.f32.mrb[0].mxu0
      %v4983 = vadd.f32 0.0, %v4982
      %v4984 = vpop.f32.mrb[0].mxu0
      %v4985 = vpop.f32.mrb[0].mxu0
      %v4986 = vadd.f32 0.0, %v4985
      %v4987 = vpop.f32.mrb[0].mxu0
      %4988 = vmatprep.mubr.bf16.mxu0 0
      %4989 = vmatmul.mubr.bf16.gmra.mrb[0].mxu0 %v4855
      %v4990 = vpop.f32.mrb[0].mxu0
      %v4991 = vadd.f32 0.0, %v4990
      %v4992 = vpop.f32.mrb[0].mxu0
      %v4993 = vpop.f32.mrb[0].mxu0
      %v4994 = vadd.f32 0.0, %v4993
      %v4995 = vpop.f32.mrb[0].mxu0
      %4996 = vmatprep.mubr.bf16.mxu0 0
      %4997 = vmatmul.mubr.bf16.gmra.mrb[0].mxu0 %v4856
      %v4998 = vpop.f32.mrb[0].mxu0
      %v4999 = vadd.f32 0.0, %v4998
      %v5000 = vpop.f32.mrb[0].mxu0
      %v5001 = vpop.f32.mrb[0].mxu0
      %v5002 = vadd.f32 0.0, %v5001
      %v5003 = vpop.f32.mrb[0].mxu0
      %5004 = vmatprep.mubr.bf16.mxu0 0
      %5005 = vmatmul.mubr.bf16.gmra.mrb[0].mxu0 %v4857
      %v5006 = vpop.f32.mrb[0].mxu0
      %v5007 = vadd.f32 0.0, %v5006
      %v5008 = vpop.f32.mrb[0].mxu0
      %v5009 = vpop.f32.mrb[0].mxu0
      %v5010 = vadd.f32 0.0, %v5009
      %v5011 = vpop.f32.mrb[0].mxu0
      %5012 = vmatprep.mubr.bf16.mxu0 0
      %5013 = vmatmul.mubr.bf16.gmra.mrb[0].mxu0 %v4858
      %v5014 = vpop.f32.mrb[0].mxu0
      %v5015 = vadd.f32 0.0, %v5014
      %v5016 = vpop.f32.mrb[0].mxu0
      %v5017 = vpop.f32.mrb[0].mxu0
      %v5018 = vadd.f32 0.0, %v5017
      %v5019 = vpop.f32.mrb[0].mxu0
      %5020 = vdwg.mxu0
      %v5021 = vld [vmem:[#allocation5] sm:$0xff]
      %v5022 = vld [vmem:[#allocation5 + $0x8] sm:$0xff]
      %v5023 = vld [vmem:[#allocation5 + $0x10] sm:$0xff]
      %v5024 = vld [vmem:[#allocation5 + $0x18] sm:$0xff]
      %v5025 = vld [vmem:[#allocation5 + $0x20] sm:$0xff]
      %v5026 = vld [vmem:[#allocation5 + $0x28] sm:$0xff]
      %v5027 = vld [vmem:[#allocation5 + $0x30] sm:$0xff]
      %v5028 = vld [vmem:[#allocation5 + $0x38] sm:$0xff]
      %v5029 = vld [vmem:[#allocation5 + $0x40] sm:$0xff]
      %v5030 = vld [vmem:[#allocation5 + $0x48] sm:$0xff]
      %v5031 = vld [vmem:[#allocation5 + $0x50] sm:$0xff]
      %v5032 = vld [vmem:[#allocation5 + $0x58] sm:$0xff]
      %v5033 = vld [vmem:[#allocation5 + $0x60] sm:$0xff]
      %v5034 = vld [vmem:[#allocation5 + $0x68] sm:$0xff]
      %v5035 = vld [vmem:[#allocation5 + $0x70] sm:$0xff]
      %v5036 = vld [vmem:[#allocation5 + $0x78] sm:$0xff]
      %v5037 = vadd.f32 %v5021, %v4959
      %v5038 = vadd.f32 %v5022, %v4962
      %v5039 = vadd.f32 %v5023, %v4967
      %v5040 = vadd.f32 %v5024, %v4970
      %v5041 = vadd.f32 %v5025, %v4975
      %v5042 = vadd.f32 %v5026, %v4978
      %v5043 = vadd.f32 %v5027, %v4983
      %v5044 = vadd.f32 %v5028, %v4986
      %v5045 = vadd.f32 %v5029, %v4991
      %v5046 = vadd.f32 %v5030, %v4994
      %v5047 = vadd.f32 %v5031, %v4999
      %v5048 = vadd.f32 %v5032, %v5002
      %v5049 = vadd.f32 %v5033, %v5007
      %v5050 = vadd.f32 %v5034, %v5010
      %v5051 = vadd.f32 %v5035, %v5015
      %v5052 = vadd.f32 %v5036, %v5018
      %5053 = vst [vmem:[#allocation5] sm:$0xff] %v5037
      %5054 = vst [vmem:[#allocation5 + $0x8] sm:$0xff] %v5038
      %5055 = vst [vmem:[#allocation5 + $0x10] sm:$0xff] %v5039
      %5056 = vst [vmem:[#allocation5 + $0x18] sm:$0xff] %v5040
      %5057 = vst [vmem:[#allocation5 + $0x20] sm:$0xff] %v5041
      %5058 = vst [vmem:[#allocation5 + $0x28] sm:$0xff] %v5042
      %5059 = vst [vmem:[#allocation5 + $0x30] sm:$0xff] %v5043
      %5060 = vst [vmem:[#allocation5 + $0x38] sm:$0xff] %v5044
      %5061 = vst [vmem:[#allocation5 + $0x40] sm:$0xff] %v5045
      %5062 = vst [vmem:[#allocation5 + $0x48] sm:$0xff] %v5046
      %5063 = vst [vmem:[#allocation5 + $0x50] sm:$0xff] %v5047
      %5064 = vst [vmem:[#allocation5 + $0x58] sm:$0xff] %v5048
      %5065 = vst [vmem:[#allocation5 + $0x60] sm:$0xff] %v5049
      %5066 = vst [vmem:[#allocation5 + $0x68] sm:$0xff] %v5050
      %5067 = vst [vmem:[#allocation5 + $0x70] sm:$0xff] %v5051
      %5068 = vst [vmem:[#allocation5 + $0x78] sm:$0xff] %v5052
      %v5069 = vld [vmem:[#allocation5] sm:$0xff]
      %v5070 = vld [vmem:[#allocation5 + $0x8] sm:$0xff]
      %v5071 = vld [vmem:[#allocation5 + $0x10] sm:$0xff]
      %v5072 = vld [vmem:[#allocation5 + $0x18] sm:$0xff]
      %v5073 = vld [vmem:[#allocation5 + $0x20] sm:$0xff]
      %v5074 = vld [vmem:[#allocation5 + $0x28] sm:$0xff]
      %v5075 = vld [vmem:[#allocation5 + $0x30] sm:$0xff]
      %v5076 = vld [vmem:[#allocation5 + $0x38] sm:$0xff]
      %v5077 = vld [vmem:[#allocation5 + $0x40] sm:$0xff]
      %v5078 = vld [vmem:[#allocation5 + $0x48] sm:$0xff]
      %v5079 = vld [vmem:[#allocation5 + $0x50] sm:$0xff]
      %v5080 = vld [vmem:[#allocation5 + $0x58] sm:$0xff]
      %v5081 = vld [vmem:[#allocation5 + $0x60] sm:$0xff]
      %v5082 = vld [vmem:[#allocation5 + $0x68] sm:$0xff]
      %v5083 = vld [vmem:[#allocation5 + $0x70] sm:$0xff]
      %v5084 = vld [vmem:[#allocation5 + $0x78] sm:$0xff]
      %v5085 = vld [vmem:[%s5] sm:$0x1]
      %v5087 = vlaneseq
      %v5088 = vshrl.u32 %v5087, 7
      %v5089 = vsub.s32 0, %v5088
      %v5090 = vrot.slane %v5085, %v5089
      %v5092 = vmul.f32 %v5069, %v5090
      %v5093 = vmul.f32 %v5070, %v5090
      %v5094 = vmul.f32 %v5071, %v5090
      %v5095 = vmul.f32 %v5072, %v5090
      %v5096 = vmul.f32 %v5073, %v5090
      %v5097 = vmul.f32 %v5074, %v5090
      %v5098 = vmul.f32 %v5075, %v5090
      %v5099 = vmul.f32 %v5076, %v5090
      %v5100 = vmul.f32 %v5077, %v5090
      %v5101 = vmul.f32 %v5078, %v5090
      %v5102 = vmul.f32 %v5079, %v5090
      %v5103 = vmul.f32 %v5080, %v5090
      %v5104 = vmul.f32 %v5081, %v5090
      %v5105 = vmul.f32 %v5082, %v5090
      %v5106 = vmul.f32 %v5083, %v5090
      %v5107 = vmul.f32 %v5084, %v5090
      %v5108 = vld [vmem:[%s6] sm:$0x1]
      %v5110 = vlaneseq
      %v5111 = vshrl.u32 %v5110, 7
      %v5112 = vsub.s32 0, %v5111
      %v5113 = vrot.slane %v5108, %v5112
      %v5115 = vadd.f32 %v5092, %v5113
      %v5116 = vadd.f32 %v5093, %v5113
      %v5117 = vadd.f32 %v5094, %v5113
      %v5118 = vadd.f32 %v5095, %v5113
      %v5119 = vadd.f32 %v5096, %v5113
      %v5120 = vadd.f32 %v5097, %v5113
      %v5121 = vadd.f32 %v5098, %v5113
      %v5122 = vadd.f32 %v5099, %v5113
      %v5123 = vadd.f32 %v5100, %v5113
      %v5124 = vadd.f32 %v5101, %v5113
      %v5125 = vadd.f32 %v5102, %v5113
      %v5126 = vadd.f32 %v5103, %v5113
      %v5127 = vadd.f32 %v5104, %v5113
      %v5128 = vadd.f32 %v5105, %v5113
      %v5129 = vadd.f32 %v5106, %v5113
      %v5130 = vadd.f32 %v5107, %v5113
      %v5131 = vld [vmem:[%s307] sm:$0xff]
      %v5132 = vld [vmem:[%s307 + $0x8] sm:$0xff]
      %v5133 = vld [vmem:[%s307 + $0x10] sm:$0xff]
      %v5134 = vld [vmem:[%s307 + $0x18] sm:$0xff]
      %v5135 = vld [vmem:[%s307 + $0x20] sm:$0xff]
      %v5136 = vld [vmem:[%s307 + $0x28] sm:$0xff]
      %v5137 = vld [vmem:[%s307 + $0x30] sm:$0xff]
      %v5138 = vld [vmem:[%s307 + $0x38] sm:$0xff]
      %v5139 = vld [vmem:[%s307 + $0x40] sm:$0xff]
      %v5140 = vld [vmem:[%s307 + $0x48] sm:$0xff]
      %v5141 = vld [vmem:[%s307 + $0x50] sm:$0xff]
      %v5142 = vld [vmem:[%s307 + $0x58] sm:$0xff]
      %v5143 = vld [vmem:[%s307 + $0x60] sm:$0xff]
      %v5144 = vld [vmem:[%s307 + $0x68] sm:$0xff]
      %v5145 = vld [vmem:[%s307 + $0x70] sm:$0xff]
      %v5146 = vld [vmem:[%s307 + $0x78] sm:$0xff]
      %v5147 = vadd.f32 %v5115, %v5131
      %v5148 = vadd.f32 %v5116, %v5132
      %v5149 = vadd.f32 %v5117, %v5133
      %v5150 = vadd.f32 %v5118, %v5134
      %v5151 = vadd.f32 %v5119, %v5135
      %v5152 = vadd.f32 %v5120, %v5136
      %v5153 = vadd.f32 %v5121, %v5137
      %v5154 = vadd.f32 %v5122, %v5138
      %v5155 = vadd.f32 %v5123, %v5139
      %v5156 = vadd.f32 %v5124, %v5140
      %v5157 = vadd.f32 %v5125, %v5141
      %v5158 = vadd.f32 %v5126, %v5142
      %v5159 = vadd.f32 %v5127, %v5143
      %v5160 = vadd.f32 %v5128, %v5144
      %v5161 = vadd.f32 %v5129, %v5145
      %v5162 = vadd.f32 %v5130, %v5146
      %5163 = vst [vmem:[%s302] sm:$0xff] %v5147
      %5164 = vst [vmem:[%s302 + $0x8] sm:$0xff] %v5148
      %5165 = vst [vmem:[%s302 + $0x10] sm:$0xff] %v5149
      %5166 = vst [vmem:[%s302 + $0x18] sm:$0xff] %v5150
      %5167 = vst [vmem:[%s302 + $0x20] sm:$0xff] %v5151
      %5168 = vst [vmem:[%s302 + $0x28] sm:$0xff] %v5152
      %5169 = vst [vmem:[%s302 + $0x30] sm:$0xff] %v5153
      %5170 = vst [vmem:[%s302 + $0x38] sm:$0xff] %v5154
      %5171 = vst [vmem:[%s302 + $0x40] sm:$0xff] %v5155
      %5172 = vst [vmem:[%s302 + $0x48] sm:$0xff] %v5156
      %5173 = vst [vmem:[%s302 + $0x50] sm:$0xff] %v5157
      %5174 = vst [vmem:[%s302 + $0x58] sm:$0xff] %v5158
      %5175 = vst [vmem:[%s302 + $0x60] sm:$0xff] %v5159
      %5176 = vst [vmem:[%s302 + $0x68] sm:$0xff] %v5160
      %5177 = vst [vmem:[%s302 + $0x70] sm:$0xff] %v5161
      %5178 = vst [vmem:[%s302 + $0x78] sm:$0xff] %v5162
      %s5179 = smul.u32 8, %s23
      %p5180 = scmp.lt.s32.totalorder %s22, 1
      %s5181 = scalar_select %p5180, %s22, 1
      %p5182 = scmp.lt.s32.totalorder %s5179, 15
      %s5183 = scalar_select %p5182, %s5179, 15
      %s5184 = smul.addr %s5183, 2
      %s5185 = smul.addr %s5181, 32
      %s5186 = sadd.s32 %s5184, %s5185
      %s5187 = smul.addr %s5186, 8
      %s5188 = scalar_lea.vmem %s7, %s5187
      // Predicated region
      $region73: #{resnet_block_forward.1} parent=47 // pred_check
        %p5189 = pneg %p202
      $region74: #{resnet_block_forward.1} parent=47 // pred_check_branch
        %5191 = sbr.rel (%p5189) target = $region76
      $region75: #{resnet_block_forward.1} parent=47 // pred_region
        %s5192 = smul.u32 8, %s23
      $region76: #{resnet_block_forward.1} parent=47 // pred_fallthru
        _
    $region48: #{resnet_block_forward.1} parent=5 // pred_fallthru
      _
    %p5193 = scmp.le.s32.totalorder 2, %s13
    // Predicated region
    $region77: #{resnet_block_forward.1} parent=5 // pred_check
      %p5194 = pneg %p5193
    $region78: #{resnet_block_forward.1} parent=5 // pred_check_branch
      %5196 = sbr.rel (%p5194) target = $region80
    $region79: #{resnet_block_forward.1} parent=5 // pred_region
      %s5197 = ssub.s32 %s13, 2
      // Predicated region
      $region81: #{resnet_block_forward.1} parent=79 // pred_check
        %p5198 = pneg %p208
      $region82: #{resnet_block_forward.1} parent=79 // pred_check_branch
        %5200 = sbr.rel (%p5198) target = $region84
      $region83: #{resnet_block_forward.1} parent=79 // pred_region
        %s5201 = smul.u32 8, %s25
        %p5202 = scmp.lt.s32.totalorder %s24, 1
        %s5203 = scalar_select %p5202, %s24, 1
        %p5204 = scmp.lt.s32.totalorder %s5201, 15
        %s5205 = scalar_select %p5204, %s5201, 15
        %s5206 = smul.addr %s5205, 2
        %s5207 = smul.addr %s5203, 32
        %s5208 = sadd.s32 %s5206, %s5207
        %s5209 = smul.addr %s5208, 8
        %s5210 = scalar_lea.vmem %s7, %s5209
      $region84: #{resnet_block_forward.1} parent=79 // pred_fallthru
        _
    $region80: #{resnet_block_forward.1} parent=5 // pred_fallthru
      _
  $region6: #{resnet_block_forward.1} parent=0 // loop_footer
    %s17 = sadd.s32 1, %s13
  $region7: #{resnet_block_forward.1} parent=0 // loop_footer_branch
    %12 = sbr.rel target = $region3
  $region8: #{resnet_block_forward.1} parent=0 // loop_exit
    _

</llo_original>
